<compile_context>
chip_gen: v7x
topology: tpu7x:2x2x1
jax: 0.10.0
libtpu: 0.0.40
codegen_flags: <defaults>
</compile_context>

<pallas_src>
import functools

import numpy as np
import jax
import jax.numpy as jnp
from jax import lax
from jax.experimental import pallas as pl
from jax.experimental.pallas import tpu as pltpu

BN_EPS = 1e-5
CONV_K = 9           # CBR conv kernel
CONV_PAD = 4
UP_K = 8             # ConvTranspose1d kernel
UP_TAPS = 5          # polyphase im2col taps (4 used per phase + 1 zero block)
UP_PAD = 2

CBR_NAMES = [
    "enc1_1", "enc1_2", "enc1_3",
    "enc2_1", "enc2_2",
    "enc3_1", "enc3_2",
    "enc4_1", "enc4_2",
    "dec3_1", "dec3_2",
    "dec2_1", "dec2_2",
    "dec1_1", "dec1_2", "dec1_3", "dec1_4",
]
UP_NAMES = ["up3", "up2", "up1"]


# --------------------------- host-side weight packing ------------------------

def _pack_cbr(p):
    """Conv1d(bias=False) + folded eval-mode BatchNorm1d -> (W_flat, scale, shift)."""
    w = p["w"]                                        # (Cout, Cin, K)
    cout, cin, k = w.shape
    # W_flat[co, k*Cin + ci] = w[co, ci, k]  (matches im2col row order)
    w_flat = jnp.transpose(w, (0, 2, 1)).reshape(cout, k * cin).astype(jnp.bfloat16)
    scale = (p["gamma"] / jnp.sqrt(p["var"] + BN_EPS)).astype(jnp.float32)
    shift = (p["beta"] - p["mean"] * scale).astype(jnp.float32)
    return w_flat, scale[:, None], shift[:, None]


def _pack_up(p):
    """ConvTranspose1d(k=8,s=2,p=3,bias=True) -> polyphase stacked weights.

    y[:, 2m]   = sum_q W_even[:, q*Cin+i] * x[i, m+q-2]   (q = 0..3)
    y[:, 2m+1] = sum_q W_odd [:, q*Cin+i] * x[i, m+q-2]   (q = 1..4)
    Both phases are stacked on the output-row axis so one matmul does both.
    """
    w = p["w"]                                        # (Cin, Cout, 8) torch layout
    cin, cout, _ = w.shape
    wt = jnp.transpose(w, (1, 0, 2))                  # (Cout, Cin, 8)
    zeros = jnp.zeros_like(wt[:, :, 0])
    w_even = jnp.stack([wt[:, :, 7], wt[:, :, 5], wt[:, :, 3], wt[:, :, 1], zeros],
                       axis=1)                        # (Cout, 5, Cin)
    w_odd = jnp.stack([zeros, wt[:, :, 6], wt[:, :, 4], wt[:, :, 2], wt[:, :, 0]],
                      axis=1)
    w_stack = jnp.concatenate([w_even.reshape(cout, UP_TAPS * cin),
                               w_odd.reshape(cout, UP_TAPS * cin)], axis=0)
    b_stack = jnp.concatenate([p["b"], p["b"]])[:, None].astype(jnp.float32)
    return w_stack.astype(jnp.bfloat16), b_stack


def _pool_interleave_consts(L):
    """0/1 selection matrices for maxpool (even/odd pick) and upsample interleave."""
    i = np.arange(L)[:, None]
    j = np.arange(L // 2)[None, :]
    se = (i == 2 * j).astype(np.float32)              # (L, L/2)  pick even lanes
    so = (i == 2 * j + 1).astype(np.float32)          # (L, L/2)  pick odd lanes
    ee = np.ascontiguousarray(se.T)                   # (L/2, L)  scatter to even lanes
    eo = np.ascontiguousarray(so.T)
    cast = lambda a: jnp.asarray(a, jnp.bfloat16)
    return cast(se), cast(so), cast(ee), cast(eo)


def pack_params(P, L):
    """Flatten all layer parameters (and pooling/interleave constants) into a tuple."""
    flat = list(_pool_interleave_consts(L))
    for name in CBR_NAMES:
        flat.extend(_pack_cbr(P[name]))
    for name in UP_NAMES:
        flat.extend(_pack_up(P[name]))
    return tuple(flat)


# ------------------------------ fused Pallas kernel --------------------------

def unet_forward_packed(x, packed):
    B, cin0, L = x.shape
    assert cin0 == 1, "Unet_1D expects a single input channel"
    assert L % 8 == 0, "3 pooling levels require L % 8 == 0"

    n_cbr = len(CBR_NAMES)
    cbr_w = packed[4:4 + 3 * n_cbr:3]
    up_w = packed[4 + 3 * n_cbr::2]
    class_n = cbr_w[-1].shape[0]
    max_cin = max(max(w.shape[1] // CONV_K for w in cbr_w),
                  max(w.shape[1] // UP_TAPS for w in up_w))
    max_col = max(max(w.shape[1] for w in cbr_w), max(w.shape[1] for w in up_w))

    def kernel(*refs):
        x_ref = refs[0]
        se_ref, so_ref, ee_ref, eo_ref = refs[1:5]
        pos = 5
        wref = {}
        for name in CBR_NAMES:
            wref[name] = refs[pos:pos + 3]
            pos += 3
        for name in UP_NAMES:
            wref[name] = refs[pos:pos + 2]
            pos += 2
        o_ref = refs[pos]
        pad_ref = refs[pos + 1]       # (max_cin, L + 2*CONV_PAD) bf16 scratch
        col_ref = refs[pos + 2]       # (max_col, L)              bf16 scratch

        def im2col(branches, taps, pad):
            """Stack branches on channel rows (implicit concat), zero-pad along L
            inside VMEM scratch, and lay out the (taps*Cin, L) im2col matrix."""
            lb = branches[0].shape[-1]
            lp = lb + 2 * pad
            r = 0
            for xb in branches:
                c = xb.shape[0]
                pad_ref[r:r + c, 0:lp] = jnp.zeros((c, lp), pad_ref.dtype)
                pad_ref[r:r + c, pad:pad + lb] = xb.astype(pad_ref.dtype)
                r += c
            for k in range(taps):
                col_ref[k * r:(k + 1) * r, 0:lb] = pad_ref[0:r, k:k + lb]
            return col_ref[0:taps * r, 0:lb]

        def cbr(branches, name):
            w_ref, sc_ref, sh_ref = wref[name]
            xcol = im2col(branches, CONV_K, CONV_PAD)
            y = jnp.dot(w_ref[...], xcol, preferred_element_type=jnp.float32)
            y = y * sc_ref[...] + sh_ref[...]          # f32 epilogue (BN folded)
            return jnp.maximum(y, 0.0)

        def upsample(xb, name):
            w_ref, b_ref = wref[name]
            cout = w_ref.shape[0] // 2
            lb = xb.shape[-1]
            xcol = im2col([xb], UP_TAPS, UP_PAD)
            ys = jnp.dot(w_ref[...], xcol, preferred_element_type=jnp.float32)
            ys = ys + b_ref[...]
            y_even = ys[0:cout, :].astype(jnp.bfloat16)
            y_odd = ys[cout:2 * cout, :].astype(jnp.bfloat16)
            ee = ee_ref[0:lb, 0:2 * lb]
            eo = eo_ref[0:lb, 0:2 * lb]
            # interleave even/odd phases onto the 2*lb output lanes
            return (jnp.dot(y_even, ee, preferred_element_type=jnp.float32)
                    + jnp.dot(y_odd, eo, preferred_element_type=jnp.float32))

        def maxpool2(y):
            lb = y.shape[-1]
            yb = y.astype(jnp.bfloat16)
            se = se_ref[0:lb, 0:lb // 2]
            so = so_ref[0:lb, 0:lb // 2]
            return jnp.maximum(
                jnp.dot(yb, se, preferred_element_type=jnp.float32),
                jnp.dot(yb, so, preferred_element_type=jnp.float32))

        x0 = x_ref[0]                                  # (1, L) f32
        enc1 = cbr([x0], "enc1_1")
        enc1 = cbr([enc1], "enc1_2")
        enc1 = cbr([enc1], "enc1_3")
        enc2 = cbr([maxpool2(enc1)], "enc2_1")
        enc2 = cbr([enc2], "enc2_2")
        enc3 = cbr([maxpool2(enc2)], "enc3_1")
        enc3 = cbr([enc3], "enc3_2")
        enc4 = cbr([maxpool2(enc3)], "enc4_1")
        enc4 = cbr([enc4], "enc4_2")
        dec3 = upsample(enc4, "up3")
        dec3 = cbr([enc3, dec3], "dec3_1")             # implicit cat([enc3, dec3])
        dec3 = cbr([dec3], "dec3_2")
        dec2 = upsample(dec3, "up2")
        dec2 = cbr([enc2, dec2], "dec2_1")
        dec2 = cbr([dec2], "dec2_2")
        dec1 = upsample(dec2, "up1")
        dec1 = cbr([enc1, dec1], "dec1_1")
        dec1 = cbr([dec1], "dec1_2")
        dec1 = cbr([dec1], "dec1_3")
        out = cbr([dec1], "dec1_4")
        o_ref[0] = out.astype(o_ref.dtype)

    weight_specs = [pl.BlockSpec(a.shape, lambda b: (0, 0)) for a in packed]
    in_specs = [pl.BlockSpec((1, 1, L), lambda b: (b, 0, 0))] + weight_specs
    out_specs = pl.BlockSpec((1, class_n, L), lambda b: (b, 0, 0))
    scratch_shapes = [
        pltpu.VMEM((max_cin, L + 2 * CONV_PAD), jnp.bfloat16),
        pltpu.VMEM((max_col, L), jnp.bfloat16),
    ]
    return pl.pallas_call(
        kernel,
        out_shape=jax.ShapeDtypeStruct((B, class_n, L), jnp.float32),
        grid=(B,),
        in_specs=in_specs,
        out_specs=out_specs,
        scratch_shapes=scratch_shapes,
        compiler_params=pltpu.CompilerParams(dimension_semantics=("parallel",)),
    )(x, *packed)


def unet_forward(x, P):
    return unet_forward_packed(x, pack_params(P, x.shape[2]))


# ------------------------------ pure-JAX references --------------------------

def _ref_conv(x, w_oik, pad, lhs_dilation=1, bf16=False):
    if bf16:
        x = x.astype(jnp.bfloat16)
        w_oik = w_oik.astype(jnp.bfloat16)
        precision = None
    else:
        precision = lax.Precision.HIGHEST
    return lax.conv_general_dilated(
        x, w_oik, window_strides=(1,), padding=[(pad, pad)],
        lhs_dilation=(lhs_dilation,),
        dimension_numbers=("NCH", "OIH", "NCH"),
        preferred_element_type=jnp.float32,
        precision=precision)


def ref_cbr(x, p, bf16=False):
    # TODO(synk): BatchNorm1d is eval-mode only (running stats folded); training-mode
    # batch statistics are not computed.
    y = _ref_conv(x, p["w"], pad=CONV_PAD, bf16=bf16)
    scale = p["gamma"] / jnp.sqrt(p["var"] + BN_EPS)
    shift = p["beta"] - p["mean"] * scale
    return jnp.maximum(y * scale[None, :, None] + shift[None, :, None], 0.0)


def ref_conv_transpose1d(x, p, stride=2, pad=3, bf16=False):
    w = p["w"]
    K = w.shape[2]
    w_conv = jnp.flip(jnp.transpose(w, (1, 0, 2)), axis=2)
    y = _ref_conv(x, w_conv, pad=K - 1 - pad, lhs_dilation=stride, bf16=bf16)
    return y + p["b"][None, :, None]


def ref_maxpool1d(x):
    return jnp.maximum(x[:, :, 0::2], x[:, :, 1::2])


def ref_forward(x, P, bf16=False):
    c = functools.partial(ref_cbr, bf16=bf16)
    u = functools.partial(ref_conv_transpose1d, bf16=bf16)
    enc1 = c(x, P["enc1_1"]); enc1 = c(enc1, P["enc1_2"]); enc1 = c(enc1, P["enc1_3"])
    enc2 = ref_maxpool1d(enc1)
    enc2 = c(enc2, P["enc2_1"]); enc2 = c(enc2, P["enc2_2"])
    enc3 = ref_maxpool1d(enc2)
    enc3 = c(enc3, P["enc3_1"]); enc3 = c(enc3, P["enc3_2"])
    enc4 = ref_maxpool1d(enc3)
    enc4 = c(enc4, P["enc4_1"]); enc4 = c(enc4, P["enc4_2"])
    dec3 = u(enc4, P["up3"])
    dec3 = c(jnp.concatenate([enc3, dec3], axis=1), P["dec3_1"])
    dec3 = c(dec3, P["dec3_2"])
    dec2 = u(dec3, P["up2"])
    dec2 = c(jnp.concatenate([enc2, dec2], axis=1), P["dec2_1"])
    dec2 = c(dec2, P["dec2_2"])
    dec1 = u(dec2, P["up1"])
    dec1 = c(jnp.concatenate([enc1, dec1], axis=1), P["dec1_1"])
    dec1 = c(dec1, P["dec1_2"])
    dec1 = c(dec1, P["dec1_3"])
    return c(dec1, P["dec1_4"])


# --------------------------------- param init ---------------------------------

def _init_cbr(key, cin, cout, K=CONV_K):
    kw, kg, kb, km, kv = jax.random.split(key, 5)
    return dict(
        w=jax.random.normal(kw, (cout, cin, K), jnp.float32) / np.sqrt(cin * K),
        gamma=1.0 + 0.1 * jax.random.normal(kg, (cout,), jnp.float32),
        beta=0.1 * jax.random.normal(kb, (cout,), jnp.float32),
        mean=0.1 * jax.random.normal(km, (cout,), jnp.float32),
        var=1.0 + 0.1 * jnp.abs(jax.random.normal(kv, (cout,), jnp.float32)),
    )


def _init_upsample(key, ch, K=UP_K):
    kw, kb = jax.random.split(key)
    return dict(
        w=jax.random.normal(kw, (ch, ch, K), jnp.float32) / np.sqrt(ch * K),
        b=0.1 * jax.random.normal(kb, (ch,), jnp.float32),
    )


def init_params(key, layer_n, class_n):
    n = layer_n
    cbr_cfg = [
        ("enc1_1", 1, n), ("enc1_2", n, n), ("enc1_3", n, n),
        ("enc2_1", n, 2 * n), ("enc2_2", 2 * n, 2 * n),
        ("enc3_1", 2 * n, 4 * n), ("enc3_2", 4 * n, 4 * n),
        ("enc4_1", 4 * n, 8 * n), ("enc4_2", 8 * n, 8 * n),
        ("dec3_1", 4 * n + 8 * n, 4 * n), ("dec3_2", 4 * n, 4 * n),
        ("dec2_1", 2 * n + 4 * n, 2 * n), ("dec2_2", 2 * n, 2 * n),
        ("dec1_1", n + 2 * n, n), ("dec1_2", n, n),
        ("dec1_3", n, class_n), ("dec1_4", class_n, class_n),
    ]
    up_cfg = [("up3", 8 * n), ("up2", 4 * n), ("up1", 2 * n)]
    keys = jax.random.split(key, len(cbr_cfg) + len(up_cfg))
    P = {}
    for (name, cin, cout), k in zip(cbr_cfg, keys[:len(cbr_cfg)]):
        P[name] = _init_cbr(k, cin, cout)
    for (name, ch), k in zip(up_cfg, keys[len(cbr_cfg):]):
        P[name] = _init_upsample(k, ch)
    return P


# ------------------------------------ main ------------------------------------

if __name__ == "__main__":
    layer_n, class_n = 4, 3
    B, L = 2, 16                          # L must be divisible by 8 (3 pooling levels)

    root = jax.random.PRNGKey(0)
    kx, kp = jax.random.split(root)
    x = jax.random.normal(kx, (B, 1, L), jnp.float32)
    params = init_params(kp, layer_n, class_n)

    packed = pack_params(params, L)       # one-time host-side weight packing
    fwd = jax.jit(unet_forward_packed)    # runtime graph = exactly one pallas_call
    out = jax.block_until_ready(fwd(x, packed))
    assert out.shape == (B, class_n, L), out.shape

    # 1) Strong structural check: reference using the same numerics
    #    (bf16 matmul inputs, f32 accumulation) must match tightly.
    ref_matched = ref_forward(x, params, bf16=True)
    if not bool(jnp.allclose(out, ref_matched, rtol=1e-2, atol=1e-2)):
        raise AssertionError(
            "Pallas U-Net mismatch vs bf16-matched reference; max abs diff = "
            f"{float(jnp.max(jnp.abs(out - ref_matched)))}")

    # 2) Sanity check vs the full-f32 (HIGHEST) reference: bf16 MXU inputs are the
    #    intended numerics, so the tolerance is loosened accordingly.
    ref_f32 = ref_forward(x, params, bf16=False)
    if not bool(jnp.allclose(out, ref_f32, rtol=1e-1, atol=1e-1)):
        raise AssertionError(
            "Pallas U-Net too far from f32 reference; max abs diff = "
            f"{float(jnp.max(jnp.abs(out - ref_f32)))}")

    print("KERNEL_OK")
</pallas_src>

<mosaic_0001>
module attributes {stable_mosaic.version = 11 : i64} {
  func.func @kernel(%arg0: i32, %arg1: memref<1x1x16xf32, #tpu.memory_space<vmem>>, %arg2: memref<16x8xbf16, #tpu.memory_space<vmem>>, %arg3: memref<16x8xbf16, #tpu.memory_space<vmem>>, %arg4: memref<8x16xbf16, #tpu.memory_space<vmem>>, %arg5: memref<8x16xbf16, #tpu.memory_space<vmem>>, %arg6: memref<4x9xbf16, #tpu.memory_space<vmem>>, %arg7: memref<4x1xf32, #tpu.memory_space<vmem>>, %arg8: memref<4x1xf32, #tpu.memory_space<vmem>>, %arg9: memref<4x36xbf16, #tpu.memory_space<vmem>>, %arg10: memref<4x1xf32, #tpu.memory_space<vmem>>, %arg11: memref<4x1xf32, #tpu.memory_space<vmem>>, %arg12: memref<4x36xbf16, #tpu.memory_space<vmem>>, %arg13: memref<4x1xf32, #tpu.memory_space<vmem>>, %arg14: memref<4x1xf32, #tpu.memory_space<vmem>>, %arg15: memref<8x36xbf16, #tpu.memory_space<vmem>>, %arg16: memref<8x1xf32, #tpu.memory_space<vmem>>, %arg17: memref<8x1xf32, #tpu.memory_space<vmem>>, %arg18: memref<8x72xbf16, #tpu.memory_space<vmem>>, %arg19: memref<8x1xf32, #tpu.memory_space<vmem>>, %arg20: memref<8x1xf32, #tpu.memory_space<vmem>>, %arg21: memref<16x72xbf16, #tpu.memory_space<vmem>>, %arg22: memref<16x1xf32, #tpu.memory_space<vmem>>, %arg23: memref<16x1xf32, #tpu.memory_space<vmem>>, %arg24: memref<16x144xbf16, #tpu.memory_space<vmem>>, %arg25: memref<16x1xf32, #tpu.memory_space<vmem>>, %arg26: memref<16x1xf32, #tpu.memory_space<vmem>>, %arg27: memref<32x144xbf16, #tpu.memory_space<vmem>>, %arg28: memref<32x1xf32, #tpu.memory_space<vmem>>, %arg29: memref<32x1xf32, #tpu.memory_space<vmem>>, %arg30: memref<32x288xbf16, #tpu.memory_space<vmem>>, %arg31: memref<32x1xf32, #tpu.memory_space<vmem>>, %arg32: memref<32x1xf32, #tpu.memory_space<vmem>>, %arg33: memref<16x432xbf16, #tpu.memory_space<vmem>>, %arg34: memref<16x1xf32, #tpu.memory_space<vmem>>, %arg35: memref<16x1xf32, #tpu.memory_space<vmem>>, %arg36: memref<16x144xbf16, #tpu.memory_space<vmem>>, %arg37: memref<16x1xf32, #tpu.memory_space<vmem>>, %arg38: memref<16x1xf32, #tpu.memory_space<vmem>>, %arg39: memref<8x216xbf16, #tpu.memory_space<vmem>>, %arg40: memref<8x1xf32, #tpu.memory_space<vmem>>, %arg41: memref<8x1xf32, #tpu.memory_space<vmem>>, %arg42: memref<8x72xbf16, #tpu.memory_space<vmem>>, %arg43: memref<8x1xf32, #tpu.memory_space<vmem>>, %arg44: memref<8x1xf32, #tpu.memory_space<vmem>>, %arg45: memref<4x108xbf16, #tpu.memory_space<vmem>>, %arg46: memref<4x1xf32, #tpu.memory_space<vmem>>, %arg47: memref<4x1xf32, #tpu.memory_space<vmem>>, %arg48: memref<4x36xbf16, #tpu.memory_space<vmem>>, %arg49: memref<4x1xf32, #tpu.memory_space<vmem>>, %arg50: memref<4x1xf32, #tpu.memory_space<vmem>>, %arg51: memref<3x36xbf16, #tpu.memory_space<vmem>>, %arg52: memref<3x1xf32, #tpu.memory_space<vmem>>, %arg53: memref<3x1xf32, #tpu.memory_space<vmem>>, %arg54: memref<3x27xbf16, #tpu.memory_space<vmem>>, %arg55: memref<3x1xf32, #tpu.memory_space<vmem>>, %arg56: memref<3x1xf32, #tpu.memory_space<vmem>>, %arg57: memref<64x160xbf16, #tpu.memory_space<vmem>>, %arg58: memref<64x1xf32, #tpu.memory_space<vmem>>, %arg59: memref<32x80xbf16, #tpu.memory_space<vmem>>, %arg60: memref<32x1xf32, #tpu.memory_space<vmem>>, %arg61: memref<16x40xbf16, #tpu.memory_space<vmem>>, %arg62: memref<16x1xf32, #tpu.memory_space<vmem>>, %arg63: memref<1x3x16xf32, #tpu.memory_space<vmem>>, %arg64: memref<48x24xbf16, #tpu.memory_space<vmem>>, %arg65: memref<432x16xbf16, #tpu.memory_space<vmem>>) attributes {dimension_semantics = [#tpu.dimension_semantics<parallel>], iteration_bounds = array<i64: 2>, scalar_prefetch = 0 : i64, scratch_operands = 2 : i64, tpu.core_type = #tpu.core_type<tc>, window_params = [{transform_indices = @transform_0, window_bounds = array<i64: 1, 1, 16>}, {pipeline_mode = #tpu.pipeline_mode<synchronous>, transform_indices = @transform_1, window_bounds = array<i64: 16, 8>}, {pipeline_mode = #tpu.pipeline_mode<synchronous>, transform_indices = @transform_2, window_bounds = array<i64: 16, 8>}, {pipeline_mode = #tpu.pipeline_mode<synchronous>, transform_indices = @transform_3, window_bounds = array<i64: 8, 16>}, {pipeline_mode = #tpu.pipeline_mode<synchronous>, transform_indices = @transform_4, window_bounds = array<i64: 8, 16>}, {pipeline_mode = #tpu.pipeline_mode<synchronous>, transform_indices = @transform_5, window_bounds = array<i64: 4, 9>}, {pipeline_mode = #tpu.pipeline_mode<synchronous>, transform_indices = @transform_6, window_bounds = array<i64: 4, 1>}, {pipeline_mode = #tpu.pipeline_mode<synchronous>, transform_indices = @transform_7, window_bounds = array<i64: 4, 1>}, {pipeline_mode = #tpu.pipeline_mode<synchronous>, transform_indices = @transform_8, window_bounds = array<i64: 4, 36>}, {pipeline_mode = #tpu.pipeline_mode<synchronous>, transform_indices = @transform_9, window_bounds = array<i64: 4, 1>}, {pipeline_mode = #tpu.pipeline_mode<synchronous>, transform_indices = @transform_10, window_bounds = array<i64: 4, 1>}, {pipeline_mode = #tpu.pipeline_mode<synchronous>, transform_indices = @transform_11, window_bounds = array<i64: 4, 36>}, {pipeline_mode = #tpu.pipeline_mode<synchronous>, transform_indices = @transform_12, window_bounds = array<i64: 4, 1>}, {pipeline_mode = #tpu.pipeline_mode<synchronous>, transform_indices = @transform_13, window_bounds = array<i64: 4, 1>}, {pipeline_mode = #tpu.pipeline_mode<synchronous>, transform_indices = @transform_14, window_bounds = array<i64: 8, 36>}, {pipeline_mode = #tpu.pipeline_mode<synchronous>, transform_indices = @transform_15, window_bounds = array<i64: 8, 1>}, {pipeline_mode = #tpu.pipeline_mode<synchronous>, transform_indices = @transform_16, window_bounds = array<i64: 8, 1>}, {pipeline_mode = #tpu.pipeline_mode<synchronous>, transform_indices = @transform_17, window_bounds = array<i64: 8, 72>}, {pipeline_mode = #tpu.pipeline_mode<synchronous>, transform_indices = @transform_18, window_bounds = array<i64: 8, 1>}, {pipeline_mode = #tpu.pipeline_mode<synchronous>, transform_indices = @transform_19, window_bounds = array<i64: 8, 1>}, {pipeline_mode = #tpu.pipeline_mode<synchronous>, transform_indices = @transform_20, window_bounds = array<i64: 16, 72>}, {pipeline_mode = #tpu.pipeline_mode<synchronous>, transform_indices = @transform_21, window_bounds = array<i64: 16, 1>}, {pipeline_mode = #tpu.pipeline_mode<synchronous>, transform_indices = @transform_22, window_bounds = array<i64: 16, 1>}, {pipeline_mode = #tpu.pipeline_mode<synchronous>, transform_indices = @transform_23, window_bounds = array<i64: 16, 144>}, {pipeline_mode = #tpu.pipeline_mode<synchronous>, transform_indices = @transform_24, window_bounds = array<i64: 16, 1>}, {pipeline_mode = #tpu.pipeline_mode<synchronous>, transform_indices = @transform_25, window_bounds = array<i64: 16, 1>}, {pipeline_mode = #tpu.pipeline_mode<synchronous>, transform_indices = @transform_26, window_bounds = array<i64: 32, 144>}, {pipeline_mode = #tpu.pipeline_mode<synchronous>, transform_indices = @transform_27, window_bounds = array<i64: 32, 1>}, {pipeline_mode = #tpu.pipeline_mode<synchronous>, transform_indices = @transform_28, window_bounds = array<i64: 32, 1>}, {pipeline_mode = #tpu.pipeline_mode<synchronous>, transform_indices = @transform_29, window_bounds = array<i64: 32, 288>}, {pipeline_mode = #tpu.pipeline_mode<synchronous>, transform_indices = @transform_30, window_bounds = array<i64: 32, 1>}, {pipeline_mode = #tpu.pipeline_mode<synchronous>, transform_indices = @transform_31, window_bounds = array<i64: 32, 1>}, {pipeline_mode = #tpu.pipeline_mode<synchronous>, transform_indices = @transform_32, window_bounds = array<i64: 16, 432>}, {pipeline_mode = #tpu.pipeline_mode<synchronous>, transform_indices = @transform_33, window_bounds = array<i64: 16, 1>}, {pipeline_mode = #tpu.pipeline_mode<synchronous>, transform_indices = @transform_34, window_bounds = array<i64: 16, 1>}, {pipeline_mode = #tpu.pipeline_mode<synchronous>, transform_indices = @transform_35, window_bounds = array<i64: 16, 144>}, {pipeline_mode = #tpu.pipeline_mode<synchronous>, transform_indices = @transform_36, window_bounds = array<i64: 16, 1>}, {pipeline_mode = #tpu.pipeline_mode<synchronous>, transform_indices = @transform_37, window_bounds = array<i64: 16, 1>}, {pipeline_mode = #tpu.pipeline_mode<synchronous>, transform_indices = @transform_38, window_bounds = array<i64: 8, 216>}, {pipeline_mode = #tpu.pipeline_mode<synchronous>, transform_indices = @transform_39, window_bounds = array<i64: 8, 1>}, {pipeline_mode = #tpu.pipeline_mode<synchronous>, transform_indices = @transform_40, window_bounds = array<i64: 8, 1>}, {pipeline_mode = #tpu.pipeline_mode<synchronous>, transform_indices = @transform_41, window_bounds = array<i64: 8, 72>}, {pipeline_mode = #tpu.pipeline_mode<synchronous>, transform_indices = @transform_42, window_bounds = array<i64: 8, 1>}, {pipeline_mode = #tpu.pipeline_mode<synchronous>, transform_indices = @transform_43, window_bounds = array<i64: 8, 1>}, {pipeline_mode = #tpu.pipeline_mode<synchronous>, transform_indices = @transform_44, window_bounds = array<i64: 4, 108>}, {pipeline_mode = #tpu.pipeline_mode<synchronous>, transform_indices = @transform_45, window_bounds = array<i64: 4, 1>}, {pipeline_mode = #tpu.pipeline_mode<synchronous>, transform_indices = @transform_46, window_bounds = array<i64: 4, 1>}, {pipeline_mode = #tpu.pipeline_mode<synchronous>, transform_indices = @transform_47, window_bounds = array<i64: 4, 36>}, {pipeline_mode = #tpu.pipeline_mode<synchronous>, transform_indices = @transform_48, window_bounds = array<i64: 4, 1>}, {pipeline_mode = #tpu.pipeline_mode<synchronous>, transform_indices = @transform_49, window_bounds = array<i64: 4, 1>}, {pipeline_mode = #tpu.pipeline_mode<synchronous>, transform_indices = @transform_50, window_bounds = array<i64: 3, 36>}, {pipeline_mode = #tpu.pipeline_mode<synchronous>, transform_indices = @transform_51, window_bounds = array<i64: 3, 1>}, {pipeline_mode = #tpu.pipeline_mode<synchronous>, transform_indices = @transform_52, window_bounds = array<i64: 3, 1>}, {pipeline_mode = #tpu.pipeline_mode<synchronous>, transform_indices = @transform_53, window_bounds = array<i64: 3, 27>}, {pipeline_mode = #tpu.pipeline_mode<synchronous>, transform_indices = @transform_54, window_bounds = array<i64: 3, 1>}, {pipeline_mode = #tpu.pipeline_mode<synchronous>, transform_indices = @transform_55, window_bounds = array<i64: 3, 1>}, {pipeline_mode = #tpu.pipeline_mode<synchronous>, transform_indices = @transform_56, window_bounds = array<i64: 64, 160>}, {pipeline_mode = #tpu.pipeline_mode<synchronous>, transform_indices = @transform_57, window_bounds = array<i64: 64, 1>}, {pipeline_mode = #tpu.pipeline_mode<synchronous>, transform_indices = @transform_58, window_bounds = array<i64: 32, 80>}, {pipeline_mode = #tpu.pipeline_mode<synchronous>, transform_indices = @transform_59, window_bounds = array<i64: 32, 1>}, {pipeline_mode = #tpu.pipeline_mode<synchronous>, transform_indices = @transform_60, window_bounds = array<i64: 16, 40>}, {pipeline_mode = #tpu.pipeline_mode<synchronous>, transform_indices = @transform_61, window_bounds = array<i64: 16, 1>}, {transform_indices = @transform_62, window_bounds = array<i64: 1, 3, 16>}]} {
    %c0 = arith.constant 0 : index
    %c0_0 = arith.constant 0 : index
    %c0_1 = arith.constant 0 : index
    %0 = vector.load %arg1[%c0, %c0_0, %c0_1] : memref<1x1x16xf32, #tpu.memory_space<vmem>>, vector<1x1x16xf32>
    %1 = vector.shape_cast %0 : vector<1x1x16xf32> to vector<1x16xf32>
    %cst = arith.constant 0.000000e+00 : bf16
    %2 = vector.broadcast %cst : bf16 to vector<1x24xbf16>
    %c0_2 = arith.constant 0 : index
    %c0_3 = arith.constant 0 : index
    %3 = vector.load %arg64[%c0_2, %c0_3] : memref<48x24xbf16, #tpu.memory_space<vmem>>, vector<1x24xbf16>
    tpu.vector_store %arg64[%c0_2, %c0_3], %2 {strides = array<i32>} : memref<48x24xbf16, #tpu.memory_space<vmem>>, vector<1x24xbf16>,
    %4 = arith.truncf %1 : vector<1x16xf32> to vector<1x16xbf16>
    %c0_4 = arith.constant 0 : index
    %c4 = arith.constant 4 : index
    %5 = vector.load %arg64[%c0_4, %c4] : memref<48x24xbf16, #tpu.memory_space<vmem>>, vector<1x16xbf16>
    tpu.vector_store %arg64[%c0_4, %c4], %4 {strides = array<i32>} : memref<48x24xbf16, #tpu.memory_space<vmem>>, vector<1x16xbf16>,
    %c0_5 = arith.constant 0 : index
    %c0_6 = arith.constant 0 : index
    %6 = vector.load %arg64[%c0_5, %c0_6] : memref<48x24xbf16, #tpu.memory_space<vmem>>, vector<1x16xbf16>
    %c0_7 = arith.constant 0 : index
    %c0_8 = arith.constant 0 : index
    %7 = vector.load %arg65[%c0_7, %c0_8] : memref<432x16xbf16, #tpu.memory_space<vmem>>, vector<1x16xbf16>
    tpu.vector_store %arg65[%c0_7, %c0_8], %6 {strides = array<i32>} : memref<432x16xbf16, #tpu.memory_space<vmem>>, vector<1x16xbf16>,
    %c0_9 = arith.constant 0 : index
    %c1 = arith.constant 1 : index
    %8 = vector.load %arg64[%c0_9, %c1] : memref<48x24xbf16, #tpu.memory_space<vmem>>, vector<1x16xbf16>
    %c1_10 = arith.constant 1 : index
    %c0_11 = arith.constant 0 : index
    %9 = vector.load %arg65[%c1_10, %c0_11] : memref<432x16xbf16, #tpu.memory_space<vmem>>, vector<1x16xbf16>
    tpu.vector_store %arg65[%c1_10, %c0_11], %8 {strides = array<i32>} : memref<432x16xbf16, #tpu.memory_space<vmem>>, vector<1x16xbf16>,
    %c0_12 = arith.constant 0 : index
    %c2 = arith.constant 2 : index
    %10 = vector.load %arg64[%c0_12, %c2] : memref<48x24xbf16, #tpu.memory_space<vmem>>, vector<1x16xbf16>
    %c2_13 = arith.constant 2 : index
    %c0_14 = arith.constant 0 : index
    %11 = vector.load %arg65[%c2_13, %c0_14] : memref<432x16xbf16, #tpu.memory_space<vmem>>, vector<1x16xbf16>
    tpu.vector_store %arg65[%c2_13, %c0_14], %10 {strides = array<i32>} : memref<432x16xbf16, #tpu.memory_space<vmem>>, vector<1x16xbf16>,
    %c0_15 = arith.constant 0 : index
    %c3 = arith.constant 3 : index
    %12 = vector.load %arg64[%c0_15, %c3] : memref<48x24xbf16, #tpu.memory_space<vmem>>, vector<1x16xbf16>
    %c3_16 = arith.constant 3 : index
    %c0_17 = arith.constant 0 : index
    %13 = vector.load %arg65[%c3_16, %c0_17] : memref<432x16xbf16, #tpu.memory_space<vmem>>, vector<1x16xbf16>
    tpu.vector_store %arg65[%c3_16, %c0_17], %12 {strides = array<i32>} : memref<432x16xbf16, #tpu.memory_space<vmem>>, vector<1x16xbf16>,
    %c0_18 = arith.constant 0 : index
    %c4_19 = arith.constant 4 : index
    %14 = vector.load %arg64[%c0_18, %c4_19] : memref<48x24xbf16, #tpu.memory_space<vmem>>, vector<1x16xbf16>
    %c4_20 = arith.constant 4 : index
    %c0_21 = arith.constant 0 : index
    %15 = vector.load %arg65[%c4_20, %c0_21] : memref<432x16xbf16, #tpu.memory_space<vmem>>, vector<1x16xbf16>
    tpu.vector_store %arg65[%c4_20, %c0_21], %14 {strides = array<i32>} : memref<432x16xbf16, #tpu.memory_space<vmem>>, vector<1x16xbf16>,
    %c0_22 = arith.constant 0 : index
    %c5 = arith.constant 5 : index
    %16 = vector.load %arg64[%c0_22, %c5] : memref<48x24xbf16, #tpu.memory_space<vmem>>, vector<1x16xbf16>
    %c5_23 = arith.constant 5 : index
    %c0_24 = arith.constant 0 : index
    %17 = vector.load %arg65[%c5_23, %c0_24] : memref<432x16xbf16, #tpu.memory_space<vmem>>, vector<1x16xbf16>
    tpu.vector_store %arg65[%c5_23, %c0_24], %16 {strides = array<i32>} : memref<432x16xbf16, #tpu.memory_space<vmem>>, vector<1x16xbf16>,
    %c0_25 = arith.constant 0 : index
    %c6 = arith.constant 6 : index
    %18 = vector.load %arg64[%c0_25, %c6] : memref<48x24xbf16, #tpu.memory_space<vmem>>, vector<1x16xbf16>
    %c6_26 = arith.constant 6 : index
    %c0_27 = arith.constant 0 : index
    %19 = vector.load %arg65[%c6_26, %c0_27] : memref<432x16xbf16, #tpu.memory_space<vmem>>, vector<1x16xbf16>
    tpu.vector_store %arg65[%c6_26, %c0_27], %18 {strides = array<i32>} : memref<432x16xbf16, #tpu.memory_space<vmem>>, vector<1x16xbf16>,
    %c0_28 = arith.constant 0 : index
    %c7 = arith.constant 7 : index
    %20 = vector.load %arg64[%c0_28, %c7] : memref<48x24xbf16, #tpu.memory_space<vmem>>, vector<1x16xbf16>
    %c7_29 = arith.constant 7 : index
    %c0_30 = arith.constant 0 : index
    %21 = vector.load %arg65[%c7_29, %c0_30] : memref<432x16xbf16, #tpu.memory_space<vmem>>, vector<1x16xbf16>
    tpu.vector_store %arg65[%c7_29, %c0_30], %20 {strides = array<i32>} : memref<432x16xbf16, #tpu.memory_space<vmem>>, vector<1x16xbf16>,
    %c0_31 = arith.constant 0 : index
    %c8 = arith.constant 8 : index
    %22 = vector.load %arg64[%c0_31, %c8] : memref<48x24xbf16, #tpu.memory_space<vmem>>, vector<1x16xbf16>
    %c8_32 = arith.constant 8 : index
    %c0_33 = arith.constant 0 : index
    %23 = vector.load %arg65[%c8_32, %c0_33] : memref<432x16xbf16, #tpu.memory_space<vmem>>, vector<1x16xbf16>
    tpu.vector_store %arg65[%c8_32, %c0_33], %22 {strides = array<i32>} : memref<432x16xbf16, #tpu.memory_space<vmem>>, vector<1x16xbf16>,
    %c0_34 = arith.constant 0 : index
    %c0_35 = arith.constant 0 : index
    %24 = vector.load %arg65[%c0_34, %c0_35] : memref<432x16xbf16, #tpu.memory_space<vmem>>, vector<9x16xbf16>
    %c0_36 = arith.constant 0 : index
    %c0_37 = arith.constant 0 : index
    %25 = vector.load %arg6[%c0_36, %c0_37] : memref<4x9xbf16, #tpu.memory_space<vmem>>, vector<4x9xbf16>
    %cst_38 = arith.constant dense<0.000000e+00> : vector<4x16xf32>
    %26 = tpu.matmul %25, %24, %cst_38 {dimension_numbers = #tpu.dot_dimension_numbers<[1], [0], [0], [1], [0, 0, 1, 1], [], []>} : vector<4x9xbf16>, vector<9x16xbf16>, vector<4x16xf32> -> vector<4x16xf32>
    %c0_39 = arith.constant 0 : index
    %c0_40 = arith.constant 0 : index
    %27 = vector.load %arg7[%c0_39, %c0_40] : memref<4x1xf32, #tpu.memory_space<vmem>>, vector<4x1xf32>
    %28 = vector.broadcast %27 : vector<4x1xf32> to vector<4x16xf32>
    %29 = arith.mulf %26, %28 : vector<4x16xf32>
    %c0_41 = arith.constant 0 : index
    %c0_42 = arith.constant 0 : index
    %30 = vector.load %arg8[%c0_41, %c0_42] : memref<4x1xf32, #tpu.memory_space<vmem>>, vector<4x1xf32>
    %31 = vector.broadcast %30 : vector<4x1xf32> to vector<4x16xf32>
    %32 = arith.addf %29, %31 : vector<4x16xf32>
    %cst_43 = arith.constant 0.000000e+00 : f32
    %33 = vector.broadcast %cst_43 : f32 to vector<4x16xf32>
    %34 = arith.maximumf %32, %33 : vector<4x16xf32>
    %cst_44 = arith.constant 0.000000e+00 : bf16
    %35 = vector.broadcast %cst_44 : bf16 to vector<4x24xbf16>
    %c0_45 = arith.constant 0 : index
    %c0_46 = arith.constant 0 : index
    %36 = vector.load %arg64[%c0_45, %c0_46] : memref<48x24xbf16, #tpu.memory_space<vmem>>, vector<4x24xbf16>
    tpu.vector_store %arg64[%c0_45, %c0_46], %35 {strides = array<i32>} : memref<48x24xbf16, #tpu.memory_space<vmem>>, vector<4x24xbf16>,
    %37 = arith.truncf %34 : vector<4x16xf32> to vector<4x16xbf16>
    %c0_47 = arith.constant 0 : index
    %c4_48 = arith.constant 4 : index
    %38 = vector.load %arg64[%c0_47, %c4_48] : memref<48x24xbf16, #tpu.memory_space<vmem>>, vector<4x16xbf16>
    tpu.vector_store %arg64[%c0_47, %c4_48], %37 {strides = array<i32>} : memref<48x24xbf16, #tpu.memory_space<vmem>>, vector<4x16xbf16>,
    %c0_49 = arith.constant 0 : index
    %c0_50 = arith.constant 0 : index
    %39 = vector.load %arg64[%c0_49, %c0_50] : memref<48x24xbf16, #tpu.memory_space<vmem>>, vector<4x16xbf16>
    %c0_51 = arith.constant 0 : index
    %c0_52 = arith.constant 0 : index
    %40 = vector.load %arg65[%c0_51, %c0_52] : memref<432x16xbf16, #tpu.memory_space<vmem>>, vector<4x16xbf16>
    tpu.vector_store %arg65[%c0_51, %c0_52], %39 {strides = array<i32>} : memref<432x16xbf16, #tpu.memory_space<vmem>>, vector<4x16xbf16>,
    %c0_53 = arith.constant 0 : index
    %c1_54 = arith.constant 1 : index
    %41 = vector.load %arg64[%c0_53, %c1_54] : memref<48x24xbf16, #tpu.memory_space<vmem>>, vector<4x16xbf16>
    %c4_55 = arith.constant 4 : index
    %c0_56 = arith.constant 0 : index
    %42 = vector.load %arg65[%c4_55, %c0_56] : memref<432x16xbf16, #tpu.memory_space<vmem>>, vector<4x16xbf16>
    tpu.vector_store %arg65[%c4_55, %c0_56], %41 {strides = array<i32>} : memref<432x16xbf16, #tpu.memory_space<vmem>>, vector<4x16xbf16>,
    %c0_57 = arith.constant 0 : index
    %c2_58 = arith.constant 2 : index
    %43 = vector.load %arg64[%c0_57, %c2_58] : memref<48x24xbf16, #tpu.memory_space<vmem>>, vector<4x16xbf16>
    %c8_59 = arith.constant 8 : index
    %c0_60 = arith.constant 0 : index
    %44 = vector.load %arg65[%c8_59, %c0_60] : memref<432x16xbf16, #tpu.memory_space<vmem>>, vector<4x16xbf16>
    tpu.vector_store %arg65[%c8_59, %c0_60], %43 {strides = array<i32>} : memref<432x16xbf16, #tpu.memory_space<vmem>>, vector<4x16xbf16>,
    %c0_61 = arith.constant 0 : index
    %c3_62 = arith.constant 3 : index
    %45 = vector.load %arg64[%c0_61, %c3_62] : memref<48x24xbf16, #tpu.memory_space<vmem>>, vector<4x16xbf16>
    %c12 = arith.constant 12 : index
    %c0_63 = arith.constant 0 : index
    %46 = vector.load %arg65[%c12, %c0_63] : memref<432x16xbf16, #tpu.memory_space<vmem>>, vector<4x16xbf16>
    tpu.vector_store %arg65[%c12, %c0_63], %45 {strides = array<i32>} : memref<432x16xbf16, #tpu.memory_space<vmem>>, vector<4x16xbf16>,
    %c0_64 = arith.constant 0 : index
    %c4_65 = arith.constant 4 : index
    %47 = vector.load %arg64[%c0_64, %c4_65] : memref<48x24xbf16, #tpu.memory_space<vmem>>, vector<4x16xbf16>
    %c16 = arith.constant 16 : index
    %c0_66 = arith.constant 0 : index
    %48 = vector.load %arg65[%c16, %c0_66] : memref<432x16xbf16, #tpu.memory_space<vmem>>, vector<4x16xbf16>
    tpu.vector_store %arg65[%c16, %c0_66], %47 {strides = array<i32>} : memref<432x16xbf16, #tpu.memory_space<vmem>>, vector<4x16xbf16>,
    %c0_67 = arith.constant 0 : index
    %c5_68 = arith.constant 5 : index
    %49 = vector.load %arg64[%c0_67, %c5_68] : memref<48x24xbf16, #tpu.memory_space<vmem>>, vector<4x16xbf16>
    %c20 = arith.constant 20 : index
    %c0_69 = arith.constant 0 : index
    %50 = vector.load %arg65[%c20, %c0_69] : memref<432x16xbf16, #tpu.memory_space<vmem>>, vector<4x16xbf16>
    tpu.vector_store %arg65[%c20, %c0_69], %49 {strides = array<i32>} : memref<432x16xbf16, #tpu.memory_space<vmem>>, vector<4x16xbf16>,
    %c0_70 = arith.constant 0 : index
    %c6_71 = arith.constant 6 : index
    %51 = vector.load %arg64[%c0_70, %c6_71] : memref<48x24xbf16, #tpu.memory_space<vmem>>, vector<4x16xbf16>
    %c24 = arith.constant 24 : index
    %c0_72 = arith.constant 0 : index
    %52 = vector.load %arg65[%c24, %c0_72] : memref<432x16xbf16, #tpu.memory_space<vmem>>, vector<4x16xbf16>
    tpu.vector_store %arg65[%c24, %c0_72], %51 {strides = array<i32>} : memref<432x16xbf16, #tpu.memory_space<vmem>>, vector<4x16xbf16>,
    %c0_73 = arith.constant 0 : index
    %c7_74 = arith.constant 7 : index
    %53 = vector.load %arg64[%c0_73, %c7_74] : memref<48x24xbf16, #tpu.memory_space<vmem>>, vector<4x16xbf16>
    %c28 = arith.constant 28 : index
    %c0_75 = arith.constant 0 : index
    %54 = vector.load %arg65[%c28, %c0_75] : memref<432x16xbf16, #tpu.memory_space<vmem>>, vector<4x16xbf16>
    tpu.vector_store %arg65[%c28, %c0_75], %53 {strides = array<i32>} : memref<432x16xbf16, #tpu.memory_space<vmem>>, vector<4x16xbf16>,
    %c0_76 = arith.constant 0 : index
    %c8_77 = arith.constant 8 : index
    %55 = vector.load %arg64[%c0_76, %c8_77] : memref<48x24xbf16, #tpu.memory_space<vmem>>, vector<4x16xbf16>
    %c32 = arith.constant 32 : index
    %c0_78 = arith.constant 0 : index
    %56 = vector.load %arg65[%c32, %c0_78] : memref<432x16xbf16, #tpu.memory_space<vmem>>, vector<4x16xbf16>
    tpu.vector_store %arg65[%c32, %c0_78], %55 {strides = array<i32>} : memref<432x16xbf16, #tpu.memory_space<vmem>>, vector<4x16xbf16>,
    %c0_79 = arith.constant 0 : index
    %c0_80 = arith.constant 0 : index
    %57 = vector.load %arg65[%c0_79, %c0_80] : memref<432x16xbf16, #tpu.memory_space<vmem>>, vector<36x16xbf16>
    %c0_81 = arith.constant 0 : index
    %c0_82 = arith.constant 0 : index
    %58 = vector.load %arg9[%c0_81, %c0_82] : memref<4x36xbf16, #tpu.memory_space<vmem>>, vector<4x36xbf16>
    %cst_83 = arith.constant dense<0.000000e+00> : vector<4x16xf32>
    %59 = tpu.matmul %58, %57, %cst_83 {dimension_numbers = #tpu.dot_dimension_numbers<[1], [0], [0], [1], [0, 0, 1, 1], [], []>} : vector<4x36xbf16>, vector<36x16xbf16>, vector<4x16xf32> -> vector<4x16xf32>
    %c0_84 = arith.constant 0 : index
    %c0_85 = arith.constant 0 : index
    %60 = vector.load %arg10[%c0_84, %c0_85] : memref<4x1xf32, #tpu.memory_space<vmem>>, vector<4x1xf32>
    %61 = vector.broadcast %60 : vector<4x1xf32> to vector<4x16xf32>
    %62 = arith.mulf %59, %61 : vector<4x16xf32>
    %c0_86 = arith.constant 0 : index
    %c0_87 = arith.constant 0 : index
    %63 = vector.load %arg11[%c0_86, %c0_87] : memref<4x1xf32, #tpu.memory_space<vmem>>, vector<4x1xf32>
    %64 = vector.broadcast %63 : vector<4x1xf32> to vector<4x16xf32>
    %65 = arith.addf %62, %64 : vector<4x16xf32>
    %cst_88 = arith.constant 0.000000e+00 : f32
    %66 = vector.broadcast %cst_88 : f32 to vector<4x16xf32>
    %67 = arith.maximumf %65, %66 : vector<4x16xf32>
    %cst_89 = arith.constant 0.000000e+00 : bf16
    %68 = vector.broadcast %cst_89 : bf16 to vector<4x24xbf16>
    %c0_90 = arith.constant 0 : index
    %c0_91 = arith.constant 0 : index
    %69 = vector.load %arg64[%c0_90, %c0_91] : memref<48x24xbf16, #tpu.memory_space<vmem>>, vector<4x24xbf16>
    tpu.vector_store %arg64[%c0_90, %c0_91], %68 {strides = array<i32>} : memref<48x24xbf16, #tpu.memory_space<vmem>>, vector<4x24xbf16>,
    %70 = arith.truncf %67 : vector<4x16xf32> to vector<4x16xbf16>
    %c0_92 = arith.constant 0 : index
    %c4_93 = arith.constant 4 : index
    %71 = vector.load %arg64[%c0_92, %c4_93] : memref<48x24xbf16, #tpu.memory_space<vmem>>, vector<4x16xbf16>
    tpu.vector_store %arg64[%c0_92, %c4_93], %70 {strides = array<i32>} : memref<48x24xbf16, #tpu.memory_space<vmem>>, vector<4x16xbf16>,
    %c0_94 = arith.constant 0 : index
    %c0_95 = arith.constant 0 : index
    %72 = vector.load %arg64[%c0_94, %c0_95] : memref<48x24xbf16, #tpu.memory_space<vmem>>, vector<4x16xbf16>
    %c0_96 = arith.constant 0 : index
    %c0_97 = arith.constant 0 : index
    %73 = vector.load %arg65[%c0_96, %c0_97] : memref<432x16xbf16, #tpu.memory_space<vmem>>, vector<4x16xbf16>
    tpu.vector_store %arg65[%c0_96, %c0_97], %72 {strides = array<i32>} : memref<432x16xbf16, #tpu.memory_space<vmem>>, vector<4x16xbf16>,
    %c0_98 = arith.constant 0 : index
    %c1_99 = arith.constant 1 : index
    %74 = vector.load %arg64[%c0_98, %c1_99] : memref<48x24xbf16, #tpu.memory_space<vmem>>, vector<4x16xbf16>
    %c4_100 = arith.constant 4 : index
    %c0_101 = arith.constant 0 : index
    %75 = vector.load %arg65[%c4_100, %c0_101] : memref<432x16xbf16, #tpu.memory_space<vmem>>, vector<4x16xbf16>
    tpu.vector_store %arg65[%c4_100, %c0_101], %74 {strides = array<i32>} : memref<432x16xbf16, #tpu.memory_space<vmem>>, vector<4x16xbf16>,
    %c0_102 = arith.constant 0 : index
    %c2_103 = arith.constant 2 : index
    %76 = vector.load %arg64[%c0_102, %c2_103] : memref<48x24xbf16, #tpu.memory_space<vmem>>, vector<4x16xbf16>
    %c8_104 = arith.constant 8 : index
    %c0_105 = arith.constant 0 : index
    %77 = vector.load %arg65[%c8_104, %c0_105] : memref<432x16xbf16, #tpu.memory_space<vmem>>, vector<4x16xbf16>
    tpu.vector_store %arg65[%c8_104, %c0_105], %76 {strides = array<i32>} : memref<432x16xbf16, #tpu.memory_space<vmem>>, vector<4x16xbf16>,
    %c0_106 = arith.constant 0 : index
    %c3_107 = arith.constant 3 : index
    %78 = vector.load %arg64[%c0_106, %c3_107] : memref<48x24xbf16, #tpu.memory_space<vmem>>, vector<4x16xbf16>
    %c12_108 = arith.constant 12 : index
    %c0_109 = arith.constant 0 : index
    %79 = vector.load %arg65[%c12_108, %c0_109] : memref<432x16xbf16, #tpu.memory_space<vmem>>, vector<4x16xbf16>
    tpu.vector_store %arg65[%c12_108, %c0_109], %78 {strides = array<i32>} : memref<432x16xbf16, #tpu.memory_space<vmem>>, vector<4x16xbf16>,
    %c0_110 = arith.constant 0 : index
    %c4_111 = arith.constant 4 : index
    %80 = vector.load %arg64[%c0_110, %c4_111] : memref<48x24xbf16, #tpu.memory_space<vmem>>, vector<4x16xbf16>
    %c16_112 = arith.constant 16 : index
    %c0_113 = arith.constant 0 : index
    %81 = vector.load %arg65[%c16_112, %c0_113] : memref<432x16xbf16, #tpu.memory_space<vmem>>, vector<4x16xbf16>
    tpu.vector_store %arg65[%c16_112, %c0_113], %80 {strides = array<i32>} : memref<432x16xbf16, #tpu.memory_space<vmem>>, vector<4x16xbf16>,
    %c0_114 = arith.constant 0 : index
    %c5_115 = arith.constant 5 : index
    %82 = vector.load %arg64[%c0_114, %c5_115] : memref<48x24xbf16, #tpu.memory_space<vmem>>, vector<4x16xbf16>
    %c20_116 = arith.constant 20 : index
    %c0_117 = arith.constant 0 : index
    %83 = vector.load %arg65[%c20_116, %c0_117] : memref<432x16xbf16, #tpu.memory_space<vmem>>, vector<4x16xbf16>
    tpu.vector_store %arg65[%c20_116, %c0_117], %82 {strides = array<i32>} : memref<432x16xbf16, #tpu.memory_space<vmem>>, vector<4x16xbf16>,
    %c0_118 = arith.constant 0 : index
    %c6_119 = arith.constant 6 : index
    %84 = vector.load %arg64[%c0_118, %c6_119] : memref<48x24xbf16, #tpu.memory_space<vmem>>, vector<4x16xbf16>
    %c24_120 = arith.constant 24 : index
    %c0_121 = arith.constant 0 : index
    %85 = vector.load %arg65[%c24_120, %c0_121] : memref<432x16xbf16, #tpu.memory_space<vmem>>, vector<4x16xbf16>
    tpu.vector_store %arg65[%c24_120, %c0_121], %84 {strides = array<i32>} : memref<432x16xbf16, #tpu.memory_space<vmem>>, vector<4x16xbf16>,
    %c0_122 = arith.constant 0 : index
    %c7_123 = arith.constant 7 : index
    %86 = vector.load %arg64[%c0_122, %c7_123] : memref<48x24xbf16, #tpu.memory_space<vmem>>, vector<4x16xbf16>
    %c28_124 = arith.constant 28 : index
    %c0_125 = arith.constant 0 : index
    %87 = vector.load %arg65[%c28_124, %c0_125] : memref<432x16xbf16, #tpu.memory_space<vmem>>, vector<4x16xbf16>
    tpu.vector_store %arg65[%c28_124, %c0_125], %86 {strides = array<i32>} : memref<432x16xbf16, #tpu.memory_space<vmem>>, vector<4x16xbf16>,
    %c0_126 = arith.constant 0 : index
    %c8_127 = arith.constant 8 : index
    %88 = vector.load %arg64[%c0_126, %c8_127] : memref<48x24xbf16, #tpu.memory_space<vmem>>, vector<4x16xbf16>
    %c32_128 = arith.constant 32 : index
    %c0_129 = arith.constant 0 : index
    %89 = vector.load %arg65[%c32_128, %c0_129] : memref<432x16xbf16, #tpu.memory_space<vmem>>, vector<4x16xbf16>
    tpu.vector_store %arg65[%c32_128, %c0_129], %88 {strides = array<i32>} : memref<432x16xbf16, #tpu.memory_space<vmem>>, vector<4x16xbf16>,
    %c0_130 = arith.constant 0 : index
    %c0_131 = arith.constant 0 : index
    %90 = vector.load %arg65[%c0_130, %c0_131] : memref<432x16xbf16, #tpu.memory_space<vmem>>, vector<36x16xbf16>
    %c0_132 = arith.constant 0 : index
    %c0_133 = arith.constant 0 : index
    %91 = vector.load %arg12[%c0_132, %c0_133] : memref<4x36xbf16, #tpu.memory_space<vmem>>, vector<4x36xbf16>
    %cst_134 = arith.constant dense<0.000000e+00> : vector<4x16xf32>
    %92 = tpu.matmul %91, %90, %cst_134 {dimension_numbers = #tpu.dot_dimension_numbers<[1], [0], [0], [1], [0, 0, 1, 1], [], []>} : vector<4x36xbf16>, vector<36x16xbf16>, vector<4x16xf32> -> vector<4x16xf32>
    %c0_135 = arith.constant 0 : index
    %c0_136 = arith.constant 0 : index
    %93 = vector.load %arg13[%c0_135, %c0_136] : memref<4x1xf32, #tpu.memory_space<vmem>>, vector<4x1xf32>
    %94 = vector.broadcast %93 : vector<4x1xf32> to vector<4x16xf32>
    %95 = arith.mulf %92, %94 : vector<4x16xf32>
    %c0_137 = arith.constant 0 : index
    %c0_138 = arith.constant 0 : index
    %96 = vector.load %arg14[%c0_137, %c0_138] : memref<4x1xf32, #tpu.memory_space<vmem>>, vector<4x1xf32>
    %97 = vector.broadcast %96 : vector<4x1xf32> to vector<4x16xf32>
    %98 = arith.addf %95, %97 : vector<4x16xf32>
    %cst_139 = arith.constant 0.000000e+00 : f32
    %99 = vector.broadcast %cst_139 : f32 to vector<4x16xf32>
    %100 = arith.maximumf %98, %99 : vector<4x16xf32>
    %101 = arith.truncf %100 : vector<4x16xf32> to vector<4x16xbf16>
    %c0_140 = arith.constant 0 : index
    %c0_141 = arith.constant 0 : index
    %102 = vector.load %arg2[%c0_140, %c0_141] : memref<16x8xbf16, #tpu.memory_space<vmem>>, vector<16x8xbf16>
    %c0_142 = arith.constant 0 : index
    %c0_143 = arith.constant 0 : index
    %103 = vector.load %arg3[%c0_142, %c0_143] : memref<16x8xbf16, #tpu.memory_space<vmem>>, vector<16x8xbf16>
    %cst_144 = arith.constant dense<0.000000e+00> : vector<4x8xf32>
    %104 = tpu.matmul %101, %102, %cst_144 {dimension_numbers = #tpu.dot_dimension_numbers<[1], [0], [0], [1], [0, 0, 1, 1], [], []>} : vector<4x16xbf16>, vector<16x8xbf16>, vector<4x8xf32> -> vector<4x8xf32>
    %cst_145 = arith.constant dense<0.000000e+00> : vector<4x8xf32>
    %105 = tpu.matmul %101, %103, %cst_145 {dimension_numbers = #tpu.dot_dimension_numbers<[1], [0], [0], [1], [0, 0, 1, 1], [], []>} : vector<4x16xbf16>, vector<16x8xbf16>, vector<4x8xf32> -> vector<4x8xf32>
    %106 = arith.maximumf %104, %105 : vector<4x8xf32>
    %cst_146 = arith.constant 0.000000e+00 : bf16
    %107 = vector.broadcast %cst_146 : bf16 to vector<4x16xbf16>
    %c0_147 = arith.constant 0 : index
    %c0_148 = arith.constant 0 : index
    %108 = vector.load %arg64[%c0_147, %c0_148] : memref<48x24xbf16, #tpu.memory_space<vmem>>, vector<4x16xbf16>
    tpu.vector_store %arg64[%c0_147, %c0_148], %107 {strides = array<i32>} : memref<48x24xbf16, #tpu.memory_space<vmem>>, vector<4x16xbf16>,
    %109 = arith.truncf %106 : vector<4x8xf32> to vector<4x8xbf16>
    %c0_149 = arith.constant 0 : index
    %c4_150 = arith.constant 4 : index
    %110 = vector.load %arg64[%c0_149, %c4_150] : memref<48x24xbf16, #tpu.memory_space<vmem>>, vector<4x8xbf16>
    tpu.vector_store %arg64[%c0_149, %c4_150], %109 {strides = array<i32>} : memref<48x24xbf16, #tpu.memory_space<vmem>>, vector<4x8xbf16>,
    %c0_151 = arith.constant 0 : index
    %c0_152 = arith.constant 0 : index
    %111 = vector.load %arg64[%c0_151, %c0_152] : memref<48x24xbf16, #tpu.memory_space<vmem>>, vector<4x8xbf16>
    %c0_153 = arith.constant 0 : index
    %c0_154 = arith.constant 0 : index
    %112 = vector.load %arg65[%c0_153, %c0_154] : memref<432x16xbf16, #tpu.memory_space<vmem>>, vector<4x8xbf16>
    tpu.vector_store %arg65[%c0_153, %c0_154], %111 {strides = array<i32>} : memref<432x16xbf16, #tpu.memory_space<vmem>>, vector<4x8xbf16>,
    %c0_155 = arith.constant 0 : index
    %c1_156 = arith.constant 1 : index
    %113 = vector.load %arg64[%c0_155, %c1_156] : memref<48x24xbf16, #tpu.memory_space<vmem>>, vector<4x8xbf16>
    %c4_157 = arith.constant 4 : index
    %c0_158 = arith.constant 0 : index
    %114 = vector.load %arg65[%c4_157, %c0_158] : memref<432x16xbf16, #tpu.memory_space<vmem>>, vector<4x8xbf16>
    tpu.vector_store %arg65[%c4_157, %c0_158], %113 {strides = array<i32>} : memref<432x16xbf16, #tpu.memory_space<vmem>>, vector<4x8xbf16>,
    %c0_159 = arith.constant 0 : index
    %c2_160 = arith.constant 2 : index
    %115 = vector.load %arg64[%c0_159, %c2_160] : memref<48x24xbf16, #tpu.memory_space<vmem>>, vector<4x8xbf16>
    %c8_161 = arith.constant 8 : index
    %c0_162 = arith.constant 0 : index
    %116 = vector.load %arg65[%c8_161, %c0_162] : memref<432x16xbf16, #tpu.memory_space<vmem>>, vector<4x8xbf16>
    tpu.vector_store %arg65[%c8_161, %c0_162], %115 {strides = array<i32>} : memref<432x16xbf16, #tpu.memory_space<vmem>>, vector<4x8xbf16>,
    %c0_163 = arith.constant 0 : index
    %c3_164 = arith.constant 3 : index
    %117 = vector.load %arg64[%c0_163, %c3_164] : memref<48x24xbf16, #tpu.memory_space<vmem>>, vector<4x8xbf16>
    %c12_165 = arith.constant 12 : index
    %c0_166 = arith.constant 0 : index
    %118 = vector.load %arg65[%c12_165, %c0_166] : memref<432x16xbf16, #tpu.memory_space<vmem>>, vector<4x8xbf16>
    tpu.vector_store %arg65[%c12_165, %c0_166], %117 {strides = array<i32>} : memref<432x16xbf16, #tpu.memory_space<vmem>>, vector<4x8xbf16>,
    %c0_167 = arith.constant 0 : index
    %c4_168 = arith.constant 4 : index
    %119 = vector.load %arg64[%c0_167, %c4_168] : memref<48x24xbf16, #tpu.memory_space<vmem>>, vector<4x8xbf16>
    %c16_169 = arith.constant 16 : index
    %c0_170 = arith.constant 0 : index
    %120 = vector.load %arg65[%c16_169, %c0_170] : memref<432x16xbf16, #tpu.memory_space<vmem>>, vector<4x8xbf16>
    tpu.vector_store %arg65[%c16_169, %c0_170], %119 {strides = array<i32>} : memref<432x16xbf16, #tpu.memory_space<vmem>>, vector<4x8xbf16>,
    %c0_171 = arith.constant 0 : index
    %c5_172 = arith.constant 5 : index
    %121 = vector.load %arg64[%c0_171, %c5_172] : memref<48x24xbf16, #tpu.memory_space<vmem>>, vector<4x8xbf16>
    %c20_173 = arith.constant 20 : index
    %c0_174 = arith.constant 0 : index
    %122 = vector.load %arg65[%c20_173, %c0_174] : memref<432x16xbf16, #tpu.memory_space<vmem>>, vector<4x8xbf16>
    tpu.vector_store %arg65[%c20_173, %c0_174], %121 {strides = array<i32>} : memref<432x16xbf16, #tpu.memory_space<vmem>>, vector<4x8xbf16>,
    %c0_175 = arith.constant 0 : index
    %c6_176 = arith.constant 6 : index
    %123 = vector.load %arg64[%c0_175, %c6_176] : memref<48x24xbf16, #tpu.memory_space<vmem>>, vector<4x8xbf16>
    %c24_177 = arith.constant 24 : index
    %c0_178 = arith.constant 0 : index
    %124 = vector.load %arg65[%c24_177, %c0_178] : memref<432x16xbf16, #tpu.memory_space<vmem>>, vector<4x8xbf16>
    tpu.vector_store %arg65[%c24_177, %c0_178], %123 {strides = array<i32>} : memref<432x16xbf16, #tpu.memory_space<vmem>>, vector<4x8xbf16>,
    %c0_179 = arith.constant 0 : index
    %c7_180 = arith.constant 7 : index
    %125 = vector.load %arg64[%c0_179, %c7_180] : memref<48x24xbf16, #tpu.memory_space<vmem>>, vector<4x8xbf16>
    %c28_181 = arith.constant 28 : index
    %c0_182 = arith.constant 0 : index
    %126 = vector.load %arg65[%c28_181, %c0_182] : memref<432x16xbf16, #tpu.memory_space<vmem>>, vector<4x8xbf16>
    tpu.vector_store %arg65[%c28_181, %c0_182], %125 {strides = array<i32>} : memref<432x16xbf16, #tpu.memory_space<vmem>>, vector<4x8xbf16>,
    %c0_183 = arith.constant 0 : index
    %c8_184 = arith.constant 8 : index
    %127 = vector.load %arg64[%c0_183, %c8_184] : memref<48x24xbf16, #tpu.memory_space<vmem>>, vector<4x8xbf16>
    %c32_185 = arith.constant 32 : index
    %c0_186 = arith.constant 0 : index
    %128 = vector.load %arg65[%c32_185, %c0_186] : memref<432x16xbf16, #tpu.memory_space<vmem>>, vector<4x8xbf16>
    tpu.vector_store %arg65[%c32_185, %c0_186], %127 {strides = array<i32>} : memref<432x16xbf16, #tpu.memory_space<vmem>>, vector<4x8xbf16>,
    %c0_187 = arith.constant 0 : index
    %c0_188 = arith.constant 0 : index
    %129 = vector.load %arg65[%c0_187, %c0_188] : memref<432x16xbf16, #tpu.memory_space<vmem>>, vector<36x8xbf16>
    %c0_189 = arith.constant 0 : index
    %c0_190 = arith.constant 0 : index
    %130 = vector.load %arg15[%c0_189, %c0_190] : memref<8x36xbf16, #tpu.memory_space<vmem>>, vector<8x36xbf16>
    %cst_191 = arith.constant dense<0.000000e+00> : vector<8x8xf32>
    %131 = tpu.matmul %130, %129, %cst_191 {dimension_numbers = #tpu.dot_dimension_numbers<[1], [0], [0], [1], [0, 0, 1, 1], [], []>} : vector<8x36xbf16>, vector<36x8xbf16>, vector<8x8xf32> -> vector<8x8xf32>
    %c0_192 = arith.constant 0 : index
    %c0_193 = arith.constant 0 : index
    %132 = vector.load %arg16[%c0_192, %c0_193] : memref<8x1xf32, #tpu.memory_space<vmem>>, vector<8x1xf32>
    %133 = vector.broadcast %132 : vector<8x1xf32> to vector<8x8xf32>
    %134 = arith.mulf %131, %133 : vector<8x8xf32>
    %c0_194 = arith.constant 0 : index
    %c0_195 = arith.constant 0 : index
    %135 = vector.load %arg17[%c0_194, %c0_195] : memref<8x1xf32, #tpu.memory_space<vmem>>, vector<8x1xf32>
    %136 = vector.broadcast %135 : vector<8x1xf32> to vector<8x8xf32>
    %137 = arith.addf %134, %136 : vector<8x8xf32>
    %cst_196 = arith.constant 0.000000e+00 : f32
    %138 = vector.broadcast %cst_196 : f32 to vector<8x8xf32>
    %139 = arith.maximumf %137, %138 : vector<8x8xf32>
    %cst_197 = arith.constant 0.000000e+00 : bf16
    %140 = vector.broadcast %cst_197 : bf16 to vector<8x16xbf16>
    %c0_198 = arith.constant 0 : index
    %c0_199 = arith.constant 0 : index
    %141 = vector.load %arg64[%c0_198, %c0_199] : memref<48x24xbf16, #tpu.memory_space<vmem>>, vector<8x16xbf16>
    tpu.vector_store %arg64[%c0_198, %c0_199], %140 {strides = array<i32>} : memref<48x24xbf16, #tpu.memory_space<vmem>>, vector<8x16xbf16>,
    %142 = arith.truncf %139 : vector<8x8xf32> to vector<8x8xbf16>
    %c0_200 = arith.constant 0 : index
    %c4_201 = arith.constant 4 : index
    %143 = vector.load %arg64[%c0_200, %c4_201] : memref<48x24xbf16, #tpu.memory_space<vmem>>, vector<8x8xbf16>
    tpu.vector_store %arg64[%c0_200, %c4_201], %142 {strides = array<i32>} : memref<48x24xbf16, #tpu.memory_space<vmem>>, vector<8x8xbf16>,
    %c0_202 = arith.constant 0 : index
    %c0_203 = arith.constant 0 : index
    %144 = vector.load %arg64[%c0_202, %c0_203] : memref<48x24xbf16, #tpu.memory_space<vmem>>, vector<8x8xbf16>
    %c0_204 = arith.constant 0 : index
    %c0_205 = arith.constant 0 : index
    %145 = vector.load %arg65[%c0_204, %c0_205] : memref<432x16xbf16, #tpu.memory_space<vmem>>, vector<8x8xbf16>
    tpu.vector_store %arg65[%c0_204, %c0_205], %144 {strides = array<i32>} : memref<432x16xbf16, #tpu.memory_space<vmem>>, vector<8x8xbf16>,
    %c0_206 = arith.constant 0 : index
    %c1_207 = arith.constant 1 : index
    %146 = vector.load %arg64[%c0_206, %c1_207] : memref<48x24xbf16, #tpu.memory_space<vmem>>, vector<8x8xbf16>
    %c8_208 = arith.constant 8 : index
    %c0_209 = arith.constant 0 : index
    %147 = vector.load %arg65[%c8_208, %c0_209] : memref<432x16xbf16, #tpu.memory_space<vmem>>, vector<8x8xbf16>
    tpu.vector_store %arg65[%c8_208, %c0_209], %146 {strides = array<i32>} : memref<432x16xbf16, #tpu.memory_space<vmem>>, vector<8x8xbf16>,
    %c0_210 = arith.constant 0 : index
    %c2_211 = arith.constant 2 : index
    %148 = vector.load %arg64[%c0_210, %c2_211] : memref<48x24xbf16, #tpu.memory_space<vmem>>, vector<8x8xbf16>
    %c16_212 = arith.constant 16 : index
    %c0_213 = arith.constant 0 : index
    %149 = vector.load %arg65[%c16_212, %c0_213] : memref<432x16xbf16, #tpu.memory_space<vmem>>, vector<8x8xbf16>
    tpu.vector_store %arg65[%c16_212, %c0_213], %148 {strides = array<i32>} : memref<432x16xbf16, #tpu.memory_space<vmem>>, vector<8x8xbf16>,
    %c0_214 = arith.constant 0 : index
    %c3_215 = arith.constant 3 : index
    %150 = vector.load %arg64[%c0_214, %c3_215] : memref<48x24xbf16, #tpu.memory_space<vmem>>, vector<8x8xbf16>
    %c24_216 = arith.constant 24 : index
    %c0_217 = arith.constant 0 : index
    %151 = vector.load %arg65[%c24_216, %c0_217] : memref<432x16xbf16, #tpu.memory_space<vmem>>, vector<8x8xbf16>
    tpu.vector_store %arg65[%c24_216, %c0_217], %150 {strides = array<i32>} : memref<432x16xbf16, #tpu.memory_space<vmem>>, vector<8x8xbf16>,
    %c0_218 = arith.constant 0 : index
    %c4_219 = arith.constant 4 : index
    %152 = vector.load %arg64[%c0_218, %c4_219] : memref<48x24xbf16, #tpu.memory_space<vmem>>, vector<8x8xbf16>
    %c32_220 = arith.constant 32 : index
    %c0_221 = arith.constant 0 : index
    %153 = vector.load %arg65[%c32_220, %c0_221] : memref<432x16xbf16, #tpu.memory_space<vmem>>, vector<8x8xbf16>
    tpu.vector_store %arg65[%c32_220, %c0_221], %152 {strides = array<i32>} : memref<432x16xbf16, #tpu.memory_space<vmem>>, vector<8x8xbf16>,
    %c0_222 = arith.constant 0 : index
    %c5_223 = arith.constant 5 : index
    %154 = vector.load %arg64[%c0_222, %c5_223] : memref<48x24xbf16, #tpu.memory_space<vmem>>, vector<8x8xbf16>
    %c40 = arith.constant 40 : index
    %c0_224 = arith.constant 0 : index
    %155 = vector.load %arg65[%c40, %c0_224] : memref<432x16xbf16, #tpu.memory_space<vmem>>, vector<8x8xbf16>
    tpu.vector_store %arg65[%c40, %c0_224], %154 {strides = array<i32>} : memref<432x16xbf16, #tpu.memory_space<vmem>>, vector<8x8xbf16>,
    %c0_225 = arith.constant 0 : index
    %c6_226 = arith.constant 6 : index
    %156 = vector.load %arg64[%c0_225, %c6_226] : memref<48x24xbf16, #tpu.memory_space<vmem>>, vector<8x8xbf16>
    %c48 = arith.constant 48 : index
    %c0_227 = arith.constant 0 : index
    %157 = vector.load %arg65[%c48, %c0_227] : memref<432x16xbf16, #tpu.memory_space<vmem>>, vector<8x8xbf16>
    tpu.vector_store %arg65[%c48, %c0_227], %156 {strides = array<i32>} : memref<432x16xbf16, #tpu.memory_space<vmem>>, vector<8x8xbf16>,
    %c0_228 = arith.constant 0 : index
    %c7_229 = arith.constant 7 : index
    %158 = vector.load %arg64[%c0_228, %c7_229] : memref<48x24xbf16, #tpu.memory_space<vmem>>, vector<8x8xbf16>
    %c56 = arith.constant 56 : index
    %c0_230 = arith.constant 0 : index
    %159 = vector.load %arg65[%c56, %c0_230] : memref<432x16xbf16, #tpu.memory_space<vmem>>, vector<8x8xbf16>
    tpu.vector_store %arg65[%c56, %c0_230], %158 {strides = array<i32>} : memref<432x16xbf16, #tpu.memory_space<vmem>>, vector<8x8xbf16>,
    %c0_231 = arith.constant 0 : index
    %c8_232 = arith.constant 8 : index
    %160 = vector.load %arg64[%c0_231, %c8_232] : memref<48x24xbf16, #tpu.memory_space<vmem>>, vector<8x8xbf16>
    %c64 = arith.constant 64 : index
    %c0_233 = arith.constant 0 : index
    %161 = vector.load %arg65[%c64, %c0_233] : memref<432x16xbf16, #tpu.memory_space<vmem>>, vector<8x8xbf16>
    tpu.vector_store %arg65[%c64, %c0_233], %160 {strides = array<i32>} : memref<432x16xbf16, #tpu.memory_space<vmem>>, vector<8x8xbf16>,
    %c0_234 = arith.constant 0 : index
    %c0_235 = arith.constant 0 : index
    %162 = vector.load %arg65[%c0_234, %c0_235] : memref<432x16xbf16, #tpu.memory_space<vmem>>, vector<72x8xbf16>
    %c0_236 = arith.constant 0 : index
    %c0_237 = arith.constant 0 : index
    %163 = vector.load %arg18[%c0_236, %c0_237] : memref<8x72xbf16, #tpu.memory_space<vmem>>, vector<8x72xbf16>
    %cst_238 = arith.constant dense<0.000000e+00> : vector<8x8xf32>
    %164 = tpu.matmul %163, %162, %cst_238 {dimension_numbers = #tpu.dot_dimension_numbers<[1], [0], [0], [1], [0, 0, 1, 1], [], []>} : vector<8x72xbf16>, vector<72x8xbf16>, vector<8x8xf32> -> vector<8x8xf32>
    %c0_239 = arith.constant 0 : index
    %c0_240 = arith.constant 0 : index
    %165 = vector.load %arg19[%c0_239, %c0_240] : memref<8x1xf32, #tpu.memory_space<vmem>>, vector<8x1xf32>
    %166 = vector.broadcast %165 : vector<8x1xf32> to vector<8x8xf32>
    %167 = arith.mulf %164, %166 : vector<8x8xf32>
    %c0_241 = arith.constant 0 : index
    %c0_242 = arith.constant 0 : index
    %168 = vector.load %arg20[%c0_241, %c0_242] : memref<8x1xf32, #tpu.memory_space<vmem>>, vector<8x1xf32>
    %169 = vector.broadcast %168 : vector<8x1xf32> to vector<8x8xf32>
    %170 = arith.addf %167, %169 : vector<8x8xf32>
    %cst_243 = arith.constant 0.000000e+00 : f32
    %171 = vector.broadcast %cst_243 : f32 to vector<8x8xf32>
    %172 = arith.maximumf %170, %171 : vector<8x8xf32>
    %173 = arith.truncf %172 : vector<8x8xf32> to vector<8x8xbf16>
    %c0_244 = arith.constant 0 : index
    %c0_245 = arith.constant 0 : index
    %174 = vector.load %arg2[%c0_244, %c0_245] : memref<16x8xbf16, #tpu.memory_space<vmem>>, vector<8x4xbf16>
    %c0_246 = arith.constant 0 : index
    %c0_247 = arith.constant 0 : index
    %175 = vector.load %arg3[%c0_246, %c0_247] : memref<16x8xbf16, #tpu.memory_space<vmem>>, vector<8x4xbf16>
    %cst_248 = arith.constant dense<0.000000e+00> : vector<8x4xf32>
    %176 = tpu.matmul %173, %174, %cst_248 {dimension_numbers = #tpu.dot_dimension_numbers<[1], [0], [0], [1], [0, 0, 1, 1], [], []>} : vector<8x8xbf16>, vector<8x4xbf16>, vector<8x4xf32> -> vector<8x4xf32>
    %cst_249 = arith.constant dense<0.000000e+00> : vector<8x4xf32>
    %177 = tpu.matmul %173, %175, %cst_249 {dimension_numbers = #tpu.dot_dimension_numbers<[1], [0], [0], [1], [0, 0, 1, 1], [], []>} : vector<8x8xbf16>, vector<8x4xbf16>, vector<8x4xf32> -> vector<8x4xf32>
    %178 = arith.maximumf %176, %177 : vector<8x4xf32>
    %cst_250 = arith.constant 0.000000e+00 : bf16
    %179 = vector.broadcast %cst_250 : bf16 to vector<8x12xbf16>
    %c0_251 = arith.constant 0 : index
    %c0_252 = arith.constant 0 : index
    %180 = vector.load %arg64[%c0_251, %c0_252] : memref<48x24xbf16, #tpu.memory_space<vmem>>, vector<8x12xbf16>
    tpu.vector_store %arg64[%c0_251, %c0_252], %179 {strides = array<i32>} : memref<48x24xbf16, #tpu.memory_space<vmem>>, vector<8x12xbf16>,
    %181 = arith.truncf %178 : vector<8x4xf32> to vector<8x4xbf16>
    %c0_253 = arith.constant 0 : index
    %c4_254 = arith.constant 4 : index
    %182 = vector.load %arg64[%c0_253, %c4_254] : memref<48x24xbf16, #tpu.memory_space<vmem>>, vector<8x4xbf16>
    tpu.vector_store %arg64[%c0_253, %c4_254], %181 {strides = array<i32>} : memref<48x24xbf16, #tpu.memory_space<vmem>>, vector<8x4xbf16>,
    %c0_255 = arith.constant 0 : index
    %c0_256 = arith.constant 0 : index
    %183 = vector.load %arg64[%c0_255, %c0_256] : memref<48x24xbf16, #tpu.memory_space<vmem>>, vector<8x4xbf16>
    %c0_257 = arith.constant 0 : index
    %c0_258 = arith.constant 0 : index
    %184 = vector.load %arg65[%c0_257, %c0_258] : memref<432x16xbf16, #tpu.memory_space<vmem>>, vector<8x4xbf16>
    tpu.vector_store %arg65[%c0_257, %c0_258], %183 {strides = array<i32>} : memref<432x16xbf16, #tpu.memory_space<vmem>>, vector<8x4xbf16>,
    %c0_259 = arith.constant 0 : index
    %c1_260 = arith.constant 1 : index
    %185 = vector.load %arg64[%c0_259, %c1_260] : memref<48x24xbf16, #tpu.memory_space<vmem>>, vector<8x4xbf16>
    %c8_261 = arith.constant 8 : index
    %c0_262 = arith.constant 0 : index
    %186 = vector.load %arg65[%c8_261, %c0_262] : memref<432x16xbf16, #tpu.memory_space<vmem>>, vector<8x4xbf16>
    tpu.vector_store %arg65[%c8_261, %c0_262], %185 {strides = array<i32>} : memref<432x16xbf16, #tpu.memory_space<vmem>>, vector<8x4xbf16>,
    %c0_263 = arith.constant 0 : index
    %c2_264 = arith.constant 2 : index
    %187 = vector.load %arg64[%c0_263, %c2_264] : memref<48x24xbf16, #tpu.memory_space<vmem>>, vector<8x4xbf16>
    %c16_265 = arith.constant 16 : index
    %c0_266 = arith.constant 0 : index
    %188 = vector.load %arg65[%c16_265, %c0_266] : memref<432x16xbf16, #tpu.memory_space<vmem>>, vector<8x4xbf16>
    tpu.vector_store %arg65[%c16_265, %c0_266], %187 {strides = array<i32>} : memref<432x16xbf16, #tpu.memory_space<vmem>>, vector<8x4xbf16>,
    %c0_267 = arith.constant 0 : index
    %c3_268 = arith.constant 3 : index
    %189 = vector.load %arg64[%c0_267, %c3_268] : memref<48x24xbf16, #tpu.memory_space<vmem>>, vector<8x4xbf16>
    %c24_269 = arith.constant 24 : index
    %c0_270 = arith.constant 0 : index
    %190 = vector.load %arg65[%c24_269, %c0_270] : memref<432x16xbf16, #tpu.memory_space<vmem>>, vector<8x4xbf16>
    tpu.vector_store %arg65[%c24_269, %c0_270], %189 {strides = array<i32>} : memref<432x16xbf16, #tpu.memory_space<vmem>>, vector<8x4xbf16>,
    %c0_271 = arith.constant 0 : index
    %c4_272 = arith.constant 4 : index
    %191 = vector.load %arg64[%c0_271, %c4_272] : memref<48x24xbf16, #tpu.memory_space<vmem>>, vector<8x4xbf16>
    %c32_273 = arith.constant 32 : index
    %c0_274 = arith.constant 0 : index
    %192 = vector.load %arg65[%c32_273, %c0_274] : memref<432x16xbf16, #tpu.memory_space<vmem>>, vector<8x4xbf16>
    tpu.vector_store %arg65[%c32_273, %c0_274], %191 {strides = array<i32>} : memref<432x16xbf16, #tpu.memory_space<vmem>>, vector<8x4xbf16>,
    %c0_275 = arith.constant 0 : index
    %c5_276 = arith.constant 5 : index
    %193 = vector.load %arg64[%c0_275, %c5_276] : memref<48x24xbf16, #tpu.memory_space<vmem>>, vector<8x4xbf16>
    %c40_277 = arith.constant 40 : index
    %c0_278 = arith.constant 0 : index
    %194 = vector.load %arg65[%c40_277, %c0_278] : memref<432x16xbf16, #tpu.memory_space<vmem>>, vector<8x4xbf16>
    tpu.vector_store %arg65[%c40_277, %c0_278], %193 {strides = array<i32>} : memref<432x16xbf16, #tpu.memory_space<vmem>>, vector<8x4xbf16>,
    %c0_279 = arith.constant 0 : index
    %c6_280 = arith.constant 6 : index
    %195 = vector.load %arg64[%c0_279, %c6_280] : memref<48x24xbf16, #tpu.memory_space<vmem>>, vector<8x4xbf16>
    %c48_281 = arith.constant 48 : index
    %c0_282 = arith.constant 0 : index
    %196 = vector.load %arg65[%c48_281, %c0_282] : memref<432x16xbf16, #tpu.memory_space<vmem>>, vector<8x4xbf16>
    tpu.vector_store %arg65[%c48_281, %c0_282], %195 {strides = array<i32>} : memref<432x16xbf16, #tpu.memory_space<vmem>>, vector<8x4xbf16>,
    %c0_283 = arith.constant 0 : index
    %c7_284 = arith.constant 7 : index
    %197 = vector.load %arg64[%c0_283, %c7_284] : memref<48x24xbf16, #tpu.memory_space<vmem>>, vector<8x4xbf16>
    %c56_285 = arith.constant 56 : index
    %c0_286 = arith.constant 0 : index
    %198 = vector.load %arg65[%c56_285, %c0_286] : memref<432x16xbf16, #tpu.memory_space<vmem>>, vector<8x4xbf16>
    tpu.vector_store %arg65[%c56_285, %c0_286], %197 {strides = array<i32>} : memref<432x16xbf16, #tpu.memory_space<vmem>>, vector<8x4xbf16>,
    %c0_287 = arith.constant 0 : index
    %c8_288 = arith.constant 8 : index
    %199 = vector.load %arg64[%c0_287, %c8_288] : memref<48x24xbf16, #tpu.memory_space<vmem>>, vector<8x4xbf16>
    %c64_289 = arith.constant 64 : index
    %c0_290 = arith.constant 0 : index
    %200 = vector.load %arg65[%c64_289, %c0_290] : memref<432x16xbf16, #tpu.memory_space<vmem>>, vector<8x4xbf16>
    tpu.vector_store %arg65[%c64_289, %c0_290], %199 {strides = array<i32>} : memref<432x16xbf16, #tpu.memory_space<vmem>>, vector<8x4xbf16>,
    %c0_291 = arith.constant 0 : index
    %c0_292 = arith.constant 0 : index
    %201 = vector.load %arg65[%c0_291, %c0_292] : memref<432x16xbf16, #tpu.memory_space<vmem>>, vector<72x4xbf16>
    %c0_293 = arith.constant 0 : index
    %c0_294 = arith.constant 0 : index
    %202 = vector.load %arg21[%c0_293, %c0_294] : memref<16x72xbf16, #tpu.memory_space<vmem>>, vector<16x72xbf16>
    %cst_295 = arith.constant dense<0.000000e+00> : vector<16x4xf32>
    %203 = tpu.matmul %202, %201, %cst_295 {dimension_numbers = #tpu.dot_dimension_numbers<[1], [0], [0], [1], [0, 0, 1, 1], [], []>} : vector<16x72xbf16>, vector<72x4xbf16>, vector<16x4xf32> -> vector<16x4xf32>
    %c0_296 = arith.constant 0 : index
    %c0_297 = arith.constant 0 : index
    %204 = vector.load %arg22[%c0_296, %c0_297] : memref<16x1xf32, #tpu.memory_space<vmem>>, vector<16x1xf32>
    %205 = vector.broadcast %204 : vector<16x1xf32> to vector<16x4xf32>
    %206 = arith.mulf %203, %205 : vector<16x4xf32>
    %c0_298 = arith.constant 0 : index
    %c0_299 = arith.constant 0 : index
    %207 = vector.load %arg23[%c0_298, %c0_299] : memref<16x1xf32, #tpu.memory_space<vmem>>, vector<16x1xf32>
    %208 = vector.broadcast %207 : vector<16x1xf32> to vector<16x4xf32>
    %209 = arith.addf %206, %208 : vector<16x4xf32>
    %cst_300 = arith.constant 0.000000e+00 : f32
    %210 = vector.broadcast %cst_300 : f32 to vector<16x4xf32>
    %211 = arith.maximumf %209, %210 : vector<16x4xf32>
    %cst_301 = arith.constant 0.000000e+00 : bf16
    %212 = vector.broadcast %cst_301 : bf16 to vector<16x12xbf16>
    %c0_302 = arith.constant 0 : index
    %c0_303 = arith.constant 0 : index
    %213 = vector.load %arg64[%c0_302, %c0_303] : memref<48x24xbf16, #tpu.memory_space<vmem>>, vector<16x12xbf16>
    tpu.vector_store %arg64[%c0_302, %c0_303], %212 {strides = array<i32>} : memref<48x24xbf16, #tpu.memory_space<vmem>>, vector<16x12xbf16>,
    %214 = arith.truncf %211 : vector<16x4xf32> to vector<16x4xbf16>
    %c0_304 = arith.constant 0 : index
    %c4_305 = arith.constant 4 : index
    %215 = vector.load %arg64[%c0_304, %c4_305] : memref<48x24xbf16, #tpu.memory_space<vmem>>, vector<16x4xbf16>
    tpu.vector_store %arg64[%c0_304, %c4_305], %214 {strides = array<i32>} : memref<48x24xbf16, #tpu.memory_space<vmem>>, vector<16x4xbf16>,
    %c0_306 = arith.constant 0 : index
    %c0_307 = arith.constant 0 : index
    %216 = vector.load %arg64[%c0_306, %c0_307] : memref<48x24xbf16, #tpu.memory_space<vmem>>, vector<16x4xbf16>
    %c0_308 = arith.constant 0 : index
    %c0_309 = arith.constant 0 : index
    %217 = vector.load %arg65[%c0_308, %c0_309] : memref<432x16xbf16, #tpu.memory_space<vmem>>, vector<16x4xbf16>
    tpu.vector_store %arg65[%c0_308, %c0_309], %216 {strides = array<i32>} : memref<432x16xbf16, #tpu.memory_space<vmem>>, vector<16x4xbf16>,
    %c0_310 = arith.constant 0 : index
    %c1_311 = arith.constant 1 : index
    %218 = vector.load %arg64[%c0_310, %c1_311] : memref<48x24xbf16, #tpu.memory_space<vmem>>, vector<16x4xbf16>
    %c16_312 = arith.constant 16 : index
    %c0_313 = arith.constant 0 : index
    %219 = vector.load %arg65[%c16_312, %c0_313] : memref<432x16xbf16, #tpu.memory_space<vmem>>, vector<16x4xbf16>
    tpu.vector_store %arg65[%c16_312, %c0_313], %218 {strides = array<i32>} : memref<432x16xbf16, #tpu.memory_space<vmem>>, vector<16x4xbf16>,
    %c0_314 = arith.constant 0 : index
    %c2_315 = arith.constant 2 : index
    %220 = vector.load %arg64[%c0_314, %c2_315] : memref<48x24xbf16, #tpu.memory_space<vmem>>, vector<16x4xbf16>
    %c32_316 = arith.constant 32 : index
    %c0_317 = arith.constant 0 : index
    %221 = vector.load %arg65[%c32_316, %c0_317] : memref<432x16xbf16, #tpu.memory_space<vmem>>, vector<16x4xbf16>
    tpu.vector_store %arg65[%c32_316, %c0_317], %220 {strides = array<i32>} : memref<432x16xbf16, #tpu.memory_space<vmem>>, vector<16x4xbf16>,
    %c0_318 = arith.constant 0 : index
    %c3_319 = arith.constant 3 : index
    %222 = vector.load %arg64[%c0_318, %c3_319] : memref<48x24xbf16, #tpu.memory_space<vmem>>, vector<16x4xbf16>
    %c48_320 = arith.constant 48 : index
    %c0_321 = arith.constant 0 : index
    %223 = vector.load %arg65[%c48_320, %c0_321] : memref<432x16xbf16, #tpu.memory_space<vmem>>, vector<16x4xbf16>
    tpu.vector_store %arg65[%c48_320, %c0_321], %222 {strides = array<i32>} : memref<432x16xbf16, #tpu.memory_space<vmem>>, vector<16x4xbf16>,
    %c0_322 = arith.constant 0 : index
    %c4_323 = arith.constant 4 : index
    %224 = vector.load %arg64[%c0_322, %c4_323] : memref<48x24xbf16, #tpu.memory_space<vmem>>, vector<16x4xbf16>
    %c64_324 = arith.constant 64 : index
    %c0_325 = arith.constant 0 : index
    %225 = vector.load %arg65[%c64_324, %c0_325] : memref<432x16xbf16, #tpu.memory_space<vmem>>, vector<16x4xbf16>
    tpu.vector_store %arg65[%c64_324, %c0_325], %224 {strides = array<i32>} : memref<432x16xbf16, #tpu.memory_space<vmem>>, vector<16x4xbf16>,
    %c0_326 = arith.constant 0 : index
    %c5_327 = arith.constant 5 : index
    %226 = vector.load %arg64[%c0_326, %c5_327] : memref<48x24xbf16, #tpu.memory_space<vmem>>, vector<16x4xbf16>
    %c80 = arith.constant 80 : index
    %c0_328 = arith.constant 0 : index
    %227 = vector.load %arg65[%c80, %c0_328] : memref<432x16xbf16, #tpu.memory_space<vmem>>, vector<16x4xbf16>
    tpu.vector_store %arg65[%c80, %c0_328], %226 {strides = array<i32>} : memref<432x16xbf16, #tpu.memory_space<vmem>>, vector<16x4xbf16>,
    %c0_329 = arith.constant 0 : index
    %c6_330 = arith.constant 6 : index
    %228 = vector.load %arg64[%c0_329, %c6_330] : memref<48x24xbf16, #tpu.memory_space<vmem>>, vector<16x4xbf16>
    %c96 = arith.constant 96 : index
    %c0_331 = arith.constant 0 : index
    %229 = vector.load %arg65[%c96, %c0_331] : memref<432x16xbf16, #tpu.memory_space<vmem>>, vector<16x4xbf16>
    tpu.vector_store %arg65[%c96, %c0_331], %228 {strides = array<i32>} : memref<432x16xbf16, #tpu.memory_space<vmem>>, vector<16x4xbf16>,
    %c0_332 = arith.constant 0 : index
    %c7_333 = arith.constant 7 : index
    %230 = vector.load %arg64[%c0_332, %c7_333] : memref<48x24xbf16, #tpu.memory_space<vmem>>, vector<16x4xbf16>
    %c112 = arith.constant 112 : index
    %c0_334 = arith.constant 0 : index
    %231 = vector.load %arg65[%c112, %c0_334] : memref<432x16xbf16, #tpu.memory_space<vmem>>, vector<16x4xbf16>
    tpu.vector_store %arg65[%c112, %c0_334], %230 {strides = array<i32>} : memref<432x16xbf16, #tpu.memory_space<vmem>>, vector<16x4xbf16>,
    %c0_335 = arith.constant 0 : index
    %c8_336 = arith.constant 8 : index
    %232 = vector.load %arg64[%c0_335, %c8_336] : memref<48x24xbf16, #tpu.memory_space<vmem>>, vector<16x4xbf16>
    %c128 = arith.constant 128 : index
    %c0_337 = arith.constant 0 : index
    %233 = vector.load %arg65[%c128, %c0_337] : memref<432x16xbf16, #tpu.memory_space<vmem>>, vector<16x4xbf16>
    tpu.vector_store %arg65[%c128, %c0_337], %232 {strides = array<i32>} : memref<432x16xbf16, #tpu.memory_space<vmem>>, vector<16x4xbf16>,
    %c0_338 = arith.constant 0 : index
    %c0_339 = arith.constant 0 : index
    %234 = vector.load %arg65[%c0_338, %c0_339] : memref<432x16xbf16, #tpu.memory_space<vmem>>, vector<144x4xbf16>
    %c0_340 = arith.constant 0 : index
    %c0_341 = arith.constant 0 : index
    %235 = vector.load %arg24[%c0_340, %c0_341] : memref<16x144xbf16, #tpu.memory_space<vmem>>, vector<16x144xbf16>
    %cst_342 = arith.constant dense<0.000000e+00> : vector<16x4xf32>
    %236 = tpu.matmul %235, %234, %cst_342 {dimension_numbers = #tpu.dot_dimension_numbers<[1], [0], [0], [1], [0, 0, 1, 1], [], []>} : vector<16x144xbf16>, vector<144x4xbf16>, vector<16x4xf32> -> vector<16x4xf32>
    %c0_343 = arith.constant 0 : index
    %c0_344 = arith.constant 0 : index
    %237 = vector.load %arg25[%c0_343, %c0_344] : memref<16x1xf32, #tpu.memory_space<vmem>>, vector<16x1xf32>
    %238 = vector.broadcast %237 : vector<16x1xf32> to vector<16x4xf32>
    %239 = arith.mulf %236, %238 : vector<16x4xf32>
    %c0_345 = arith.constant 0 : index
    %c0_346 = arith.constant 0 : index
    %240 = vector.load %arg26[%c0_345, %c0_346] : memref<16x1xf32, #tpu.memory_space<vmem>>, vector<16x1xf32>
    %241 = vector.broadcast %240 : vector<16x1xf32> to vector<16x4xf32>
    %242 = arith.addf %239, %241 : vector<16x4xf32>
    %cst_347 = arith.constant 0.000000e+00 : f32
    %243 = vector.broadcast %cst_347 : f32 to vector<16x4xf32>
    %244 = arith.maximumf %242, %243 : vector<16x4xf32>
    %245 = arith.truncf %244 : vector<16x4xf32> to vector<16x4xbf16>
    %c0_348 = arith.constant 0 : index
    %c0_349 = arith.constant 0 : index
    %246 = vector.load %arg2[%c0_348, %c0_349] : memref<16x8xbf16, #tpu.memory_space<vmem>>, vector<4x2xbf16>
    %c0_350 = arith.constant 0 : index
    %c0_351 = arith.constant 0 : index
    %247 = vector.load %arg3[%c0_350, %c0_351] : memref<16x8xbf16, #tpu.memory_space<vmem>>, vector<4x2xbf16>
    %cst_352 = arith.constant dense<0.000000e+00> : vector<16x2xf32>
    %248 = tpu.matmul %245, %246, %cst_352 {dimension_numbers = #tpu.dot_dimension_numbers<[1], [0], [0], [1], [0, 0, 1, 1], [], []>} : vector<16x4xbf16>, vector<4x2xbf16>, vector<16x2xf32> -> vector<16x2xf32>
    %cst_353 = arith.constant dense<0.000000e+00> : vector<16x2xf32>
    %249 = tpu.matmul %245, %247, %cst_353 {dimension_numbers = #tpu.dot_dimension_numbers<[1], [0], [0], [1], [0, 0, 1, 1], [], []>} : vector<16x4xbf16>, vector<4x2xbf16>, vector<16x2xf32> -> vector<16x2xf32>
    %250 = arith.maximumf %248, %249 : vector<16x2xf32>
    %cst_354 = arith.constant 0.000000e+00 : bf16
    %251 = vector.broadcast %cst_354 : bf16 to vector<16x10xbf16>
    %c0_355 = arith.constant 0 : index
    %c0_356 = arith.constant 0 : index
    %252 = vector.load %arg64[%c0_355, %c0_356] : memref<48x24xbf16, #tpu.memory_space<vmem>>, vector<16x10xbf16>
    tpu.vector_store %arg64[%c0_355, %c0_356], %251 {strides = array<i32>} : memref<48x24xbf16, #tpu.memory_space<vmem>>, vector<16x10xbf16>,
    %253 = arith.truncf %250 : vector<16x2xf32> to vector<16x2xbf16>
    %c0_357 = arith.constant 0 : index
    %c4_358 = arith.constant 4 : index
    %254 = vector.load %arg64[%c0_357, %c4_358] : memref<48x24xbf16, #tpu.memory_space<vmem>>, vector<16x2xbf16>
    tpu.vector_store %arg64[%c0_357, %c4_358], %253 {strides = array<i32>} : memref<48x24xbf16, #tpu.memory_space<vmem>>, vector<16x2xbf16>,
    %c0_359 = arith.constant 0 : index
    %c0_360 = arith.constant 0 : index
    %255 = vector.load %arg64[%c0_359, %c0_360] : memref<48x24xbf16, #tpu.memory_space<vmem>>, vector<16x2xbf16>
    %c0_361 = arith.constant 0 : index
    %c0_362 = arith.constant 0 : index
    %256 = vector.load %arg65[%c0_361, %c0_362] : memref<432x16xbf16, #tpu.memory_space<vmem>>, vector<16x2xbf16>
    tpu.vector_store %arg65[%c0_361, %c0_362], %255 {strides = array<i32>} : memref<432x16xbf16, #tpu.memory_space<vmem>>, vector<16x2xbf16>,
    %c0_363 = arith.constant 0 : index
    %c1_364 = arith.constant 1 : index
    %257 = vector.load %arg64[%c0_363, %c1_364] : memref<48x24xbf16, #tpu.memory_space<vmem>>, vector<16x2xbf16>
    %c16_365 = arith.constant 16 : index
    %c0_366 = arith.constant 0 : index
    %258 = vector.load %arg65[%c16_365, %c0_366] : memref<432x16xbf16, #tpu.memory_space<vmem>>, vector<16x2xbf16>
    tpu.vector_store %arg65[%c16_365, %c0_366], %257 {strides = array<i32>} : memref<432x16xbf16, #tpu.memory_space<vmem>>, vector<16x2xbf16>,
    %c0_367 = arith.constant 0 : index
    %c2_368 = arith.constant 2 : index
    %259 = vector.load %arg64[%c0_367, %c2_368] : memref<48x24xbf16, #tpu.memory_space<vmem>>, vector<16x2xbf16>
    %c32_369 = arith.constant 32 : index
    %c0_370 = arith.constant 0 : index
    %260 = vector.load %arg65[%c32_369, %c0_370] : memref<432x16xbf16, #tpu.memory_space<vmem>>, vector<16x2xbf16>
    tpu.vector_store %arg65[%c32_369, %c0_370], %259 {strides = array<i32>} : memref<432x16xbf16, #tpu.memory_space<vmem>>, vector<16x2xbf16>,
    %c0_371 = arith.constant 0 : index
    %c3_372 = arith.constant 3 : index
    %261 = vector.load %arg64[%c0_371, %c3_372] : memref<48x24xbf16, #tpu.memory_space<vmem>>, vector<16x2xbf16>
    %c48_373 = arith.constant 48 : index
    %c0_374 = arith.constant 0 : index
    %262 = vector.load %arg65[%c48_373, %c0_374] : memref<432x16xbf16, #tpu.memory_space<vmem>>, vector<16x2xbf16>
    tpu.vector_store %arg65[%c48_373, %c0_374], %261 {strides = array<i32>} : memref<432x16xbf16, #tpu.memory_space<vmem>>, vector<16x2xbf16>,
    %c0_375 = arith.constant 0 : index
    %c4_376 = arith.constant 4 : index
    %263 = vector.load %arg64[%c0_375, %c4_376] : memref<48x24xbf16, #tpu.memory_space<vmem>>, vector<16x2xbf16>
    %c64_377 = arith.constant 64 : index
    %c0_378 = arith.constant 0 : index
    %264 = vector.load %arg65[%c64_377, %c0_378] : memref<432x16xbf16, #tpu.memory_space<vmem>>, vector<16x2xbf16>
    tpu.vector_store %arg65[%c64_377, %c0_378], %263 {strides = array<i32>} : memref<432x16xbf16, #tpu.memory_space<vmem>>, vector<16x2xbf16>,
    %c0_379 = arith.constant 0 : index
    %c5_380 = arith.constant 5 : index
    %265 = vector.load %arg64[%c0_379, %c5_380] : memref<48x24xbf16, #tpu.memory_space<vmem>>, vector<16x2xbf16>
    %c80_381 = arith.constant 80 : index
    %c0_382 = arith.constant 0 : index
    %266 = vector.load %arg65[%c80_381, %c0_382] : memref<432x16xbf16, #tpu.memory_space<vmem>>, vector<16x2xbf16>
    tpu.vector_store %arg65[%c80_381, %c0_382], %265 {strides = array<i32>} : memref<432x16xbf16, #tpu.memory_space<vmem>>, vector<16x2xbf16>,
    %c0_383 = arith.constant 0 : index
    %c6_384 = arith.constant 6 : index
    %267 = vector.load %arg64[%c0_383, %c6_384] : memref<48x24xbf16, #tpu.memory_space<vmem>>, vector<16x2xbf16>
    %c96_385 = arith.constant 96 : index
    %c0_386 = arith.constant 0 : index
    %268 = vector.load %arg65[%c96_385, %c0_386] : memref<432x16xbf16, #tpu.memory_space<vmem>>, vector<16x2xbf16>
    tpu.vector_store %arg65[%c96_385, %c0_386], %267 {strides = array<i32>} : memref<432x16xbf16, #tpu.memory_space<vmem>>, vector<16x2xbf16>,
    %c0_387 = arith.constant 0 : index
    %c7_388 = arith.constant 7 : index
    %269 = vector.load %arg64[%c0_387, %c7_388] : memref<48x24xbf16, #tpu.memory_space<vmem>>, vector<16x2xbf16>
    %c112_389 = arith.constant 112 : index
    %c0_390 = arith.constant 0 : index
    %270 = vector.load %arg65[%c112_389, %c0_390] : memref<432x16xbf16, #tpu.memory_space<vmem>>, vector<16x2xbf16>
    tpu.vector_store %arg65[%c112_389, %c0_390], %269 {strides = array<i32>} : memref<432x16xbf16, #tpu.memory_space<vmem>>, vector<16x2xbf16>,
    %c0_391 = arith.constant 0 : index
    %c8_392 = arith.constant 8 : index
    %271 = vector.load %arg64[%c0_391, %c8_392] : memref<48x24xbf16, #tpu.memory_space<vmem>>, vector<16x2xbf16>
    %c128_393 = arith.constant 128 : index
    %c0_394 = arith.constant 0 : index
    %272 = vector.load %arg65[%c128_393, %c0_394] : memref<432x16xbf16, #tpu.memory_space<vmem>>, vector<16x2xbf16>
    tpu.vector_store %arg65[%c128_393, %c0_394], %271 {strides = array<i32>} : memref<432x16xbf16, #tpu.memory_space<vmem>>, vector<16x2xbf16>,
    %c0_395 = arith.constant 0 : index
    %c0_396 = arith.constant 0 : index
    %273 = vector.load %arg65[%c0_395, %c0_396] : memref<432x16xbf16, #tpu.memory_space<vmem>>, vector<144x2xbf16>
    %c0_397 = arith.constant 0 : index
    %c0_398 = arith.constant 0 : index
    %274 = vector.load %arg27[%c0_397, %c0_398] : memref<32x144xbf16, #tpu.memory_space<vmem>>, vector<32x144xbf16>
    %cst_399 = arith.constant dense<0.000000e+00> : vector<32x2xf32>
    %275 = tpu.matmul %274, %273, %cst_399 {dimension_numbers = #tpu.dot_dimension_numbers<[1], [0], [0], [1], [0, 0, 1, 1], [], []>} : vector<32x144xbf16>, vector<144x2xbf16>, vector<32x2xf32> -> vector<32x2xf32>
    %c0_400 = arith.constant 0 : index
    %c0_401 = arith.constant 0 : index
    %276 = vector.load %arg28[%c0_400, %c0_401] : memref<32x1xf32, #tpu.memory_space<vmem>>, vector<32x1xf32>
    %277 = vector.broadcast %276 : vector<32x1xf32> to vector<32x2xf32>
    %278 = arith.mulf %275, %277 : vector<32x2xf32>
    %c0_402 = arith.constant 0 : index
    %c0_403 = arith.constant 0 : index
    %279 = vector.load %arg29[%c0_402, %c0_403] : memref<32x1xf32, #tpu.memory_space<vmem>>, vector<32x1xf32>
    %280 = vector.broadcast %279 : vector<32x1xf32> to vector<32x2xf32>
    %281 = arith.addf %278, %280 : vector<32x2xf32>
    %cst_404 = arith.constant 0.000000e+00 : f32
    %282 = vector.broadcast %cst_404 : f32 to vector<32x2xf32>
    %283 = arith.maximumf %281, %282 : vector<32x2xf32>
    %cst_405 = arith.constant 0.000000e+00 : bf16
    %284 = vector.broadcast %cst_405 : bf16 to vector<32x10xbf16>
    %c0_406 = arith.constant 0 : index
    %c0_407 = arith.constant 0 : index
    %285 = vector.load %arg64[%c0_406, %c0_407] : memref<48x24xbf16, #tpu.memory_space<vmem>>, vector<32x10xbf16>
    tpu.vector_store %arg64[%c0_406, %c0_407], %284 {strides = array<i32>} : memref<48x24xbf16, #tpu.memory_space<vmem>>, vector<32x10xbf16>,
    %286 = arith.truncf %283 : vector<32x2xf32> to vector<32x2xbf16>
    %c0_408 = arith.constant 0 : index
    %c4_409 = arith.constant 4 : index
    %287 = vector.load %arg64[%c0_408, %c4_409] : memref<48x24xbf16, #tpu.memory_space<vmem>>, vector<32x2xbf16>
    tpu.vector_store %arg64[%c0_408, %c4_409], %286 {strides = array<i32>} : memref<48x24xbf16, #tpu.memory_space<vmem>>, vector<32x2xbf16>,
    %c0_410 = arith.constant 0 : index
    %c0_411 = arith.constant 0 : index
    %288 = vector.load %arg64[%c0_410, %c0_411] : memref<48x24xbf16, #tpu.memory_space<vmem>>, vector<32x2xbf16>
    %c0_412 = arith.constant 0 : index
    %c0_413 = arith.constant 0 : index
    %289 = vector.load %arg65[%c0_412, %c0_413] : memref<432x16xbf16, #tpu.memory_space<vmem>>, vector<32x2xbf16>
    tpu.vector_store %arg65[%c0_412, %c0_413], %288 {strides = array<i32>} : memref<432x16xbf16, #tpu.memory_space<vmem>>, vector<32x2xbf16>,
    %c0_414 = arith.constant 0 : index
    %c1_415 = arith.constant 1 : index
    %290 = vector.load %arg64[%c0_414, %c1_415] : memref<48x24xbf16, #tpu.memory_space<vmem>>, vector<32x2xbf16>
    %c32_416 = arith.constant 32 : index
    %c0_417 = arith.constant 0 : index
    %291 = vector.load %arg65[%c32_416, %c0_417] : memref<432x16xbf16, #tpu.memory_space<vmem>>, vector<32x2xbf16>
    tpu.vector_store %arg65[%c32_416, %c0_417], %290 {strides = array<i32>} : memref<432x16xbf16, #tpu.memory_space<vmem>>, vector<32x2xbf16>,
    %c0_418 = arith.constant 0 : index
    %c2_419 = arith.constant 2 : index
    %292 = vector.load %arg64[%c0_418, %c2_419] : memref<48x24xbf16, #tpu.memory_space<vmem>>, vector<32x2xbf16>
    %c64_420 = arith.constant 64 : index
    %c0_421 = arith.constant 0 : index
    %293 = vector.load %arg65[%c64_420, %c0_421] : memref<432x16xbf16, #tpu.memory_space<vmem>>, vector<32x2xbf16>
    tpu.vector_store %arg65[%c64_420, %c0_421], %292 {strides = array<i32>} : memref<432x16xbf16, #tpu.memory_space<vmem>>, vector<32x2xbf16>,
    %c0_422 = arith.constant 0 : index
    %c3_423 = arith.constant 3 : index
    %294 = vector.load %arg64[%c0_422, %c3_423] : memref<48x24xbf16, #tpu.memory_space<vmem>>, vector<32x2xbf16>
    %c96_424 = arith.constant 96 : index
    %c0_425 = arith.constant 0 : index
    %295 = vector.load %arg65[%c96_424, %c0_425] : memref<432x16xbf16, #tpu.memory_space<vmem>>, vector<32x2xbf16>
    tpu.vector_store %arg65[%c96_424, %c0_425], %294 {strides = array<i32>} : memref<432x16xbf16, #tpu.memory_space<vmem>>, vector<32x2xbf16>,
    %c0_426 = arith.constant 0 : index
    %c4_427 = arith.constant 4 : index
    %296 = vector.load %arg64[%c0_426, %c4_427] : memref<48x24xbf16, #tpu.memory_space<vmem>>, vector<32x2xbf16>
    %c128_428 = arith.constant 128 : index
    %c0_429 = arith.constant 0 : index
    %297 = vector.load %arg65[%c128_428, %c0_429] : memref<432x16xbf16, #tpu.memory_space<vmem>>, vector<32x2xbf16>
    tpu.vector_store %arg65[%c128_428, %c0_429], %296 {strides = array<i32>} : memref<432x16xbf16, #tpu.memory_space<vmem>>, vector<32x2xbf16>,
    %c0_430 = arith.constant 0 : index
    %c5_431 = arith.constant 5 : index
    %298 = vector.load %arg64[%c0_430, %c5_431] : memref<48x24xbf16, #tpu.memory_space<vmem>>, vector<32x2xbf16>
    %c160 = arith.constant 160 : index
    %c0_432 = arith.constant 0 : index
    %299 = vector.load %arg65[%c160, %c0_432] : memref<432x16xbf16, #tpu.memory_space<vmem>>, vector<32x2xbf16>
    tpu.vector_store %arg65[%c160, %c0_432], %298 {strides = array<i32>} : memref<432x16xbf16, #tpu.memory_space<vmem>>, vector<32x2xbf16>,
    %c0_433 = arith.constant 0 : index
    %c6_434 = arith.constant 6 : index
    %300 = vector.load %arg64[%c0_433, %c6_434] : memref<48x24xbf16, #tpu.memory_space<vmem>>, vector<32x2xbf16>
    %c192 = arith.constant 192 : index
    %c0_435 = arith.constant 0 : index
    %301 = vector.load %arg65[%c192, %c0_435] : memref<432x16xbf16, #tpu.memory_space<vmem>>, vector<32x2xbf16>
    tpu.vector_store %arg65[%c192, %c0_435], %300 {strides = array<i32>} : memref<432x16xbf16, #tpu.memory_space<vmem>>, vector<32x2xbf16>,
    %c0_436 = arith.constant 0 : index
    %c7_437 = arith.constant 7 : index
    %302 = vector.load %arg64[%c0_436, %c7_437] : memref<48x24xbf16, #tpu.memory_space<vmem>>, vector<32x2xbf16>
    %c224 = arith.constant 224 : index
    %c0_438 = arith.constant 0 : index
    %303 = vector.load %arg65[%c224, %c0_438] : memref<432x16xbf16, #tpu.memory_space<vmem>>, vector<32x2xbf16>
    tpu.vector_store %arg65[%c224, %c0_438], %302 {strides = array<i32>} : memref<432x16xbf16, #tpu.memory_space<vmem>>, vector<32x2xbf16>,
    %c0_439 = arith.constant 0 : index
    %c8_440 = arith.constant 8 : index
    %304 = vector.load %arg64[%c0_439, %c8_440] : memref<48x24xbf16, #tpu.memory_space<vmem>>, vector<32x2xbf16>
    %c256 = arith.constant 256 : index
    %c0_441 = arith.constant 0 : index
    %305 = vector.load %arg65[%c256, %c0_441] : memref<432x16xbf16, #tpu.memory_space<vmem>>, vector<32x2xbf16>
    tpu.vector_store %arg65[%c256, %c0_441], %304 {strides = array<i32>} : memref<432x16xbf16, #tpu.memory_space<vmem>>, vector<32x2xbf16>,
    %c0_442 = arith.constant 0 : index
    %c0_443 = arith.constant 0 : index
    %306 = vector.load %arg65[%c0_442, %c0_443] : memref<432x16xbf16, #tpu.memory_space<vmem>>, vector<288x2xbf16>
    %c0_444 = arith.constant 0 : index
    %c0_445 = arith.constant 0 : index
    %307 = vector.load %arg30[%c0_444, %c0_445] : memref<32x288xbf16, #tpu.memory_space<vmem>>, vector<32x288xbf16>
    %cst_446 = arith.constant dense<0.000000e+00> : vector<32x2xf32>
    %308 = tpu.matmul %307, %306, %cst_446 {dimension_numbers = #tpu.dot_dimension_numbers<[1], [0], [0], [1], [0, 0, 1, 1], [], []>} : vector<32x288xbf16>, vector<288x2xbf16>, vector<32x2xf32> -> vector<32x2xf32>
    %c0_447 = arith.constant 0 : index
    %c0_448 = arith.constant 0 : index
    %309 = vector.load %arg31[%c0_447, %c0_448] : memref<32x1xf32, #tpu.memory_space<vmem>>, vector<32x1xf32>
    %310 = vector.broadcast %309 : vector<32x1xf32> to vector<32x2xf32>
    %311 = arith.mulf %308, %310 : vector<32x2xf32>
    %c0_449 = arith.constant 0 : index
    %c0_450 = arith.constant 0 : index
    %312 = vector.load %arg32[%c0_449, %c0_450] : memref<32x1xf32, #tpu.memory_space<vmem>>, vector<32x1xf32>
    %313 = vector.broadcast %312 : vector<32x1xf32> to vector<32x2xf32>
    %314 = arith.addf %311, %313 : vector<32x2xf32>
    %cst_451 = arith.constant 0.000000e+00 : f32
    %315 = vector.broadcast %cst_451 : f32 to vector<32x2xf32>
    %316 = arith.maximumf %314, %315 : vector<32x2xf32>
    %cst_452 = arith.constant 0.000000e+00 : bf16
    %317 = vector.broadcast %cst_452 : bf16 to vector<32x6xbf16>
    %c0_453 = arith.constant 0 : index
    %c0_454 = arith.constant 0 : index
    %318 = vector.load %arg64[%c0_453, %c0_454] : memref<48x24xbf16, #tpu.memory_space<vmem>>, vector<32x6xbf16>
    tpu.vector_store %arg64[%c0_453, %c0_454], %317 {strides = array<i32>} : memref<48x24xbf16, #tpu.memory_space<vmem>>, vector<32x6xbf16>,
    %319 = arith.truncf %316 : vector<32x2xf32> to vector<32x2xbf16>
    %c0_455 = arith.constant 0 : index
    %c2_456 = arith.constant 2 : index
    %320 = vector.load %arg64[%c0_455, %c2_456] : memref<48x24xbf16, #tpu.memory_space<vmem>>, vector<32x2xbf16>
    tpu.vector_store %arg64[%c0_455, %c2_456], %319 {strides = array<i32>} : memref<48x24xbf16, #tpu.memory_space<vmem>>, vector<32x2xbf16>,
    %c0_457 = arith.constant 0 : index
    %c0_458 = arith.constant 0 : index
    %321 = vector.load %arg64[%c0_457, %c0_458] : memref<48x24xbf16, #tpu.memory_space<vmem>>, vector<32x2xbf16>
    %c0_459 = arith.constant 0 : index
    %c0_460 = arith.constant 0 : index
    %322 = vector.load %arg65[%c0_459, %c0_460] : memref<432x16xbf16, #tpu.memory_space<vmem>>, vector<32x2xbf16>
    tpu.vector_store %arg65[%c0_459, %c0_460], %321 {strides = array<i32>} : memref<432x16xbf16, #tpu.memory_space<vmem>>, vector<32x2xbf16>,
    %c0_461 = arith.constant 0 : index
    %c1_462 = arith.constant 1 : index
    %323 = vector.load %arg64[%c0_461, %c1_462] : memref<48x24xbf16, #tpu.memory_space<vmem>>, vector<32x2xbf16>
    %c32_463 = arith.constant 32 : index
    %c0_464 = arith.constant 0 : index
    %324 = vector.load %arg65[%c32_463, %c0_464] : memref<432x16xbf16, #tpu.memory_space<vmem>>, vector<32x2xbf16>
    tpu.vector_store %arg65[%c32_463, %c0_464], %323 {strides = array<i32>} : memref<432x16xbf16, #tpu.memory_space<vmem>>, vector<32x2xbf16>,
    %c0_465 = arith.constant 0 : index
    %c2_466 = arith.constant 2 : index
    %325 = vector.load %arg64[%c0_465, %c2_466] : memref<48x24xbf16, #tpu.memory_space<vmem>>, vector<32x2xbf16>
    %c64_467 = arith.constant 64 : index
    %c0_468 = arith.constant 0 : index
    %326 = vector.load %arg65[%c64_467, %c0_468] : memref<432x16xbf16, #tpu.memory_space<vmem>>, vector<32x2xbf16>
    tpu.vector_store %arg65[%c64_467, %c0_468], %325 {strides = array<i32>} : memref<432x16xbf16, #tpu.memory_space<vmem>>, vector<32x2xbf16>,
    %c0_469 = arith.constant 0 : index
    %c3_470 = arith.constant 3 : index
    %327 = vector.load %arg64[%c0_469, %c3_470] : memref<48x24xbf16, #tpu.memory_space<vmem>>, vector<32x2xbf16>
    %c96_471 = arith.constant 96 : index
    %c0_472 = arith.constant 0 : index
    %328 = vector.load %arg65[%c96_471, %c0_472] : memref<432x16xbf16, #tpu.memory_space<vmem>>, vector<32x2xbf16>
    tpu.vector_store %arg65[%c96_471, %c0_472], %327 {strides = array<i32>} : memref<432x16xbf16, #tpu.memory_space<vmem>>, vector<32x2xbf16>,
    %c0_473 = arith.constant 0 : index
    %c4_474 = arith.constant 4 : index
    %329 = vector.load %arg64[%c0_473, %c4_474] : memref<48x24xbf16, #tpu.memory_space<vmem>>, vector<32x2xbf16>
    %c128_475 = arith.constant 128 : index
    %c0_476 = arith.constant 0 : index
    %330 = vector.load %arg65[%c128_475, %c0_476] : memref<432x16xbf16, #tpu.memory_space<vmem>>, vector<32x2xbf16>
    tpu.vector_store %arg65[%c128_475, %c0_476], %329 {strides = array<i32>} : memref<432x16xbf16, #tpu.memory_space<vmem>>, vector<32x2xbf16>,
    %c0_477 = arith.constant 0 : index
    %c0_478 = arith.constant 0 : index
    %331 = vector.load %arg65[%c0_477, %c0_478] : memref<432x16xbf16, #tpu.memory_space<vmem>>, vector<160x2xbf16>
    %c0_479 = arith.constant 0 : index
    %c0_480 = arith.constant 0 : index
    %332 = vector.load %arg57[%c0_479, %c0_480] : memref<64x160xbf16, #tpu.memory_space<vmem>>, vector<64x160xbf16>
    %cst_481 = arith.constant dense<0.000000e+00> : vector<64x2xf32>
    %333 = tpu.matmul %332, %331, %cst_481 {dimension_numbers = #tpu.dot_dimension_numbers<[1], [0], [0], [1], [0, 0, 1, 1], [], []>} : vector<64x160xbf16>, vector<160x2xbf16>, vector<64x2xf32> -> vector<64x2xf32>
    %c0_482 = arith.constant 0 : index
    %c0_483 = arith.constant 0 : index
    %334 = vector.load %arg58[%c0_482, %c0_483] : memref<64x1xf32, #tpu.memory_space<vmem>>, vector<64x1xf32>
    %335 = vector.broadcast %334 : vector<64x1xf32> to vector<64x2xf32>
    %336 = arith.addf %333, %335 : vector<64x2xf32>
    %337 = vector.extract_strided_slice %336 {offsets = [0, 0], sizes = [32, 2], strides = [1, 1]} : vector<64x2xf32> to vector<32x2xf32>
    %338 = arith.truncf %337 : vector<32x2xf32> to vector<32x2xbf16>
    %339 = vector.extract_strided_slice %336 {offsets = [32, 0], sizes = [32, 2], strides = [1, 1]} : vector<64x2xf32> to vector<32x2xf32>
    %340 = arith.truncf %339 : vector<32x2xf32> to vector<32x2xbf16>
    %c0_484 = arith.constant 0 : index
    %c0_485 = arith.constant 0 : index
    %341 = vector.load %arg4[%c0_484, %c0_485] : memref<8x16xbf16, #tpu.memory_space<vmem>>, vector<2x4xbf16>
    %c0_486 = arith.constant 0 : index
    %c0_487 = arith.constant 0 : index
    %342 = vector.load %arg5[%c0_486, %c0_487] : memref<8x16xbf16, #tpu.memory_space<vmem>>, vector<2x4xbf16>
    %cst_488 = arith.constant dense<0.000000e+00> : vector<32x4xf32>
    %343 = tpu.matmul %338, %341, %cst_488 {dimension_numbers = #tpu.dot_dimension_numbers<[1], [0], [0], [1], [0, 0, 1, 1], [], []>} : vector<32x2xbf16>, vector<2x4xbf16>, vector<32x4xf32> -> vector<32x4xf32>
    %cst_489 = arith.constant dense<0.000000e+00> : vector<32x4xf32>
    %344 = tpu.matmul %340, %342, %cst_489 {dimension_numbers = #tpu.dot_dimension_numbers<[1], [0], [0], [1], [0, 0, 1, 1], [], []>} : vector<32x2xbf16>, vector<2x4xbf16>, vector<32x4xf32> -> vector<32x4xf32>
    %345 = arith.addf %343, %344 : vector<32x4xf32>
    %cst_490 = arith.constant 0.000000e+00 : bf16
    %346 = vector.broadcast %cst_490 : bf16 to vector<16x12xbf16>
    %c0_491 = arith.constant 0 : index
    %c0_492 = arith.constant 0 : index
    %347 = vector.load %arg64[%c0_491, %c0_492] : memref<48x24xbf16, #tpu.memory_space<vmem>>, vector<16x12xbf16>
    tpu.vector_store %arg64[%c0_491, %c0_492], %346 {strides = array<i32>} : memref<48x24xbf16, #tpu.memory_space<vmem>>, vector<16x12xbf16>,
    %348 = arith.truncf %244 : vector<16x4xf32> to vector<16x4xbf16>
    %c0_493 = arith.constant 0 : index
    %c4_494 = arith.constant 4 : index
    %349 = vector.load %arg64[%c0_493, %c4_494] : memref<48x24xbf16, #tpu.memory_space<vmem>>, vector<16x4xbf16>
    tpu.vector_store %arg64[%c0_493, %c4_494], %348 {strides = array<i32>} : memref<48x24xbf16, #tpu.memory_space<vmem>>, vector<16x4xbf16>,
    %cst_495 = arith.constant 0.000000e+00 : bf16
    %350 = vector.broadcast %cst_495 : bf16 to vector<32x12xbf16>
    %c16_496 = arith.constant 16 : index
    %c0_497 = arith.constant 0 : index
    %351 = vector.load %arg64[%c16_496, %c0_497] : memref<48x24xbf16, #tpu.memory_space<vmem>>, vector<32x12xbf16>
    tpu.vector_store %arg64[%c16_496, %c0_497], %350 {strides = array<i32>} : memref<48x24xbf16, #tpu.memory_space<vmem>>, vector<32x12xbf16>,
    %352 = arith.truncf %345 : vector<32x4xf32> to vector<32x4xbf16>
    %c16_498 = arith.constant 16 : index
    %c4_499 = arith.constant 4 : index
    %353 = vector.load %arg64[%c16_498, %c4_499] : memref<48x24xbf16, #tpu.memory_space<vmem>>, vector<32x4xbf16>
    tpu.vector_store %arg64[%c16_498, %c4_499], %352 {strides = array<i32>} : memref<48x24xbf16, #tpu.memory_space<vmem>>, vector<32x4xbf16>,
    %c0_500 = arith.constant 0 : index
    %c0_501 = arith.constant 0 : index
    %354 = vector.load %arg64[%c0_500, %c0_501] : memref<48x24xbf16, #tpu.memory_space<vmem>>, vector<48x4xbf16>
    %c0_502 = arith.constant 0 : index
    %c0_503 = arith.constant 0 : index
    %355 = vector.load %arg65[%c0_502, %c0_503] : memref<432x16xbf16, #tpu.memory_space<vmem>>, vector<48x4xbf16>
    tpu.vector_store %arg65[%c0_502, %c0_503], %354 {strides = array<i32>} : memref<432x16xbf16, #tpu.memory_space<vmem>>, vector<48x4xbf16>,
    %c0_504 = arith.constant 0 : index
    %c1_505 = arith.constant 1 : index
    %356 = vector.load %arg64[%c0_504, %c1_505] : memref<48x24xbf16, #tpu.memory_space<vmem>>, vector<48x4xbf16>
    %c48_506 = arith.constant 48 : index
    %c0_507 = arith.constant 0 : index
    %357 = vector.load %arg65[%c48_506, %c0_507] : memref<432x16xbf16, #tpu.memory_space<vmem>>, vector<48x4xbf16>
    tpu.vector_store %arg65[%c48_506, %c0_507], %356 {strides = array<i32>} : memref<432x16xbf16, #tpu.memory_space<vmem>>, vector<48x4xbf16>,
    %c0_508 = arith.constant 0 : index
    %c2_509 = arith.constant 2 : index
    %358 = vector.load %arg64[%c0_508, %c2_509] : memref<48x24xbf16, #tpu.memory_space<vmem>>, vector<48x4xbf16>
    %c96_510 = arith.constant 96 : index
    %c0_511 = arith.constant 0 : index
    %359 = vector.load %arg65[%c96_510, %c0_511] : memref<432x16xbf16, #tpu.memory_space<vmem>>, vector<48x4xbf16>
    tpu.vector_store %arg65[%c96_510, %c0_511], %358 {strides = array<i32>} : memref<432x16xbf16, #tpu.memory_space<vmem>>, vector<48x4xbf16>,
    %c0_512 = arith.constant 0 : index
    %c3_513 = arith.constant 3 : index
    %360 = vector.load %arg64[%c0_512, %c3_513] : memref<48x24xbf16, #tpu.memory_space<vmem>>, vector<48x4xbf16>
    %c144 = arith.constant 144 : index
    %c0_514 = arith.constant 0 : index
    %361 = vector.load %arg65[%c144, %c0_514] : memref<432x16xbf16, #tpu.memory_space<vmem>>, vector<48x4xbf16>
    tpu.vector_store %arg65[%c144, %c0_514], %360 {strides = array<i32>} : memref<432x16xbf16, #tpu.memory_space<vmem>>, vector<48x4xbf16>,
    %c0_515 = arith.constant 0 : index
    %c4_516 = arith.constant 4 : index
    %362 = vector.load %arg64[%c0_515, %c4_516] : memref<48x24xbf16, #tpu.memory_space<vmem>>, vector<48x4xbf16>
    %c192_517 = arith.constant 192 : index
    %c0_518 = arith.constant 0 : index
    %363 = vector.load %arg65[%c192_517, %c0_518] : memref<432x16xbf16, #tpu.memory_space<vmem>>, vector<48x4xbf16>
    tpu.vector_store %arg65[%c192_517, %c0_518], %362 {strides = array<i32>} : memref<432x16xbf16, #tpu.memory_space<vmem>>, vector<48x4xbf16>,
    %c0_519 = arith.constant 0 : index
    %c5_520 = arith.constant 5 : index
    %364 = vector.load %arg64[%c0_519, %c5_520] : memref<48x24xbf16, #tpu.memory_space<vmem>>, vector<48x4xbf16>
    %c240 = arith.constant 240 : index
    %c0_521 = arith.constant 0 : index
    %365 = vector.load %arg65[%c240, %c0_521] : memref<432x16xbf16, #tpu.memory_space<vmem>>, vector<48x4xbf16>
    tpu.vector_store %arg65[%c240, %c0_521], %364 {strides = array<i32>} : memref<432x16xbf16, #tpu.memory_space<vmem>>, vector<48x4xbf16>,
    %c0_522 = arith.constant 0 : index
    %c6_523 = arith.constant 6 : index
    %366 = vector.load %arg64[%c0_522, %c6_523] : memref<48x24xbf16, #tpu.memory_space<vmem>>, vector<48x4xbf16>
    %c288 = arith.constant 288 : index
    %c0_524 = arith.constant 0 : index
    %367 = vector.load %arg65[%c288, %c0_524] : memref<432x16xbf16, #tpu.memory_space<vmem>>, vector<48x4xbf16>
    tpu.vector_store %arg65[%c288, %c0_524], %366 {strides = array<i32>} : memref<432x16xbf16, #tpu.memory_space<vmem>>, vector<48x4xbf16>,
    %c0_525 = arith.constant 0 : index
    %c7_526 = arith.constant 7 : index
    %368 = vector.load %arg64[%c0_525, %c7_526] : memref<48x24xbf16, #tpu.memory_space<vmem>>, vector<48x4xbf16>
    %c336 = arith.constant 336 : index
    %c0_527 = arith.constant 0 : index
    %369 = vector.load %arg65[%c336, %c0_527] : memref<432x16xbf16, #tpu.memory_space<vmem>>, vector<48x4xbf16>
    tpu.vector_store %arg65[%c336, %c0_527], %368 {strides = array<i32>} : memref<432x16xbf16, #tpu.memory_space<vmem>>, vector<48x4xbf16>,
    %c0_528 = arith.constant 0 : index
    %c8_529 = arith.constant 8 : index
    %370 = vector.load %arg64[%c0_528, %c8_529] : memref<48x24xbf16, #tpu.memory_space<vmem>>, vector<48x4xbf16>
    %c384 = arith.constant 384 : index
    %c0_530 = arith.constant 0 : index
    %371 = vector.load %arg65[%c384, %c0_530] : memref<432x16xbf16, #tpu.memory_space<vmem>>, vector<48x4xbf16>
    tpu.vector_store %arg65[%c384, %c0_530], %370 {strides = array<i32>} : memref<432x16xbf16, #tpu.memory_space<vmem>>, vector<48x4xbf16>,
    %c0_531 = arith.constant 0 : index
    %c0_532 = arith.constant 0 : index
    %372 = vector.load %arg65[%c0_531, %c0_532] : memref<432x16xbf16, #tpu.memory_space<vmem>>, vector<432x4xbf16>
    %c0_533 = arith.constant 0 : index
    %c0_534 = arith.constant 0 : index
    %373 = vector.load %arg33[%c0_533, %c0_534] : memref<16x432xbf16, #tpu.memory_space<vmem>>, vector<16x432xbf16>
    %cst_535 = arith.constant dense<0.000000e+00> : vector<16x4xf32>
    %374 = tpu.matmul %373, %372, %cst_535 {dimension_numbers = #tpu.dot_dimension_numbers<[1], [0], [0], [1], [0, 0, 1, 1], [], []>} : vector<16x432xbf16>, vector<432x4xbf16>, vector<16x4xf32> -> vector<16x4xf32>
    %c0_536 = arith.constant 0 : index
    %c0_537 = arith.constant 0 : index
    %375 = vector.load %arg34[%c0_536, %c0_537] : memref<16x1xf32, #tpu.memory_space<vmem>>, vector<16x1xf32>
    %376 = vector.broadcast %375 : vector<16x1xf32> to vector<16x4xf32>
    %377 = arith.mulf %374, %376 : vector<16x4xf32>
    %c0_538 = arith.constant 0 : index
    %c0_539 = arith.constant 0 : index
    %378 = vector.load %arg35[%c0_538, %c0_539] : memref<16x1xf32, #tpu.memory_space<vmem>>, vector<16x1xf32>
    %379 = vector.broadcast %378 : vector<16x1xf32> to vector<16x4xf32>
    %380 = arith.addf %377, %379 : vector<16x4xf32>
    %cst_540 = arith.constant 0.000000e+00 : f32
    %381 = vector.broadcast %cst_540 : f32 to vector<16x4xf32>
    %382 = arith.maximumf %380, %381 : vector<16x4xf32>
    %cst_541 = arith.constant 0.000000e+00 : bf16
    %383 = vector.broadcast %cst_541 : bf16 to vector<16x12xbf16>
    %c0_542 = arith.constant 0 : index
    %c0_543 = arith.constant 0 : index
    %384 = vector.load %arg64[%c0_542, %c0_543] : memref<48x24xbf16, #tpu.memory_space<vmem>>, vector<16x12xbf16>
    tpu.vector_store %arg64[%c0_542, %c0_543], %383 {strides = array<i32>} : memref<48x24xbf16, #tpu.memory_space<vmem>>, vector<16x12xbf16>,
    %385 = arith.truncf %382 : vector<16x4xf32> to vector<16x4xbf16>
    %c0_544 = arith.constant 0 : index
    %c4_545 = arith.constant 4 : index
    %386 = vector.load %arg64[%c0_544, %c4_545] : memref<48x24xbf16, #tpu.memory_space<vmem>>, vector<16x4xbf16>
    tpu.vector_store %arg64[%c0_544, %c4_545], %385 {strides = array<i32>} : memref<48x24xbf16, #tpu.memory_space<vmem>>, vector<16x4xbf16>,
    %c0_546 = arith.constant 0 : index
    %c0_547 = arith.constant 0 : index
    %387 = vector.load %arg64[%c0_546, %c0_547] : memref<48x24xbf16, #tpu.memory_space<vmem>>, vector<16x4xbf16>
    %c0_548 = arith.constant 0 : index
    %c0_549 = arith.constant 0 : index
    %388 = vector.load %arg65[%c0_548, %c0_549] : memref<432x16xbf16, #tpu.memory_space<vmem>>, vector<16x4xbf16>
    tpu.vector_store %arg65[%c0_548, %c0_549], %387 {strides = array<i32>} : memref<432x16xbf16, #tpu.memory_space<vmem>>, vector<16x4xbf16>,
    %c0_550 = arith.constant 0 : index
    %c1_551 = arith.constant 1 : index
    %389 = vector.load %arg64[%c0_550, %c1_551] : memref<48x24xbf16, #tpu.memory_space<vmem>>, vector<16x4xbf16>
    %c16_552 = arith.constant 16 : index
    %c0_553 = arith.constant 0 : index
    %390 = vector.load %arg65[%c16_552, %c0_553] : memref<432x16xbf16, #tpu.memory_space<vmem>>, vector<16x4xbf16>
    tpu.vector_store %arg65[%c16_552, %c0_553], %389 {strides = array<i32>} : memref<432x16xbf16, #tpu.memory_space<vmem>>, vector<16x4xbf16>,
    %c0_554 = arith.constant 0 : index
    %c2_555 = arith.constant 2 : index
    %391 = vector.load %arg64[%c0_554, %c2_555] : memref<48x24xbf16, #tpu.memory_space<vmem>>, vector<16x4xbf16>
    %c32_556 = arith.constant 32 : index
    %c0_557 = arith.constant 0 : index
    %392 = vector.load %arg65[%c32_556, %c0_557] : memref<432x16xbf16, #tpu.memory_space<vmem>>, vector<16x4xbf16>
    tpu.vector_store %arg65[%c32_556, %c0_557], %391 {strides = array<i32>} : memref<432x16xbf16, #tpu.memory_space<vmem>>, vector<16x4xbf16>,
    %c0_558 = arith.constant 0 : index
    %c3_559 = arith.constant 3 : index
    %393 = vector.load %arg64[%c0_558, %c3_559] : memref<48x24xbf16, #tpu.memory_space<vmem>>, vector<16x4xbf16>
    %c48_560 = arith.constant 48 : index
    %c0_561 = arith.constant 0 : index
    %394 = vector.load %arg65[%c48_560, %c0_561] : memref<432x16xbf16, #tpu.memory_space<vmem>>, vector<16x4xbf16>
    tpu.vector_store %arg65[%c48_560, %c0_561], %393 {strides = array<i32>} : memref<432x16xbf16, #tpu.memory_space<vmem>>, vector<16x4xbf16>,
    %c0_562 = arith.constant 0 : index
    %c4_563 = arith.constant 4 : index
    %395 = vector.load %arg64[%c0_562, %c4_563] : memref<48x24xbf16, #tpu.memory_space<vmem>>, vector<16x4xbf16>
    %c64_564 = arith.constant 64 : index
    %c0_565 = arith.constant 0 : index
    %396 = vector.load %arg65[%c64_564, %c0_565] : memref<432x16xbf16, #tpu.memory_space<vmem>>, vector<16x4xbf16>
    tpu.vector_store %arg65[%c64_564, %c0_565], %395 {strides = array<i32>} : memref<432x16xbf16, #tpu.memory_space<vmem>>, vector<16x4xbf16>,
    %c0_566 = arith.constant 0 : index
    %c5_567 = arith.constant 5 : index
    %397 = vector.load %arg64[%c0_566, %c5_567] : memref<48x24xbf16, #tpu.memory_space<vmem>>, vector<16x4xbf16>
    %c80_568 = arith.constant 80 : index
    %c0_569 = arith.constant 0 : index
    %398 = vector.load %arg65[%c80_568, %c0_569] : memref<432x16xbf16, #tpu.memory_space<vmem>>, vector<16x4xbf16>
    tpu.vector_store %arg65[%c80_568, %c0_569], %397 {strides = array<i32>} : memref<432x16xbf16, #tpu.memory_space<vmem>>, vector<16x4xbf16>,
    %c0_570 = arith.constant 0 : index
    %c6_571 = arith.constant 6 : index
    %399 = vector.load %arg64[%c0_570, %c6_571] : memref<48x24xbf16, #tpu.memory_space<vmem>>, vector<16x4xbf16>
    %c96_572 = arith.constant 96 : index
    %c0_573 = arith.constant 0 : index
    %400 = vector.load %arg65[%c96_572, %c0_573] : memref<432x16xbf16, #tpu.memory_space<vmem>>, vector<16x4xbf16>
    tpu.vector_store %arg65[%c96_572, %c0_573], %399 {strides = array<i32>} : memref<432x16xbf16, #tpu.memory_space<vmem>>, vector<16x4xbf16>,
    %c0_574 = arith.constant 0 : index
    %c7_575 = arith.constant 7 : index
    %401 = vector.load %arg64[%c0_574, %c7_575] : memref<48x24xbf16, #tpu.memory_space<vmem>>, vector<16x4xbf16>
    %c112_576 = arith.constant 112 : index
    %c0_577 = arith.constant 0 : index
    %402 = vector.load %arg65[%c112_576, %c0_577] : memref<432x16xbf16, #tpu.memory_space<vmem>>, vector<16x4xbf16>
    tpu.vector_store %arg65[%c112_576, %c0_577], %401 {strides = array<i32>} : memref<432x16xbf16, #tpu.memory_space<vmem>>, vector<16x4xbf16>,
    %c0_578 = arith.constant 0 : index
    %c8_579 = arith.constant 8 : index
    %403 = vector.load %arg64[%c0_578, %c8_579] : memref<48x24xbf16, #tpu.memory_space<vmem>>, vector<16x4xbf16>
    %c128_580 = arith.constant 128 : index
    %c0_581 = arith.constant 0 : index
    %404 = vector.load %arg65[%c128_580, %c0_581] : memref<432x16xbf16, #tpu.memory_space<vmem>>, vector<16x4xbf16>
    tpu.vector_store %arg65[%c128_580, %c0_581], %403 {strides = array<i32>} : memref<432x16xbf16, #tpu.memory_space<vmem>>, vector<16x4xbf16>,
    %c0_582 = arith.constant 0 : index
    %c0_583 = arith.constant 0 : index
    %405 = vector.load %arg65[%c0_582, %c0_583] : memref<432x16xbf16, #tpu.memory_space<vmem>>, vector<144x4xbf16>
    %c0_584 = arith.constant 0 : index
    %c0_585 = arith.constant 0 : index
    %406 = vector.load %arg36[%c0_584, %c0_585] : memref<16x144xbf16, #tpu.memory_space<vmem>>, vector<16x144xbf16>
    %cst_586 = arith.constant dense<0.000000e+00> : vector<16x4xf32>
    %407 = tpu.matmul %406, %405, %cst_586 {dimension_numbers = #tpu.dot_dimension_numbers<[1], [0], [0], [1], [0, 0, 1, 1], [], []>} : vector<16x144xbf16>, vector<144x4xbf16>, vector<16x4xf32> -> vector<16x4xf32>
    %c0_587 = arith.constant 0 : index
    %c0_588 = arith.constant 0 : index
    %408 = vector.load %arg37[%c0_587, %c0_588] : memref<16x1xf32, #tpu.memory_space<vmem>>, vector<16x1xf32>
    %409 = vector.broadcast %408 : vector<16x1xf32> to vector<16x4xf32>
    %410 = arith.mulf %407, %409 : vector<16x4xf32>
    %c0_589 = arith.constant 0 : index
    %c0_590 = arith.constant 0 : index
    %411 = vector.load %arg38[%c0_589, %c0_590] : memref<16x1xf32, #tpu.memory_space<vmem>>, vector<16x1xf32>
    %412 = vector.broadcast %411 : vector<16x1xf32> to vector<16x4xf32>
    %413 = arith.addf %410, %412 : vector<16x4xf32>
    %cst_591 = arith.constant 0.000000e+00 : f32
    %414 = vector.broadcast %cst_591 : f32 to vector<16x4xf32>
    %415 = arith.maximumf %413, %414 : vector<16x4xf32>
    %cst_592 = arith.constant 0.000000e+00 : bf16
    %416 = vector.broadcast %cst_592 : bf16 to vector<16x8xbf16>
    %c0_593 = arith.constant 0 : index
    %c0_594 = arith.constant 0 : index
    %417 = vector.load %arg64[%c0_593, %c0_594] : memref<48x24xbf16, #tpu.memory_space<vmem>>, vector<16x8xbf16>
    tpu.vector_store %arg64[%c0_593, %c0_594], %416 {strides = array<i32>} : memref<48x24xbf16, #tpu.memory_space<vmem>>, vector<16x8xbf16>,
    %418 = arith.truncf %415 : vector<16x4xf32> to vector<16x4xbf16>
    %c0_595 = arith.constant 0 : index
    %c2_596 = arith.constant 2 : index
    %419 = vector.load %arg64[%c0_595, %c2_596] : memref<48x24xbf16, #tpu.memory_space<vmem>>, vector<16x4xbf16>
    tpu.vector_store %arg64[%c0_595, %c2_596], %418 {strides = array<i32>} : memref<48x24xbf16, #tpu.memory_space<vmem>>, vector<16x4xbf16>,
    %c0_597 = arith.constant 0 : index
    %c0_598 = arith.constant 0 : index
    %420 = vector.load %arg64[%c0_597, %c0_598] : memref<48x24xbf16, #tpu.memory_space<vmem>>, vector<16x4xbf16>
    %c0_599 = arith.constant 0 : index
    %c0_600 = arith.constant 0 : index
    %421 = vector.load %arg65[%c0_599, %c0_600] : memref<432x16xbf16, #tpu.memory_space<vmem>>, vector<16x4xbf16>
    tpu.vector_store %arg65[%c0_599, %c0_600], %420 {strides = array<i32>} : memref<432x16xbf16, #tpu.memory_space<vmem>>, vector<16x4xbf16>,
    %c0_601 = arith.constant 0 : index
    %c1_602 = arith.constant 1 : index
    %422 = vector.load %arg64[%c0_601, %c1_602] : memref<48x24xbf16, #tpu.memory_space<vmem>>, vector<16x4xbf16>
    %c16_603 = arith.constant 16 : index
    %c0_604 = arith.constant 0 : index
    %423 = vector.load %arg65[%c16_603, %c0_604] : memref<432x16xbf16, #tpu.memory_space<vmem>>, vector<16x4xbf16>
    tpu.vector_store %arg65[%c16_603, %c0_604], %422 {strides = array<i32>} : memref<432x16xbf16, #tpu.memory_space<vmem>>, vector<16x4xbf16>,
    %c0_605 = arith.constant 0 : index
    %c2_606 = arith.constant 2 : index
    %424 = vector.load %arg64[%c0_605, %c2_606] : memref<48x24xbf16, #tpu.memory_space<vmem>>, vector<16x4xbf16>
    %c32_607 = arith.constant 32 : index
    %c0_608 = arith.constant 0 : index
    %425 = vector.load %arg65[%c32_607, %c0_608] : memref<432x16xbf16, #tpu.memory_space<vmem>>, vector<16x4xbf16>
    tpu.vector_store %arg65[%c32_607, %c0_608], %424 {strides = array<i32>} : memref<432x16xbf16, #tpu.memory_space<vmem>>, vector<16x4xbf16>,
    %c0_609 = arith.constant 0 : index
    %c3_610 = arith.constant 3 : index
    %426 = vector.load %arg64[%c0_609, %c3_610] : memref<48x24xbf16, #tpu.memory_space<vmem>>, vector<16x4xbf16>
    %c48_611 = arith.constant 48 : index
    %c0_612 = arith.constant 0 : index
    %427 = vector.load %arg65[%c48_611, %c0_612] : memref<432x16xbf16, #tpu.memory_space<vmem>>, vector<16x4xbf16>
    tpu.vector_store %arg65[%c48_611, %c0_612], %426 {strides = array<i32>} : memref<432x16xbf16, #tpu.memory_space<vmem>>, vector<16x4xbf16>,
    %c0_613 = arith.constant 0 : index
    %c4_614 = arith.constant 4 : index
    %428 = vector.load %arg64[%c0_613, %c4_614] : memref<48x24xbf16, #tpu.memory_space<vmem>>, vector<16x4xbf16>
    %c64_615 = arith.constant 64 : index
    %c0_616 = arith.constant 0 : index
    %429 = vector.load %arg65[%c64_615, %c0_616] : memref<432x16xbf16, #tpu.memory_space<vmem>>, vector<16x4xbf16>
    tpu.vector_store %arg65[%c64_615, %c0_616], %428 {strides = array<i32>} : memref<432x16xbf16, #tpu.memory_space<vmem>>, vector<16x4xbf16>,
    %c0_617 = arith.constant 0 : index
    %c0_618 = arith.constant 0 : index
    %430 = vector.load %arg65[%c0_617, %c0_618] : memref<432x16xbf16, #tpu.memory_space<vmem>>, vector<80x4xbf16>
    %c0_619 = arith.constant 0 : index
    %c0_620 = arith.constant 0 : index
    %431 = vector.load %arg59[%c0_619, %c0_620] : memref<32x80xbf16, #tpu.memory_space<vmem>>, vector<32x80xbf16>
    %cst_621 = arith.constant dense<0.000000e+00> : vector<32x4xf32>
    %432 = tpu.matmul %431, %430, %cst_621 {dimension_numbers = #tpu.dot_dimension_numbers<[1], [0], [0], [1], [0, 0, 1, 1], [], []>} : vector<32x80xbf16>, vector<80x4xbf16>, vector<32x4xf32> -> vector<32x4xf32>
    %c0_622 = arith.constant 0 : index
    %c0_623 = arith.constant 0 : index
    %433 = vector.load %arg60[%c0_622, %c0_623] : memref<32x1xf32, #tpu.memory_space<vmem>>, vector<32x1xf32>
    %434 = vector.broadcast %433 : vector<32x1xf32> to vector<32x4xf32>
    %435 = arith.addf %432, %434 : vector<32x4xf32>
    %436 = vector.extract_strided_slice %435 {offsets = [0, 0], sizes = [16, 4], strides = [1, 1]} : vector<32x4xf32> to vector<16x4xf32>
    %437 = arith.truncf %436 : vector<16x4xf32> to vector<16x4xbf16>
    %438 = vector.extract_strided_slice %435 {offsets = [16, 0], sizes = [16, 4], strides = [1, 1]} : vector<32x4xf32> to vector<16x4xf32>
    %439 = arith.truncf %438 : vector<16x4xf32> to vector<16x4xbf16>
    %c0_624 = arith.constant 0 : index
    %c0_625 = arith.constant 0 : index
    %440 = vector.load %arg4[%c0_624, %c0_625] : memref<8x16xbf16, #tpu.memory_space<vmem>>, vector<4x8xbf16>
    %c0_626 = arith.constant 0 : index
    %c0_627 = arith.constant 0 : index
    %441 = vector.load %arg5[%c0_626, %c0_627] : memref<8x16xbf16, #tpu.memory_space<vmem>>, vector<4x8xbf16>
    %cst_628 = arith.constant dense<0.000000e+00> : vector<16x8xf32>
    %442 = tpu.matmul %437, %440, %cst_628 {dimension_numbers = #tpu.dot_dimension_numbers<[1], [0], [0], [1], [0, 0, 1, 1], [], []>} : vector<16x4xbf16>, vector<4x8xbf16>, vector<16x8xf32> -> vector<16x8xf32>
    %cst_629 = arith.constant dense<0.000000e+00> : vector<16x8xf32>
    %443 = tpu.matmul %439, %441, %cst_629 {dimension_numbers = #tpu.dot_dimension_numbers<[1], [0], [0], [1], [0, 0, 1, 1], [], []>} : vector<16x4xbf16>, vector<4x8xbf16>, vector<16x8xf32> -> vector<16x8xf32>
    %444 = arith.addf %442, %443 : vector<16x8xf32>
    %cst_630 = arith.constant 0.000000e+00 : bf16
    %445 = vector.broadcast %cst_630 : bf16 to vector<8x16xbf16>
    %c0_631 = arith.constant 0 : index
    %c0_632 = arith.constant 0 : index
    %446 = vector.load %arg64[%c0_631, %c0_632] : memref<48x24xbf16, #tpu.memory_space<vmem>>, vector<8x16xbf16>
    tpu.vector_store %arg64[%c0_631, %c0_632], %445 {strides = array<i32>} : memref<48x24xbf16, #tpu.memory_space<vmem>>, vector<8x16xbf16>,
    %447 = arith.truncf %172 : vector<8x8xf32> to vector<8x8xbf16>
    %c0_633 = arith.constant 0 : index
    %c4_634 = arith.constant 4 : index
    %448 = vector.load %arg64[%c0_633, %c4_634] : memref<48x24xbf16, #tpu.memory_space<vmem>>, vector<8x8xbf16>
    tpu.vector_store %arg64[%c0_633, %c4_634], %447 {strides = array<i32>} : memref<48x24xbf16, #tpu.memory_space<vmem>>, vector<8x8xbf16>,
    %cst_635 = arith.constant 0.000000e+00 : bf16
    %449 = vector.broadcast %cst_635 : bf16 to vector<16x16xbf16>
    %c8_636 = arith.constant 8 : index
    %c0_637 = arith.constant 0 : index
    %450 = vector.load %arg64[%c8_636, %c0_637] : memref<48x24xbf16, #tpu.memory_space<vmem>>, vector<16x16xbf16>
    tpu.vector_store %arg64[%c8_636, %c0_637], %449 {strides = array<i32>} : memref<48x24xbf16, #tpu.memory_space<vmem>>, vector<16x16xbf16>,
    %451 = arith.truncf %444 : vector<16x8xf32> to vector<16x8xbf16>
    %c8_638 = arith.constant 8 : index
    %c4_639 = arith.constant 4 : index
    %452 = vector.load %arg64[%c8_638, %c4_639] : memref<48x24xbf16, #tpu.memory_space<vmem>>, vector<16x8xbf16>
    tpu.vector_store %arg64[%c8_638, %c4_639], %451 {strides = array<i32>} : memref<48x24xbf16, #tpu.memory_space<vmem>>, vector<16x8xbf16>,
    %c0_640 = arith.constant 0 : index
    %c0_641 = arith.constant 0 : index
    %453 = vector.load %arg64[%c0_640, %c0_641] : memref<48x24xbf16, #tpu.memory_space<vmem>>, vector<24x8xbf16>
    %c0_642 = arith.constant 0 : index
    %c0_643 = arith.constant 0 : index
    %454 = vector.load %arg65[%c0_642, %c0_643] : memref<432x16xbf16, #tpu.memory_space<vmem>>, vector<24x8xbf16>
    tpu.vector_store %arg65[%c0_642, %c0_643], %453 {strides = array<i32>} : memref<432x16xbf16, #tpu.memory_space<vmem>>, vector<24x8xbf16>,
    %c0_644 = arith.constant 0 : index
    %c1_645 = arith.constant 1 : index
    %455 = vector.load %arg64[%c0_644, %c1_645] : memref<48x24xbf16, #tpu.memory_space<vmem>>, vector<24x8xbf16>
    %c24_646 = arith.constant 24 : index
    %c0_647 = arith.constant 0 : index
    %456 = vector.load %arg65[%c24_646, %c0_647] : memref<432x16xbf16, #tpu.memory_space<vmem>>, vector<24x8xbf16>
    tpu.vector_store %arg65[%c24_646, %c0_647], %455 {strides = array<i32>} : memref<432x16xbf16, #tpu.memory_space<vmem>>, vector<24x8xbf16>,
    %c0_648 = arith.constant 0 : index
    %c2_649 = arith.constant 2 : index
    %457 = vector.load %arg64[%c0_648, %c2_649] : memref<48x24xbf16, #tpu.memory_space<vmem>>, vector<24x8xbf16>
    %c48_650 = arith.constant 48 : index
    %c0_651 = arith.constant 0 : index
    %458 = vector.load %arg65[%c48_650, %c0_651] : memref<432x16xbf16, #tpu.memory_space<vmem>>, vector<24x8xbf16>
    tpu.vector_store %arg65[%c48_650, %c0_651], %457 {strides = array<i32>} : memref<432x16xbf16, #tpu.memory_space<vmem>>, vector<24x8xbf16>,
    %c0_652 = arith.constant 0 : index
    %c3_653 = arith.constant 3 : index
    %459 = vector.load %arg64[%c0_652, %c3_653] : memref<48x24xbf16, #tpu.memory_space<vmem>>, vector<24x8xbf16>
    %c72 = arith.constant 72 : index
    %c0_654 = arith.constant 0 : index
    %460 = vector.load %arg65[%c72, %c0_654] : memref<432x16xbf16, #tpu.memory_space<vmem>>, vector<24x8xbf16>
    tpu.vector_store %arg65[%c72, %c0_654], %459 {strides = array<i32>} : memref<432x16xbf16, #tpu.memory_space<vmem>>, vector<24x8xbf16>,
    %c0_655 = arith.constant 0 : index
    %c4_656 = arith.constant 4 : index
    %461 = vector.load %arg64[%c0_655, %c4_656] : memref<48x24xbf16, #tpu.memory_space<vmem>>, vector<24x8xbf16>
    %c96_657 = arith.constant 96 : index
    %c0_658 = arith.constant 0 : index
    %462 = vector.load %arg65[%c96_657, %c0_658] : memref<432x16xbf16, #tpu.memory_space<vmem>>, vector<24x8xbf16>
    tpu.vector_store %arg65[%c96_657, %c0_658], %461 {strides = array<i32>} : memref<432x16xbf16, #tpu.memory_space<vmem>>, vector<24x8xbf16>,
    %c0_659 = arith.constant 0 : index
    %c5_660 = arith.constant 5 : index
    %463 = vector.load %arg64[%c0_659, %c5_660] : memref<48x24xbf16, #tpu.memory_space<vmem>>, vector<24x8xbf16>
    %c120 = arith.constant 120 : index
    %c0_661 = arith.constant 0 : index
    %464 = vector.load %arg65[%c120, %c0_661] : memref<432x16xbf16, #tpu.memory_space<vmem>>, vector<24x8xbf16>
    tpu.vector_store %arg65[%c120, %c0_661], %463 {strides = array<i32>} : memref<432x16xbf16, #tpu.memory_space<vmem>>, vector<24x8xbf16>,
    %c0_662 = arith.constant 0 : index
    %c6_663 = arith.constant 6 : index
    %465 = vector.load %arg64[%c0_662, %c6_663] : memref<48x24xbf16, #tpu.memory_space<vmem>>, vector<24x8xbf16>
    %c144_664 = arith.constant 144 : index
    %c0_665 = arith.constant 0 : index
    %466 = vector.load %arg65[%c144_664, %c0_665] : memref<432x16xbf16, #tpu.memory_space<vmem>>, vector<24x8xbf16>
    tpu.vector_store %arg65[%c144_664, %c0_665], %465 {strides = array<i32>} : memref<432x16xbf16, #tpu.memory_space<vmem>>, vector<24x8xbf16>,
    %c0_666 = arith.constant 0 : index
    %c7_667 = arith.constant 7 : index
    %467 = vector.load %arg64[%c0_666, %c7_667] : memref<48x24xbf16, #tpu.memory_space<vmem>>, vector<24x8xbf16>
    %c168 = arith.constant 168 : index
    %c0_668 = arith.constant 0 : index
    %468 = vector.load %arg65[%c168, %c0_668] : memref<432x16xbf16, #tpu.memory_space<vmem>>, vector<24x8xbf16>
    tpu.vector_store %arg65[%c168, %c0_668], %467 {strides = array<i32>} : memref<432x16xbf16, #tpu.memory_space<vmem>>, vector<24x8xbf16>,
    %c0_669 = arith.constant 0 : index
    %c8_670 = arith.constant 8 : index
    %469 = vector.load %arg64[%c0_669, %c8_670] : memref<48x24xbf16, #tpu.memory_space<vmem>>, vector<24x8xbf16>
    %c192_671 = arith.constant 192 : index
    %c0_672 = arith.constant 0 : index
    %470 = vector.load %arg65[%c192_671, %c0_672] : memref<432x16xbf16, #tpu.memory_space<vmem>>, vector<24x8xbf16>
    tpu.vector_store %arg65[%c192_671, %c0_672], %469 {strides = array<i32>} : memref<432x16xbf16, #tpu.memory_space<vmem>>, vector<24x8xbf16>,
    %c0_673 = arith.constant 0 : index
    %c0_674 = arith.constant 0 : index
    %471 = vector.load %arg65[%c0_673, %c0_674] : memref<432x16xbf16, #tpu.memory_space<vmem>>, vector<216x8xbf16>
    %c0_675 = arith.constant 0 : index
    %c0_676 = arith.constant 0 : index
    %472 = vector.load %arg39[%c0_675, %c0_676] : memref<8x216xbf16, #tpu.memory_space<vmem>>, vector<8x216xbf16>
    %cst_677 = arith.constant dense<0.000000e+00> : vector<8x8xf32>
    %473 = tpu.matmul %472, %471, %cst_677 {dimension_numbers = #tpu.dot_dimension_numbers<[1], [0], [0], [1], [0, 0, 1, 1], [], []>} : vector<8x216xbf16>, vector<216x8xbf16>, vector<8x8xf32> -> vector<8x8xf32>
    %c0_678 = arith.constant 0 : index
    %c0_679 = arith.constant 0 : index
    %474 = vector.load %arg40[%c0_678, %c0_679] : memref<8x1xf32, #tpu.memory_space<vmem>>, vector<8x1xf32>
    %475 = vector.broadcast %474 : vector<8x1xf32> to vector<8x8xf32>
    %476 = arith.mulf %473, %475 : vector<8x8xf32>
    %c0_680 = arith.constant 0 : index
    %c0_681 = arith.constant 0 : index
    %477 = vector.load %arg41[%c0_680, %c0_681] : memref<8x1xf32, #tpu.memory_space<vmem>>, vector<8x1xf32>
    %478 = vector.broadcast %477 : vector<8x1xf32> to vector<8x8xf32>
    %479 = arith.addf %476, %478 : vector<8x8xf32>
    %cst_682 = arith.constant 0.000000e+00 : f32
    %480 = vector.broadcast %cst_682 : f32 to vector<8x8xf32>
    %481 = arith.maximumf %479, %480 : vector<8x8xf32>
    %cst_683 = arith.constant 0.000000e+00 : bf16
    %482 = vector.broadcast %cst_683 : bf16 to vector<8x16xbf16>
    %c0_684 = arith.constant 0 : index
    %c0_685 = arith.constant 0 : index
    %483 = vector.load %arg64[%c0_684, %c0_685] : memref<48x24xbf16, #tpu.memory_space<vmem>>, vector<8x16xbf16>
    tpu.vector_store %arg64[%c0_684, %c0_685], %482 {strides = array<i32>} : memref<48x24xbf16, #tpu.memory_space<vmem>>, vector<8x16xbf16>,
    %484 = arith.truncf %481 : vector<8x8xf32> to vector<8x8xbf16>
    %c0_686 = arith.constant 0 : index
    %c4_687 = arith.constant 4 : index
    %485 = vector.load %arg64[%c0_686, %c4_687] : memref<48x24xbf16, #tpu.memory_space<vmem>>, vector<8x8xbf16>
    tpu.vector_store %arg64[%c0_686, %c4_687], %484 {strides = array<i32>} : memref<48x24xbf16, #tpu.memory_space<vmem>>, vector<8x8xbf16>,
    %c0_688 = arith.constant 0 : index
    %c0_689 = arith.constant 0 : index
    %486 = vector.load %arg64[%c0_688, %c0_689] : memref<48x24xbf16, #tpu.memory_space<vmem>>, vector<8x8xbf16>
    %c0_690 = arith.constant 0 : index
    %c0_691 = arith.constant 0 : index
    %487 = vector.load %arg65[%c0_690, %c0_691] : memref<432x16xbf16, #tpu.memory_space<vmem>>, vector<8x8xbf16>
    tpu.vector_store %arg65[%c0_690, %c0_691], %486 {strides = array<i32>} : memref<432x16xbf16, #tpu.memory_space<vmem>>, vector<8x8xbf16>,
    %c0_692 = arith.constant 0 : index
    %c1_693 = arith.constant 1 : index
    %488 = vector.load %arg64[%c0_692, %c1_693] : memref<48x24xbf16, #tpu.memory_space<vmem>>, vector<8x8xbf16>
    %c8_694 = arith.constant 8 : index
    %c0_695 = arith.constant 0 : index
    %489 = vector.load %arg65[%c8_694, %c0_695] : memref<432x16xbf16, #tpu.memory_space<vmem>>, vector<8x8xbf16>
    tpu.vector_store %arg65[%c8_694, %c0_695], %488 {strides = array<i32>} : memref<432x16xbf16, #tpu.memory_space<vmem>>, vector<8x8xbf16>,
    %c0_696 = arith.constant 0 : index
    %c2_697 = arith.constant 2 : index
    %490 = vector.load %arg64[%c0_696, %c2_697] : memref<48x24xbf16, #tpu.memory_space<vmem>>, vector<8x8xbf16>
    %c16_698 = arith.constant 16 : index
    %c0_699 = arith.constant 0 : index
    %491 = vector.load %arg65[%c16_698, %c0_699] : memref<432x16xbf16, #tpu.memory_space<vmem>>, vector<8x8xbf16>
    tpu.vector_store %arg65[%c16_698, %c0_699], %490 {strides = array<i32>} : memref<432x16xbf16, #tpu.memory_space<vmem>>, vector<8x8xbf16>,
    %c0_700 = arith.constant 0 : index
    %c3_701 = arith.constant 3 : index
    %492 = vector.load %arg64[%c0_700, %c3_701] : memref<48x24xbf16, #tpu.memory_space<vmem>>, vector<8x8xbf16>
    %c24_702 = arith.constant 24 : index
    %c0_703 = arith.constant 0 : index
    %493 = vector.load %arg65[%c24_702, %c0_703] : memref<432x16xbf16, #tpu.memory_space<vmem>>, vector<8x8xbf16>
    tpu.vector_store %arg65[%c24_702, %c0_703], %492 {strides = array<i32>} : memref<432x16xbf16, #tpu.memory_space<vmem>>, vector<8x8xbf16>,
    %c0_704 = arith.constant 0 : index
    %c4_705 = arith.constant 4 : index
    %494 = vector.load %arg64[%c0_704, %c4_705] : memref<48x24xbf16, #tpu.memory_space<vmem>>, vector<8x8xbf16>
    %c32_706 = arith.constant 32 : index
    %c0_707 = arith.constant 0 : index
    %495 = vector.load %arg65[%c32_706, %c0_707] : memref<432x16xbf16, #tpu.memory_space<vmem>>, vector<8x8xbf16>
    tpu.vector_store %arg65[%c32_706, %c0_707], %494 {strides = array<i32>} : memref<432x16xbf16, #tpu.memory_space<vmem>>, vector<8x8xbf16>,
    %c0_708 = arith.constant 0 : index
    %c5_709 = arith.constant 5 : index
    %496 = vector.load %arg64[%c0_708, %c5_709] : memref<48x24xbf16, #tpu.memory_space<vmem>>, vector<8x8xbf16>
    %c40_710 = arith.constant 40 : index
    %c0_711 = arith.constant 0 : index
    %497 = vector.load %arg65[%c40_710, %c0_711] : memref<432x16xbf16, #tpu.memory_space<vmem>>, vector<8x8xbf16>
    tpu.vector_store %arg65[%c40_710, %c0_711], %496 {strides = array<i32>} : memref<432x16xbf16, #tpu.memory_space<vmem>>, vector<8x8xbf16>,
    %c0_712 = arith.constant 0 : index
    %c6_713 = arith.constant 6 : index
    %498 = vector.load %arg64[%c0_712, %c6_713] : memref<48x24xbf16, #tpu.memory_space<vmem>>, vector<8x8xbf16>
    %c48_714 = arith.constant 48 : index
    %c0_715 = arith.constant 0 : index
    %499 = vector.load %arg65[%c48_714, %c0_715] : memref<432x16xbf16, #tpu.memory_space<vmem>>, vector<8x8xbf16>
    tpu.vector_store %arg65[%c48_714, %c0_715], %498 {strides = array<i32>} : memref<432x16xbf16, #tpu.memory_space<vmem>>, vector<8x8xbf16>,
    %c0_716 = arith.constant 0 : index
    %c7_717 = arith.constant 7 : index
    %500 = vector.load %arg64[%c0_716, %c7_717] : memref<48x24xbf16, #tpu.memory_space<vmem>>, vector<8x8xbf16>
    %c56_718 = arith.constant 56 : index
    %c0_719 = arith.constant 0 : index
    %501 = vector.load %arg65[%c56_718, %c0_719] : memref<432x16xbf16, #tpu.memory_space<vmem>>, vector<8x8xbf16>
    tpu.vector_store %arg65[%c56_718, %c0_719], %500 {strides = array<i32>} : memref<432x16xbf16, #tpu.memory_space<vmem>>, vector<8x8xbf16>,
    %c0_720 = arith.constant 0 : index
    %c8_721 = arith.constant 8 : index
    %502 = vector.load %arg64[%c0_720, %c8_721] : memref<48x24xbf16, #tpu.memory_space<vmem>>, vector<8x8xbf16>
    %c64_722 = arith.constant 64 : index
    %c0_723 = arith.constant 0 : index
    %503 = vector.load %arg65[%c64_722, %c0_723] : memref<432x16xbf16, #tpu.memory_space<vmem>>, vector<8x8xbf16>
    tpu.vector_store %arg65[%c64_722, %c0_723], %502 {strides = array<i32>} : memref<432x16xbf16, #tpu.memory_space<vmem>>, vector<8x8xbf16>,
    %c0_724 = arith.constant 0 : index
    %c0_725 = arith.constant 0 : index
    %504 = vector.load %arg65[%c0_724, %c0_725] : memref<432x16xbf16, #tpu.memory_space<vmem>>, vector<72x8xbf16>
    %c0_726 = arith.constant 0 : index
    %c0_727 = arith.constant 0 : index
    %505 = vector.load %arg42[%c0_726, %c0_727] : memref<8x72xbf16, #tpu.memory_space<vmem>>, vector<8x72xbf16>
    %cst_728 = arith.constant dense<0.000000e+00> : vector<8x8xf32>
    %506 = tpu.matmul %505, %504, %cst_728 {dimension_numbers = #tpu.dot_dimension_numbers<[1], [0], [0], [1], [0, 0, 1, 1], [], []>} : vector<8x72xbf16>, vector<72x8xbf16>, vector<8x8xf32> -> vector<8x8xf32>
    %c0_729 = arith.constant 0 : index
    %c0_730 = arith.constant 0 : index
    %507 = vector.load %arg43[%c0_729, %c0_730] : memref<8x1xf32, #tpu.memory_space<vmem>>, vector<8x1xf32>
    %508 = vector.broadcast %507 : vector<8x1xf32> to vector<8x8xf32>
    %509 = arith.mulf %506, %508 : vector<8x8xf32>
    %c0_731 = arith.constant 0 : index
    %c0_732 = arith.constant 0 : index
    %510 = vector.load %arg44[%c0_731, %c0_732] : memref<8x1xf32, #tpu.memory_space<vmem>>, vector<8x1xf32>
    %511 = vector.broadcast %510 : vector<8x1xf32> to vector<8x8xf32>
    %512 = arith.addf %509, %511 : vector<8x8xf32>
    %cst_733 = arith.constant 0.000000e+00 : f32
    %513 = vector.broadcast %cst_733 : f32 to vector<8x8xf32>
    %514 = arith.maximumf %512, %513 : vector<8x8xf32>
    %cst_734 = arith.constant 0.000000e+00 : bf16
    %515 = vector.broadcast %cst_734 : bf16 to vector<8x12xbf16>
    %c0_735 = arith.constant 0 : index
    %c0_736 = arith.constant 0 : index
    %516 = vector.load %arg64[%c0_735, %c0_736] : memref<48x24xbf16, #tpu.memory_space<vmem>>, vector<8x12xbf16>
    tpu.vector_store %arg64[%c0_735, %c0_736], %515 {strides = array<i32>} : memref<48x24xbf16, #tpu.memory_space<vmem>>, vector<8x12xbf16>,
    %517 = arith.truncf %514 : vector<8x8xf32> to vector<8x8xbf16>
    %c0_737 = arith.constant 0 : index
    %c2_738 = arith.constant 2 : index
    %518 = vector.load %arg64[%c0_737, %c2_738] : memref<48x24xbf16, #tpu.memory_space<vmem>>, vector<8x8xbf16>
    tpu.vector_store %arg64[%c0_737, %c2_738], %517 {strides = array<i32>} : memref<48x24xbf16, #tpu.memory_space<vmem>>, vector<8x8xbf16>,
    %c0_739 = arith.constant 0 : index
    %c0_740 = arith.constant 0 : index
    %519 = vector.load %arg64[%c0_739, %c0_740] : memref<48x24xbf16, #tpu.memory_space<vmem>>, vector<8x8xbf16>
    %c0_741 = arith.constant 0 : index
    %c0_742 = arith.constant 0 : index
    %520 = vector.load %arg65[%c0_741, %c0_742] : memref<432x16xbf16, #tpu.memory_space<vmem>>, vector<8x8xbf16>
    tpu.vector_store %arg65[%c0_741, %c0_742], %519 {strides = array<i32>} : memref<432x16xbf16, #tpu.memory_space<vmem>>, vector<8x8xbf16>,
    %c0_743 = arith.constant 0 : index
    %c1_744 = arith.constant 1 : index
    %521 = vector.load %arg64[%c0_743, %c1_744] : memref<48x24xbf16, #tpu.memory_space<vmem>>, vector<8x8xbf16>
    %c8_745 = arith.constant 8 : index
    %c0_746 = arith.constant 0 : index
    %522 = vector.load %arg65[%c8_745, %c0_746] : memref<432x16xbf16, #tpu.memory_space<vmem>>, vector<8x8xbf16>
    tpu.vector_store %arg65[%c8_745, %c0_746], %521 {strides = array<i32>} : memref<432x16xbf16, #tpu.memory_space<vmem>>, vector<8x8xbf16>,
    %c0_747 = arith.constant 0 : index
    %c2_748 = arith.constant 2 : index
    %523 = vector.load %arg64[%c0_747, %c2_748] : memref<48x24xbf16, #tpu.memory_space<vmem>>, vector<8x8xbf16>
    %c16_749 = arith.constant 16 : index
    %c0_750 = arith.constant 0 : index
    %524 = vector.load %arg65[%c16_749, %c0_750] : memref<432x16xbf16, #tpu.memory_space<vmem>>, vector<8x8xbf16>
    tpu.vector_store %arg65[%c16_749, %c0_750], %523 {strides = array<i32>} : memref<432x16xbf16, #tpu.memory_space<vmem>>, vector<8x8xbf16>,
    %c0_751 = arith.constant 0 : index
    %c3_752 = arith.constant 3 : index
    %525 = vector.load %arg64[%c0_751, %c3_752] : memref<48x24xbf16, #tpu.memory_space<vmem>>, vector<8x8xbf16>
    %c24_753 = arith.constant 24 : index
    %c0_754 = arith.constant 0 : index
    %526 = vector.load %arg65[%c24_753, %c0_754] : memref<432x16xbf16, #tpu.memory_space<vmem>>, vector<8x8xbf16>
    tpu.vector_store %arg65[%c24_753, %c0_754], %525 {strides = array<i32>} : memref<432x16xbf16, #tpu.memory_space<vmem>>, vector<8x8xbf16>,
    %c0_755 = arith.constant 0 : index
    %c4_756 = arith.constant 4 : index
    %527 = vector.load %arg64[%c0_755, %c4_756] : memref<48x24xbf16, #tpu.memory_space<vmem>>, vector<8x8xbf16>
    %c32_757 = arith.constant 32 : index
    %c0_758 = arith.constant 0 : index
    %528 = vector.load %arg65[%c32_757, %c0_758] : memref<432x16xbf16, #tpu.memory_space<vmem>>, vector<8x8xbf16>
    tpu.vector_store %arg65[%c32_757, %c0_758], %527 {strides = array<i32>} : memref<432x16xbf16, #tpu.memory_space<vmem>>, vector<8x8xbf16>,
    %c0_759 = arith.constant 0 : index
    %c0_760 = arith.constant 0 : index
    %529 = vector.load %arg65[%c0_759, %c0_760] : memref<432x16xbf16, #tpu.memory_space<vmem>>, vector<40x8xbf16>
    %c0_761 = arith.constant 0 : index
    %c0_762 = arith.constant 0 : index
    %530 = vector.load %arg61[%c0_761, %c0_762] : memref<16x40xbf16, #tpu.memory_space<vmem>>, vector<16x40xbf16>
    %cst_763 = arith.constant dense<0.000000e+00> : vector<16x8xf32>
    %531 = tpu.matmul %530, %529, %cst_763 {dimension_numbers = #tpu.dot_dimension_numbers<[1], [0], [0], [1], [0, 0, 1, 1], [], []>} : vector<16x40xbf16>, vector<40x8xbf16>, vector<16x8xf32> -> vector<16x8xf32>
    %c0_764 = arith.constant 0 : index
    %c0_765 = arith.constant 0 : index
    %532 = vector.load %arg62[%c0_764, %c0_765] : memref<16x1xf32, #tpu.memory_space<vmem>>, vector<16x1xf32>
    %533 = vector.broadcast %532 : vector<16x1xf32> to vector<16x8xf32>
    %534 = arith.addf %531, %533 : vector<16x8xf32>
    %535 = vector.extract_strided_slice %534 {offsets = [0, 0], sizes = [8, 8], strides = [1, 1]} : vector<16x8xf32> to vector<8x8xf32>
    %536 = arith.truncf %535 : vector<8x8xf32> to vector<8x8xbf16>
    %537 = vector.extract_strided_slice %534 {offsets = [8, 0], sizes = [8, 8], strides = [1, 1]} : vector<16x8xf32> to vector<8x8xf32>
    %538 = arith.truncf %537 : vector<8x8xf32> to vector<8x8xbf16>
    %c0_766 = arith.constant 0 : index
    %c0_767 = arith.constant 0 : index
    %539 = vector.load %arg4[%c0_766, %c0_767] : memref<8x16xbf16, #tpu.memory_space<vmem>>, vector<8x16xbf16>
    %c0_768 = arith.constant 0 : index
    %c0_769 = arith.constant 0 : index
    %540 = vector.load %arg5[%c0_768, %c0_769] : memref<8x16xbf16, #tpu.memory_space<vmem>>, vector<8x16xbf16>
    %cst_770 = arith.constant dense<0.000000e+00> : vector<8x16xf32>
    %541 = tpu.matmul %536, %539, %cst_770 {dimension_numbers = #tpu.dot_dimension_numbers<[1], [0], [0], [1], [0, 0, 1, 1], [], []>} : vector<8x8xbf16>, vector<8x16xbf16>, vector<8x16xf32> -> vector<8x16xf32>
    %cst_771 = arith.constant dense<0.000000e+00> : vector<8x16xf32>
    %542 = tpu.matmul %538, %540, %cst_771 {dimension_numbers = #tpu.dot_dimension_numbers<[1], [0], [0], [1], [0, 0, 1, 1], [], []>} : vector<8x8xbf16>, vector<8x16xbf16>, vector<8x16xf32> -> vector<8x16xf32>
    %543 = arith.addf %541, %542 : vector<8x16xf32>
    %cst_772 = arith.constant 0.000000e+00 : bf16
    %544 = vector.broadcast %cst_772 : bf16 to vector<4x24xbf16>
    %c0_773 = arith.constant 0 : index
    %c0_774 = arith.constant 0 : index
    %545 = vector.load %arg64[%c0_773, %c0_774] : memref<48x24xbf16, #tpu.memory_space<vmem>>, vector<4x24xbf16>
    tpu.vector_store %arg64[%c0_773, %c0_774], %544 {strides = array<i32>} : memref<48x24xbf16, #tpu.memory_space<vmem>>, vector<4x24xbf16>,
    %546 = arith.truncf %100 : vector<4x16xf32> to vector<4x16xbf16>
    %c0_775 = arith.constant 0 : index
    %c4_776 = arith.constant 4 : index
    %547 = vector.load %arg64[%c0_775, %c4_776] : memref<48x24xbf16, #tpu.memory_space<vmem>>, vector<4x16xbf16>
    tpu.vector_store %arg64[%c0_775, %c4_776], %546 {strides = array<i32>} : memref<48x24xbf16, #tpu.memory_space<vmem>>, vector<4x16xbf16>,
    %cst_777 = arith.constant 0.000000e+00 : bf16
    %548 = vector.broadcast %cst_777 : bf16 to vector<8x24xbf16>
    %c4_778 = arith.constant 4 : index
    %c0_779 = arith.constant 0 : index
    %549 = vector.load %arg64[%c4_778, %c0_779] : memref<48x24xbf16, #tpu.memory_space<vmem>>, vector<8x24xbf16>
    tpu.vector_store %arg64[%c4_778, %c0_779], %548 {strides = array<i32>} : memref<48x24xbf16, #tpu.memory_space<vmem>>, vector<8x24xbf16>,
    %550 = arith.truncf %543 : vector<8x16xf32> to vector<8x16xbf16>
    %c4_780 = arith.constant 4 : index
    %c4_781 = arith.constant 4 : index
    %551 = vector.load %arg64[%c4_780, %c4_781] : memref<48x24xbf16, #tpu.memory_space<vmem>>, vector<8x16xbf16>
    tpu.vector_store %arg64[%c4_780, %c4_781], %550 {strides = array<i32>} : memref<48x24xbf16, #tpu.memory_space<vmem>>, vector<8x16xbf16>,
    %c0_782 = arith.constant 0 : index
    %c0_783 = arith.constant 0 : index
    %552 = vector.load %arg64[%c0_782, %c0_783] : memref<48x24xbf16, #tpu.memory_space<vmem>>, vector<12x16xbf16>
    %c0_784 = arith.constant 0 : index
    %c0_785 = arith.constant 0 : index
    %553 = vector.load %arg65[%c0_784, %c0_785] : memref<432x16xbf16, #tpu.memory_space<vmem>>, vector<12x16xbf16>
    tpu.vector_store %arg65[%c0_784, %c0_785], %552 {strides = array<i32>} : memref<432x16xbf16, #tpu.memory_space<vmem>>, vector<12x16xbf16>,
    %c0_786 = arith.constant 0 : index
    %c1_787 = arith.constant 1 : index
    %554 = vector.load %arg64[%c0_786, %c1_787] : memref<48x24xbf16, #tpu.memory_space<vmem>>, vector<12x16xbf16>
    %c12_788 = arith.constant 12 : index
    %c0_789 = arith.constant 0 : index
    %555 = vector.load %arg65[%c12_788, %c0_789] : memref<432x16xbf16, #tpu.memory_space<vmem>>, vector<12x16xbf16>
    tpu.vector_store %arg65[%c12_788, %c0_789], %554 {strides = array<i32>} : memref<432x16xbf16, #tpu.memory_space<vmem>>, vector<12x16xbf16>,
    %c0_790 = arith.constant 0 : index
    %c2_791 = arith.constant 2 : index
    %556 = vector.load %arg64[%c0_790, %c2_791] : memref<48x24xbf16, #tpu.memory_space<vmem>>, vector<12x16xbf16>
    %c24_792 = arith.constant 24 : index
    %c0_793 = arith.constant 0 : index
    %557 = vector.load %arg65[%c24_792, %c0_793] : memref<432x16xbf16, #tpu.memory_space<vmem>>, vector<12x16xbf16>
    tpu.vector_store %arg65[%c24_792, %c0_793], %556 {strides = array<i32>} : memref<432x16xbf16, #tpu.memory_space<vmem>>, vector<12x16xbf16>,
    %c0_794 = arith.constant 0 : index
    %c3_795 = arith.constant 3 : index
    %558 = vector.load %arg64[%c0_794, %c3_795] : memref<48x24xbf16, #tpu.memory_space<vmem>>, vector<12x16xbf16>
    %c36 = arith.constant 36 : index
    %c0_796 = arith.constant 0 : index
    %559 = vector.load %arg65[%c36, %c0_796] : memref<432x16xbf16, #tpu.memory_space<vmem>>, vector<12x16xbf16>
    tpu.vector_store %arg65[%c36, %c0_796], %558 {strides = array<i32>} : memref<432x16xbf16, #tpu.memory_space<vmem>>, vector<12x16xbf16>,
    %c0_797 = arith.constant 0 : index
    %c4_798 = arith.constant 4 : index
    %560 = vector.load %arg64[%c0_797, %c4_798] : memref<48x24xbf16, #tpu.memory_space<vmem>>, vector<12x16xbf16>
    %c48_799 = arith.constant 48 : index
    %c0_800 = arith.constant 0 : index
    %561 = vector.load %arg65[%c48_799, %c0_800] : memref<432x16xbf16, #tpu.memory_space<vmem>>, vector<12x16xbf16>
    tpu.vector_store %arg65[%c48_799, %c0_800], %560 {strides = array<i32>} : memref<432x16xbf16, #tpu.memory_space<vmem>>, vector<12x16xbf16>,
    %c0_801 = arith.constant 0 : index
    %c5_802 = arith.constant 5 : index
    %562 = vector.load %arg64[%c0_801, %c5_802] : memref<48x24xbf16, #tpu.memory_space<vmem>>, vector<12x16xbf16>
    %c60 = arith.constant 60 : index
    %c0_803 = arith.constant 0 : index
    %563 = vector.load %arg65[%c60, %c0_803] : memref<432x16xbf16, #tpu.memory_space<vmem>>, vector<12x16xbf16>
    tpu.vector_store %arg65[%c60, %c0_803], %562 {strides = array<i32>} : memref<432x16xbf16, #tpu.memory_space<vmem>>, vector<12x16xbf16>,
    %c0_804 = arith.constant 0 : index
    %c6_805 = arith.constant 6 : index
    %564 = vector.load %arg64[%c0_804, %c6_805] : memref<48x24xbf16, #tpu.memory_space<vmem>>, vector<12x16xbf16>
    %c72_806 = arith.constant 72 : index
    %c0_807 = arith.constant 0 : index
    %565 = vector.load %arg65[%c72_806, %c0_807] : memref<432x16xbf16, #tpu.memory_space<vmem>>, vector<12x16xbf16>
    tpu.vector_store %arg65[%c72_806, %c0_807], %564 {strides = array<i32>} : memref<432x16xbf16, #tpu.memory_space<vmem>>, vector<12x16xbf16>,
    %c0_808 = arith.constant 0 : index
    %c7_809 = arith.constant 7 : index
    %566 = vector.load %arg64[%c0_808, %c7_809] : memref<48x24xbf16, #tpu.memory_space<vmem>>, vector<12x16xbf16>
    %c84 = arith.constant 84 : index
    %c0_810 = arith.constant 0 : index
    %567 = vector.load %arg65[%c84, %c0_810] : memref<432x16xbf16, #tpu.memory_space<vmem>>, vector<12x16xbf16>
    tpu.vector_store %arg65[%c84, %c0_810], %566 {strides = array<i32>} : memref<432x16xbf16, #tpu.memory_space<vmem>>, vector<12x16xbf16>,
    %c0_811 = arith.constant 0 : index
    %c8_812 = arith.constant 8 : index
    %568 = vector.load %arg64[%c0_811, %c8_812] : memref<48x24xbf16, #tpu.memory_space<vmem>>, vector<12x16xbf16>
    %c96_813 = arith.constant 96 : index
    %c0_814 = arith.constant 0 : index
    %569 = vector.load %arg65[%c96_813, %c0_814] : memref<432x16xbf16, #tpu.memory_space<vmem>>, vector<12x16xbf16>
    tpu.vector_store %arg65[%c96_813, %c0_814], %568 {strides = array<i32>} : memref<432x16xbf16, #tpu.memory_space<vmem>>, vector<12x16xbf16>,
    %c0_815 = arith.constant 0 : index
    %c0_816 = arith.constant 0 : index
    %570 = vector.load %arg65[%c0_815, %c0_816] : memref<432x16xbf16, #tpu.memory_space<vmem>>, vector<108x16xbf16>
    %c0_817 = arith.constant 0 : index
    %c0_818 = arith.constant 0 : index
    %571 = vector.load %arg45[%c0_817, %c0_818] : memref<4x108xbf16, #tpu.memory_space<vmem>>, vector<4x108xbf16>
    %cst_819 = arith.constant dense<0.000000e+00> : vector<4x16xf32>
    %572 = tpu.matmul %571, %570, %cst_819 {dimension_numbers = #tpu.dot_dimension_numbers<[1], [0], [0], [1], [0, 0, 1, 1], [], []>} : vector<4x108xbf16>, vector<108x16xbf16>, vector<4x16xf32> -> vector<4x16xf32>
    %c0_820 = arith.constant 0 : index
    %c0_821 = arith.constant 0 : index
    %573 = vector.load %arg46[%c0_820, %c0_821] : memref<4x1xf32, #tpu.memory_space<vmem>>, vector<4x1xf32>
    %574 = vector.broadcast %573 : vector<4x1xf32> to vector<4x16xf32>
    %575 = arith.mulf %572, %574 : vector<4x16xf32>
    %c0_822 = arith.constant 0 : index
    %c0_823 = arith.constant 0 : index
    %576 = vector.load %arg47[%c0_822, %c0_823] : memref<4x1xf32, #tpu.memory_space<vmem>>, vector<4x1xf32>
    %577 = vector.broadcast %576 : vector<4x1xf32> to vector<4x16xf32>
    %578 = arith.addf %575, %577 : vector<4x16xf32>
    %cst_824 = arith.constant 0.000000e+00 : f32
    %579 = vector.broadcast %cst_824 : f32 to vector<4x16xf32>
    %580 = arith.maximumf %578, %579 : vector<4x16xf32>
    %cst_825 = arith.constant 0.000000e+00 : bf16
    %581 = vector.broadcast %cst_825 : bf16 to vector<4x24xbf16>
    %c0_826 = arith.constant 0 : index
    %c0_827 = arith.constant 0 : index
    %582 = vector.load %arg64[%c0_826, %c0_827] : memref<48x24xbf16, #tpu.memory_space<vmem>>, vector<4x24xbf16>
    tpu.vector_store %arg64[%c0_826, %c0_827], %581 {strides = array<i32>} : memref<48x24xbf16, #tpu.memory_space<vmem>>, vector<4x24xbf16>,
    %583 = arith.truncf %580 : vector<4x16xf32> to vector<4x16xbf16>
    %c0_828 = arith.constant 0 : index
    %c4_829 = arith.constant 4 : index
    %584 = vector.load %arg64[%c0_828, %c4_829] : memref<48x24xbf16, #tpu.memory_space<vmem>>, vector<4x16xbf16>
    tpu.vector_store %arg64[%c0_828, %c4_829], %583 {strides = array<i32>} : memref<48x24xbf16, #tpu.memory_space<vmem>>, vector<4x16xbf16>,
    %c0_830 = arith.constant 0 : index
    %c0_831 = arith.constant 0 : index
    %585 = vector.load %arg64[%c0_830, %c0_831] : memref<48x24xbf16, #tpu.memory_space<vmem>>, vector<4x16xbf16>
    %c0_832 = arith.constant 0 : index
    %c0_833 = arith.constant 0 : index
    %586 = vector.load %arg65[%c0_832, %c0_833] : memref<432x16xbf16, #tpu.memory_space<vmem>>, vector<4x16xbf16>
    tpu.vector_store %arg65[%c0_832, %c0_833], %585 {strides = array<i32>} : memref<432x16xbf16, #tpu.memory_space<vmem>>, vector<4x16xbf16>,
    %c0_834 = arith.constant 0 : index
    %c1_835 = arith.constant 1 : index
    %587 = vector.load %arg64[%c0_834, %c1_835] : memref<48x24xbf16, #tpu.memory_space<vmem>>, vector<4x16xbf16>
    %c4_836 = arith.constant 4 : index
    %c0_837 = arith.constant 0 : index
    %588 = vector.load %arg65[%c4_836, %c0_837] : memref<432x16xbf16, #tpu.memory_space<vmem>>, vector<4x16xbf16>
    tpu.vector_store %arg65[%c4_836, %c0_837], %587 {strides = array<i32>} : memref<432x16xbf16, #tpu.memory_space<vmem>>, vector<4x16xbf16>,
    %c0_838 = arith.constant 0 : index
    %c2_839 = arith.constant 2 : index
    %589 = vector.load %arg64[%c0_838, %c2_839] : memref<48x24xbf16, #tpu.memory_space<vmem>>, vector<4x16xbf16>
    %c8_840 = arith.constant 8 : index
    %c0_841 = arith.constant 0 : index
    %590 = vector.load %arg65[%c8_840, %c0_841] : memref<432x16xbf16, #tpu.memory_space<vmem>>, vector<4x16xbf16>
    tpu.vector_store %arg65[%c8_840, %c0_841], %589 {strides = array<i32>} : memref<432x16xbf16, #tpu.memory_space<vmem>>, vector<4x16xbf16>,
    %c0_842 = arith.constant 0 : index
    %c3_843 = arith.constant 3 : index
    %591 = vector.load %arg64[%c0_842, %c3_843] : memref<48x24xbf16, #tpu.memory_space<vmem>>, vector<4x16xbf16>
    %c12_844 = arith.constant 12 : index
    %c0_845 = arith.constant 0 : index
    %592 = vector.load %arg65[%c12_844, %c0_845] : memref<432x16xbf16, #tpu.memory_space<vmem>>, vector<4x16xbf16>
    tpu.vector_store %arg65[%c12_844, %c0_845], %591 {strides = array<i32>} : memref<432x16xbf16, #tpu.memory_space<vmem>>, vector<4x16xbf16>,
    %c0_846 = arith.constant 0 : index
    %c4_847 = arith.constant 4 : index
    %593 = vector.load %arg64[%c0_846, %c4_847] : memref<48x24xbf16, #tpu.memory_space<vmem>>, vector<4x16xbf16>
    %c16_848 = arith.constant 16 : index
    %c0_849 = arith.constant 0 : index
    %594 = vector.load %arg65[%c16_848, %c0_849] : memref<432x16xbf16, #tpu.memory_space<vmem>>, vector<4x16xbf16>
    tpu.vector_store %arg65[%c16_848, %c0_849], %593 {strides = array<i32>} : memref<432x16xbf16, #tpu.memory_space<vmem>>, vector<4x16xbf16>,
    %c0_850 = arith.constant 0 : index
    %c5_851 = arith.constant 5 : index
    %595 = vector.load %arg64[%c0_850, %c5_851] : memref<48x24xbf16, #tpu.memory_space<vmem>>, vector<4x16xbf16>
    %c20_852 = arith.constant 20 : index
    %c0_853 = arith.constant 0 : index
    %596 = vector.load %arg65[%c20_852, %c0_853] : memref<432x16xbf16, #tpu.memory_space<vmem>>, vector<4x16xbf16>
    tpu.vector_store %arg65[%c20_852, %c0_853], %595 {strides = array<i32>} : memref<432x16xbf16, #tpu.memory_space<vmem>>, vector<4x16xbf16>,
    %c0_854 = arith.constant 0 : index
    %c6_855 = arith.constant 6 : index
    %597 = vector.load %arg64[%c0_854, %c6_855] : memref<48x24xbf16, #tpu.memory_space<vmem>>, vector<4x16xbf16>
    %c24_856 = arith.constant 24 : index
    %c0_857 = arith.constant 0 : index
    %598 = vector.load %arg65[%c24_856, %c0_857] : memref<432x16xbf16, #tpu.memory_space<vmem>>, vector<4x16xbf16>
    tpu.vector_store %arg65[%c24_856, %c0_857], %597 {strides = array<i32>} : memref<432x16xbf16, #tpu.memory_space<vmem>>, vector<4x16xbf16>,
    %c0_858 = arith.constant 0 : index
    %c7_859 = arith.constant 7 : index
    %599 = vector.load %arg64[%c0_858, %c7_859] : memref<48x24xbf16, #tpu.memory_space<vmem>>, vector<4x16xbf16>
    %c28_860 = arith.constant 28 : index
    %c0_861 = arith.constant 0 : index
    %600 = vector.load %arg65[%c28_860, %c0_861] : memref<432x16xbf16, #tpu.memory_space<vmem>>, vector<4x16xbf16>
    tpu.vector_store %arg65[%c28_860, %c0_861], %599 {strides = array<i32>} : memref<432x16xbf16, #tpu.memory_space<vmem>>, vector<4x16xbf16>,
    %c0_862 = arith.constant 0 : index
    %c8_863 = arith.constant 8 : index
    %601 = vector.load %arg64[%c0_862, %c8_863] : memref<48x24xbf16, #tpu.memory_space<vmem>>, vector<4x16xbf16>
    %c32_864 = arith.constant 32 : index
    %c0_865 = arith.constant 0 : index
    %602 = vector.load %arg65[%c32_864, %c0_865] : memref<432x16xbf16, #tpu.memory_space<vmem>>, vector<4x16xbf16>
    tpu.vector_store %arg65[%c32_864, %c0_865], %601 {strides = array<i32>} : memref<432x16xbf16, #tpu.memory_space<vmem>>, vector<4x16xbf16>,
    %c0_866 = arith.constant 0 : index
    %c0_867 = arith.constant 0 : index
    %603 = vector.load %arg65[%c0_866, %c0_867] : memref<432x16xbf16, #tpu.memory_space<vmem>>, vector<36x16xbf16>
    %c0_868 = arith.constant 0 : index
    %c0_869 = arith.constant 0 : index
    %604 = vector.load %arg48[%c0_868, %c0_869] : memref<4x36xbf16, #tpu.memory_space<vmem>>, vector<4x36xbf16>
    %cst_870 = arith.constant dense<0.000000e+00> : vector<4x16xf32>
    %605 = tpu.matmul %604, %603, %cst_870 {dimension_numbers = #tpu.dot_dimension_numbers<[1], [0], [0], [1], [0, 0, 1, 1], [], []>} : vector<4x36xbf16>, vector<36x16xbf16>, vector<4x16xf32> -> vector<4x16xf32>
    %c0_871 = arith.constant 0 : index
    %c0_872 = arith.constant 0 : index
    %606 = vector.load %arg49[%c0_871, %c0_872] : memref<4x1xf32, #tpu.memory_space<vmem>>, vector<4x1xf32>
    %607 = vector.broadcast %606 : vector<4x1xf32> to vector<4x16xf32>
    %608 = arith.mulf %605, %607 : vector<4x16xf32>
    %c0_873 = arith.constant 0 : index
    %c0_874 = arith.constant 0 : index
    %609 = vector.load %arg50[%c0_873, %c0_874] : memref<4x1xf32, #tpu.memory_space<vmem>>, vector<4x1xf32>
    %610 = vector.broadcast %609 : vector<4x1xf32> to vector<4x16xf32>
    %611 = arith.addf %608, %610 : vector<4x16xf32>
    %cst_875 = arith.constant 0.000000e+00 : f32
    %612 = vector.broadcast %cst_875 : f32 to vector<4x16xf32>
    %613 = arith.maximumf %611, %612 : vector<4x16xf32>
    %cst_876 = arith.constant 0.000000e+00 : bf16
    %614 = vector.broadcast %cst_876 : bf16 to vector<4x24xbf16>
    %c0_877 = arith.constant 0 : index
    %c0_878 = arith.constant 0 : index
    %615 = vector.load %arg64[%c0_877, %c0_878] : memref<48x24xbf16, #tpu.memory_space<vmem>>, vector<4x24xbf16>
    tpu.vector_store %arg64[%c0_877, %c0_878], %614 {strides = array<i32>} : memref<48x24xbf16, #tpu.memory_space<vmem>>, vector<4x24xbf16>,
    %616 = arith.truncf %613 : vector<4x16xf32> to vector<4x16xbf16>
    %c0_879 = arith.constant 0 : index
    %c4_880 = arith.constant 4 : index
    %617 = vector.load %arg64[%c0_879, %c4_880] : memref<48x24xbf16, #tpu.memory_space<vmem>>, vector<4x16xbf16>
    tpu.vector_store %arg64[%c0_879, %c4_880], %616 {strides = array<i32>} : memref<48x24xbf16, #tpu.memory_space<vmem>>, vector<4x16xbf16>,
    %c0_881 = arith.constant 0 : index
    %c0_882 = arith.constant 0 : index
    %618 = vector.load %arg64[%c0_881, %c0_882] : memref<48x24xbf16, #tpu.memory_space<vmem>>, vector<4x16xbf16>
    %c0_883 = arith.constant 0 : index
    %c0_884 = arith.constant 0 : index
    %619 = vector.load %arg65[%c0_883, %c0_884] : memref<432x16xbf16, #tpu.memory_space<vmem>>, vector<4x16xbf16>
    tpu.vector_store %arg65[%c0_883, %c0_884], %618 {strides = array<i32>} : memref<432x16xbf16, #tpu.memory_space<vmem>>, vector<4x16xbf16>,
    %c0_885 = arith.constant 0 : index
    %c1_886 = arith.constant 1 : index
    %620 = vector.load %arg64[%c0_885, %c1_886] : memref<48x24xbf16, #tpu.memory_space<vmem>>, vector<4x16xbf16>
    %c4_887 = arith.constant 4 : index
    %c0_888 = arith.constant 0 : index
    %621 = vector.load %arg65[%c4_887, %c0_888] : memref<432x16xbf16, #tpu.memory_space<vmem>>, vector<4x16xbf16>
    tpu.vector_store %arg65[%c4_887, %c0_888], %620 {strides = array<i32>} : memref<432x16xbf16, #tpu.memory_space<vmem>>, vector<4x16xbf16>,
    %c0_889 = arith.constant 0 : index
    %c2_890 = arith.constant 2 : index
    %622 = vector.load %arg64[%c0_889, %c2_890] : memref<48x24xbf16, #tpu.memory_space<vmem>>, vector<4x16xbf16>
    %c8_891 = arith.constant 8 : index
    %c0_892 = arith.constant 0 : index
    %623 = vector.load %arg65[%c8_891, %c0_892] : memref<432x16xbf16, #tpu.memory_space<vmem>>, vector<4x16xbf16>
    tpu.vector_store %arg65[%c8_891, %c0_892], %622 {strides = array<i32>} : memref<432x16xbf16, #tpu.memory_space<vmem>>, vector<4x16xbf16>,
    %c0_893 = arith.constant 0 : index
    %c3_894 = arith.constant 3 : index
    %624 = vector.load %arg64[%c0_893, %c3_894] : memref<48x24xbf16, #tpu.memory_space<vmem>>, vector<4x16xbf16>
    %c12_895 = arith.constant 12 : index
    %c0_896 = arith.constant 0 : index
    %625 = vector.load %arg65[%c12_895, %c0_896] : memref<432x16xbf16, #tpu.memory_space<vmem>>, vector<4x16xbf16>
    tpu.vector_store %arg65[%c12_895, %c0_896], %624 {strides = array<i32>} : memref<432x16xbf16, #tpu.memory_space<vmem>>, vector<4x16xbf16>,
    %c0_897 = arith.constant 0 : index
    %c4_898 = arith.constant 4 : index
    %626 = vector.load %arg64[%c0_897, %c4_898] : memref<48x24xbf16, #tpu.memory_space<vmem>>, vector<4x16xbf16>
    %c16_899 = arith.constant 16 : index
    %c0_900 = arith.constant 0 : index
    %627 = vector.load %arg65[%c16_899, %c0_900] : memref<432x16xbf16, #tpu.memory_space<vmem>>, vector<4x16xbf16>
    tpu.vector_store %arg65[%c16_899, %c0_900], %626 {strides = array<i32>} : memref<432x16xbf16, #tpu.memory_space<vmem>>, vector<4x16xbf16>,
    %c0_901 = arith.constant 0 : index
    %c5_902 = arith.constant 5 : index
    %628 = vector.load %arg64[%c0_901, %c5_902] : memref<48x24xbf16, #tpu.memory_space<vmem>>, vector<4x16xbf16>
    %c20_903 = arith.constant 20 : index
    %c0_904 = arith.constant 0 : index
    %629 = vector.load %arg65[%c20_903, %c0_904] : memref<432x16xbf16, #tpu.memory_space<vmem>>, vector<4x16xbf16>
    tpu.vector_store %arg65[%c20_903, %c0_904], %628 {strides = array<i32>} : memref<432x16xbf16, #tpu.memory_space<vmem>>, vector<4x16xbf16>,
    %c0_905 = arith.constant 0 : index
    %c6_906 = arith.constant 6 : index
    %630 = vector.load %arg64[%c0_905, %c6_906] : memref<48x24xbf16, #tpu.memory_space<vmem>>, vector<4x16xbf16>
    %c24_907 = arith.constant 24 : index
    %c0_908 = arith.constant 0 : index
    %631 = vector.load %arg65[%c24_907, %c0_908] : memref<432x16xbf16, #tpu.memory_space<vmem>>, vector<4x16xbf16>
    tpu.vector_store %arg65[%c24_907, %c0_908], %630 {strides = array<i32>} : memref<432x16xbf16, #tpu.memory_space<vmem>>, vector<4x16xbf16>,
    %c0_909 = arith.constant 0 : index
    %c7_910 = arith.constant 7 : index
    %632 = vector.load %arg64[%c0_909, %c7_910] : memref<48x24xbf16, #tpu.memory_space<vmem>>, vector<4x16xbf16>
    %c28_911 = arith.constant 28 : index
    %c0_912 = arith.constant 0 : index
    %633 = vector.load %arg65[%c28_911, %c0_912] : memref<432x16xbf16, #tpu.memory_space<vmem>>, vector<4x16xbf16>
    tpu.vector_store %arg65[%c28_911, %c0_912], %632 {strides = array<i32>} : memref<432x16xbf16, #tpu.memory_space<vmem>>, vector<4x16xbf16>,
    %c0_913 = arith.constant 0 : index
    %c8_914 = arith.constant 8 : index
    %634 = vector.load %arg64[%c0_913, %c8_914] : memref<48x24xbf16, #tpu.memory_space<vmem>>, vector<4x16xbf16>
    %c32_915 = arith.constant 32 : index
    %c0_916 = arith.constant 0 : index
    %635 = vector.load %arg65[%c32_915, %c0_916] : memref<432x16xbf16, #tpu.memory_space<vmem>>, vector<4x16xbf16>
    tpu.vector_store %arg65[%c32_915, %c0_916], %634 {strides = array<i32>} : memref<432x16xbf16, #tpu.memory_space<vmem>>, vector<4x16xbf16>,
    %c0_917 = arith.constant 0 : index
    %c0_918 = arith.constant 0 : index
    %636 = vector.load %arg65[%c0_917, %c0_918] : memref<432x16xbf16, #tpu.memory_space<vmem>>, vector<36x16xbf16>
    %c0_919 = arith.constant 0 : index
    %c0_920 = arith.constant 0 : index
    %637 = vector.load %arg51[%c0_919, %c0_920] : memref<3x36xbf16, #tpu.memory_space<vmem>>, vector<3x36xbf16>
    %cst_921 = arith.constant dense<0.000000e+00> : vector<3x16xf32>
    %638 = tpu.matmul %637, %636, %cst_921 {dimension_numbers = #tpu.dot_dimension_numbers<[1], [0], [0], [1], [0, 0, 1, 1], [], []>} : vector<3x36xbf16>, vector<36x16xbf16>, vector<3x16xf32> -> vector<3x16xf32>
    %c0_922 = arith.constant 0 : index
    %c0_923 = arith.constant 0 : index
    %639 = vector.load %arg52[%c0_922, %c0_923] : memref<3x1xf32, #tpu.memory_space<vmem>>, vector<3x1xf32>
    %640 = vector.broadcast %639 : vector<3x1xf32> to vector<3x16xf32>
    %641 = arith.mulf %638, %640 : vector<3x16xf32>
    %c0_924 = arith.constant 0 : index
    %c0_925 = arith.constant 0 : index
    %642 = vector.load %arg53[%c0_924, %c0_925] : memref<3x1xf32, #tpu.memory_space<vmem>>, vector<3x1xf32>
    %643 = vector.broadcast %642 : vector<3x1xf32> to vector<3x16xf32>
    %644 = arith.addf %641, %643 : vector<3x16xf32>
    %cst_926 = arith.constant 0.000000e+00 : f32
    %645 = vector.broadcast %cst_926 : f32 to vector<3x16xf32>
    %646 = arith.maximumf %644, %645 : vector<3x16xf32>
    %cst_927 = arith.constant 0.000000e+00 : bf16
    %647 = vector.broadcast %cst_927 : bf16 to vector<3x24xbf16>
    %c0_928 = arith.constant 0 : index
    %c0_929 = arith.constant 0 : index
    %648 = vector.load %arg64[%c0_928, %c0_929] : memref<48x24xbf16, #tpu.memory_space<vmem>>, vector<3x24xbf16>
    tpu.vector_store %arg64[%c0_928, %c0_929], %647 {strides = array<i32>} : memref<48x24xbf16, #tpu.memory_space<vmem>>, vector<3x24xbf16>,
    %649 = arith.truncf %646 : vector<3x16xf32> to vector<3x16xbf16>
    %c0_930 = arith.constant 0 : index
    %c4_931 = arith.constant 4 : index
    %650 = vector.load %arg64[%c0_930, %c4_931] : memref<48x24xbf16, #tpu.memory_space<vmem>>, vector<3x16xbf16>
    tpu.vector_store %arg64[%c0_930, %c4_931], %649 {strides = array<i32>} : memref<48x24xbf16, #tpu.memory_space<vmem>>, vector<3x16xbf16>,
    %c0_932 = arith.constant 0 : index
    %c0_933 = arith.constant 0 : index
    %651 = vector.load %arg64[%c0_932, %c0_933] : memref<48x24xbf16, #tpu.memory_space<vmem>>, vector<3x16xbf16>
    %c0_934 = arith.constant 0 : index
    %c0_935 = arith.constant 0 : index
    %652 = vector.load %arg65[%c0_934, %c0_935] : memref<432x16xbf16, #tpu.memory_space<vmem>>, vector<3x16xbf16>
    tpu.vector_store %arg65[%c0_934, %c0_935], %651 {strides = array<i32>} : memref<432x16xbf16, #tpu.memory_space<vmem>>, vector<3x16xbf16>,
    %c0_936 = arith.constant 0 : index
    %c1_937 = arith.constant 1 : index
    %653 = vector.load %arg64[%c0_936, %c1_937] : memref<48x24xbf16, #tpu.memory_space<vmem>>, vector<3x16xbf16>
    %c3_938 = arith.constant 3 : index
    %c0_939 = arith.constant 0 : index
    %654 = vector.load %arg65[%c3_938, %c0_939] : memref<432x16xbf16, #tpu.memory_space<vmem>>, vector<3x16xbf16>
    tpu.vector_store %arg65[%c3_938, %c0_939], %653 {strides = array<i32>} : memref<432x16xbf16, #tpu.memory_space<vmem>>, vector<3x16xbf16>,
    %c0_940 = arith.constant 0 : index
    %c2_941 = arith.constant 2 : index
    %655 = vector.load %arg64[%c0_940, %c2_941] : memref<48x24xbf16, #tpu.memory_space<vmem>>, vector<3x16xbf16>
    %c6_942 = arith.constant 6 : index
    %c0_943 = arith.constant 0 : index
    %656 = vector.load %arg65[%c6_942, %c0_943] : memref<432x16xbf16, #tpu.memory_space<vmem>>, vector<3x16xbf16>
    tpu.vector_store %arg65[%c6_942, %c0_943], %655 {strides = array<i32>} : memref<432x16xbf16, #tpu.memory_space<vmem>>, vector<3x16xbf16>,
    %c0_944 = arith.constant 0 : index
    %c3_945 = arith.constant 3 : index
    %657 = vector.load %arg64[%c0_944, %c3_945] : memref<48x24xbf16, #tpu.memory_space<vmem>>, vector<3x16xbf16>
    %c9 = arith.constant 9 : index
    %c0_946 = arith.constant 0 : index
    %658 = vector.load %arg65[%c9, %c0_946] : memref<432x16xbf16, #tpu.memory_space<vmem>>, vector<3x16xbf16>
    tpu.vector_store %arg65[%c9, %c0_946], %657 {strides = array<i32>} : memref<432x16xbf16, #tpu.memory_space<vmem>>, vector<3x16xbf16>,
    %c0_947 = arith.constant 0 : index
    %c4_948 = arith.constant 4 : index
    %659 = vector.load %arg64[%c0_947, %c4_948] : memref<48x24xbf16, #tpu.memory_space<vmem>>, vector<3x16xbf16>
    %c12_949 = arith.constant 12 : index
    %c0_950 = arith.constant 0 : index
    %660 = vector.load %arg65[%c12_949, %c0_950] : memref<432x16xbf16, #tpu.memory_space<vmem>>, vector<3x16xbf16>
    tpu.vector_store %arg65[%c12_949, %c0_950], %659 {strides = array<i32>} : memref<432x16xbf16, #tpu.memory_space<vmem>>, vector<3x16xbf16>,
    %c0_951 = arith.constant 0 : index
    %c5_952 = arith.constant 5 : index
    %661 = vector.load %arg64[%c0_951, %c5_952] : memref<48x24xbf16, #tpu.memory_space<vmem>>, vector<3x16xbf16>
    %c15 = arith.constant 15 : index
    %c0_953 = arith.constant 0 : index
    %662 = vector.load %arg65[%c15, %c0_953] : memref<432x16xbf16, #tpu.memory_space<vmem>>, vector<3x16xbf16>
    tpu.vector_store %arg65[%c15, %c0_953], %661 {strides = array<i32>} : memref<432x16xbf16, #tpu.memory_space<vmem>>, vector<3x16xbf16>,
    %c0_954 = arith.constant 0 : index
    %c6_955 = arith.constant 6 : index
    %663 = vector.load %arg64[%c0_954, %c6_955] : memref<48x24xbf16, #tpu.memory_space<vmem>>, vector<3x16xbf16>
    %c18 = arith.constant 18 : index
    %c0_956 = arith.constant 0 : index
    %664 = vector.load %arg65[%c18, %c0_956] : memref<432x16xbf16, #tpu.memory_space<vmem>>, vector<3x16xbf16>
    tpu.vector_store %arg65[%c18, %c0_956], %663 {strides = array<i32>} : memref<432x16xbf16, #tpu.memory_space<vmem>>, vector<3x16xbf16>,
    %c0_957 = arith.constant 0 : index
    %c7_958 = arith.constant 7 : index
    %665 = vector.load %arg64[%c0_957, %c7_958] : memref<48x24xbf16, #tpu.memory_space<vmem>>, vector<3x16xbf16>
    %c21 = arith.constant 21 : index
    %c0_959 = arith.constant 0 : index
    %666 = vector.load %arg65[%c21, %c0_959] : memref<432x16xbf16, #tpu.memory_space<vmem>>, vector<3x16xbf16>
    tpu.vector_store %arg65[%c21, %c0_959], %665 {strides = array<i32>} : memref<432x16xbf16, #tpu.memory_space<vmem>>, vector<3x16xbf16>,
    %c0_960 = arith.constant 0 : index
    %c8_961 = arith.constant 8 : index
    %667 = vector.load %arg64[%c0_960, %c8_961] : memref<48x24xbf16, #tpu.memory_space<vmem>>, vector<3x16xbf16>
    %c24_962 = arith.constant 24 : index
    %c0_963 = arith.constant 0 : index
    %668 = vector.load %arg65[%c24_962, %c0_963] : memref<432x16xbf16, #tpu.memory_space<vmem>>, vector<3x16xbf16>
    tpu.vector_store %arg65[%c24_962, %c0_963], %667 {strides = array<i32>} : memref<432x16xbf16, #tpu.memory_space<vmem>>, vector<3x16xbf16>,
    %c0_964 = arith.constant 0 : index
    %c0_965 = arith.constant 0 : index
    %669 = vector.load %arg65[%c0_964, %c0_965] : memref<432x16xbf16, #tpu.memory_space<vmem>>, vector<27x16xbf16>
    %c0_966 = arith.constant 0 : index
    %c0_967 = arith.constant 0 : index
    %670 = vector.load %arg54[%c0_966, %c0_967] : memref<3x27xbf16, #tpu.memory_space<vmem>>, vector<3x27xbf16>
    %cst_968 = arith.constant dense<0.000000e+00> : vector<3x16xf32>
    %671 = tpu.matmul %670, %669, %cst_968 {dimension_numbers = #tpu.dot_dimension_numbers<[1], [0], [0], [1], [0, 0, 1, 1], [], []>} : vector<3x27xbf16>, vector<27x16xbf16>, vector<3x16xf32> -> vector<3x16xf32>
    %c0_969 = arith.constant 0 : index
    %c0_970 = arith.constant 0 : index
    %672 = vector.load %arg55[%c0_969, %c0_970] : memref<3x1xf32, #tpu.memory_space<vmem>>, vector<3x1xf32>
    %673 = vector.broadcast %672 : vector<3x1xf32> to vector<3x16xf32>
    %674 = arith.mulf %671, %673 : vector<3x16xf32>
    %c0_971 = arith.constant 0 : index
    %c0_972 = arith.constant 0 : index
    %675 = vector.load %arg56[%c0_971, %c0_972] : memref<3x1xf32, #tpu.memory_space<vmem>>, vector<3x1xf32>
    %676 = vector.broadcast %675 : vector<3x1xf32> to vector<3x16xf32>
    %677 = arith.addf %674, %676 : vector<3x16xf32>
    %cst_973 = arith.constant 0.000000e+00 : f32
    %678 = vector.broadcast %cst_973 : f32 to vector<3x16xf32>
    %679 = arith.maximumf %677, %678 : vector<3x16xf32>
    %c0_974 = arith.constant 0 : index
    %c0_975 = arith.constant 0 : index
    %c0_976 = arith.constant 0 : index
    %680 = vector.load %arg63[%c0_974, %c0_975, %c0_976] : memref<1x3x16xf32, #tpu.memory_space<vmem>>, vector<1x3x16xf32>
    %681 = vector.shape_cast %680 : vector<1x3x16xf32> to vector<3x16xf32>
    %682 = vector.shape_cast %679 : vector<3x16xf32> to vector<1x3x16xf32>
    tpu.vector_store %arg63[%c0_974, %c0_975, %c0_976], %682 {strides = array<i32>} : memref<1x3x16xf32, #tpu.memory_space<vmem>>, vector<1x3x16xf32>,
    return
  }
  func.func @transform_0(%arg0: i32) -> (i32, i32, i32) {
    %c0_i32 = arith.constant 0 : i32
    %c0_i32_0 = arith.constant 0 : i32
    %c0_i32_1 = arith.constant 0 : i32
    return %arg0, %c0_i32, %c0_i32_0 : i32, i32, i32
  }
  func.func @transform_1(%arg0: i32) -> (i32, i32) {
    %c0_i32 = arith.constant 0 : i32
    %c0_i32_0 = arith.constant 0 : i32
    %c0_i32_1 = arith.constant 0 : i32
    return %c0_i32, %c0_i32_0 : i32, i32
  }
  func.func @transform_2(%arg0: i32) -> (i32, i32) {
    %c0_i32 = arith.constant 0 : i32
    %c0_i32_0 = arith.constant 0 : i32
    %c0_i32_1 = arith.constant 0 : i32
    return %c0_i32, %c0_i32_0 : i32, i32
  }
  func.func @transform_3(%arg0: i32) -> (i32, i32) {
    %c0_i32 = arith.constant 0 : i32
    %c0_i32_0 = arith.constant 0 : i32
    %c0_i32_1 = arith.constant 0 : i32
    return %c0_i32, %c0_i32_0 : i32, i32
  }
  func.func @transform_4(%arg0: i32) -> (i32, i32) {
    %c0_i32 = arith.constant 0 : i32
    %c0_i32_0 = arith.constant 0 : i32
    %c0_i32_1 = arith.constant 0 : i32
    return %c0_i32, %c0_i32_0 : i32, i32
  }
  func.func @transform_5(%arg0: i32) -> (i32, i32) {
    %c0_i32 = arith.constant 0 : i32
    %c0_i32_0 = arith.constant 0 : i32
    %c0_i32_1 = arith.constant 0 : i32
    return %c0_i32, %c0_i32_0 : i32, i32
  }
  func.func @transform_6(%arg0: i32) -> (i32, i32) {
    %c0_i32 = arith.constant 0 : i32
    %c0_i32_0 = arith.constant 0 : i32
    %c0_i32_1 = arith.constant 0 : i32
    return %c0_i32, %c0_i32_0 : i32, i32
  }
  func.func @transform_7(%arg0: i32) -> (i32, i32) {
    %c0_i32 = arith.constant 0 : i32
    %c0_i32_0 = arith.constant 0 : i32
    %c0_i32_1 = arith.constant 0 : i32
    return %c0_i32, %c0_i32_0 : i32, i32
  }
  func.func @transform_8(%arg0: i32) -> (i32, i32) {
    %c0_i32 = arith.constant 0 : i32
    %c0_i32_0 = arith.constant 0 : i32
    %c0_i32_1 = arith.constant 0 : i32
    return %c0_i32, %c0_i32_0 : i32, i32
  }
  func.func @transform_9(%arg0: i32) -> (i32, i32) {
    %c0_i32 = arith.constant 0 : i32
    %c0_i32_0 = arith.constant 0 : i32
    %c0_i32_1 = arith.constant 0 : i32
    return %c0_i32, %c0_i32_0 : i32, i32
  }
  func.func @transform_10(%arg0: i32) -> (i32, i32) {
    %c0_i32 = arith.constant 0 : i32
    %c0_i32_0 = arith.constant 0 : i32
    %c0_i32_1 = arith.constant 0 : i32
    return %c0_i32, %c0_i32_0 : i32, i32
  }
  func.func @transform_11(%arg0: i32) -> (i32, i32) {
    %c0_i32 = arith.constant 0 : i32
    %c0_i32_0 = arith.constant 0 : i32
    %c0_i32_1 = arith.constant 0 : i32
    return %c0_i32, %c0_i32_0 : i32, i32
  }
  func.func @transform_12(%arg0: i32) -> (i32, i32) {
    %c0_i32 = arith.constant 0 : i32
    %c0_i32_0 = arith.constant 0 : i32
    %c0_i32_1 = arith.constant 0 : i32
    return %c0_i32, %c0_i32_0 : i32, i32
  }
  func.func @transform_13(%arg0: i32) -> (i32, i32) {
    %c0_i32 = arith.constant 0 : i32
    %c0_i32_0 = arith.constant 0 : i32
    %c0_i32_1 = arith.constant 0 : i32
    return %c0_i32, %c0_i32_0 : i32, i32
  }
  func.func @transform_14(%arg0: i32) -> (i32, i32) {
    %c0_i32 = arith.constant 0 : i32
    %c0_i32_0 = arith.constant 0 : i32
    %c0_i32_1 = arith.constant 0 : i32
    return %c0_i32, %c0_i32_0 : i32, i32
  }
  func.func @transform_15(%arg0: i32) -> (i32, i32) {
    %c0_i32 = arith.constant 0 : i32
    %c0_i32_0 = arith.constant 0 : i32
    %c0_i32_1 = arith.constant 0 : i32
    return %c0_i32, %c0_i32_0 : i32, i32
  }
  func.func @transform_16(%arg0: i32) -> (i32, i32) {
    %c0_i32 = arith.constant 0 : i32
    %c0_i32_0 = arith.constant 0 : i32
    %c0_i32_1 = arith.constant 0 : i32
    return %c0_i32, %c0_i32_0 : i32, i32
  }
  func.func @transform_17(%arg0: i32) -> (i32, i32) {
    %c0_i32 = arith.constant 0 : i32
    %c0_i32_0 = arith.constant 0 : i32
    %c0_i32_1 = arith.constant 0 : i32
    return %c0_i32, %c0_i32_0 : i32, i32
  }
  func.func @transform_18(%arg0: i32) -> (i32, i32) {
    %c0_i32 = arith.constant 0 : i32
    %c0_i32_0 = arith.constant 0 : i32
    %c0_i32_1 = arith.constant 0 : i32
    return %c0_i32, %c0_i32_0 : i32, i32
  }
  func.func @transform_19(%arg0: i32) -> (i32, i32) {
    %c0_i32 = arith.constant 0 : i32
    %c0_i32_0 = arith.constant 0 : i32
    %c0_i32_1 = arith.constant 0 : i32
    return %c0_i32, %c0_i32_0 : i32, i32
  }
  func.func @transform_20(%arg0: i32) -> (i32, i32) {
    %c0_i32 = arith.constant 0 : i32
    %c0_i32_0 = arith.constant 0 : i32
    %c0_i32_1 = arith.constant 0 : i32
    return %c0_i32, %c0_i32_0 : i32, i32
  }
  func.func @transform_21(%arg0: i32) -> (i32, i32) {
    %c0_i32 = arith.constant 0 : i32
    %c0_i32_0 = arith.constant 0 : i32
    %c0_i32_1 = arith.constant 0 : i32
    return %c0_i32, %c0_i32_0 : i32, i32
  }
  func.func @transform_22(%arg0: i32) -> (i32, i32) {
    %c0_i32 = arith.constant 0 : i32
    %c0_i32_0 = arith.constant 0 : i32
    %c0_i32_1 = arith.constant 0 : i32
    return %c0_i32, %c0_i32_0 : i32, i32
  }
  func.func @transform_23(%arg0: i32) -> (i32, i32) {
    %c0_i32 = arith.constant 0 : i32
    %c0_i32_0 = arith.constant 0 : i32
    %c0_i32_1 = arith.constant 0 : i32
    return %c0_i32, %c0_i32_0 : i32, i32
  }
  func.func @transform_24(%arg0: i32) -> (i32, i32) {
    %c0_i32 = arith.constant 0 : i32
    %c0_i32_0 = arith.constant 0 : i32
    %c0_i32_1 = arith.constant 0 : i32
    return %c0_i32, %c0_i32_0 : i32, i32
  }
  func.func @transform_25(%arg0: i32) -> (i32, i32) {
    %c0_i32 = arith.constant 0 : i32
    %c0_i32_0 = arith.constant 0 : i32
    %c0_i32_1 = arith.constant 0 : i32
    return %c0_i32, %c0_i32_0 : i32, i32
  }
  func.func @transform_26(%arg0: i32) -> (i32, i32) {
    %c0_i32 = arith.constant 0 : i32
    %c0_i32_0 = arith.constant 0 : i32
    %c0_i32_1 = arith.constant 0 : i32
    return %c0_i32, %c0_i32_0 : i32, i32
  }
  func.func @transform_27(%arg0: i32) -> (i32, i32) {
    %c0_i32 = arith.constant 0 : i32
    %c0_i32_0 = arith.constant 0 : i32
    %c0_i32_1 = arith.constant 0 : i32
    return %c0_i32, %c0_i32_0 : i32, i32
  }
  func.func @transform_28(%arg0: i32) -> (i32, i32) {
    %c0_i32 = arith.constant 0 : i32
    %c0_i32_0 = arith.constant 0 : i32
    %c0_i32_1 = arith.constant 0 : i32
    return %c0_i32, %c0_i32_0 : i32, i32
  }
  func.func @transform_29(%arg0: i32) -> (i32, i32) {
    %c0_i32 = arith.constant 0 : i32
    %c0_i32_0 = arith.constant 0 : i32
    %c0_i32_1 = arith.constant 0 : i32
    return %c0_i32, %c0_i32_0 : i32, i32
  }
  func.func @transform_30(%arg0: i32) -> (i32, i32) {
    %c0_i32 = arith.constant 0 : i32
    %c0_i32_0 = arith.constant 0 : i32
    %c0_i32_1 = arith.constant 0 : i32
    return %c0_i32, %c0_i32_0 : i32, i32
  }
  func.func @transform_31(%arg0: i32) -> (i32, i32) {
    %c0_i32 = arith.constant 0 : i32
    %c0_i32_0 = arith.constant 0 : i32
    %c0_i32_1 = arith.constant 0 : i32
    return %c0_i32, %c0_i32_0 : i32, i32
  }
  func.func @transform_32(%arg0: i32) -> (i32, i32) {
    %c0_i32 = arith.constant 0 : i32
    %c0_i32_0 = arith.constant 0 : i32
    %c0_i32_1 = arith.constant 0 : i32
    return %c0_i32, %c0_i32_0 : i32, i32
  }
  func.func @transform_33(%arg0: i32) -> (i32, i32) {
    %c0_i32 = arith.constant 0 : i32
    %c0_i32_0 = arith.constant 0 : i32
    %c0_i32_1 = arith.constant 0 : i32
    return %c0_i32, %c0_i32_0 : i32, i32
  }
  func.func @transform_34(%arg0: i32) -> (i32, i32) {
    %c0_i32 = arith.constant 0 : i32
    %c0_i32_0 = arith.constant 0 : i32
    %c0_i32_1 = arith.constant 0 : i32
    return %c0_i32, %c0_i32_0 : i32, i32
  }
  func.func @transform_35(%arg0: i32) -> (i32, i32) {
    %c0_i32 = arith.constant 0 : i32
    %c0_i32_0 = arith.constant 0 : i32
    %c0_i32_1 = arith.constant 0 : i32
    return %c0_i32, %c0_i32_0 : i32, i32
  }
  func.func @transform_36(%arg0: i32) -> (i32, i32) {
    %c0_i32 = arith.constant 0 : i32
    %c0_i32_0 = arith.constant 0 : i32
    %c0_i32_1 = arith.constant 0 : i32
    return %c0_i32, %c0_i32_0 : i32, i32
  }
  func.func @transform_37(%arg0: i32) -> (i32, i32) {
    %c0_i32 = arith.constant 0 : i32
    %c0_i32_0 = arith.constant 0 : i32
    %c0_i32_1 = arith.constant 0 : i32
    return %c0_i32, %c0_i32_0 : i32, i32
  }
  func.func @transform_38(%arg0: i32) -> (i32, i32) {
    %c0_i32 = arith.constant 0 : i32
    %c0_i32_0 = arith.constant 0 : i32
    %c0_i32_1 = arith.constant 0 : i32
    return %c0_i32, %c0_i32_0 : i32, i32
  }
  func.func @transform_39(%arg0: i32) -> (i32, i32) {
    %c0_i32 = arith.constant 0 : i32
    %c0_i32_0 = arith.constant 0 : i32
    %c0_i32_1 = arith.constant 0 : i32
    return %c0_i32, %c0_i32_0 : i32, i32
  }
  func.func @transform_40(%arg0: i32) -> (i32, i32) {
    %c0_i32 = arith.constant 0 : i32
    %c0_i32_0 = arith.constant 0 : i32
    %c0_i32_1 = arith.constant 0 : i32
    return %c0_i32, %c0_i32_0 : i32, i32
  }
  func.func @transform_41(%arg0: i32) -> (i32, i32) {
    %c0_i32 = arith.constant 0 : i32
    %c0_i32_0 = arith.constant 0 : i32
    %c0_i32_1 = arith.constant 0 : i32
    return %c0_i32, %c0_i32_0 : i32, i32
  }
  func.func @transform_42(%arg0: i32) -> (i32, i32) {
    %c0_i32 = arith.constant 0 : i32
    %c0_i32_0 = arith.constant 0 : i32
    %c0_i32_1 = arith.constant 0 : i32
    return %c0_i32, %c0_i32_0 : i32, i32
  }
  func.func @transform_43(%arg0: i32) -> (i32, i32) {
    %c0_i32 = arith.constant 0 : i32
    %c0_i32_0 = arith.constant 0 : i32
    %c0_i32_1 = arith.constant 0 : i32
    return %c0_i32, %c0_i32_0 : i32, i32
  }
  func.func @transform_44(%arg0: i32) -> (i32, i32) {
    %c0_i32 = arith.constant 0 : i32
    %c0_i32_0 = arith.constant 0 : i32
    %c0_i32_1 = arith.constant 0 : i32
    return %c0_i32, %c0_i32_0 : i32, i32
  }
  func.func @transform_45(%arg0: i32) -> (i32, i32) {
    %c0_i32 = arith.constant 0 : i32
    %c0_i32_0 = arith.constant 0 : i32
    %c0_i32_1 = arith.constant 0 : i32
    return %c0_i32, %c0_i32_0 : i32, i32
  }
  func.func @transform_46(%arg0: i32) -> (i32, i32) {
    %c0_i32 = arith.constant 0 : i32
    %c0_i32_0 = arith.constant 0 : i32
    %c0_i32_1 = arith.constant 0 : i32
    return %c0_i32, %c0_i32_0 : i32, i32
  }
  func.func @transform_47(%arg0: i32) -> (i32, i32) {
    %c0_i32 = arith.constant 0 : i32
    %c0_i32_0 = arith.constant 0 : i32
    %c0_i32_1 = arith.constant 0 : i32
    return %c0_i32, %c0_i32_0 : i32, i32
  }
  func.func @transform_48(%arg0: i32) -> (i32, i32) {
    %c0_i32 = arith.constant 0 : i32
    %c0_i32_0 = arith.constant 0 : i32
    %c0_i32_1 = arith.constant 0 : i32
    return %c0_i32, %c0_i32_0 : i32, i32
  }
  func.func @transform_49(%arg0: i32) -> (i32, i32) {
    %c0_i32 = arith.constant 0 : i32
    %c0_i32_0 = arith.constant 0 : i32
    %c0_i32_1 = arith.constant 0 : i32
    return %c0_i32, %c0_i32_0 : i32, i32
  }
  func.func @transform_50(%arg0: i32) -> (i32, i32) {
    %c0_i32 = arith.constant 0 : i32
    %c0_i32_0 = arith.constant 0 : i32
    %c0_i32_1 = arith.constant 0 : i32
    return %c0_i32, %c0_i32_0 : i32, i32
  }
  func.func @transform_51(%arg0: i32) -> (i32, i32) {
    %c0_i32 = arith.constant 0 : i32
    %c0_i32_0 = arith.constant 0 : i32
    %c0_i32_1 = arith.constant 0 : i32
    return %c0_i32, %c0_i32_0 : i32, i32
  }
  func.func @transform_52(%arg0: i32) -> (i32, i32) {
    %c0_i32 = arith.constant 0 : i32
    %c0_i32_0 = arith.constant 0 : i32
    %c0_i32_1 = arith.constant 0 : i32
    return %c0_i32, %c0_i32_0 : i32, i32
  }
  func.func @transform_53(%arg0: i32) -> (i32, i32) {
    %c0_i32 = arith.constant 0 : i32
    %c0_i32_0 = arith.constant 0 : i32
    %c0_i32_1 = arith.constant 0 : i32
    return %c0_i32, %c0_i32_0 : i32, i32
  }
  func.func @transform_54(%arg0: i32) -> (i32, i32) {
    %c0_i32 = arith.constant 0 : i32
    %c0_i32_0 = arith.constant 0 : i32
    %c0_i32_1 = arith.constant 0 : i32
    return %c0_i32, %c0_i32_0 : i32, i32
  }
  func.func @transform_55(%arg0: i32) -> (i32, i32) {
    %c0_i32 = arith.constant 0 : i32
    %c0_i32_0 = arith.constant 0 : i32
    %c0_i32_1 = arith.constant 0 : i32
    return %c0_i32, %c0_i32_0 : i32, i32
  }
  func.func @transform_56(%arg0: i32) -> (i32, i32) {
    %c0_i32 = arith.constant 0 : i32
    %c0_i32_0 = arith.constant 0 : i32
    %c0_i32_1 = arith.constant 0 : i32
    return %c0_i32, %c0_i32_0 : i32, i32
  }
  func.func @transform_57(%arg0: i32) -> (i32, i32) {
    %c0_i32 = arith.constant 0 : i32
    %c0_i32_0 = arith.constant 0 : i32
    %c0_i32_1 = arith.constant 0 : i32
    return %c0_i32, %c0_i32_0 : i32, i32
  }
  func.func @transform_58(%arg0: i32) -> (i32, i32) {
    %c0_i32 = arith.constant 0 : i32
    %c0_i32_0 = arith.constant 0 : i32
    %c0_i32_1 = arith.constant 0 : i32
    return %c0_i32, %c0_i32_0 : i32, i32
  }
  func.func @transform_59(%arg0: i32) -> (i32, i32) {
    %c0_i32 = arith.constant 0 : i32
    %c0_i32_0 = arith.constant 0 : i32
    %c0_i32_1 = arith.constant 0 : i32
    return %c0_i32, %c0_i32_0 : i32, i32
  }
  func.func @transform_60(%arg0: i32) -> (i32, i32) {
    %c0_i32 = arith.constant 0 : i32
    %c0_i32_0 = arith.constant 0 : i32
    %c0_i32_1 = arith.constant 0 : i32
    return %c0_i32, %c0_i32_0 : i32, i32
  }
  func.func @transform_61(%arg0: i32) -> (i32, i32) {
    %c0_i32 = arith.constant 0 : i32
    %c0_i32_0 = arith.constant 0 : i32
    %c0_i32_1 = arith.constant 0 : i32
    return %c0_i32, %c0_i32_0 : i32, i32
  }
  func.func @transform_62(%arg0: i32) -> (i32, i32, i32) {
    %c0_i32 = arith.constant 0 : i32
    %c0_i32_0 = arith.constant 0 : i32
    %c0_i32_1 = arith.constant 0 : i32
    return %arg0, %c0_i32, %c0_i32_0 : i32, i32, i32
  }
}

</mosaic_0001>

<llo_original>
// kernel: unet_forward_packed.1
$region0: #{unet_forward_packed.1}
  #allocation0 [shape = 'u32[]', space=smem, size = 0x4, offset = 0x4, fixed_abs, tag = 'smem constant byte address 0x4 - core index']
  #allocation1 [shape = 'u32[144,128]{1,0:T(1,128)}', space=vmem, size = 0x12000, scoped, tag = 'internal scratch']
  #allocation2 [shape = 'bf16[48,24]{1,0:T(16,128)(2,1)}', space=vmem, size = 0x3000, scoped, tag = 'scratch operand']
  #allocation3 [shape = 'bf16[432,16]{1,0:T(16,128)(2,1)}', space=vmem, size = 0x1b000, scoped, tag = 'scratch operand']
  %s0 = inlined_call_operand.smem [shape: u32[63], index: -1, kind: input, shape index: {}]
  %s1 = sld [smem:[%s0]]
  %s2 = scalar_lea.smem %s0, 1
  %s3 = sld [smem:[%s2]]
  %s4 = scalar_lea.smem %s0, 2
  %s5 = sld [smem:[%s4]]
  %s6 = scalar_lea.smem %s0, 3
  %s7 = sld [smem:[%s6]]
  %s8 = scalar_lea.smem %s0, 4
  %s9 = sld [smem:[%s8]]
  %s10 = scalar_lea.smem %s0, 5
  %s11 = sld [smem:[%s10]]
  %s12 = scalar_lea.smem %s0, 6
  %s13 = sld [smem:[%s12]]
  %s14 = scalar_lea.smem %s0, 7
  %s15 = sld [smem:[%s14]]
  %s16 = scalar_lea.smem %s0, 8
  %s17 = sld [smem:[%s16]]
  %s18 = scalar_lea.smem %s0, 9
  %s19 = sld [smem:[%s18]]
  %s20 = scalar_lea.smem %s0, 10
  %s21 = sld [smem:[%s20]]
  %s22 = scalar_lea.smem %s0, 11
  %s23 = sld [smem:[%s22]]
  %s24 = scalar_lea.smem %s0, 12
  %s25 = sld [smem:[%s24]]
  %s26 = scalar_lea.smem %s0, 13
  %s27 = sld [smem:[%s26]]
  %s28 = scalar_lea.smem %s0, 14
  %s29 = sld [smem:[%s28]]
  %s30 = scalar_lea.smem %s0, 15
  %s31 = sld [smem:[%s30]]
  %s32 = scalar_lea.smem %s0, 16
  %s33 = sld [smem:[%s32]]
  %s34 = scalar_lea.smem %s0, 17
  %s35 = sld [smem:[%s34]]
  %s36 = scalar_lea.smem %s0, 18
  %s37 = sld [smem:[%s36]]
  %s38 = scalar_lea.smem %s0, 19
  %s39 = sld [smem:[%s38]]
  %s40 = scalar_lea.smem %s0, 20
  %s41 = sld [smem:[%s40]]
  %s42 = scalar_lea.smem %s0, 21
  %s43 = sld [smem:[%s42]]
  %s44 = scalar_lea.smem %s0, 22
  %s45 = sld [smem:[%s44]]
  %s46 = scalar_lea.smem %s0, 23
  %s47 = sld [smem:[%s46]]
  %s48 = scalar_lea.smem %s0, 24
  %s49 = sld [smem:[%s48]]
  %s50 = scalar_lea.smem %s0, 25
  %s51 = sld [smem:[%s50]]
  %s52 = scalar_lea.smem %s0, 26
  %s53 = sld [smem:[%s52]]
  %s54 = scalar_lea.smem %s0, 27
  %s55 = sld [smem:[%s54]]
  %s56 = scalar_lea.smem %s0, 28
  %s57 = sld [smem:[%s56]]
  %s58 = scalar_lea.smem %s0, 29
  %s59 = sld [smem:[%s58]]
  %s60 = scalar_lea.smem %s0, 30
  %s61 = sld [smem:[%s60]]
  %s62 = scalar_lea.smem %s0, 31
  %s63 = sld [smem:[%s62]]
  %s64 = scalar_lea.smem %s0, 32
  %s65 = sld [smem:[%s64]]
  %s66 = scalar_lea.smem %s0, 33
  %s67 = sld [smem:[%s66]]
  %s68 = scalar_lea.smem %s0, 34
  %s69 = sld [smem:[%s68]]
  %s70 = scalar_lea.smem %s0, 35
  %s71 = sld [smem:[%s70]]
  %s72 = scalar_lea.smem %s0, 36
  %s73 = sld [smem:[%s72]]
  %s74 = scalar_lea.smem %s0, 37
  %s75 = sld [smem:[%s74]]
  %s76 = scalar_lea.smem %s0, 38
  %s77 = sld [smem:[%s76]]
  %s78 = scalar_lea.smem %s0, 39
  %s79 = sld [smem:[%s78]]
  %s80 = scalar_lea.smem %s0, 40
  %s81 = sld [smem:[%s80]]
  %s82 = scalar_lea.smem %s0, 41
  %s83 = sld [smem:[%s82]]
  %s84 = scalar_lea.smem %s0, 42
  %s85 = sld [smem:[%s84]]
  %s86 = scalar_lea.smem %s0, 43
  %s87 = sld [smem:[%s86]]
  %s88 = scalar_lea.smem %s0, 44
  %s89 = sld [smem:[%s88]]
  %s90 = scalar_lea.smem %s0, 45
  %s91 = sld [smem:[%s90]]
  %s92 = scalar_lea.smem %s0, 46
  %s93 = sld [smem:[%s92]]
  %s94 = scalar_lea.smem %s0, 47
  %s95 = sld [smem:[%s94]]
  %s96 = scalar_lea.smem %s0, 48
  %s97 = sld [smem:[%s96]]
  %s98 = scalar_lea.smem %s0, 49
  %s99 = sld [smem:[%s98]]
  %s100 = scalar_lea.smem %s0, 50
  %s101 = sld [smem:[%s100]]
  %s102 = scalar_lea.smem %s0, 51
  %s103 = sld [smem:[%s102]]
  %s104 = scalar_lea.smem %s0, 52
  %s105 = sld [smem:[%s104]]
  %s106 = scalar_lea.smem %s0, 53
  %s107 = sld [smem:[%s106]]
  %s108 = scalar_lea.smem %s0, 54
  %s109 = sld [smem:[%s108]]
  %s110 = scalar_lea.smem %s0, 55
  %s111 = sld [smem:[%s110]]
  %s112 = scalar_lea.smem %s0, 56
  %s113 = sld [smem:[%s112]]
  %s114 = scalar_lea.smem %s0, 57
  %s115 = sld [smem:[%s114]]
  %s116 = scalar_lea.smem %s0, 58
  %s117 = sld [smem:[%s116]]
  %s118 = scalar_lea.smem %s0, 59
  %s119 = sld [smem:[%s118]]
  %s120 = scalar_lea.smem %s0, 60
  %s121 = sld [smem:[%s120]]
  %s122 = scalar_lea.smem %s0, 61
  %s123 = sld [smem:[%s122]]
  %s124 = scalar_lea.smem %s0, 62
  %s125 = sld [smem:[%s124]]
  %s126 = sld [smem:[#allocation0]]
  $region281: #{unet_forward_packed.1} parent=0
    _
  %s128 = ssub.s32 1, %s126
  %s129 = scalar_select 0, %s128, %s126
  loop: start=0, step=1, limit=4
  $region2: #{unet_forward_packed.1} parent=0 // loop_pre_header
    _
  $region3: #{unet_forward_packed.1} parent=0 // loop_header
    %s131 = sphi 0, %s135
    %p132 = scmp.ge.s32.totalorder %s131, 4
    %s141 = sphi 0, %s143
    %s144 = sphi 0, %s141
    %s145 = sphi 0, %s144
    %s161 = sphi 0, %s145
    %s165 = sphi 0, %s165
    %s167 = sphi 0, %s165
    %s168 = sphi 0, %s167
    %s182 = sphi 0, %s168
    %s186 = sphi 0, %s186
    %s188 = sphi 0, %s186
    %s189 = sphi 0, %s188
    %s203 = sphi 0, %s189
    %s207 = sphi 0, %s207
    %s209 = sphi 0, %s207
    %s210 = sphi 0, %s209
    %s224 = sphi 0, %s210
    %s228 = sphi 0, %s228
    %s230 = sphi 0, %s228
    %s231 = sphi 0, %s230
    %s245 = sphi 0, %s231
    %s249 = sphi 0, %s249
    %s251 = sphi 0, %s249
    %s252 = sphi 0, %s251
    %s266 = sphi 0, %s252
    %s270 = sphi 0, %s270
    %s272 = sphi 0, %s270
    %s273 = sphi 0, %s272
    %s287 = sphi 0, %s273
    %s291 = sphi 0, %s291
    %s293 = sphi 0, %s291
    %s294 = sphi 0, %s293
    %s308 = sphi 0, %s294
    %s312 = sphi 0, %s312
    %s314 = sphi 0, %s312
    %s315 = sphi 0, %s314
    %s329 = sphi 0, %s315
    %s333 = sphi 0, %s333
    %s335 = sphi 0, %s333
    %s336 = sphi 0, %s335
    %s350 = sphi 0, %s336
    %s354 = sphi 0, %s354
    %s356 = sphi 0, %s354
    %s357 = sphi 0, %s356
    %s371 = sphi 0, %s357
    %s375 = sphi 0, %s375
    %s377 = sphi 0, %s375
    %s378 = sphi 0, %s377
    %s392 = sphi 0, %s378
    %s396 = sphi 0, %s396
    %s398 = sphi 0, %s396
    %s399 = sphi 0, %s398
    %s413 = sphi 0, %s399
    %s417 = sphi 0, %s417
    %s419 = sphi 0, %s417
    %s420 = sphi 0, %s419
    %s434 = sphi 0, %s420
    %s438 = sphi 0, %s438
    %s440 = sphi 0, %s438
    %s441 = sphi 0, %s440
    %s455 = sphi 0, %s441
    %s459 = sphi 0, %s459
    %s461 = sphi 0, %s459
    %s462 = sphi 0, %s461
    %s476 = sphi 0, %s462
    %s480 = sphi 0, %s480
    %s482 = sphi 0, %s480
    %s483 = sphi 0, %s482
    %s497 = sphi 0, %s483
    %s501 = sphi 0, %s501
    %s503 = sphi 0, %s501
    %s504 = sphi 0, %s503
    %s518 = sphi 0, %s504
    %s522 = sphi 0, %s522
    %s524 = sphi 0, %s522
    %s525 = sphi 0, %s524
    %s539 = sphi 0, %s525
    %s543 = sphi 0, %s543
    %s545 = sphi 0, %s543
    %s546 = sphi 0, %s545
    %s560 = sphi 0, %s546
    %s564 = sphi 0, %s564
    %s566 = sphi 0, %s564
    %s567 = sphi 0, %s566
    %s581 = sphi 0, %s567
    %s585 = sphi 0, %s585
    %s587 = sphi 0, %s585
    %s588 = sphi 0, %s587
    %s602 = sphi 0, %s588
    %s606 = sphi 0, %s606
    %s608 = sphi 0, %s606
    %s609 = sphi 0, %s608
    %s623 = sphi 0, %s609
    %s627 = sphi 0, %s627
    %s629 = sphi 0, %s627
    %s630 = sphi 0, %s629
    %s644 = sphi 0, %s630
    %s648 = sphi 0, %s648
    %s650 = sphi 0, %s648
    %s651 = sphi 0, %s650
    %s665 = sphi 0, %s651
    %s669 = sphi 0, %s669
    %s671 = sphi 0, %s669
    %s672 = sphi 0, %s671
    %s686 = sphi 0, %s672
    %s690 = sphi 0, %s690
    %s692 = sphi 0, %s690
    %s693 = sphi 0, %s692
    %s707 = sphi 0, %s693
    %s711 = sphi 0, %s711
    %s713 = sphi 0, %s711
    %s714 = sphi 0, %s713
    %s728 = sphi 0, %s714
    %s732 = sphi 0, %s732
    %s734 = sphi 0, %s732
    %s735 = sphi 0, %s734
    %s749 = sphi 0, %s735
    %s753 = sphi 0, %s753
    %s755 = sphi 0, %s753
    %s756 = sphi 0, %s755
    %s770 = sphi 0, %s756
    %s774 = sphi 0, %s774
    %s776 = sphi 0, %s774
    %s777 = sphi 0, %s776
    %s791 = sphi 0, %s777
    %s795 = sphi 0, %s795
    %s797 = sphi 0, %s795
    %s798 = sphi 0, %s797
    %s812 = sphi 0, %s798
    %s816 = sphi 0, %s816
    %s818 = sphi 0, %s816
    %s819 = sphi 0, %s818
    %s833 = sphi 0, %s819
    %s837 = sphi 0, %s837
    %s839 = sphi 0, %s837
    %s840 = sphi 0, %s839
    %s854 = sphi 0, %s840
    %s858 = sphi 0, %s858
    %s860 = sphi 0, %s858
    %s861 = sphi 0, %s860
    %s875 = sphi 0, %s861
    %s879 = sphi 0, %s879
    %s881 = sphi 0, %s879
    %s882 = sphi 0, %s881
    %s896 = sphi 0, %s882
    %s900 = sphi 0, %s900
    %s902 = sphi 0, %s900
    %s903 = sphi 0, %s902
    %s917 = sphi 0, %s903
    %s921 = sphi 0, %s921
    %s923 = sphi 0, %s921
    %s924 = sphi 0, %s923
    %s938 = sphi 0, %s924
    %s942 = sphi 0, %s942
    %s944 = sphi 0, %s942
    %s945 = sphi 0, %s944
    %s959 = sphi 0, %s945
    %s963 = sphi 0, %s963
    %s965 = sphi 0, %s963
    %s966 = sphi 0, %s965
    %s980 = sphi 0, %s966
    %s984 = sphi 0, %s984
    %s986 = sphi 0, %s984
    %s987 = sphi 0, %s986
    %s1001 = sphi 0, %s987
    %s1005 = sphi 0, %s1005
    %s1007 = sphi 0, %s1005
    %s1008 = sphi 0, %s1007
    %s1022 = sphi 0, %s1008
    %s1026 = sphi 0, %s1026
    %s1028 = sphi 0, %s1026
    %s1029 = sphi 0, %s1028
    %s1043 = sphi 0, %s1029
    %s1047 = sphi 0, %s1047
    %s1049 = sphi 0, %s1047
    %s1050 = sphi 0, %s1049
    %s1064 = sphi 0, %s1050
    %s1068 = sphi 0, %s1068
    %s1070 = sphi 0, %s1068
    %s1071 = sphi 0, %s1070
    %s1085 = sphi 0, %s1071
    %s1089 = sphi 0, %s1089
    %s1091 = sphi 0, %s1089
    %s1092 = sphi 0, %s1091
    %s1106 = sphi 0, %s1092
    %s1110 = sphi 0, %s1110
    %s1112 = sphi 0, %s1110
    %s1113 = sphi 0, %s1112
    %s1127 = sphi 0, %s1113
    %s1131 = sphi 0, %s1131
    %s1133 = sphi 0, %s1131
    %s1134 = sphi 0, %s1133
    %s1148 = sphi 0, %s1134
    %s1152 = sphi 0, %s1152
    %s1154 = sphi 0, %s1152
    %s1155 = sphi 0, %s1154
    %s1169 = sphi 0, %s1155
    %s1173 = sphi 0, %s1173
    %s1175 = sphi 0, %s1173
    %s1176 = sphi 0, %s1175
    %s1190 = sphi 0, %s1176
    %s1194 = sphi 0, %s1194
    %s1196 = sphi 0, %s1194
    %s1197 = sphi 0, %s1196
    %s1211 = sphi 0, %s1197
    %s1215 = sphi 0, %s1215
    %s1217 = sphi 0, %s1215
    %s1218 = sphi 0, %s1217
    %s1232 = sphi 0, %s1218
    %s1236 = sphi 0, %s1236
    %s1238 = sphi 0, %s1236
    %s1239 = sphi 0, %s1238
    %s1253 = sphi 0, %s1239
    %s1257 = sphi 0, %s1257
    %s1259 = sphi 0, %s1257
    %s1260 = sphi 0, %s1259
    %s1274 = sphi 0, %s1260
    %s1278 = sphi 0, %s1278
    %s1280 = sphi 0, %s1278
    %s1281 = sphi 0, %s1280
    %s1295 = sphi 0, %s1281
    %s1299 = sphi 0, %s1299
    %s1301 = sphi 0, %s1299
    %s1302 = sphi 0, %s1301
    %s1316 = sphi 0, %s1302
    %s1320 = sphi 0, %s1320
    %s1322 = sphi 0, %s1320
    %s1323 = sphi 0, %s1322
    %s1337 = sphi 0, %s1323
    %s1341 = sphi 0, %s1341
    %s1343 = sphi 0, %s1341
    %s1344 = sphi 0, %s1343
    %s1358 = sphi 0, %s1344
    %s1362 = sphi 0, %s1362
    %s1364 = sphi 0, %s1362
    %s1365 = sphi 0, %s1364
    %s1379 = sphi 0, %s1365
    %s1383 = sphi 0, %s1383
    %s1385 = sphi 0, %s1383
    %s1386 = sphi 0, %s1385
    %s1400 = sphi 0, %s1386
    %s1404 = sphi 0, %s1404
    %s1406 = sphi 0, %s1404
    %s1407 = sphi 0, %s1406
    %s1421 = sphi 0, %s1407
    %s1425 = sphi 0, %s1425
    %s1427 = sphi 0, %s1425
    %s1428 = sphi 0, %s1427
    %s1442 = sphi 0, %s1428
    %s1448 = sphi 0, %s1450
    %s1451 = sphi 0, %s1448
    %s1452 = sphi 0, %s1451
    %s1468 = sphi 0, %s1452
  $region4: #{unet_forward_packed.1} parent=0 // loop_header_branch
    %134 = sbr.rel (%p132) target = $region8
  $region5: #{unet_forward_packed.1} parent=0 // loop_body
    %s136 = ssub.s32 %s131, 1
    %s137 = ssub.s32 %s131, 2
    %s138 = sadd.s32 %s131, 1
    %s139 = ssub.s32 %s131, %s138
    %p140 = scmp.eq.s32.totalorder %s139, 0
    %s142 = sadd.s32 %s141, 1
    %s143 = scalar_select %p140, %s141, %s142
    %p146 = pneg %p140
    %p147 = scmp.eq.s32.totalorder %s131, 1
    %p148 = por %p146, %p147
    %p149 = scmp.ne.s32.totalorder %s141, %s144
    %p150 = scmp.eq.s32.totalorder %s131, 0
    %p151 = por %p149, %p150
    %p152 = scmp.ne.s32.totalorder %s141, %s144
    %p153 = scmp.eq.s32.totalorder %s136, 1
    %p154 = por %p152, %p153
    %p155 = scmp.ne.s32.totalorder %s144, %s145
    %p156 = scmp.eq.s32.totalorder %s136, 0
    %p157 = por %p155, %p156
    %p158 = scmp.ne.s32.totalorder %s144, %s145
    %p159 = scmp.eq.s32.totalorder %s137, 1
    %p160 = por %p158, %p159
    %p162 = scmp.ne.s32.totalorder %s145, %s161
    %p163 = scmp.eq.s32.totalorder %s137, 0
    %p164 = por %p162, %p163
    %s166 = sadd.s32 %s165, 1
    %p169 = scmp.eq.s32.totalorder %s131, 1
    %p170 = scmp.ne.s32.totalorder %s165, %s167
    %p171 = scmp.eq.s32.totalorder %s131, 0
    %p172 = por %p170, %p171
    %p173 = scmp.ne.s32.totalorder %s165, %s167
    %p174 = scmp.eq.s32.totalorder %s136, 1
    %p175 = por %p173, %p174
    %p176 = scmp.ne.s32.totalorder %s167, %s168
    %p177 = scmp.eq.s32.totalorder %s136, 0
    %p178 = por %p176, %p177
    %p179 = scmp.ne.s32.totalorder %s167, %s168
    %p180 = scmp.eq.s32.totalorder %s137, 1
    %p181 = por %p179, %p180
    %p183 = scmp.ne.s32.totalorder %s168, %s182
    %p184 = scmp.eq.s32.totalorder %s137, 0
    %p185 = por %p183, %p184
    %s187 = sadd.s32 %s186, 1
    %p190 = scmp.eq.s32.totalorder %s131, 1
    %p191 = scmp.ne.s32.totalorder %s186, %s188
    %p192 = scmp.eq.s32.totalorder %s131, 0
    %p193 = por %p191, %p192
    %p194 = scmp.ne.s32.totalorder %s186, %s188
    %p195 = scmp.eq.s32.totalorder %s136, 1
    %p196 = por %p194, %p195
    %p197 = scmp.ne.s32.totalorder %s188, %s189
    %p198 = scmp.eq.s32.totalorder %s136, 0
    %p199 = por %p197, %p198
    %p200 = scmp.ne.s32.totalorder %s188, %s189
    %p201 = scmp.eq.s32.totalorder %s137, 1
    %p202 = por %p200, %p201
    %p204 = scmp.ne.s32.totalorder %s189, %s203
    %p205 = scmp.eq.s32.totalorder %s137, 0
    %p206 = por %p204, %p205
    %s208 = sadd.s32 %s207, 1
    %p211 = scmp.eq.s32.totalorder %s131, 1
    %p212 = scmp.ne.s32.totalorder %s207, %s209
    %p213 = scmp.eq.s32.totalorder %s131, 0
    %p214 = por %p212, %p213
    %p215 = scmp.ne.s32.totalorder %s207, %s209
    %p216 = scmp.eq.s32.totalorder %s136, 1
    %p217 = por %p215, %p216
    %p218 = scmp.ne.s32.totalorder %s209, %s210
    %p219 = scmp.eq.s32.totalorder %s136, 0
    %p220 = por %p218, %p219
    %p221 = scmp.ne.s32.totalorder %s209, %s210
    %p222 = scmp.eq.s32.totalorder %s137, 1
    %p223 = por %p221, %p222
    %p225 = scmp.ne.s32.totalorder %s210, %s224
    %p226 = scmp.eq.s32.totalorder %s137, 0
    %p227 = por %p225, %p226
    %s229 = sadd.s32 %s228, 1
    %p232 = scmp.eq.s32.totalorder %s131, 1
    %p233 = scmp.ne.s32.totalorder %s228, %s230
    %p234 = scmp.eq.s32.totalorder %s131, 0
    %p235 = por %p233, %p234
    %p236 = scmp.ne.s32.totalorder %s228, %s230
    %p237 = scmp.eq.s32.totalorder %s136, 1
    %p238 = por %p236, %p237
    %p239 = scmp.ne.s32.totalorder %s230, %s231
    %p240 = scmp.eq.s32.totalorder %s136, 0
    %p241 = por %p239, %p240
    %p242 = scmp.ne.s32.totalorder %s230, %s231
    %p243 = scmp.eq.s32.totalorder %s137, 1
    %p244 = por %p242, %p243
    %p246 = scmp.ne.s32.totalorder %s231, %s245
    %p247 = scmp.eq.s32.totalorder %s137, 0
    %p248 = por %p246, %p247
    %s250 = sadd.s32 %s249, 1
    %p253 = scmp.eq.s32.totalorder %s131, 1
    %p254 = scmp.ne.s32.totalorder %s249, %s251
    %p255 = scmp.eq.s32.totalorder %s131, 0
    %p256 = por %p254, %p255
    %p257 = scmp.ne.s32.totalorder %s249, %s251
    %p258 = scmp.eq.s32.totalorder %s136, 1
    %p259 = por %p257, %p258
    %p260 = scmp.ne.s32.totalorder %s251, %s252
    %p261 = scmp.eq.s32.totalorder %s136, 0
    %p262 = por %p260, %p261
    %p263 = scmp.ne.s32.totalorder %s251, %s252
    %p264 = scmp.eq.s32.totalorder %s137, 1
    %p265 = por %p263, %p264
    %p267 = scmp.ne.s32.totalorder %s252, %s266
    %p268 = scmp.eq.s32.totalorder %s137, 0
    %p269 = por %p267, %p268
    %s271 = sadd.s32 %s270, 1
    %p274 = scmp.eq.s32.totalorder %s131, 1
    %p275 = scmp.ne.s32.totalorder %s270, %s272
    %p276 = scmp.eq.s32.totalorder %s131, 0
    %p277 = por %p275, %p276
    %p278 = scmp.ne.s32.totalorder %s270, %s272
    %p279 = scmp.eq.s32.totalorder %s136, 1
    %p280 = por %p278, %p279
    %p281 = scmp.ne.s32.totalorder %s272, %s273
    %p282 = scmp.eq.s32.totalorder %s136, 0
    %p283 = por %p281, %p282
    %p284 = scmp.ne.s32.totalorder %s272, %s273
    %p285 = scmp.eq.s32.totalorder %s137, 1
    %p286 = por %p284, %p285
    %p288 = scmp.ne.s32.totalorder %s273, %s287
    %p289 = scmp.eq.s32.totalorder %s137, 0
    %p290 = por %p288, %p289
    %s292 = sadd.s32 %s291, 1
    %p295 = scmp.eq.s32.totalorder %s131, 1
    %p296 = scmp.ne.s32.totalorder %s291, %s293
    %p297 = scmp.eq.s32.totalorder %s131, 0
    %p298 = por %p296, %p297
    %p299 = scmp.ne.s32.totalorder %s291, %s293
    %p300 = scmp.eq.s32.totalorder %s136, 1
    %p301 = por %p299, %p300
    %p302 = scmp.ne.s32.totalorder %s293, %s294
    %p303 = scmp.eq.s32.totalorder %s136, 0
    %p304 = por %p302, %p303
    %p305 = scmp.ne.s32.totalorder %s293, %s294
    %p306 = scmp.eq.s32.totalorder %s137, 1
    %p307 = por %p305, %p306
    %p309 = scmp.ne.s32.totalorder %s294, %s308
    %p310 = scmp.eq.s32.totalorder %s137, 0
    %p311 = por %p309, %p310
    %s313 = sadd.s32 %s312, 1
    %p316 = scmp.eq.s32.totalorder %s131, 1
    %p317 = scmp.ne.s32.totalorder %s312, %s314
    %p318 = scmp.eq.s32.totalorder %s131, 0
    %p319 = por %p317, %p318
    %p320 = scmp.ne.s32.totalorder %s312, %s314
    %p321 = scmp.eq.s32.totalorder %s136, 1
    %p322 = por %p320, %p321
    %p323 = scmp.ne.s32.totalorder %s314, %s315
    %p324 = scmp.eq.s32.totalorder %s136, 0
    %p325 = por %p323, %p324
    %p326 = scmp.ne.s32.totalorder %s314, %s315
    %p327 = scmp.eq.s32.totalorder %s137, 1
    %p328 = por %p326, %p327
    %p330 = scmp.ne.s32.totalorder %s315, %s329
    %p331 = scmp.eq.s32.totalorder %s137, 0
    %p332 = por %p330, %p331
    %s334 = sadd.s32 %s333, 1
    %p337 = scmp.eq.s32.totalorder %s131, 1
    %p338 = scmp.ne.s32.totalorder %s333, %s335
    %p339 = scmp.eq.s32.totalorder %s131, 0
    %p340 = por %p338, %p339
    %p341 = scmp.ne.s32.totalorder %s333, %s335
    %p342 = scmp.eq.s32.totalorder %s136, 1
    %p343 = por %p341, %p342
    %p344 = scmp.ne.s32.totalorder %s335, %s336
    %p345 = scmp.eq.s32.totalorder %s136, 0
    %p346 = por %p344, %p345
    %p347 = scmp.ne.s32.totalorder %s335, %s336
    %p348 = scmp.eq.s32.totalorder %s137, 1
    %p349 = por %p347, %p348
    %p351 = scmp.ne.s32.totalorder %s336, %s350
    %p352 = scmp.eq.s32.totalorder %s137, 0
    %p353 = por %p351, %p352
    %s355 = sadd.s32 %s354, 1
    %p358 = scmp.eq.s32.totalorder %s131, 1
    %p359 = scmp.ne.s32.totalorder %s354, %s356
    %p360 = scmp.eq.s32.totalorder %s131, 0
    %p361 = por %p359, %p360
    %p362 = scmp.ne.s32.totalorder %s354, %s356
    %p363 = scmp.eq.s32.totalorder %s136, 1
    %p364 = por %p362, %p363
    %p365 = scmp.ne.s32.totalorder %s356, %s357
    %p366 = scmp.eq.s32.totalorder %s136, 0
    %p367 = por %p365, %p366
    %p368 = scmp.ne.s32.totalorder %s356, %s357
    %p369 = scmp.eq.s32.totalorder %s137, 1
    %p370 = por %p368, %p369
    %p372 = scmp.ne.s32.totalorder %s357, %s371
    %p373 = scmp.eq.s32.totalorder %s137, 0
    %p374 = por %p372, %p373
    %s376 = sadd.s32 %s375, 1
    %p379 = scmp.eq.s32.totalorder %s131, 1
    %p380 = scmp.ne.s32.totalorder %s375, %s377
    %p381 = scmp.eq.s32.totalorder %s131, 0
    %p382 = por %p380, %p381
    %p383 = scmp.ne.s32.totalorder %s375, %s377
    %p384 = scmp.eq.s32.totalorder %s136, 1
    %p385 = por %p383, %p384
    %p386 = scmp.ne.s32.totalorder %s377, %s378
    %p387 = scmp.eq.s32.totalorder %s136, 0
    %p388 = por %p386, %p387
    %p389 = scmp.ne.s32.totalorder %s377, %s378
    %p390 = scmp.eq.s32.totalorder %s137, 1
    %p391 = por %p389, %p390
    %p393 = scmp.ne.s32.totalorder %s378, %s392
    %p394 = scmp.eq.s32.totalorder %s137, 0
    %p395 = por %p393, %p394
    %s397 = sadd.s32 %s396, 1
    %p400 = scmp.eq.s32.totalorder %s131, 1
    %p401 = scmp.ne.s32.totalorder %s396, %s398
    %p402 = scmp.eq.s32.totalorder %s131, 0
    %p403 = por %p401, %p402
    %p404 = scmp.ne.s32.totalorder %s396, %s398
    %p405 = scmp.eq.s32.totalorder %s136, 1
    %p406 = por %p404, %p405
    %p407 = scmp.ne.s32.totalorder %s398, %s399
    %p408 = scmp.eq.s32.totalorder %s136, 0
    %p409 = por %p407, %p408
    %p410 = scmp.ne.s32.totalorder %s398, %s399
    %p411 = scmp.eq.s32.totalorder %s137, 1
    %p412 = por %p410, %p411
    %p414 = scmp.ne.s32.totalorder %s399, %s413
    %p415 = scmp.eq.s32.totalorder %s137, 0
    %p416 = por %p414, %p415
    %s418 = sadd.s32 %s417, 1
    %p421 = scmp.eq.s32.totalorder %s131, 1
    %p422 = scmp.ne.s32.totalorder %s417, %s419
    %p423 = scmp.eq.s32.totalorder %s131, 0
    %p424 = por %p422, %p423
    %p425 = scmp.ne.s32.totalorder %s417, %s419
    %p426 = scmp.eq.s32.totalorder %s136, 1
    %p427 = por %p425, %p426
    %p428 = scmp.ne.s32.totalorder %s419, %s420
    %p429 = scmp.eq.s32.totalorder %s136, 0
    %p430 = por %p428, %p429
    %p431 = scmp.ne.s32.totalorder %s419, %s420
    %p432 = scmp.eq.s32.totalorder %s137, 1
    %p433 = por %p431, %p432
    %p435 = scmp.ne.s32.totalorder %s420, %s434
    %p436 = scmp.eq.s32.totalorder %s137, 0
    %p437 = por %p435, %p436
    %s439 = sadd.s32 %s438, 1
    %p442 = scmp.eq.s32.totalorder %s131, 1
    %p443 = scmp.ne.s32.totalorder %s438, %s440
    %p444 = scmp.eq.s32.totalorder %s131, 0
    %p445 = por %p443, %p444
    %p446 = scmp.ne.s32.totalorder %s438, %s440
    %p447 = scmp.eq.s32.totalorder %s136, 1
    %p448 = por %p446, %p447
    %p449 = scmp.ne.s32.totalorder %s440, %s441
    %p450 = scmp.eq.s32.totalorder %s136, 0
    %p451 = por %p449, %p450
    %p452 = scmp.ne.s32.totalorder %s440, %s441
    %p453 = scmp.eq.s32.totalorder %s137, 1
    %p454 = por %p452, %p453
    %p456 = scmp.ne.s32.totalorder %s441, %s455
    %p457 = scmp.eq.s32.totalorder %s137, 0
    %p458 = por %p456, %p457
    %s460 = sadd.s32 %s459, 1
    %p463 = scmp.eq.s32.totalorder %s131, 1
    %p464 = scmp.ne.s32.totalorder %s459, %s461
    %p465 = scmp.eq.s32.totalorder %s131, 0
    %p466 = por %p464, %p465
    %p467 = scmp.ne.s32.totalorder %s459, %s461
    %p468 = scmp.eq.s32.totalorder %s136, 1
    %p469 = por %p467, %p468
    %p470 = scmp.ne.s32.totalorder %s461, %s462
    %p471 = scmp.eq.s32.totalorder %s136, 0
    %p472 = por %p470, %p471
    %p473 = scmp.ne.s32.totalorder %s461, %s462
    %p474 = scmp.eq.s32.totalorder %s137, 1
    %p475 = por %p473, %p474
    %p477 = scmp.ne.s32.totalorder %s462, %s476
    %p478 = scmp.eq.s32.totalorder %s137, 0
    %p479 = por %p477, %p478
    %s481 = sadd.s32 %s480, 1
    %p484 = scmp.eq.s32.totalorder %s131, 1
    %p485 = scmp.ne.s32.totalorder %s480, %s482
    %p486 = scmp.eq.s32.totalorder %s131, 0
    %p487 = por %p485, %p486
    %p488 = scmp.ne.s32.totalorder %s480, %s482
    %p489 = scmp.eq.s32.totalorder %s136, 1
    %p490 = por %p488, %p489
    %p491 = scmp.ne.s32.totalorder %s482, %s483
    %p492 = scmp.eq.s32.totalorder %s136, 0
    %p493 = por %p491, %p492
    %p494 = scmp.ne.s32.totalorder %s482, %s483
    %p495 = scmp.eq.s32.totalorder %s137, 1
    %p496 = por %p494, %p495
    %p498 = scmp.ne.s32.totalorder %s483, %s497
    %p499 = scmp.eq.s32.totalorder %s137, 0
    %p500 = por %p498, %p499
    %s502 = sadd.s32 %s501, 1
    %p505 = scmp.eq.s32.totalorder %s131, 1
    %p506 = scmp.ne.s32.totalorder %s501, %s503
    %p507 = scmp.eq.s32.totalorder %s131, 0
    %p508 = por %p506, %p507
    %p509 = scmp.ne.s32.totalorder %s501, %s503
    %p510 = scmp.eq.s32.totalorder %s136, 1
    %p511 = por %p509, %p510
    %p512 = scmp.ne.s32.totalorder %s503, %s504
    %p513 = scmp.eq.s32.totalorder %s136, 0
    %p514 = por %p512, %p513
    %p515 = scmp.ne.s32.totalorder %s503, %s504
    %p516 = scmp.eq.s32.totalorder %s137, 1
    %p517 = por %p515, %p516
    %p519 = scmp.ne.s32.totalorder %s504, %s518
    %p520 = scmp.eq.s32.totalorder %s137, 0
    %p521 = por %p519, %p520
    %s523 = sadd.s32 %s522, 1
    %p526 = scmp.eq.s32.totalorder %s131, 1
    %p527 = scmp.ne.s32.totalorder %s522, %s524
    %p528 = scmp.eq.s32.totalorder %s131, 0
    %p529 = por %p527, %p528
    %p530 = scmp.ne.s32.totalorder %s522, %s524
    %p531 = scmp.eq.s32.totalorder %s136, 1
    %p532 = por %p530, %p531
    %p533 = scmp.ne.s32.totalorder %s524, %s525
    %p534 = scmp.eq.s32.totalorder %s136, 0
    %p535 = por %p533, %p534
    %p536 = scmp.ne.s32.totalorder %s524, %s525
    %p537 = scmp.eq.s32.totalorder %s137, 1
    %p538 = por %p536, %p537
    %p540 = scmp.ne.s32.totalorder %s525, %s539
    %p541 = scmp.eq.s32.totalorder %s137, 0
    %p542 = por %p540, %p541
    %s544 = sadd.s32 %s543, 1
    %p547 = scmp.eq.s32.totalorder %s131, 1
    %p548 = scmp.ne.s32.totalorder %s543, %s545
    %p549 = scmp.eq.s32.totalorder %s131, 0
    %p550 = por %p548, %p549
    %p551 = scmp.ne.s32.totalorder %s543, %s545
    %p552 = scmp.eq.s32.totalorder %s136, 1
    %p553 = por %p551, %p552
    %p554 = scmp.ne.s32.totalorder %s545, %s546
    %p555 = scmp.eq.s32.totalorder %s136, 0
    %p556 = por %p554, %p555
    %p557 = scmp.ne.s32.totalorder %s545, %s546
    %p558 = scmp.eq.s32.totalorder %s137, 1
    %p559 = por %p557, %p558
    %p561 = scmp.ne.s32.totalorder %s546, %s560
    %p562 = scmp.eq.s32.totalorder %s137, 0
    %p563 = por %p561, %p562
    %s565 = sadd.s32 %s564, 1
    %p568 = scmp.eq.s32.totalorder %s131, 1
    %p569 = scmp.ne.s32.totalorder %s564, %s566
    %p570 = scmp.eq.s32.totalorder %s131, 0
    %p571 = por %p569, %p570
    %p572 = scmp.ne.s32.totalorder %s564, %s566
    %p573 = scmp.eq.s32.totalorder %s136, 1
    %p574 = por %p572, %p573
    %p575 = scmp.ne.s32.totalorder %s566, %s567
    %p576 = scmp.eq.s32.totalorder %s136, 0
    %p577 = por %p575, %p576
    %p578 = scmp.ne.s32.totalorder %s566, %s567
    %p579 = scmp.eq.s32.totalorder %s137, 1
    %p580 = por %p578, %p579
    %p582 = scmp.ne.s32.totalorder %s567, %s581
    %p583 = scmp.eq.s32.totalorder %s137, 0
    %p584 = por %p582, %p583
    %s586 = sadd.s32 %s585, 1
    %p589 = scmp.eq.s32.totalorder %s131, 1
    %p590 = scmp.ne.s32.totalorder %s585, %s587
    %p591 = scmp.eq.s32.totalorder %s131, 0
    %p592 = por %p590, %p591
    %p593 = scmp.ne.s32.totalorder %s585, %s587
    %p594 = scmp.eq.s32.totalorder %s136, 1
    %p595 = por %p593, %p594
    %p596 = scmp.ne.s32.totalorder %s587, %s588
    %p597 = scmp.eq.s32.totalorder %s136, 0
    %p598 = por %p596, %p597
    %p599 = scmp.ne.s32.totalorder %s587, %s588
    %p600 = scmp.eq.s32.totalorder %s137, 1
    %p601 = por %p599, %p600
    %p603 = scmp.ne.s32.totalorder %s588, %s602
    %p604 = scmp.eq.s32.totalorder %s137, 0
    %p605 = por %p603, %p604
    %s607 = sadd.s32 %s606, 1
    %p610 = scmp.eq.s32.totalorder %s131, 1
    %p611 = scmp.ne.s32.totalorder %s606, %s608
    %p612 = scmp.eq.s32.totalorder %s131, 0
    %p613 = por %p611, %p612
    %p614 = scmp.ne.s32.totalorder %s606, %s608
    %p615 = scmp.eq.s32.totalorder %s136, 1
    %p616 = por %p614, %p615
    %p617 = scmp.ne.s32.totalorder %s608, %s609
    %p618 = scmp.eq.s32.totalorder %s136, 0
    %p619 = por %p617, %p618
    %p620 = scmp.ne.s32.totalorder %s608, %s609
    %p621 = scmp.eq.s32.totalorder %s137, 1
    %p622 = por %p620, %p621
    %p624 = scmp.ne.s32.totalorder %s609, %s623
    %p625 = scmp.eq.s32.totalorder %s137, 0
    %p626 = por %p624, %p625
    %s628 = sadd.s32 %s627, 1
    %p631 = scmp.eq.s32.totalorder %s131, 1
    %p632 = scmp.ne.s32.totalorder %s627, %s629
    %p633 = scmp.eq.s32.totalorder %s131, 0
    %p634 = por %p632, %p633
    %p635 = scmp.ne.s32.totalorder %s627, %s629
    %p636 = scmp.eq.s32.totalorder %s136, 1
    %p637 = por %p635, %p636
    %p638 = scmp.ne.s32.totalorder %s629, %s630
    %p639 = scmp.eq.s32.totalorder %s136, 0
    %p640 = por %p638, %p639
    %p641 = scmp.ne.s32.totalorder %s629, %s630
    %p642 = scmp.eq.s32.totalorder %s137, 1
    %p643 = por %p641, %p642
    %p645 = scmp.ne.s32.totalorder %s630, %s644
    %p646 = scmp.eq.s32.totalorder %s137, 0
    %p647 = por %p645, %p646
    %s649 = sadd.s32 %s648, 1
    %p652 = scmp.eq.s32.totalorder %s131, 1
    %p653 = scmp.ne.s32.totalorder %s648, %s650
    %p654 = scmp.eq.s32.totalorder %s131, 0
    %p655 = por %p653, %p654
    %p656 = scmp.ne.s32.totalorder %s648, %s650
    %p657 = scmp.eq.s32.totalorder %s136, 1
    %p658 = por %p656, %p657
    %p659 = scmp.ne.s32.totalorder %s650, %s651
    %p660 = scmp.eq.s32.totalorder %s136, 0
    %p661 = por %p659, %p660
    %p662 = scmp.ne.s32.totalorder %s650, %s651
    %p663 = scmp.eq.s32.totalorder %s137, 1
    %p664 = por %p662, %p663
    %p666 = scmp.ne.s32.totalorder %s651, %s665
    %p667 = scmp.eq.s32.totalorder %s137, 0
    %p668 = por %p666, %p667
    %s670 = sadd.s32 %s669, 1
    %p673 = scmp.eq.s32.totalorder %s131, 1
    %p674 = scmp.ne.s32.totalorder %s669, %s671
    %p675 = scmp.eq.s32.totalorder %s131, 0
    %p676 = por %p674, %p675
    %p677 = scmp.ne.s32.totalorder %s669, %s671
    %p678 = scmp.eq.s32.totalorder %s136, 1
    %p679 = por %p677, %p678
    %p680 = scmp.ne.s32.totalorder %s671, %s672
    %p681 = scmp.eq.s32.totalorder %s136, 0
    %p682 = por %p680, %p681
    %p683 = scmp.ne.s32.totalorder %s671, %s672
    %p684 = scmp.eq.s32.totalorder %s137, 1
    %p685 = por %p683, %p684
    %p687 = scmp.ne.s32.totalorder %s672, %s686
    %p688 = scmp.eq.s32.totalorder %s137, 0
    %p689 = por %p687, %p688
    %s691 = sadd.s32 %s690, 1
    %p694 = scmp.eq.s32.totalorder %s131, 1
    %p695 = scmp.ne.s32.totalorder %s690, %s692
    %p696 = scmp.eq.s32.totalorder %s131, 0
    %p697 = por %p695, %p696
    %p698 = scmp.ne.s32.totalorder %s690, %s692
    %p699 = scmp.eq.s32.totalorder %s136, 1
    %p700 = por %p698, %p699
    %p701 = scmp.ne.s32.totalorder %s692, %s693
    %p702 = scmp.eq.s32.totalorder %s136, 0
    %p703 = por %p701, %p702
    %p704 = scmp.ne.s32.totalorder %s692, %s693
    %p705 = scmp.eq.s32.totalorder %s137, 1
    %p706 = por %p704, %p705
    %p708 = scmp.ne.s32.totalorder %s693, %s707
    %p709 = scmp.eq.s32.totalorder %s137, 0
    %p710 = por %p708, %p709
    %s712 = sadd.s32 %s711, 1
    %p715 = scmp.eq.s32.totalorder %s131, 1
    %p716 = scmp.ne.s32.totalorder %s711, %s713
    %p717 = scmp.eq.s32.totalorder %s131, 0
    %p718 = por %p716, %p717
    %p719 = scmp.ne.s32.totalorder %s711, %s713
    %p720 = scmp.eq.s32.totalorder %s136, 1
    %p721 = por %p719, %p720
    %p722 = scmp.ne.s32.totalorder %s713, %s714
    %p723 = scmp.eq.s32.totalorder %s136, 0
    %p724 = por %p722, %p723
    %p725 = scmp.ne.s32.totalorder %s713, %s714
    %p726 = scmp.eq.s32.totalorder %s137, 1
    %p727 = por %p725, %p726
    %p729 = scmp.ne.s32.totalorder %s714, %s728
    %p730 = scmp.eq.s32.totalorder %s137, 0
    %p731 = por %p729, %p730
    %s733 = sadd.s32 %s732, 1
    %p736 = scmp.eq.s32.totalorder %s131, 1
    %p737 = scmp.ne.s32.totalorder %s732, %s734
    %p738 = scmp.eq.s32.totalorder %s131, 0
    %p739 = por %p737, %p738
    %p740 = scmp.ne.s32.totalorder %s732, %s734
    %p741 = scmp.eq.s32.totalorder %s136, 1
    %p742 = por %p740, %p741
    %p743 = scmp.ne.s32.totalorder %s734, %s735
    %p744 = scmp.eq.s32.totalorder %s136, 0
    %p745 = por %p743, %p744
    %p746 = scmp.ne.s32.totalorder %s734, %s735
    %p747 = scmp.eq.s32.totalorder %s137, 1
    %p748 = por %p746, %p747
    %p750 = scmp.ne.s32.totalorder %s735, %s749
    %p751 = scmp.eq.s32.totalorder %s137, 0
    %p752 = por %p750, %p751
    %s754 = sadd.s32 %s753, 1
    %p757 = scmp.eq.s32.totalorder %s131, 1
    %p758 = scmp.ne.s32.totalorder %s753, %s755
    %p759 = scmp.eq.s32.totalorder %s131, 0
    %p760 = por %p758, %p759
    %p761 = scmp.ne.s32.totalorder %s753, %s755
    %p762 = scmp.eq.s32.totalorder %s136, 1
    %p763 = por %p761, %p762
    %p764 = scmp.ne.s32.totalorder %s755, %s756
    %p765 = scmp.eq.s32.totalorder %s136, 0
    %p766 = por %p764, %p765
    %p767 = scmp.ne.s32.totalorder %s755, %s756
    %p768 = scmp.eq.s32.totalorder %s137, 1
    %p769 = por %p767, %p768
    %p771 = scmp.ne.s32.totalorder %s756, %s770
    %p772 = scmp.eq.s32.totalorder %s137, 0
    %p773 = por %p771, %p772
    %s775 = sadd.s32 %s774, 1
    %p778 = scmp.eq.s32.totalorder %s131, 1
    %p779 = scmp.ne.s32.totalorder %s774, %s776
    %p780 = scmp.eq.s32.totalorder %s131, 0
    %p781 = por %p779, %p780
    %p782 = scmp.ne.s32.totalorder %s774, %s776
    %p783 = scmp.eq.s32.totalorder %s136, 1
    %p784 = por %p782, %p783
    %p785 = scmp.ne.s32.totalorder %s776, %s777
    %p786 = scmp.eq.s32.totalorder %s136, 0
    %p787 = por %p785, %p786
    %p788 = scmp.ne.s32.totalorder %s776, %s777
    %p789 = scmp.eq.s32.totalorder %s137, 1
    %p790 = por %p788, %p789
    %p792 = scmp.ne.s32.totalorder %s777, %s791
    %p793 = scmp.eq.s32.totalorder %s137, 0
    %p794 = por %p792, %p793
    %s796 = sadd.s32 %s795, 1
    %p799 = scmp.eq.s32.totalorder %s131, 1
    %p800 = scmp.ne.s32.totalorder %s795, %s797
    %p801 = scmp.eq.s32.totalorder %s131, 0
    %p802 = por %p800, %p801
    %p803 = scmp.ne.s32.totalorder %s795, %s797
    %p804 = scmp.eq.s32.totalorder %s136, 1
    %p805 = por %p803, %p804
    %p806 = scmp.ne.s32.totalorder %s797, %s798
    %p807 = scmp.eq.s32.totalorder %s136, 0
    %p808 = por %p806, %p807
    %p809 = scmp.ne.s32.totalorder %s797, %s798
    %p810 = scmp.eq.s32.totalorder %s137, 1
    %p811 = por %p809, %p810
    %p813 = scmp.ne.s32.totalorder %s798, %s812
    %p814 = scmp.eq.s32.totalorder %s137, 0
    %p815 = por %p813, %p814
    %s817 = sadd.s32 %s816, 1
    %p820 = scmp.eq.s32.totalorder %s131, 1
    %p821 = scmp.ne.s32.totalorder %s816, %s818
    %p822 = scmp.eq.s32.totalorder %s131, 0
    %p823 = por %p821, %p822
    %p824 = scmp.ne.s32.totalorder %s816, %s818
    %p825 = scmp.eq.s32.totalorder %s136, 1
    %p826 = por %p824, %p825
    %p827 = scmp.ne.s32.totalorder %s818, %s819
    %p828 = scmp.eq.s32.totalorder %s136, 0
    %p829 = por %p827, %p828
    %p830 = scmp.ne.s32.totalorder %s818, %s819
    %p831 = scmp.eq.s32.totalorder %s137, 1
    %p832 = por %p830, %p831
    %p834 = scmp.ne.s32.totalorder %s819, %s833
    %p835 = scmp.eq.s32.totalorder %s137, 0
    %p836 = por %p834, %p835
    %s838 = sadd.s32 %s837, 1
    %p841 = scmp.eq.s32.totalorder %s131, 1
    %p842 = scmp.ne.s32.totalorder %s837, %s839
    %p843 = scmp.eq.s32.totalorder %s131, 0
    %p844 = por %p842, %p843
    %p845 = scmp.ne.s32.totalorder %s837, %s839
    %p846 = scmp.eq.s32.totalorder %s136, 1
    %p847 = por %p845, %p846
    %p848 = scmp.ne.s32.totalorder %s839, %s840
    %p849 = scmp.eq.s32.totalorder %s136, 0
    %p850 = por %p848, %p849
    %p851 = scmp.ne.s32.totalorder %s839, %s840
    %p852 = scmp.eq.s32.totalorder %s137, 1
    %p853 = por %p851, %p852
    %p855 = scmp.ne.s32.totalorder %s840, %s854
    %p856 = scmp.eq.s32.totalorder %s137, 0
    %p857 = por %p855, %p856
    %s859 = sadd.s32 %s858, 1
    %p862 = scmp.eq.s32.totalorder %s131, 1
    %p863 = scmp.ne.s32.totalorder %s858, %s860
    %p864 = scmp.eq.s32.totalorder %s131, 0
    %p865 = por %p863, %p864
    %p866 = scmp.ne.s32.totalorder %s858, %s860
    %p867 = scmp.eq.s32.totalorder %s136, 1
    %p868 = por %p866, %p867
    %p869 = scmp.ne.s32.totalorder %s860, %s861
    %p870 = scmp.eq.s32.totalorder %s136, 0
    %p871 = por %p869, %p870
    %p872 = scmp.ne.s32.totalorder %s860, %s861
    %p873 = scmp.eq.s32.totalorder %s137, 1
    %p874 = por %p872, %p873
    %p876 = scmp.ne.s32.totalorder %s861, %s875
    %p877 = scmp.eq.s32.totalorder %s137, 0
    %p878 = por %p876, %p877
    %s880 = sadd.s32 %s879, 1
    %p883 = scmp.eq.s32.totalorder %s131, 1
    %p884 = scmp.ne.s32.totalorder %s879, %s881
    %p885 = scmp.eq.s32.totalorder %s131, 0
    %p886 = por %p884, %p885
    %p887 = scmp.ne.s32.totalorder %s879, %s881
    %p888 = scmp.eq.s32.totalorder %s136, 1
    %p889 = por %p887, %p888
    %p890 = scmp.ne.s32.totalorder %s881, %s882
    %p891 = scmp.eq.s32.totalorder %s136, 0
    %p892 = por %p890, %p891
    %p893 = scmp.ne.s32.totalorder %s881, %s882
    %p894 = scmp.eq.s32.totalorder %s137, 1
    %p895 = por %p893, %p894
    %p897 = scmp.ne.s32.totalorder %s882, %s896
    %p898 = scmp.eq.s32.totalorder %s137, 0
    %p899 = por %p897, %p898
    %s901 = sadd.s32 %s900, 1
    %p904 = scmp.eq.s32.totalorder %s131, 1
    %p905 = scmp.ne.s32.totalorder %s900, %s902
    %p906 = scmp.eq.s32.totalorder %s131, 0
    %p907 = por %p905, %p906
    %p908 = scmp.ne.s32.totalorder %s900, %s902
    %p909 = scmp.eq.s32.totalorder %s136, 1
    %p910 = por %p908, %p909
    %p911 = scmp.ne.s32.totalorder %s902, %s903
    %p912 = scmp.eq.s32.totalorder %s136, 0
    %p913 = por %p911, %p912
    %p914 = scmp.ne.s32.totalorder %s902, %s903
    %p915 = scmp.eq.s32.totalorder %s137, 1
    %p916 = por %p914, %p915
    %p918 = scmp.ne.s32.totalorder %s903, %s917
    %p919 = scmp.eq.s32.totalorder %s137, 0
    %p920 = por %p918, %p919
    %s922 = sadd.s32 %s921, 1
    %p925 = scmp.eq.s32.totalorder %s131, 1
    %p926 = scmp.ne.s32.totalorder %s921, %s923
    %p927 = scmp.eq.s32.totalorder %s131, 0
    %p928 = por %p926, %p927
    %p929 = scmp.ne.s32.totalorder %s921, %s923
    %p930 = scmp.eq.s32.totalorder %s136, 1
    %p931 = por %p929, %p930
    %p932 = scmp.ne.s32.totalorder %s923, %s924
    %p933 = scmp.eq.s32.totalorder %s136, 0
    %p934 = por %p932, %p933
    %p935 = scmp.ne.s32.totalorder %s923, %s924
    %p936 = scmp.eq.s32.totalorder %s137, 1
    %p937 = por %p935, %p936
    %p939 = scmp.ne.s32.totalorder %s924, %s938
    %p940 = scmp.eq.s32.totalorder %s137, 0
    %p941 = por %p939, %p940
    %s943 = sadd.s32 %s942, 1
    %p946 = scmp.eq.s32.totalorder %s131, 1
    %p947 = scmp.ne.s32.totalorder %s942, %s944
    %p948 = scmp.eq.s32.totalorder %s131, 0
    %p949 = por %p947, %p948
    %p950 = scmp.ne.s32.totalorder %s942, %s944
    %p951 = scmp.eq.s32.totalorder %s136, 1
    %p952 = por %p950, %p951
    %p953 = scmp.ne.s32.totalorder %s944, %s945
    %p954 = scmp.eq.s32.totalorder %s136, 0
    %p955 = por %p953, %p954
    %p956 = scmp.ne.s32.totalorder %s944, %s945
    %p957 = scmp.eq.s32.totalorder %s137, 1
    %p958 = por %p956, %p957
    %p960 = scmp.ne.s32.totalorder %s945, %s959
    %p961 = scmp.eq.s32.totalorder %s137, 0
    %p962 = por %p960, %p961
    %s964 = sadd.s32 %s963, 1
    %p967 = scmp.eq.s32.totalorder %s131, 1
    %p968 = scmp.ne.s32.totalorder %s963, %s965
    %p969 = scmp.eq.s32.totalorder %s131, 0
    %p970 = por %p968, %p969
    %p971 = scmp.ne.s32.totalorder %s963, %s965
    %p972 = scmp.eq.s32.totalorder %s136, 1
    %p973 = por %p971, %p972
    %p974 = scmp.ne.s32.totalorder %s965, %s966
    %p975 = scmp.eq.s32.totalorder %s136, 0
    %p976 = por %p974, %p975
    %p977 = scmp.ne.s32.totalorder %s965, %s966
    %p978 = scmp.eq.s32.totalorder %s137, 1
    %p979 = por %p977, %p978
    %p981 = scmp.ne.s32.totalorder %s966, %s980
    %p982 = scmp.eq.s32.totalorder %s137, 0
    %p983 = por %p981, %p982
    %s985 = sadd.s32 %s984, 1
    %p988 = scmp.eq.s32.totalorder %s131, 1
    %p989 = scmp.ne.s32.totalorder %s984, %s986
    %p990 = scmp.eq.s32.totalorder %s131, 0
    %p991 = por %p989, %p990
    %p992 = scmp.ne.s32.totalorder %s984, %s986
    %p993 = scmp.eq.s32.totalorder %s136, 1
    %p994 = por %p992, %p993
    %p995 = scmp.ne.s32.totalorder %s986, %s987
    %p996 = scmp.eq.s32.totalorder %s136, 0
    %p997 = por %p995, %p996
    %p998 = scmp.ne.s32.totalorder %s986, %s987
    %p999 = scmp.eq.s32.totalorder %s137, 1
    %p1000 = por %p998, %p999
    %p1002 = scmp.ne.s32.totalorder %s987, %s1001
    %p1003 = scmp.eq.s32.totalorder %s137, 0
    %p1004 = por %p1002, %p1003
    %s1006 = sadd.s32 %s1005, 1
    %p1009 = scmp.eq.s32.totalorder %s131, 1
    %p1010 = scmp.ne.s32.totalorder %s1005, %s1007
    %p1011 = scmp.eq.s32.totalorder %s131, 0
    %p1012 = por %p1010, %p1011
    %p1013 = scmp.ne.s32.totalorder %s1005, %s1007
    %p1014 = scmp.eq.s32.totalorder %s136, 1
    %p1015 = por %p1013, %p1014
    %p1016 = scmp.ne.s32.totalorder %s1007, %s1008
    %p1017 = scmp.eq.s32.totalorder %s136, 0
    %p1018 = por %p1016, %p1017
    %p1019 = scmp.ne.s32.totalorder %s1007, %s1008
    %p1020 = scmp.eq.s32.totalorder %s137, 1
    %p1021 = por %p1019, %p1020
    %p1023 = scmp.ne.s32.totalorder %s1008, %s1022
    %p1024 = scmp.eq.s32.totalorder %s137, 0
    %p1025 = por %p1023, %p1024
    %s1027 = sadd.s32 %s1026, 1
    %p1030 = scmp.eq.s32.totalorder %s131, 1
    %p1031 = scmp.ne.s32.totalorder %s1026, %s1028
    %p1032 = scmp.eq.s32.totalorder %s131, 0
    %p1033 = por %p1031, %p1032
    %p1034 = scmp.ne.s32.totalorder %s1026, %s1028
    %p1035 = scmp.eq.s32.totalorder %s136, 1
    %p1036 = por %p1034, %p1035
    %p1037 = scmp.ne.s32.totalorder %s1028, %s1029
    %p1038 = scmp.eq.s32.totalorder %s136, 0
    %p1039 = por %p1037, %p1038
    %p1040 = scmp.ne.s32.totalorder %s1028, %s1029
    %p1041 = scmp.eq.s32.totalorder %s137, 1
    %p1042 = por %p1040, %p1041
    %p1044 = scmp.ne.s32.totalorder %s1029, %s1043
    %p1045 = scmp.eq.s32.totalorder %s137, 0
    %p1046 = por %p1044, %p1045
    %s1048 = sadd.s32 %s1047, 1
    %p1051 = scmp.eq.s32.totalorder %s131, 1
    %p1052 = scmp.ne.s32.totalorder %s1047, %s1049
    %p1053 = scmp.eq.s32.totalorder %s131, 0
    %p1054 = por %p1052, %p1053
    %p1055 = scmp.ne.s32.totalorder %s1047, %s1049
    %p1056 = scmp.eq.s32.totalorder %s136, 1
    %p1057 = por %p1055, %p1056
    %p1058 = scmp.ne.s32.totalorder %s1049, %s1050
    %p1059 = scmp.eq.s32.totalorder %s136, 0
    %p1060 = por %p1058, %p1059
    %p1061 = scmp.ne.s32.totalorder %s1049, %s1050
    %p1062 = scmp.eq.s32.totalorder %s137, 1
    %p1063 = por %p1061, %p1062
    %p1065 = scmp.ne.s32.totalorder %s1050, %s1064
    %p1066 = scmp.eq.s32.totalorder %s137, 0
    %p1067 = por %p1065, %p1066
    %s1069 = sadd.s32 %s1068, 1
    %p1072 = scmp.eq.s32.totalorder %s131, 1
    %p1073 = scmp.ne.s32.totalorder %s1068, %s1070
    %p1074 = scmp.eq.s32.totalorder %s131, 0
    %p1075 = por %p1073, %p1074
    %p1076 = scmp.ne.s32.totalorder %s1068, %s1070
    %p1077 = scmp.eq.s32.totalorder %s136, 1
    %p1078 = por %p1076, %p1077
    %p1079 = scmp.ne.s32.totalorder %s1070, %s1071
    %p1080 = scmp.eq.s32.totalorder %s136, 0
    %p1081 = por %p1079, %p1080
    %p1082 = scmp.ne.s32.totalorder %s1070, %s1071
    %p1083 = scmp.eq.s32.totalorder %s137, 1
    %p1084 = por %p1082, %p1083
    %p1086 = scmp.ne.s32.totalorder %s1071, %s1085
    %p1087 = scmp.eq.s32.totalorder %s137, 0
    %p1088 = por %p1086, %p1087
    %s1090 = sadd.s32 %s1089, 1
    %p1093 = scmp.eq.s32.totalorder %s131, 1
    %p1094 = scmp.ne.s32.totalorder %s1089, %s1091
    %p1095 = scmp.eq.s32.totalorder %s131, 0
    %p1096 = por %p1094, %p1095
    %p1097 = scmp.ne.s32.totalorder %s1089, %s1091
    %p1098 = scmp.eq.s32.totalorder %s136, 1
    %p1099 = por %p1097, %p1098
    %p1100 = scmp.ne.s32.totalorder %s1091, %s1092
    %p1101 = scmp.eq.s32.totalorder %s136, 0
    %p1102 = por %p1100, %p1101
    %p1103 = scmp.ne.s32.totalorder %s1091, %s1092
    %p1104 = scmp.eq.s32.totalorder %s137, 1
    %p1105 = por %p1103, %p1104
    %p1107 = scmp.ne.s32.totalorder %s1092, %s1106
    %p1108 = scmp.eq.s32.totalorder %s137, 0
    %p1109 = por %p1107, %p1108
    %s1111 = sadd.s32 %s1110, 1
    %p1114 = scmp.eq.s32.totalorder %s131, 1
    %p1115 = scmp.ne.s32.totalorder %s1110, %s1112
    %p1116 = scmp.eq.s32.totalorder %s131, 0
    %p1117 = por %p1115, %p1116
    %p1118 = scmp.ne.s32.totalorder %s1110, %s1112
    %p1119 = scmp.eq.s32.totalorder %s136, 1
    %p1120 = por %p1118, %p1119
    %p1121 = scmp.ne.s32.totalorder %s1112, %s1113
    %p1122 = scmp.eq.s32.totalorder %s136, 0
    %p1123 = por %p1121, %p1122
    %p1124 = scmp.ne.s32.totalorder %s1112, %s1113
    %p1125 = scmp.eq.s32.totalorder %s137, 1
    %p1126 = por %p1124, %p1125
    %p1128 = scmp.ne.s32.totalorder %s1113, %s1127
    %p1129 = scmp.eq.s32.totalorder %s137, 0
    %p1130 = por %p1128, %p1129
    %s1132 = sadd.s32 %s1131, 1
    %p1135 = scmp.eq.s32.totalorder %s131, 1
    %p1136 = scmp.ne.s32.totalorder %s1131, %s1133
    %p1137 = scmp.eq.s32.totalorder %s131, 0
    %p1138 = por %p1136, %p1137
    %p1139 = scmp.ne.s32.totalorder %s1131, %s1133
    %p1140 = scmp.eq.s32.totalorder %s136, 1
    %p1141 = por %p1139, %p1140
    %p1142 = scmp.ne.s32.totalorder %s1133, %s1134
    %p1143 = scmp.eq.s32.totalorder %s136, 0
    %p1144 = por %p1142, %p1143
    %p1145 = scmp.ne.s32.totalorder %s1133, %s1134
    %p1146 = scmp.eq.s32.totalorder %s137, 1
    %p1147 = por %p1145, %p1146
    %p1149 = scmp.ne.s32.totalorder %s1134, %s1148
    %p1150 = scmp.eq.s32.totalorder %s137, 0
    %p1151 = por %p1149, %p1150
    %s1153 = sadd.s32 %s1152, 1
    %p1156 = scmp.eq.s32.totalorder %s131, 1
    %p1157 = scmp.ne.s32.totalorder %s1152, %s1154
    %p1158 = scmp.eq.s32.totalorder %s131, 0
    %p1159 = por %p1157, %p1158
    %p1160 = scmp.ne.s32.totalorder %s1152, %s1154
    %p1161 = scmp.eq.s32.totalorder %s136, 1
    %p1162 = por %p1160, %p1161
    %p1163 = scmp.ne.s32.totalorder %s1154, %s1155
    %p1164 = scmp.eq.s32.totalorder %s136, 0
    %p1165 = por %p1163, %p1164
    %p1166 = scmp.ne.s32.totalorder %s1154, %s1155
    %p1167 = scmp.eq.s32.totalorder %s137, 1
    %p1168 = por %p1166, %p1167
    %p1170 = scmp.ne.s32.totalorder %s1155, %s1169
    %p1171 = scmp.eq.s32.totalorder %s137, 0
    %p1172 = por %p1170, %p1171
    %s1174 = sadd.s32 %s1173, 1
    %p1177 = scmp.eq.s32.totalorder %s131, 1
    %p1178 = scmp.ne.s32.totalorder %s1173, %s1175
    %p1179 = scmp.eq.s32.totalorder %s131, 0
    %p1180 = por %p1178, %p1179
    %p1181 = scmp.ne.s32.totalorder %s1173, %s1175
    %p1182 = scmp.eq.s32.totalorder %s136, 1
    %p1183 = por %p1181, %p1182
    %p1184 = scmp.ne.s32.totalorder %s1175, %s1176
    %p1185 = scmp.eq.s32.totalorder %s136, 0
    %p1186 = por %p1184, %p1185
    %p1187 = scmp.ne.s32.totalorder %s1175, %s1176
    %p1188 = scmp.eq.s32.totalorder %s137, 1
    %p1189 = por %p1187, %p1188
    %p1191 = scmp.ne.s32.totalorder %s1176, %s1190
    %p1192 = scmp.eq.s32.totalorder %s137, 0
    %p1193 = por %p1191, %p1192
    %s1195 = sadd.s32 %s1194, 1
    %p1198 = scmp.eq.s32.totalorder %s131, 1
    %p1199 = scmp.ne.s32.totalorder %s1194, %s1196
    %p1200 = scmp.eq.s32.totalorder %s131, 0
    %p1201 = por %p1199, %p1200
    %p1202 = scmp.ne.s32.totalorder %s1194, %s1196
    %p1203 = scmp.eq.s32.totalorder %s136, 1
    %p1204 = por %p1202, %p1203
    %p1205 = scmp.ne.s32.totalorder %s1196, %s1197
    %p1206 = scmp.eq.s32.totalorder %s136, 0
    %p1207 = por %p1205, %p1206
    %p1208 = scmp.ne.s32.totalorder %s1196, %s1197
    %p1209 = scmp.eq.s32.totalorder %s137, 1
    %p1210 = por %p1208, %p1209
    %p1212 = scmp.ne.s32.totalorder %s1197, %s1211
    %p1213 = scmp.eq.s32.totalorder %s137, 0
    %p1214 = por %p1212, %p1213
    %s1216 = sadd.s32 %s1215, 1
    %p1219 = scmp.eq.s32.totalorder %s131, 1
    %p1220 = scmp.ne.s32.totalorder %s1215, %s1217
    %p1221 = scmp.eq.s32.totalorder %s131, 0
    %p1222 = por %p1220, %p1221
    %p1223 = scmp.ne.s32.totalorder %s1215, %s1217
    %p1224 = scmp.eq.s32.totalorder %s136, 1
    %p1225 = por %p1223, %p1224
    %p1226 = scmp.ne.s32.totalorder %s1217, %s1218
    %p1227 = scmp.eq.s32.totalorder %s136, 0
    %p1228 = por %p1226, %p1227
    %p1229 = scmp.ne.s32.totalorder %s1217, %s1218
    %p1230 = scmp.eq.s32.totalorder %s137, 1
    %p1231 = por %p1229, %p1230
    %p1233 = scmp.ne.s32.totalorder %s1218, %s1232
    %p1234 = scmp.eq.s32.totalorder %s137, 0
    %p1235 = por %p1233, %p1234
    %s1237 = sadd.s32 %s1236, 1
    %p1240 = scmp.eq.s32.totalorder %s131, 1
    %p1241 = scmp.ne.s32.totalorder %s1236, %s1238
    %p1242 = scmp.eq.s32.totalorder %s131, 0
    %p1243 = por %p1241, %p1242
    %p1244 = scmp.ne.s32.totalorder %s1236, %s1238
    %p1245 = scmp.eq.s32.totalorder %s136, 1
    %p1246 = por %p1244, %p1245
    %p1247 = scmp.ne.s32.totalorder %s1238, %s1239
    %p1248 = scmp.eq.s32.totalorder %s136, 0
    %p1249 = por %p1247, %p1248
    %p1250 = scmp.ne.s32.totalorder %s1238, %s1239
    %p1251 = scmp.eq.s32.totalorder %s137, 1
    %p1252 = por %p1250, %p1251
    %p1254 = scmp.ne.s32.totalorder %s1239, %s1253
    %p1255 = scmp.eq.s32.totalorder %s137, 0
    %p1256 = por %p1254, %p1255
    %s1258 = sadd.s32 %s1257, 1
    %p1261 = scmp.eq.s32.totalorder %s131, 1
    %p1262 = scmp.ne.s32.totalorder %s1257, %s1259
    %p1263 = scmp.eq.s32.totalorder %s131, 0
    %p1264 = por %p1262, %p1263
    %p1265 = scmp.ne.s32.totalorder %s1257, %s1259
    %p1266 = scmp.eq.s32.totalorder %s136, 1
    %p1267 = por %p1265, %p1266
    %p1268 = scmp.ne.s32.totalorder %s1259, %s1260
    %p1269 = scmp.eq.s32.totalorder %s136, 0
    %p1270 = por %p1268, %p1269
    %p1271 = scmp.ne.s32.totalorder %s1259, %s1260
    %p1272 = scmp.eq.s32.totalorder %s137, 1
    %p1273 = por %p1271, %p1272
    %p1275 = scmp.ne.s32.totalorder %s1260, %s1274
    %p1276 = scmp.eq.s32.totalorder %s137, 0
    %p1277 = por %p1275, %p1276
    %s1279 = sadd.s32 %s1278, 1
    %p1282 = scmp.eq.s32.totalorder %s131, 1
    %p1283 = scmp.ne.s32.totalorder %s1278, %s1280
    %p1284 = scmp.eq.s32.totalorder %s131, 0
    %p1285 = por %p1283, %p1284
    %p1286 = scmp.ne.s32.totalorder %s1278, %s1280
    %p1287 = scmp.eq.s32.totalorder %s136, 1
    %p1288 = por %p1286, %p1287
    %p1289 = scmp.ne.s32.totalorder %s1280, %s1281
    %p1290 = scmp.eq.s32.totalorder %s136, 0
    %p1291 = por %p1289, %p1290
    %p1292 = scmp.ne.s32.totalorder %s1280, %s1281
    %p1293 = scmp.eq.s32.totalorder %s137, 1
    %p1294 = por %p1292, %p1293
    %p1296 = scmp.ne.s32.totalorder %s1281, %s1295
    %p1297 = scmp.eq.s32.totalorder %s137, 0
    %p1298 = por %p1296, %p1297
    %s1300 = sadd.s32 %s1299, 1
    %p1303 = scmp.eq.s32.totalorder %s131, 1
    %p1304 = scmp.ne.s32.totalorder %s1299, %s1301
    %p1305 = scmp.eq.s32.totalorder %s131, 0
    %p1306 = por %p1304, %p1305
    %p1307 = scmp.ne.s32.totalorder %s1299, %s1301
    %p1308 = scmp.eq.s32.totalorder %s136, 1
    %p1309 = por %p1307, %p1308
    %p1310 = scmp.ne.s32.totalorder %s1301, %s1302
    %p1311 = scmp.eq.s32.totalorder %s136, 0
    %p1312 = por %p1310, %p1311
    %p1313 = scmp.ne.s32.totalorder %s1301, %s1302
    %p1314 = scmp.eq.s32.totalorder %s137, 1
    %p1315 = por %p1313, %p1314
    %p1317 = scmp.ne.s32.totalorder %s1302, %s1316
    %p1318 = scmp.eq.s32.totalorder %s137, 0
    %p1319 = por %p1317, %p1318
    %s1321 = sadd.s32 %s1320, 1
    %p1324 = scmp.eq.s32.totalorder %s131, 1
    %p1325 = scmp.ne.s32.totalorder %s1320, %s1322
    %p1326 = scmp.eq.s32.totalorder %s131, 0
    %p1327 = por %p1325, %p1326
    %p1328 = scmp.ne.s32.totalorder %s1320, %s1322
    %p1329 = scmp.eq.s32.totalorder %s136, 1
    %p1330 = por %p1328, %p1329
    %p1331 = scmp.ne.s32.totalorder %s1322, %s1323
    %p1332 = scmp.eq.s32.totalorder %s136, 0
    %p1333 = por %p1331, %p1332
    %p1334 = scmp.ne.s32.totalorder %s1322, %s1323
    %p1335 = scmp.eq.s32.totalorder %s137, 1
    %p1336 = por %p1334, %p1335
    %p1338 = scmp.ne.s32.totalorder %s1323, %s1337
    %p1339 = scmp.eq.s32.totalorder %s137, 0
    %p1340 = por %p1338, %p1339
    %s1342 = sadd.s32 %s1341, 1
    %p1345 = scmp.eq.s32.totalorder %s131, 1
    %p1346 = scmp.ne.s32.totalorder %s1341, %s1343
    %p1347 = scmp.eq.s32.totalorder %s131, 0
    %p1348 = por %p1346, %p1347
    %p1349 = scmp.ne.s32.totalorder %s1341, %s1343
    %p1350 = scmp.eq.s32.totalorder %s136, 1
    %p1351 = por %p1349, %p1350
    %p1352 = scmp.ne.s32.totalorder %s1343, %s1344
    %p1353 = scmp.eq.s32.totalorder %s136, 0
    %p1354 = por %p1352, %p1353
    %p1355 = scmp.ne.s32.totalorder %s1343, %s1344
    %p1356 = scmp.eq.s32.totalorder %s137, 1
    %p1357 = por %p1355, %p1356
    %p1359 = scmp.ne.s32.totalorder %s1344, %s1358
    %p1360 = scmp.eq.s32.totalorder %s137, 0
    %p1361 = por %p1359, %p1360
    %s1363 = sadd.s32 %s1362, 1
    %p1366 = scmp.eq.s32.totalorder %s131, 1
    %p1367 = scmp.ne.s32.totalorder %s1362, %s1364
    %p1368 = scmp.eq.s32.totalorder %s131, 0
    %p1369 = por %p1367, %p1368
    %p1370 = scmp.ne.s32.totalorder %s1362, %s1364
    %p1371 = scmp.eq.s32.totalorder %s136, 1
    %p1372 = por %p1370, %p1371
    %p1373 = scmp.ne.s32.totalorder %s1364, %s1365
    %p1374 = scmp.eq.s32.totalorder %s136, 0
    %p1375 = por %p1373, %p1374
    %p1376 = scmp.ne.s32.totalorder %s1364, %s1365
    %p1377 = scmp.eq.s32.totalorder %s137, 1
    %p1378 = por %p1376, %p1377
    %p1380 = scmp.ne.s32.totalorder %s1365, %s1379
    %p1381 = scmp.eq.s32.totalorder %s137, 0
    %p1382 = por %p1380, %p1381
    %s1384 = sadd.s32 %s1383, 1
    %p1387 = scmp.eq.s32.totalorder %s131, 1
    %p1388 = scmp.ne.s32.totalorder %s1383, %s1385
    %p1389 = scmp.eq.s32.totalorder %s131, 0
    %p1390 = por %p1388, %p1389
    %p1391 = scmp.ne.s32.totalorder %s1383, %s1385
    %p1392 = scmp.eq.s32.totalorder %s136, 1
    %p1393 = por %p1391, %p1392
    %p1394 = scmp.ne.s32.totalorder %s1385, %s1386
    %p1395 = scmp.eq.s32.totalorder %s136, 0
    %p1396 = por %p1394, %p1395
    %p1397 = scmp.ne.s32.totalorder %s1385, %s1386
    %p1398 = scmp.eq.s32.totalorder %s137, 1
    %p1399 = por %p1397, %p1398
    %p1401 = scmp.ne.s32.totalorder %s1386, %s1400
    %p1402 = scmp.eq.s32.totalorder %s137, 0
    %p1403 = por %p1401, %p1402
    %s1405 = sadd.s32 %s1404, 1
    %p1408 = scmp.eq.s32.totalorder %s131, 1
    %p1409 = scmp.ne.s32.totalorder %s1404, %s1406
    %p1410 = scmp.eq.s32.totalorder %s131, 0
    %p1411 = por %p1409, %p1410
    %p1412 = scmp.ne.s32.totalorder %s1404, %s1406
    %p1413 = scmp.eq.s32.totalorder %s136, 1
    %p1414 = por %p1412, %p1413
    %p1415 = scmp.ne.s32.totalorder %s1406, %s1407
    %p1416 = scmp.eq.s32.totalorder %s136, 0
    %p1417 = por %p1415, %p1416
    %p1418 = scmp.ne.s32.totalorder %s1406, %s1407
    %p1419 = scmp.eq.s32.totalorder %s137, 1
    %p1420 = por %p1418, %p1419
    %p1422 = scmp.ne.s32.totalorder %s1407, %s1421
    %p1423 = scmp.eq.s32.totalorder %s137, 0
    %p1424 = por %p1422, %p1423
    %s1426 = sadd.s32 %s1425, 1
    %p1429 = scmp.eq.s32.totalorder %s131, 1
    %p1430 = scmp.ne.s32.totalorder %s1425, %s1427
    %p1431 = scmp.eq.s32.totalorder %s131, 0
    %p1432 = por %p1430, %p1431
    %p1433 = scmp.ne.s32.totalorder %s1425, %s1427
    %p1434 = scmp.eq.s32.totalorder %s136, 1
    %p1435 = por %p1433, %p1434
    %p1436 = scmp.ne.s32.totalorder %s1427, %s1428
    %p1437 = scmp.eq.s32.totalorder %s136, 0
    %p1438 = por %p1436, %p1437
    %p1439 = scmp.ne.s32.totalorder %s1427, %s1428
    %p1440 = scmp.eq.s32.totalorder %s137, 1
    %p1441 = por %p1439, %p1440
    %p1443 = scmp.ne.s32.totalorder %s1428, %s1442
    %p1444 = scmp.eq.s32.totalorder %s137, 0
    %p1445 = por %p1443, %p1444
    %s1446 = ssub.s32 %s131, %s138
    %p1447 = scmp.eq.s32.totalorder %s1446, 0
    %s1449 = sadd.s32 %s1448, 1
    %s1450 = scalar_select %p1447, %s1448, %s1449
    %p1453 = pneg %p1447
    %p1454 = scmp.eq.s32.totalorder %s131, 1
    %p1455 = por %p1453, %p1454
    %p1456 = scmp.ne.s32.totalorder %s1448, %s1451
    %p1457 = scmp.eq.s32.totalorder %s131, 0
    %p1458 = por %p1456, %p1457
    %p1459 = scmp.ne.s32.totalorder %s1448, %s1451
    %p1460 = scmp.eq.s32.totalorder %s136, 1
    %p1461 = por %p1459, %p1460
    %p1462 = scmp.ne.s32.totalorder %s1451, %s1452
    %p1463 = scmp.eq.s32.totalorder %s136, 0
    %p1464 = por %p1462, %p1463
    %p1465 = scmp.ne.s32.totalorder %s1451, %s1452
    %p1466 = scmp.eq.s32.totalorder %s137, 1
    %p1467 = por %p1465, %p1466
    %p1469 = scmp.ne.s32.totalorder %s1452, %s1468
    %p1470 = scmp.eq.s32.totalorder %s137, 0
    %p1471 = por %p1469, %p1470
    %p1472 = scmp.le.s32.totalorder 1, %s131
    %p1473 = scmp.lt.s32.totalorder %s131, 3
    %p1474 = pnand %p1472, %p1473
    %p1475 = pneg %p1474
    // Predicated region
    $region9: #{unet_forward_packed.1} parent=5 // pred_check
      _
    $region10: #{unet_forward_packed.1} parent=5 // pred_check_branch
      %1477 = sbr.rel (%p1474) target = $region12
    $region11: #{unet_forward_packed.1} parent=5 // pred_region
      %s1478 = ssub.s32 %s131, 1
      // Predicated region
      $region13: #{unet_forward_packed.1} parent=11 // pred_check
        %p1479 = pneg %p178
      $region14: #{unet_forward_packed.1} parent=11 // pred_check_branch
        %1481 = sbr.rel (%p1479) target = $region16
      $region15: #{unet_forward_packed.1} parent=11 // pred_region
        _
      $region16: #{unet_forward_packed.1} parent=11 // pred_fallthru
        _
      // Predicated region
      $region17: #{unet_forward_packed.1} parent=11 // pred_check
        %p1482 = pneg %p199
      $region18: #{unet_forward_packed.1} parent=11 // pred_check_branch
        %1484 = sbr.rel (%p1482) target = $region20
      $region19: #{unet_forward_packed.1} parent=11 // pred_region
        _
      $region20: #{unet_forward_packed.1} parent=11 // pred_fallthru
        _
      // Predicated region
      $region21: #{unet_forward_packed.1} parent=11 // pred_check
        %p1485 = pneg %p220
      $region22: #{unet_forward_packed.1} parent=11 // pred_check_branch
        %1487 = sbr.rel (%p1485) target = $region24
      $region23: #{unet_forward_packed.1} parent=11 // pred_region
        _
      $region24: #{unet_forward_packed.1} parent=11 // pred_fallthru
        _
      // Predicated region
      $region25: #{unet_forward_packed.1} parent=11 // pred_check
        %p1488 = pneg %p241
      $region26: #{unet_forward_packed.1} parent=11 // pred_check_branch
        %1490 = sbr.rel (%p1488) target = $region28
      $region27: #{unet_forward_packed.1} parent=11 // pred_region
        _
      $region28: #{unet_forward_packed.1} parent=11 // pred_fallthru
        _
      // Predicated region
      $region29: #{unet_forward_packed.1} parent=11 // pred_check
        %p1491 = pneg %p262
      $region30: #{unet_forward_packed.1} parent=11 // pred_check_branch
        %1493 = sbr.rel (%p1491) target = $region32
      $region31: #{unet_forward_packed.1} parent=11 // pred_region
        _
      $region32: #{unet_forward_packed.1} parent=11 // pred_fallthru
        _
      // Predicated region
      $region33: #{unet_forward_packed.1} parent=11 // pred_check
        %p1494 = pneg %p283
      $region34: #{unet_forward_packed.1} parent=11 // pred_check_branch
        %1496 = sbr.rel (%p1494) target = $region36
      $region35: #{unet_forward_packed.1} parent=11 // pred_region
        _
      $region36: #{unet_forward_packed.1} parent=11 // pred_fallthru
        _
      // Predicated region
      $region37: #{unet_forward_packed.1} parent=11 // pred_check
        %p1497 = pneg %p304
      $region38: #{unet_forward_packed.1} parent=11 // pred_check_branch
        %1499 = sbr.rel (%p1497) target = $region40
      $region39: #{unet_forward_packed.1} parent=11 // pred_region
        _
      $region40: #{unet_forward_packed.1} parent=11 // pred_fallthru
        _
      // Predicated region
      $region41: #{unet_forward_packed.1} parent=11 // pred_check
        %p1500 = pneg %p325
      $region42: #{unet_forward_packed.1} parent=11 // pred_check_branch
        %1502 = sbr.rel (%p1500) target = $region44
      $region43: #{unet_forward_packed.1} parent=11 // pred_region
        _
      $region44: #{unet_forward_packed.1} parent=11 // pred_fallthru
        _
      // Predicated region
      $region45: #{unet_forward_packed.1} parent=11 // pred_check
        %p1503 = pneg %p346
      $region46: #{unet_forward_packed.1} parent=11 // pred_check_branch
        %1505 = sbr.rel (%p1503) target = $region48
      $region47: #{unet_forward_packed.1} parent=11 // pred_region
        _
      $region48: #{unet_forward_packed.1} parent=11 // pred_fallthru
        _
      // Predicated region
      $region49: #{unet_forward_packed.1} parent=11 // pred_check
        %p1506 = pneg %p367
      $region50: #{unet_forward_packed.1} parent=11 // pred_check_branch
        %1508 = sbr.rel (%p1506) target = $region52
      $region51: #{unet_forward_packed.1} parent=11 // pred_region
        _
      $region52: #{unet_forward_packed.1} parent=11 // pred_fallthru
        _
      // Predicated region
      $region53: #{unet_forward_packed.1} parent=11 // pred_check
        %p1509 = pneg %p388
      $region54: #{unet_forward_packed.1} parent=11 // pred_check_branch
        %1511 = sbr.rel (%p1509) target = $region56
      $region55: #{unet_forward_packed.1} parent=11 // pred_region
        _
      $region56: #{unet_forward_packed.1} parent=11 // pred_fallthru
        _
      // Predicated region
      $region57: #{unet_forward_packed.1} parent=11 // pred_check
        %p1512 = pneg %p409
      $region58: #{unet_forward_packed.1} parent=11 // pred_check_branch
        %1514 = sbr.rel (%p1512) target = $region60
      $region59: #{unet_forward_packed.1} parent=11 // pred_region
        _
      $region60: #{unet_forward_packed.1} parent=11 // pred_fallthru
        _
      // Predicated region
      $region61: #{unet_forward_packed.1} parent=11 // pred_check
        %p1515 = pneg %p430
      $region62: #{unet_forward_packed.1} parent=11 // pred_check_branch
        %1517 = sbr.rel (%p1515) target = $region64
      $region63: #{unet_forward_packed.1} parent=11 // pred_region
        _
      $region64: #{unet_forward_packed.1} parent=11 // pred_fallthru
        _
      // Predicated region
      $region65: #{unet_forward_packed.1} parent=11 // pred_check
        %p1518 = pneg %p451
      $region66: #{unet_forward_packed.1} parent=11 // pred_check_branch
        %1520 = sbr.rel (%p1518) target = $region68
      $region67: #{unet_forward_packed.1} parent=11 // pred_region
        _
      $region68: #{unet_forward_packed.1} parent=11 // pred_fallthru
        _
      // Predicated region
      $region69: #{unet_forward_packed.1} parent=11 // pred_check
        %p1521 = pneg %p472
      $region70: #{unet_forward_packed.1} parent=11 // pred_check_branch
        %1523 = sbr.rel (%p1521) target = $region72
      $region71: #{unet_forward_packed.1} parent=11 // pred_region
        _
      $region72: #{unet_forward_packed.1} parent=11 // pred_fallthru
        _
      // Predicated region
      $region73: #{unet_forward_packed.1} parent=11 // pred_check
        %p1524 = pneg %p493
      $region74: #{unet_forward_packed.1} parent=11 // pred_check_branch
        %1526 = sbr.rel (%p1524) target = $region76
      $region75: #{unet_forward_packed.1} parent=11 // pred_region
        _
      $region76: #{unet_forward_packed.1} parent=11 // pred_fallthru
        _
      // Predicated region
      $region77: #{unet_forward_packed.1} parent=11 // pred_check
        %p1527 = pneg %p514
      $region78: #{unet_forward_packed.1} parent=11 // pred_check_branch
        %1529 = sbr.rel (%p1527) target = $region80
      $region79: #{unet_forward_packed.1} parent=11 // pred_region
        _
      $region80: #{unet_forward_packed.1} parent=11 // pred_fallthru
        _
      // Predicated region
      $region81: #{unet_forward_packed.1} parent=11 // pred_check
        %p1530 = pneg %p535
      $region82: #{unet_forward_packed.1} parent=11 // pred_check_branch
        %1532 = sbr.rel (%p1530) target = $region84
      $region83: #{unet_forward_packed.1} parent=11 // pred_region
        _
      $region84: #{unet_forward_packed.1} parent=11 // pred_fallthru
        _
      // Predicated region
      $region85: #{unet_forward_packed.1} parent=11 // pred_check
        %p1533 = pneg %p556
      $region86: #{unet_forward_packed.1} parent=11 // pred_check_branch
        %1535 = sbr.rel (%p1533) target = $region88
      $region87: #{unet_forward_packed.1} parent=11 // pred_region
        _
      $region88: #{unet_forward_packed.1} parent=11 // pred_fallthru
        _
      // Predicated region
      $region89: #{unet_forward_packed.1} parent=11 // pred_check
        %p1536 = pneg %p577
      $region90: #{unet_forward_packed.1} parent=11 // pred_check_branch
        %1538 = sbr.rel (%p1536) target = $region92
      $region91: #{unet_forward_packed.1} parent=11 // pred_region
        _
      $region92: #{unet_forward_packed.1} parent=11 // pred_fallthru
        _
      // Predicated region
      $region93: #{unet_forward_packed.1} parent=11 // pred_check
        %p1539 = pneg %p598
      $region94: #{unet_forward_packed.1} parent=11 // pred_check_branch
        %1541 = sbr.rel (%p1539) target = $region96
      $region95: #{unet_forward_packed.1} parent=11 // pred_region
        _
      $region96: #{unet_forward_packed.1} parent=11 // pred_fallthru
        _
      // Predicated region
      $region97: #{unet_forward_packed.1} parent=11 // pred_check
        %p1542 = pneg %p619
      $region98: #{unet_forward_packed.1} parent=11 // pred_check_branch
        %1544 = sbr.rel (%p1542) target = $region100
      $region99: #{unet_forward_packed.1} parent=11 // pred_region
        _
      $region100: #{unet_forward_packed.1} parent=11 // pred_fallthru
        _
      // Predicated region
      $region101: #{unet_forward_packed.1} parent=11 // pred_check
        %p1545 = pneg %p640
      $region102: #{unet_forward_packed.1} parent=11 // pred_check_branch
        %1547 = sbr.rel (%p1545) target = $region104
      $region103: #{unet_forward_packed.1} parent=11 // pred_region
        _
      $region104: #{unet_forward_packed.1} parent=11 // pred_fallthru
        _
      // Predicated region
      $region105: #{unet_forward_packed.1} parent=11 // pred_check
        %p1548 = pneg %p661
      $region106: #{unet_forward_packed.1} parent=11 // pred_check_branch
        %1550 = sbr.rel (%p1548) target = $region108
      $region107: #{unet_forward_packed.1} parent=11 // pred_region
        _
      $region108: #{unet_forward_packed.1} parent=11 // pred_fallthru
        _
      // Predicated region
      $region109: #{unet_forward_packed.1} parent=11 // pred_check
        %p1551 = pneg %p682
      $region110: #{unet_forward_packed.1} parent=11 // pred_check_branch
        %1553 = sbr.rel (%p1551) target = $region112
      $region111: #{unet_forward_packed.1} parent=11 // pred_region
        _
      $region112: #{unet_forward_packed.1} parent=11 // pred_fallthru
        _
      // Predicated region
      $region113: #{unet_forward_packed.1} parent=11 // pred_check
        %p1554 = pneg %p703
      $region114: #{unet_forward_packed.1} parent=11 // pred_check_branch
        %1556 = sbr.rel (%p1554) target = $region116
      $region115: #{unet_forward_packed.1} parent=11 // pred_region
        _
      $region116: #{unet_forward_packed.1} parent=11 // pred_fallthru
        _
      // Predicated region
      $region117: #{unet_forward_packed.1} parent=11 // pred_check
        %p1557 = pneg %p724
      $region118: #{unet_forward_packed.1} parent=11 // pred_check_branch
        %1559 = sbr.rel (%p1557) target = $region120
      $region119: #{unet_forward_packed.1} parent=11 // pred_region
        _
      $region120: #{unet_forward_packed.1} parent=11 // pred_fallthru
        _
      // Predicated region
      $region121: #{unet_forward_packed.1} parent=11 // pred_check
        %p1560 = pneg %p745
      $region122: #{unet_forward_packed.1} parent=11 // pred_check_branch
        %1562 = sbr.rel (%p1560) target = $region124
      $region123: #{unet_forward_packed.1} parent=11 // pred_region
        _
      $region124: #{unet_forward_packed.1} parent=11 // pred_fallthru
        _
      // Predicated region
      $region125: #{unet_forward_packed.1} parent=11 // pred_check
        %p1563 = pneg %p766
      $region126: #{unet_forward_packed.1} parent=11 // pred_check_branch
        %1565 = sbr.rel (%p1563) target = $region128
      $region127: #{unet_forward_packed.1} parent=11 // pred_region
        _
      $region128: #{unet_forward_packed.1} parent=11 // pred_fallthru
        _
      // Predicated region
      $region129: #{unet_forward_packed.1} parent=11 // pred_check
        %p1566 = pneg %p787
      $region130: #{unet_forward_packed.1} parent=11 // pred_check_branch
        %1568 = sbr.rel (%p1566) target = $region132
      $region131: #{unet_forward_packed.1} parent=11 // pred_region
        _
      $region132: #{unet_forward_packed.1} parent=11 // pred_fallthru
        _
      // Predicated region
      $region133: #{unet_forward_packed.1} parent=11 // pred_check
        %p1569 = pneg %p808
      $region134: #{unet_forward_packed.1} parent=11 // pred_check_branch
        %1571 = sbr.rel (%p1569) target = $region136
      $region135: #{unet_forward_packed.1} parent=11 // pred_region
        _
      $region136: #{unet_forward_packed.1} parent=11 // pred_fallthru
        _
      // Predicated region
      $region137: #{unet_forward_packed.1} parent=11 // pred_check
        %p1572 = pneg %p829
      $region138: #{unet_forward_packed.1} parent=11 // pred_check_branch
        %1574 = sbr.rel (%p1572) target = $region140
      $region139: #{unet_forward_packed.1} parent=11 // pred_region
        _
      $region140: #{unet_forward_packed.1} parent=11 // pred_fallthru
        _
      // Predicated region
      $region141: #{unet_forward_packed.1} parent=11 // pred_check
        %p1575 = pneg %p850
      $region142: #{unet_forward_packed.1} parent=11 // pred_check_branch
        %1577 = sbr.rel (%p1575) target = $region144
      $region143: #{unet_forward_packed.1} parent=11 // pred_region
        _
      $region144: #{unet_forward_packed.1} parent=11 // pred_fallthru
        _
      // Predicated region
      $region145: #{unet_forward_packed.1} parent=11 // pred_check
        %p1578 = pneg %p871
      $region146: #{unet_forward_packed.1} parent=11 // pred_check_branch
        %1580 = sbr.rel (%p1578) target = $region148
      $region147: #{unet_forward_packed.1} parent=11 // pred_region
        _
      $region148: #{unet_forward_packed.1} parent=11 // pred_fallthru
        _
      // Predicated region
      $region149: #{unet_forward_packed.1} parent=11 // pred_check
        %p1581 = pneg %p892
      $region150: #{unet_forward_packed.1} parent=11 // pred_check_branch
        %1583 = sbr.rel (%p1581) target = $region152
      $region151: #{unet_forward_packed.1} parent=11 // pred_region
        _
      $region152: #{unet_forward_packed.1} parent=11 // pred_fallthru
        _
      // Predicated region
      $region153: #{unet_forward_packed.1} parent=11 // pred_check
        %p1584 = pneg %p913
      $region154: #{unet_forward_packed.1} parent=11 // pred_check_branch
        %1586 = sbr.rel (%p1584) target = $region156
      $region155: #{unet_forward_packed.1} parent=11 // pred_region
        _
      $region156: #{unet_forward_packed.1} parent=11 // pred_fallthru
        _
      // Predicated region
      $region157: #{unet_forward_packed.1} parent=11 // pred_check
        %p1587 = pneg %p934
      $region158: #{unet_forward_packed.1} parent=11 // pred_check_branch
        %1589 = sbr.rel (%p1587) target = $region160
      $region159: #{unet_forward_packed.1} parent=11 // pred_region
        _
      $region160: #{unet_forward_packed.1} parent=11 // pred_fallthru
        _
      // Predicated region
      $region161: #{unet_forward_packed.1} parent=11 // pred_check
        %p1590 = pneg %p955
      $region162: #{unet_forward_packed.1} parent=11 // pred_check_branch
        %1592 = sbr.rel (%p1590) target = $region164
      $region163: #{unet_forward_packed.1} parent=11 // pred_region
        _
      $region164: #{unet_forward_packed.1} parent=11 // pred_fallthru
        _
      // Predicated region
      $region165: #{unet_forward_packed.1} parent=11 // pred_check
        %p1593 = pneg %p976
      $region166: #{unet_forward_packed.1} parent=11 // pred_check_branch
        %1595 = sbr.rel (%p1593) target = $region168
      $region167: #{unet_forward_packed.1} parent=11 // pred_region
        _
      $region168: #{unet_forward_packed.1} parent=11 // pred_fallthru
        _
      // Predicated region
      $region169: #{unet_forward_packed.1} parent=11 // pred_check
        %p1596 = pneg %p997
      $region170: #{unet_forward_packed.1} parent=11 // pred_check_branch
        %1598 = sbr.rel (%p1596) target = $region172
      $region171: #{unet_forward_packed.1} parent=11 // pred_region
        _
      $region172: #{unet_forward_packed.1} parent=11 // pred_fallthru
        _
      // Predicated region
      $region173: #{unet_forward_packed.1} parent=11 // pred_check
        %p1599 = pneg %p1018
      $region174: #{unet_forward_packed.1} parent=11 // pred_check_branch
        %1601 = sbr.rel (%p1599) target = $region176
      $region175: #{unet_forward_packed.1} parent=11 // pred_region
        _
      $region176: #{unet_forward_packed.1} parent=11 // pred_fallthru
        _
      // Predicated region
      $region177: #{unet_forward_packed.1} parent=11 // pred_check
        %p1602 = pneg %p1039
      $region178: #{unet_forward_packed.1} parent=11 // pred_check_branch
        %1604 = sbr.rel (%p1602) target = $region180
      $region179: #{unet_forward_packed.1} parent=11 // pred_region
        _
      $region180: #{unet_forward_packed.1} parent=11 // pred_fallthru
        _
      // Predicated region
      $region181: #{unet_forward_packed.1} parent=11 // pred_check
        %p1605 = pneg %p1060
      $region182: #{unet_forward_packed.1} parent=11 // pred_check_branch
        %1607 = sbr.rel (%p1605) target = $region184
      $region183: #{unet_forward_packed.1} parent=11 // pred_region
        _
      $region184: #{unet_forward_packed.1} parent=11 // pred_fallthru
        _
      // Predicated region
      $region185: #{unet_forward_packed.1} parent=11 // pred_check
        %p1608 = pneg %p1081
      $region186: #{unet_forward_packed.1} parent=11 // pred_check_branch
        %1610 = sbr.rel (%p1608) target = $region188
      $region187: #{unet_forward_packed.1} parent=11 // pred_region
        _
      $region188: #{unet_forward_packed.1} parent=11 // pred_fallthru
        _
      // Predicated region
      $region189: #{unet_forward_packed.1} parent=11 // pred_check
        %p1611 = pneg %p1102
      $region190: #{unet_forward_packed.1} parent=11 // pred_check_branch
        %1613 = sbr.rel (%p1611) target = $region192
      $region191: #{unet_forward_packed.1} parent=11 // pred_region
        _
      $region192: #{unet_forward_packed.1} parent=11 // pred_fallthru
        _
      // Predicated region
      $region193: #{unet_forward_packed.1} parent=11 // pred_check
        %p1614 = pneg %p1123
      $region194: #{unet_forward_packed.1} parent=11 // pred_check_branch
        %1616 = sbr.rel (%p1614) target = $region196
      $region195: #{unet_forward_packed.1} parent=11 // pred_region
        _
      $region196: #{unet_forward_packed.1} parent=11 // pred_fallthru
        _
      // Predicated region
      $region197: #{unet_forward_packed.1} parent=11 // pred_check
        %p1617 = pneg %p1144
      $region198: #{unet_forward_packed.1} parent=11 // pred_check_branch
        %1619 = sbr.rel (%p1617) target = $region200
      $region199: #{unet_forward_packed.1} parent=11 // pred_region
        _
      $region200: #{unet_forward_packed.1} parent=11 // pred_fallthru
        _
      // Predicated region
      $region201: #{unet_forward_packed.1} parent=11 // pred_check
        %p1620 = pneg %p1165
      $region202: #{unet_forward_packed.1} parent=11 // pred_check_branch
        %1622 = sbr.rel (%p1620) target = $region204
      $region203: #{unet_forward_packed.1} parent=11 // pred_region
        _
      $region204: #{unet_forward_packed.1} parent=11 // pred_fallthru
        _
      // Predicated region
      $region205: #{unet_forward_packed.1} parent=11 // pred_check
        %p1623 = pneg %p1186
      $region206: #{unet_forward_packed.1} parent=11 // pred_check_branch
        %1625 = sbr.rel (%p1623) target = $region208
      $region207: #{unet_forward_packed.1} parent=11 // pred_region
        _
      $region208: #{unet_forward_packed.1} parent=11 // pred_fallthru
        _
      // Predicated region
      $region209: #{unet_forward_packed.1} parent=11 // pred_check
        %p1626 = pneg %p1207
      $region210: #{unet_forward_packed.1} parent=11 // pred_check_branch
        %1628 = sbr.rel (%p1626) target = $region212
      $region211: #{unet_forward_packed.1} parent=11 // pred_region
        _
      $region212: #{unet_forward_packed.1} parent=11 // pred_fallthru
        _
      // Predicated region
      $region213: #{unet_forward_packed.1} parent=11 // pred_check
        %p1629 = pneg %p1228
      $region214: #{unet_forward_packed.1} parent=11 // pred_check_branch
        %1631 = sbr.rel (%p1629) target = $region216
      $region215: #{unet_forward_packed.1} parent=11 // pred_region
        _
      $region216: #{unet_forward_packed.1} parent=11 // pred_fallthru
        _
      // Predicated region
      $region217: #{unet_forward_packed.1} parent=11 // pred_check
        %p1632 = pneg %p1249
      $region218: #{unet_forward_packed.1} parent=11 // pred_check_branch
        %1634 = sbr.rel (%p1632) target = $region220
      $region219: #{unet_forward_packed.1} parent=11 // pred_region
        _
      $region220: #{unet_forward_packed.1} parent=11 // pred_fallthru
        _
      // Predicated region
      $region221: #{unet_forward_packed.1} parent=11 // pred_check
        %p1635 = pneg %p1270
      $region222: #{unet_forward_packed.1} parent=11 // pred_check_branch
        %1637 = sbr.rel (%p1635) target = $region224
      $region223: #{unet_forward_packed.1} parent=11 // pred_region
        _
      $region224: #{unet_forward_packed.1} parent=11 // pred_fallthru
        _
      // Predicated region
      $region225: #{unet_forward_packed.1} parent=11 // pred_check
        %p1638 = pneg %p1291
      $region226: #{unet_forward_packed.1} parent=11 // pred_check_branch
        %1640 = sbr.rel (%p1638) target = $region228
      $region227: #{unet_forward_packed.1} parent=11 // pred_region
        _
      $region228: #{unet_forward_packed.1} parent=11 // pred_fallthru
        _
      // Predicated region
      $region229: #{unet_forward_packed.1} parent=11 // pred_check
        %p1641 = pneg %p1312
      $region230: #{unet_forward_packed.1} parent=11 // pred_check_branch
        %1643 = sbr.rel (%p1641) target = $region232
      $region231: #{unet_forward_packed.1} parent=11 // pred_region
        _
      $region232: #{unet_forward_packed.1} parent=11 // pred_fallthru
        _
      // Predicated region
      $region233: #{unet_forward_packed.1} parent=11 // pred_check
        %p1644 = pneg %p1333
      $region234: #{unet_forward_packed.1} parent=11 // pred_check_branch
        %1646 = sbr.rel (%p1644) target = $region236
      $region235: #{unet_forward_packed.1} parent=11 // pred_region
        _
      $region236: #{unet_forward_packed.1} parent=11 // pred_fallthru
        _
      // Predicated region
      $region237: #{unet_forward_packed.1} parent=11 // pred_check
        %p1647 = pneg %p1354
      $region238: #{unet_forward_packed.1} parent=11 // pred_check_branch
        %1649 = sbr.rel (%p1647) target = $region240
      $region239: #{unet_forward_packed.1} parent=11 // pred_region
        _
      $region240: #{unet_forward_packed.1} parent=11 // pred_fallthru
        _
      // Predicated region
      $region241: #{unet_forward_packed.1} parent=11 // pred_check
        %p1650 = pneg %p1375
      $region242: #{unet_forward_packed.1} parent=11 // pred_check_branch
        %1652 = sbr.rel (%p1650) target = $region244
      $region243: #{unet_forward_packed.1} parent=11 // pred_region
        _
      $region244: #{unet_forward_packed.1} parent=11 // pred_fallthru
        _
      // Predicated region
      $region245: #{unet_forward_packed.1} parent=11 // pred_check
        %p1653 = pneg %p1396
      $region246: #{unet_forward_packed.1} parent=11 // pred_check_branch
        %1655 = sbr.rel (%p1653) target = $region248
      $region247: #{unet_forward_packed.1} parent=11 // pred_region
        _
      $region248: #{unet_forward_packed.1} parent=11 // pred_fallthru
        _
      // Predicated region
      $region249: #{unet_forward_packed.1} parent=11 // pred_check
        %p1656 = pneg %p1417
      $region250: #{unet_forward_packed.1} parent=11 // pred_check_branch
        %1658 = sbr.rel (%p1656) target = $region252
      $region251: #{unet_forward_packed.1} parent=11 // pred_region
        _
      $region252: #{unet_forward_packed.1} parent=11 // pred_fallthru
        _
      // Predicated region
      $region253: #{unet_forward_packed.1} parent=11 // pred_check
        %p1659 = pneg %p1438
      $region254: #{unet_forward_packed.1} parent=11 // pred_check_branch
        %1661 = sbr.rel (%p1659) target = $region256
      $region255: #{unet_forward_packed.1} parent=11 // pred_region
        _
      $region256: #{unet_forward_packed.1} parent=11 // pred_fallthru
        _
    $region12: #{unet_forward_packed.1} parent=5 // pred_fallthru
      _
    %p1662 = scmp.lt.s32.totalorder %s131, 2
    // Predicated region
    $region257: #{unet_forward_packed.1} parent=5 // pred_check
      %p1663 = pneg %p1662
    $region258: #{unet_forward_packed.1} parent=5 // pred_check_branch
      %1665 = sbr.rel (%p1663) target = $region260
    $region259: #{unet_forward_packed.1} parent=5 // pred_region
      // Predicated region
      $region261: #{unet_forward_packed.1} parent=259 // pred_check
        %p1666 = pneg %p151
      $region262: #{unet_forward_packed.1} parent=259 // pred_check_branch
        %1668 = sbr.rel (%p1666) target = $region264
      $region263: #{unet_forward_packed.1} parent=259 // pred_region
        %p1669 = scmp.lt.s32.totalorder %s131, 1
        %s1670 = scalar_select %p1669, %s131, 1
        %s1671 = scalar_lea.vmem %s1, %s1670
      $region264: #{unet_forward_packed.1} parent=259 // pred_fallthru
        _
    $region260: #{unet_forward_packed.1} parent=5 // pred_fallthru
      _
    %p1672 = scmp.le.s32.totalorder 1, %s131
    %p1673 = scmp.lt.s32.totalorder %s131, 3
    %p1674 = pnand %p1672, %p1673
    %p1675 = pneg %p1674
    // Predicated region
    $region265: #{unet_forward_packed.1} parent=5 // pred_check
      _
    $region266: #{unet_forward_packed.1} parent=5 // pred_check_branch
      %1677 = sbr.rel (%p1674) target = $region268
    $region267: #{unet_forward_packed.1} parent=5 // pred_region
      %s1678 = ssub.s32 %s131, 1
      %p1679 = scmp.lt.s32.totalorder %s136, 1
      %s1680 = scalar_select %p1679, %s136, 1
      %s1681 = scalar_lea.vmem %s1, %s1680
      %p1682 = pneg %p157
      %p1683 = pneg %p154
      %p1684 = pneg %p178
      %p1685 = pneg %p175
      %p1686 = pneg %p199
      %p1687 = pneg %p196
      %p1688 = pneg %p220
      %p1689 = pneg %p217
      %p1690 = pneg %p241
      %p1691 = pneg %p238
      %p1692 = pneg %p262
      %p1693 = pneg %p259
      %p1694 = pneg %p283
      %p1695 = pneg %p280
      %p1696 = pneg %p304
      %p1697 = pneg %p301
      %p1698 = pneg %p325
      %p1699 = pneg %p322
      %p1700 = pneg %p346
      %p1701 = pneg %p343
      %p1702 = pneg %p367
      %p1703 = pneg %p364
      %p1704 = pneg %p388
      %p1705 = pneg %p385
      %p1706 = pneg %p409
      %p1707 = pneg %p406
      %p1708 = pneg %p430
      %p1709 = pneg %p427
      %p1710 = pneg %p451
      %p1711 = pneg %p448
      %p1712 = pneg %p472
      %p1713 = pneg %p469
      %p1714 = pneg %p493
      %p1715 = pneg %p490
      %p1716 = pneg %p514
      %p1717 = pneg %p511
      %p1718 = pneg %p535
      %p1719 = pneg %p532
      %p1720 = pneg %p556
      %p1721 = pneg %p553
      %p1722 = pneg %p577
      %p1723 = pneg %p574
      %p1724 = pneg %p598
      %p1725 = pneg %p595
      %p1726 = pneg %p619
      %p1727 = pneg %p616
      %p1728 = pneg %p640
      %p1729 = pneg %p637
      %p1730 = pneg %p661
      %p1731 = pneg %p658
      %p1732 = pneg %p682
      %p1733 = pneg %p679
      %p1734 = pneg %p703
      %p1735 = pneg %p700
      %p1736 = pneg %p724
      %p1737 = pneg %p721
      %p1738 = pneg %p745
      %p1739 = pneg %p742
      %p1740 = pneg %p766
      %p1741 = pneg %p763
      %p1742 = pneg %p787
      %p1743 = pneg %p784
      %p1744 = pneg %p808
      %p1745 = pneg %p805
      %p1746 = pneg %p829
      %p1747 = pneg %p826
      %p1748 = pneg %p850
      %p1749 = pneg %p847
      %p1750 = pneg %p871
      %p1751 = pneg %p868
      %p1752 = pneg %p892
      %p1753 = pneg %p889
      %p1754 = pneg %p913
      %p1755 = pneg %p910
      %p1756 = pneg %p934
      %p1757 = pneg %p931
      %p1758 = pneg %p955
      %p1759 = pneg %p952
      %p1760 = pneg %p976
      %p1761 = pneg %p973
      %p1762 = pneg %p997
      %p1763 = pneg %p994
      %p1764 = pneg %p1018
      %p1765 = pneg %p1015
      %p1766 = pneg %p1039
      %p1767 = pneg %p1036
      %p1768 = pneg %p1060
      %p1769 = pneg %p1057
      %p1770 = pneg %p1081
      %p1771 = pneg %p1078
      %p1772 = pneg %p1102
      %p1773 = pneg %p1099
      %p1774 = pneg %p1123
      %p1775 = pneg %p1120
      %p1776 = pneg %p1144
      %p1777 = pneg %p1141
      %p1778 = pneg %p1165
      %p1779 = pneg %p1162
      %p1780 = pneg %p1186
      %p1781 = pneg %p1183
      %p1782 = pneg %p1207
      %p1783 = pneg %p1204
      %p1784 = pneg %p1228
      %p1785 = pneg %p1225
      %p1786 = pneg %p1249
      %p1787 = pneg %p1246
      %p1788 = pneg %p1270
      %p1789 = pneg %p1267
      %p1790 = pneg %p1291
      %p1791 = pneg %p1288
      %p1792 = pneg %p1312
      %p1793 = pneg %p1309
      %p1794 = pneg %p1333
      %p1795 = pneg %p1330
      %p1796 = pneg %p1354
      %p1797 = pneg %p1351
      %p1798 = pneg %p1375
      %p1799 = pneg %p1372
      %p1800 = pneg %p1396
      %p1801 = pneg %p1393
      %p1802 = pneg %p1417
      %p1803 = pneg %p1414
      %p1804 = pneg %p1438
      %p1805 = pneg %p1435
      %p1806 = pneg %p1464
      %p1807 = pneg %p1461
      %p1808 = scmp.lt.s32.totalorder %s136, 1
      %s1809 = scalar_select %p1808, %s136, 1
      %s1810 = smul.addr %s1809, 4
      %s1811 = scalar_lea.vmem %s125, %s1810
      %p1812 = scmp.lt.s32.totalorder %s136, 1
      %s1813 = scalar_select %p1812, %s136, 1
      %s1814 = scalar_lea.vmem %s1, %s1813
      %p1815 = scmp.lt.s32.totalorder %s136, 1
      %s1816 = scalar_select %p1815, %s136, 1
      %s1817 = smul.addr %s1816, 4
      %s1818 = scalar_lea.vmem %s125, %s1817
      %v1820 = vld [vmem:[%s1814] sm:$0x1]
      %vm1821 = vcmask 188416
      %vm1822 = vsmask.f32 256
      %vm1823 = vmand %vm1821, %vm1822
      %v1824 = vld [vmem:[#allocation2] sm:$0x1]
      %v1825 = vsel %vm1823, 0, %v1824
      %1826 = vst [vmem:[#allocation2] sm:$0x1] %v1825
      %v1827 = vpack.c.bf16 %v1820, %v1820
      %1829 = vrot.lane.b32.xlu0 %v1827, 4
      %v1830 = vpop.permute.xlu0 %1829
      %vm1832 = vcmask 155680
      %vm1833 = vmand %vm1832, %vm1822
      %v1834 = vld [vmem:[#allocation2] sm:$0x1]
      %v1835 = vsel %vm1833, %v1830, %v1834
      %1836 = vst [vmem:[#allocation2] sm:$0x1] %v1835
      %v1837 = vld [vmem:[#allocation2] sm:$0x1]
      %vm1838 = vcmask 122880
      %vm1839 = vmand %vm1838, %vm1822
      %v1840 = vld [vmem:[#allocation3] sm:$0x1]
      %v1841 = vsel %vm1839, %v1837, %v1840
      %1842 = vst [vmem:[#allocation3] sm:$0x1] %v1841
      %v1843 = vld [vmem:[#allocation2] sm:$0x1]
      %v1845 = vshll.u32 %v1843, 16
      %1847 = vrot.lane.b32.xlu0 %v1845, 127
      %v1848 = vpop.permute.xlu0 %1847
      %vm1850 = vsmask.f32 7938
      %vm1851 = vmand %vm1838, %vm1850
      %v1852 = vld [vmem:[#allocation3] sm:$0x1]
      %v1853 = vsel %vm1851, %v1848, %v1852
      %1854 = vst [vmem:[#allocation3] sm:$0x1] %v1853
      %v1855 = vld [vmem:[#allocation2] sm:$0x1]
      %v1857 = vrot.slane %v1855, 7
      %1858 = vrot.lane.b32.xlu0 %v1857, 126
      %v1859 = vpop.permute.xlu0 %1858
      %vm1861 = vcmask 123905
      %vm1862 = vsmask.f32 1280
      %vm1863 = vmand %vm1861, %vm1862
      %v1864 = vld [vmem:[#allocation3] sm:$0x2]
      %v1865 = vsel %vm1863, %v1859, %v1864
      %1866 = vst [vmem:[#allocation3] sm:$0x2] %v1865
      %v1867 = vld [vmem:[#allocation2] sm:$0x1]
      %v1869 = vshll.u32 %v1867, 16
      %v1871 = vrot.slane %v1869, 7
      %1872 = vrot.lane.b32.xlu0 %v1871, 125
      %v1873 = vpop.permute.xlu0 %1872
      %vm1875 = vsmask.f32 7942
      %vm1876 = vmand %vm1861, %vm1875
      %v1877 = vld [vmem:[#allocation3] sm:$0x2]
      %v1878 = vsel %vm1876, %v1873, %v1877
      %1879 = vst [vmem:[#allocation3] sm:$0x2] %v1878
      %v1880 = vld [vmem:[#allocation2] sm:$0x1]
      %v1882 = vrot.slane %v1880, 6
      %1883 = vrot.lane.b32.xlu0 %v1882, 124
      %v1884 = vpop.permute.xlu0 %1883
      %vm1886 = vcmask 124930
      %vm1887 = vsmask.f32 2304
      %vm1888 = vmand %vm1886, %vm1887
      %v1889 = vld [vmem:[#allocation3] sm:$0x4]
      %v1890 = vsel %vm1888, %v1884, %v1889
      %1891 = vst [vmem:[#allocation3] sm:$0x4] %v1890
      %v1892 = vld [vmem:[#allocation2] sm:$0x1]
      %v1894 = vshll.u32 %v1892, 16
      %v1896 = vrot.slane %v1894, 6
      %1897 = vrot.lane.b32.xlu0 %v1896, 123
      %v1898 = vpop.permute.xlu0 %1897
      %vm1900 = vsmask.f32 7946
      %vm1901 = vmand %vm1886, %vm1900
      %v1902 = vld [vmem:[#allocation3] sm:$0x4]
      %v1903 = vsel %vm1901, %v1898, %v1902
      %1904 = vst [vmem:[#allocation3] sm:$0x4] %v1903
      %v1905 = vld [vmem:[#allocation2] sm:$0x1]
      %v1907 = vrot.slane %v1905, 5
      %1908 = vrot.lane.b32.xlu0 %v1907, 122
      %v1909 = vpop.permute.xlu0 %1908
      %vm1911 = vcmask 125955
      %vm1912 = vsmask.f32 3328
      %vm1913 = vmand %vm1911, %vm1912
      %v1914 = vld [vmem:[#allocation3] sm:$0x8]
      %v1915 = vsel %vm1913, %v1909, %v1914
      %1916 = vst [vmem:[#allocation3] sm:$0x8] %v1915
      %v1917 = vld [vmem:[#allocation2] sm:$0x1]
      %v1919 = vshll.u32 %v1917, 16
      %v1921 = vrot.slane %v1919, 5
      %1922 = vrot.lane.b32.xlu0 %v1921, 121
      %v1923 = vpop.permute.xlu0 %1922
      %vm1925 = vsmask.f32 7950
      %vm1926 = vmand %vm1911, %vm1925
      %v1927 = vld [vmem:[#allocation3] sm:$0x8]
      %v1928 = vsel %vm1926, %v1923, %v1927
      %1929 = vst [vmem:[#allocation3] sm:$0x8] %v1928
      %v1930 = vld [vmem:[#allocation2] sm:$0x1]
      %v1932 = vrot.slane %v1930, 4
      %1933 = vrot.lane.b32.xlu0 %v1932, 120
      %v1934 = vpop.permute.xlu0 %1933
      %vm1936 = vcmask 126980
      %vm1937 = vsmask.f32 4352
      %vm1938 = vmand %vm1936, %vm1937
      %v1939 = vld [vmem:[#allocation3] sm:$0x10]
      %v1940 = vsel %vm1938, %v1934, %v1939
      %1941 = vst [vmem:[#allocation3] sm:$0x10] %v1940
      %v1942 = vld [vmem:[#allocation3] sm:$0x1f]
      %v1943 = vld [vmem:[%s11] sm:$0x3]
      %vm1944 = vcmask 72704
      %v1946 = vsel %vm1944, %v1943, 0
      %vm1948 = vcmask 1043456
      %vm1949 = vcmask 1044480
      %v1950 = vsel %vm1948, 4294967295, 65535
      %v1951 = vsel %vm1949, %v1950, 0
      %v1953 = vand.u32 %v1942, %v1951
      %1955 = vmatprep.subr.bf16.mxu0 0
      %1956 = vmatpush1.bf16.msra.mxu0 %v1953
      %1957 = vmatprep.subr.bf16.mxu0 0
      %1958 = vmatpush1.bf16.msra.mxu0 0
      %1959 = vmatprep.subr.bf16.mxu0 0
      %1960 = vmatpush1.bf16.msra.mxu0 0
      %1961 = vmatprep.subr.bf16.mxu0 0
      %1962 = vmatpush1.bf16.msra.mxu0 0
      %1963 = vmatprep.subr.bf16.mxu0 0
      %1964 = vmatpush1.bf16.msra.mxu0 0
      %1965 = vmatprep.subr.bf16.mxu0 0
      %1966 = vmatpush1.bf16.msra.mxu0 0
      %1967 = vmatprep.subr.bf16.mxu0 0
      %1968 = vmatpush1.bf16.msra.mxu0 0
      %1969 = vmatprep.subr.bf16.mxu0 0
      %1970 = vmatpush1.bf16.msra.mxu0 0
      %1971 = vmatprep.subr.bf16.mxu0 0
      %1972 = vmatpush1.bf16.msra.mxu0 0
      %1973 = vmatprep.subr.bf16.mxu0 0
      %1974 = vmatpush1.bf16.msra.mxu0 0
      %1975 = vmatprep.subr.bf16.mxu0 0
      %1976 = vmatpush1.bf16.msra.mxu0 0
      %1977 = vmatprep.subr.bf16.mxu0 0
      %1978 = vmatpush1.bf16.msra.mxu0 0
      %1979 = vmatprep.subr.bf16.mxu0 0
      %1980 = vmatpush1.bf16.msra.mxu0 0
      %1981 = vmatprep.subr.bf16.mxu0 0
      %1982 = vmatpush1.bf16.msra.mxu0 0
      %1983 = vmatprep.subr.bf16.mxu0 0
      %1984 = vmatpush1.bf16.msra.mxu0 0
      %1985 = vmatprep.subr.bf16.mxu0 0
      %1986 = vmatpush1.bf16.msra.mxu0 0
      %1987 = vmatprep.mubr.bf16.mxu0 0
      %1988 = vmatmul.mubr.bf16.gmra.mrb[0].mxu0 %v1946
      %v1989 = vpop.f32.mrb[0].mxu0
      %v1990 = vadd.f32 0.0, %v1989
      %v1991 = vpop.f32.mrb[0].mxu0
      %v1992 = vpop.f32.mrb[0].mxu0
      %v1993 = vpop.f32.mrb[0].mxu0
      %1994 = vdwg.mxu0
      %v1995 = vld [vmem:[%s13] sm:$0xf]
      %1997 = vset.pattern.permute.xlu0 0
      %1998 = vperm.xlu0 %1997, %v1995
      %v1999 = vpop.permute.xlu0 %1998
      %v2001 = vmul.f32 %v1990, %v1999
      %v2002 = vld [vmem:[%s15] sm:$0xf]
      %2004 = vset.pattern.permute.xlu0 0
      %2005 = vperm.xlu0 %2004, %v2002
      %v2006 = vpop.permute.xlu0 %2005
      %v2008 = vadd.f32 %v2001, %v2006
      %v2009 = vmax.f32 %v2008, 0.0
      %vm2010 = vcmask 189440
      %2011 = vst.msk [vmem:[#allocation2] sm:$0x3] %vm2010, 0
      %v2012 = vpack.c.bf16 %v2009, %v2009
      %2014 = vrot.lane.b32.xlu0 %v2012, 4
      %v2015 = vpop.permute.xlu0 %2014
      %vm2017 = vcmask 156704
      %2018 = vst.msk [vmem:[#allocation2] sm:$0x3] %vm2017, %v2015
      %v2019 = vld [vmem:[#allocation2] sm:$0x3]
      %vm2020 = vcmask 123904
      %2021 = vst.msk [vmem:[#allocation3] sm:$0x3] %vm2020, %v2019
      %v2022 = vld [vmem:[#allocation2] sm:$0x3]
      %v2024 = vrot.slane %v2022, 6
      %2025 = vrot.lane.b32.xlu0 %v2024, 127
      %v2026 = vpop.permute.xlu0 %2025
      %vm2028 = vcmask 125954
      %2029 = vst.msk [vmem:[#allocation3] sm:$0xc] %vm2028, %v2026
      %v2030 = vld [vmem:[#allocation2] sm:$0x3]
      %v2032 = vrot.slane %v2030, 4
      %2033 = vrot.lane.b32.xlu0 %v2032, 126
      %v2034 = vpop.permute.xlu0 %2033
      %vm2036 = vcmask 128004
      %2037 = vst.msk [vmem:[#allocation3] sm:$0x30] %vm2036, %v2034
      %v2038 = vld [vmem:[#allocation2] sm:$0x3]
      %v2040 = vrot.slane %v2038, 2
      %2041 = vrot.lane.b32.xlu0 %v2040, 125
      %v2042 = vpop.permute.xlu0 %2041
      %vm2044 = vcmask 130054
      %2045 = vst.msk [vmem:[#allocation3] sm:$0xc0] %vm2044, %v2042
      %v2046 = vld [vmem:[#allocation2] sm:$0x3]
      %2048 = vrot.lane.b32.xlu0 %v2046, 124
      %v2049 = vpop.permute.xlu0 %2048
      %2051 = vst.msk [vmem:[#allocation3 + $0x8] sm:$0x3] %vm2020, %v2049
      %v2052 = vld [vmem:[#allocation2] sm:$0x3]
      %v2054 = vrot.slane %v2052, 6
      %2055 = vrot.lane.b32.xlu0 %v2054, 123
      %v2056 = vpop.permute.xlu0 %2055
      %2058 = vst.msk [vmem:[#allocation3 + $0x8] sm:$0xc] %vm2028, %v2056
      %v2059 = vld [vmem:[#allocation2] sm:$0x3]
      %v2061 = vrot.slane %v2059, 4
      %2062 = vrot.lane.b32.xlu0 %v2061, 122
      %v2063 = vpop.permute.xlu0 %2062
      %2065 = vst.msk [vmem:[#allocation3 + $0x8] sm:$0x30] %vm2036, %v2063
      %v2066 = vld [vmem:[#allocation2] sm:$0x3]
      %v2068 = vrot.slane %v2066, 2
      %2069 = vrot.lane.b32.xlu0 %v2068, 121
      %v2070 = vpop.permute.xlu0 %2069
      %2072 = vst.msk [vmem:[#allocation3 + $0x8] sm:$0xc0] %vm2044, %v2070
      %v2073 = vld [vmem:[#allocation2] sm:$0x3]
      %2075 = vrot.lane.b32.xlu0 %v2073, 120
      %v2076 = vpop.permute.xlu0 %2075
      %2078 = vst.msk [vmem:[#allocation3 + $0x10] sm:$0x3] %vm2020, %v2076
      %v2079 = vld [vmem:[#allocation3] sm:$0xff]
      %v2080 = vld [vmem:[#allocation3 + $0x8] sm:$0xff]
      %v2081 = vld [vmem:[#allocation3 + $0x10] sm:$0x3]
      %v2082 = vld [vmem:[%s17] sm:$0x3]
      %vm2083 = vcmask 293888
      %v2085 = vsel %vm2083, %v2082, 0
      %vm2087 = vcmask 1041408
      %v2089 = vsel %vm2087, %v2081, 0
      %2091 = vmatprep.subr.bf16.mxu0 0
      %2092 = vmatpush1.bf16.msra.mxu0 %v2079
      %2093 = vmatprep.subr.bf16.mxu0 0
      %2094 = vmatpush1.bf16.msra.mxu0 %v2080
      %2095 = vmatprep.subr.bf16.mxu0 0
      %2096 = vmatpush1.bf16.msra.mxu0 %v2089
      %2097 = vmatprep.subr.bf16.mxu0 0
      %2098 = vmatpush1.bf16.msra.mxu0 0
      %2099 = vmatprep.subr.bf16.mxu0 0
      %2100 = vmatpush1.bf16.msra.mxu0 0
      %2101 = vmatprep.subr.bf16.mxu0 0
      %2102 = vmatpush1.bf16.msra.mxu0 0
      %2103 = vmatprep.subr.bf16.mxu0 0
      %2104 = vmatpush1.bf16.msra.mxu0 0
      %2105 = vmatprep.subr.bf16.mxu0 0
      %2106 = vmatpush1.bf16.msra.mxu0 0
      %2107 = vmatprep.subr.bf16.mxu0 0
      %2108 = vmatpush1.bf16.msra.mxu0 0
      %2109 = vmatprep.subr.bf16.mxu0 0
      %2110 = vmatpush1.bf16.msra.mxu0 0
      %2111 = vmatprep.subr.bf16.mxu0 0
      %2112 = vmatpush1.bf16.msra.mxu0 0
      %2113 = vmatprep.subr.bf16.mxu0 0
      %2114 = vmatpush1.bf16.msra.mxu0 0
      %2115 = vmatprep.subr.bf16.mxu0 0
      %2116 = vmatpush1.bf16.msra.mxu0 0
      %2117 = vmatprep.subr.bf16.mxu0 0
      %2118 = vmatpush1.bf16.msra.mxu0 0
      %2119 = vmatprep.subr.bf16.mxu0 0
      %2120 = vmatpush1.bf16.msra.mxu0 0
      %2121 = vmatprep.subr.bf16.mxu0 0
      %2122 = vmatpush1.bf16.msra.mxu0 0
      %2123 = vmatprep.mubr.bf16.mxu0 0
      %2124 = vmatmul.mubr.bf16.gmra.mrb[0].mxu0 %v2085
      %v2125 = vpop.f32.mrb[0].mxu0
      %v2126 = vadd.f32 0.0, %v2125
      %v2127 = vpop.f32.mrb[0].mxu0
      %v2128 = vpop.f32.mrb[0].mxu0
      %v2129 = vpop.f32.mrb[0].mxu0
      %2130 = vdwg.mxu0
      %v2131 = vld [vmem:[%s19] sm:$0xf]
      %2133 = vset.pattern.permute.xlu0 0
      %2134 = vperm.xlu0 %2133, %v2131
      %v2135 = vpop.permute.xlu0 %2134
      %v2137 = vmul.f32 %v2126, %v2135
      %v2138 = vld [vmem:[%s21] sm:$0xf]
      %2140 = vset.pattern.permute.xlu0 0
      %2141 = vperm.xlu0 %2140, %v2138
      %v2142 = vpop.permute.xlu0 %2141
      %v2144 = vadd.f32 %v2137, %v2142
      %v2145 = vmax.f32 %v2144, 0.0
      %2146 = vst.msk [vmem:[#allocation2] sm:$0x3] %vm2010, 0
      %v2147 = vpack.c.bf16 %v2145, %v2145
      %2149 = vrot.lane.b32.xlu0 %v2147, 4
      %v2150 = vpop.permute.xlu0 %2149
      %2152 = vst.msk [vmem:[#allocation2] sm:$0x3] %vm2017, %v2150
      %v2153 = vld [vmem:[#allocation2] sm:$0x3]
      %2154 = vst.msk [vmem:[#allocation3] sm:$0x3] %vm2020, %v2153
      %v2155 = vld [vmem:[#allocation2] sm:$0x3]
      %v2157 = vrot.slane %v2155, 6
      %2158 = vrot.lane.b32.xlu0 %v2157, 127
      %v2159 = vpop.permute.xlu0 %2158
      %2161 = vst.msk [vmem:[#allocation3] sm:$0xc] %vm2028, %v2159
      %v2162 = vld [vmem:[#allocation2] sm:$0x3]
      %v2164 = vrot.slane %v2162, 4
      %2165 = vrot.lane.b32.xlu0 %v2164, 126
      %v2166 = vpop.permute.xlu0 %2165
      %2168 = vst.msk [vmem:[#allocation3] sm:$0x30] %vm2036, %v2166
      %v2169 = vld [vmem:[#allocation2] sm:$0x3]
      %v2171 = vrot.slane %v2169, 2
      %2172 = vrot.lane.b32.xlu0 %v2171, 125
      %v2173 = vpop.permute.xlu0 %2172
      %2175 = vst.msk [vmem:[#allocation3] sm:$0xc0] %vm2044, %v2173
      %v2176 = vld [vmem:[#allocation2] sm:$0x3]
      %2178 = vrot.lane.b32.xlu0 %v2176, 124
      %v2179 = vpop.permute.xlu0 %2178
      %2181 = vst.msk [vmem:[#allocation3 + $0x8] sm:$0x3] %vm2020, %v2179
      %v2182 = vld [vmem:[#allocation2] sm:$0x3]
      %v2184 = vrot.slane %v2182, 6
      %2185 = vrot.lane.b32.xlu0 %v2184, 123
      %v2186 = vpop.permute.xlu0 %2185
      %2188 = vst.msk [vmem:[#allocation3 + $0x8] sm:$0xc] %vm2028, %v2186
      %v2189 = vld [vmem:[#allocation2] sm:$0x3]
      %v2191 = vrot.slane %v2189, 4
      %2192 = vrot.lane.b32.xlu0 %v2191, 122
      %v2193 = vpop.permute.xlu0 %2192
      %2195 = vst.msk [vmem:[#allocation3 + $0x8] sm:$0x30] %vm2036, %v2193
      %v2196 = vld [vmem:[#allocation2] sm:$0x3]
      %v2198 = vrot.slane %v2196, 2
      %2199 = vrot.lane.b32.xlu0 %v2198, 121
      %v2200 = vpop.permute.xlu0 %2199
      %2202 = vst.msk [vmem:[#allocation3 + $0x8] sm:$0xc0] %vm2044, %v2200
      %v2203 = vld [vmem:[#allocation2] sm:$0x3]
      %2205 = vrot.lane.b32.xlu0 %v2203, 120
      %v2206 = vpop.permute.xlu0 %2205
      %2208 = vst.msk [vmem:[#allocation3 + $0x10] sm:$0x3] %vm2020, %v2206
      %v2209 = vld [vmem:[#allocation3] sm:$0xff]
      %v2210 = vld [vmem:[#allocation3 + $0x8] sm:$0xff]
      %v2211 = vld [vmem:[#allocation3 + $0x10] sm:$0x3]
      %v2212 = vld [vmem:[%s23] sm:$0x3]
      %v2214 = vsel %vm2083, %v2212, 0
      %v2217 = vsel %vm2087, %v2211, 0
      %2219 = vmatprep.subr.bf16.mxu0 0
      %2220 = vmatpush1.bf16.msra.mxu0 %v2209
      %2221 = vmatprep.subr.bf16.mxu0 0
      %2222 = vmatpush1.bf16.msra.mxu0 %v2210
      %2223 = vmatprep.subr.bf16.mxu0 0
      %2224 = vmatpush1.bf16.msra.mxu0 %v2217
      %2225 = vmatprep.subr.bf16.mxu0 0
      %2226 = vmatpush1.bf16.msra.mxu0 0
      %2227 = vmatprep.subr.bf16.mxu0 0
      %2228 = vmatpush1.bf16.msra.mxu0 0
      %2229 = vmatprep.subr.bf16.mxu0 0
      %2230 = vmatpush1.bf16.msra.mxu0 0
      %2231 = vmatprep.subr.bf16.mxu0 0
      %2232 = vmatpush1.bf16.msra.mxu0 0
      %2233 = vmatprep.subr.bf16.mxu0 0
      %2234 = vmatpush1.bf16.msra.mxu0 0
      %2235 = vmatprep.subr.bf16.mxu0 0
      %2236 = vmatpush1.bf16.msra.mxu0 0
      %2237 = vmatprep.subr.bf16.mxu0 0
      %2238 = vmatpush1.bf16.msra.mxu0 0
      %2239 = vmatprep.subr.bf16.mxu0 0
      %2240 = vmatpush1.bf16.msra.mxu0 0
      %2241 = vmatprep.subr.bf16.mxu0 0
      %2242 = vmatpush1.bf16.msra.mxu0 0
      %2243 = vmatprep.subr.bf16.mxu0 0
      %2244 = vmatpush1.bf16.msra.mxu0 0
      %2245 = vmatprep.subr.bf16.mxu0 0
      %2246 = vmatpush1.bf16.msra.mxu0 0
      %2247 = vmatprep.subr.bf16.mxu0 0
      %2248 = vmatpush1.bf16.msra.mxu0 0
      %2249 = vmatprep.subr.bf16.mxu0 0
      %2250 = vmatpush1.bf16.msra.mxu0 0
      %2251 = vmatprep.mubr.bf16.mxu0 0
      %2252 = vmatmul.mubr.bf16.gmra.mrb[0].mxu0 %v2214
      %v2253 = vpop.f32.mrb[0].mxu0
      %v2254 = vadd.f32 0.0, %v2253
      %v2255 = vpop.f32.mrb[0].mxu0
      %v2256 = vpop.f32.mrb[0].mxu0
      %v2257 = vpop.f32.mrb[0].mxu0
      %2258 = vdwg.mxu0
      %v2259 = vld [vmem:[%s25] sm:$0xf]
      %2261 = vset.pattern.permute.xlu0 0
      %2262 = vperm.xlu0 %2261, %v2259
      %v2263 = vpop.permute.xlu0 %2262
      %v2265 = vmul.f32 %v2254, %v2263
      %v2266 = vld [vmem:[%s27] sm:$0xf]
      %2268 = vset.pattern.permute.xlu0 0
      %2269 = vperm.xlu0 %2268, %v2266
      %v2270 = vpop.permute.xlu0 %2269
      %v2272 = vadd.f32 %v2265, %v2270
      %v2273 = vmax.f32 %v2272, 0.0
      %v2274 = vpack.c.bf16 %v2273, %v2273
      %v2275 = vld [vmem:[%s3] sm:$0xf]
      %v2276 = vld [vmem:[%s3 + $0x4] sm:$0xf]
      %v2277 = vld [vmem:[%s5] sm:$0xf]
      %v2278 = vld [vmem:[%s5 + $0x4] sm:$0xf]
      %v2281 = vunpack.c.l.b16 %v2275
      %v2282 = vunpack.c.l.b16 %v2276
      %v2283 = vpack.c.b16 %v2282, %v2281
      %vm2285 = vcmask 130048
      %v2287 = vsel %vm2285, %v2274, 0
      %2289 = vmatprep.subr.bf16.mxu0 0
      %2290 = vmatpush1.bf16.msra.mxu0 %v2283
      %2291 = vmatprep.subr.bf16.mxu0 0
      %2292 = vmatpush1.bf16.msra.mxu0 0
      %2293 = vmatprep.subr.bf16.mxu0 0
      %2294 = vmatpush1.bf16.msra.mxu0 0
      %2295 = vmatprep.subr.bf16.mxu0 0
      %2296 = vmatpush1.bf16.msra.mxu0 0
      %2297 = vmatprep.subr.bf16.mxu0 0
      %2298 = vmatpush1.bf16.msra.mxu0 0
      %2299 = vmatprep.subr.bf16.mxu0 0
      %2300 = vmatpush1.bf16.msra.mxu0 0
      %2301 = vmatprep.subr.bf16.mxu0 0
      %2302 = vmatpush1.bf16.msra.mxu0 0
      %2303 = vmatprep.subr.bf16.mxu0 0
      %2304 = vmatpush1.bf16.msra.mxu0 0
      %2305 = vmatprep.subr.bf16.mxu0 0
      %2306 = vmatpush1.bf16.msra.mxu0 0
      %2307 = vmatprep.subr.bf16.mxu0 0
      %2308 = vmatpush1.bf16.msra.mxu0 0
      %2309 = vmatprep.subr.bf16.mxu0 0
      %2310 = vmatpush1.bf16.msra.mxu0 0
      %2311 = vmatprep.subr.bf16.mxu0 0
      %2312 = vmatpush1.bf16.msra.mxu0 0
      %2313 = vmatprep.subr.bf16.mxu0 0
      %2314 = vmatpush1.bf16.msra.mxu0 0
      %2315 = vmatprep.subr.bf16.mxu0 0
      %2316 = vmatpush1.bf16.msra.mxu0 0
      %2317 = vmatprep.subr.bf16.mxu0 0
      %2318 = vmatpush1.bf16.msra.mxu0 0
      %2319 = vmatprep.subr.bf16.mxu0 0
      %2320 = vmatpush1.bf16.msra.mxu0 0
      %2321 = vmatprep.mubr.bf16.mxu0 0
      %2322 = vmatmul.mubr.bf16.gmra.mrb[0].mxu0 %v2287
      %v2323 = vpop.f32.mrb[0].mxu0
      %v2324 = vadd.f32 0.0, %v2323
      %v2325 = vpop.f32.mrb[0].mxu0
      %v2326 = vpop.f32.mrb[0].mxu0
      %v2327 = vpop.f32.mrb[0].mxu0
      %2328 = vdwg.mxu0
      %v2331 = vunpack.c.l.b16 %v2277
      %v2332 = vunpack.c.l.b16 %v2278
      %v2333 = vpack.c.b16 %v2332, %v2331
      %2335 = vmatprep.subr.bf16.mxu0 0
      %2336 = vmatpush1.bf16.msra.mxu0 %v2333
      %2337 = vmatprep.subr.bf16.mxu0 0
      %2338 = vmatpush1.bf16.msra.mxu0 0
      %2339 = vmatprep.subr.bf16.mxu0 0
      %2340 = vmatpush1.bf16.msra.mxu0 0
      %2341 = vmatprep.subr.bf16.mxu0 0
      %2342 = vmatpush1.bf16.msra.mxu0 0
      %2343 = vmatprep.subr.bf16.mxu0 0
      %2344 = vmatpush1.bf16.msra.mxu0 0
      %2345 = vmatprep.subr.bf16.mxu0 0
      %2346 = vmatpush1.bf16.msra.mxu0 0
      %2347 = vmatprep.subr.bf16.mxu0 0
      %2348 = vmatpush1.bf16.msra.mxu0 0
      %2349 = vmatprep.subr.bf16.mxu0 0
      %2350 = vmatpush1.bf16.msra.mxu0 0
      %2351 = vmatprep.subr.bf16.mxu0 0
      %2352 = vmatpush1.bf16.msra.mxu0 0
      %2353 = vmatprep.subr.bf16.mxu0 0
      %2354 = vmatpush1.bf16.msra.mxu0 0
      %2355 = vmatprep.subr.bf16.mxu0 0
      %2356 = vmatpush1.bf16.msra.mxu0 0
      %2357 = vmatprep.subr.bf16.mxu0 0
      %2358 = vmatpush1.bf16.msra.mxu0 0
      %2359 = vmatprep.subr.bf16.mxu0 0
      %2360 = vmatpush1.bf16.msra.mxu0 0
      %2361 = vmatprep.subr.bf16.mxu0 0
      %2362 = vmatpush1.bf16.msra.mxu0 0
      %2363 = vmatprep.subr.bf16.mxu0 0
      %2364 = vmatpush1.bf16.msra.mxu0 0
      %2365 = vmatprep.subr.bf16.mxu0 0
      %2366 = vmatpush1.bf16.msra.mxu0 0
      %2367 = vmatprep.mubr.bf16.mxu0 0
      %2368 = vmatmul.mubr.bf16.gmra.mrb[0].mxu0 %v2287
      %v2369 = vpop.f32.mrb[0].mxu0
      %v2370 = vadd.f32 0.0, %v2369
      %v2371 = vpop.f32.mrb[0].mxu0
      %v2372 = vpop.f32.mrb[0].mxu0
      %v2373 = vpop.f32.mrb[0].mxu0
      %2374 = vdwg.mxu0
      %v2375 = vmax.f32 %v2324, %v2370
      %2376 = vst.msk [vmem:[#allocation2] sm:$0x3] %vm2020, 0
      %v2377 = vpack.c.bf16 %v2375, %v2375
      %2379 = vrot.lane.b32.xlu0 %v2377, 4
      %v2380 = vpop.permute.xlu0 %2379
      %vm2382 = vcmask 91168
      %2383 = vst.msk [vmem:[#allocation2] sm:$0x3] %vm2382, %v2380
      %v2384 = vld [vmem:[#allocation2] sm:$0x3]
      %vm2385 = vcmask 58368
      %2386 = vst.msk [vmem:[#allocation3] sm:$0x3] %vm2385, %v2384
      %v2387 = vld [vmem:[#allocation2] sm:$0x3]
      %v2389 = vrot.slane %v2387, 6
      %2390 = vrot.lane.b32.xlu0 %v2389, 127
      %v2391 = vpop.permute.xlu0 %2390
      %vm2393 = vcmask 60418
      %2394 = vst.msk [vmem:[#allocation3] sm:$0xc] %vm2393, %v2391
      %v2395 = vld [vmem:[#allocation2] sm:$0x3]
      %v2397 = vrot.slane %v2395, 4
      %2398 = vrot.lane.b32.xlu0 %v2397, 126
      %v2399 = vpop.permute.xlu0 %2398
      %vm2401 = vcmask 62468
      %2402 = vst.msk [vmem:[#allocation3] sm:$0x30] %vm2401, %v2399
      %v2403 = vld [vmem:[#allocation2] sm:$0x3]
      %v2405 = vrot.slane %v2403, 2
      %2406 = vrot.lane.b32.xlu0 %v2405, 125
      %v2407 = vpop.permute.xlu0 %2406
      %vm2409 = vcmask 64518
      %2410 = vst.msk [vmem:[#allocation3] sm:$0xc0] %vm2409, %v2407
      %v2411 = vld [vmem:[#allocation2] sm:$0x3]
      %2413 = vrot.lane.b32.xlu0 %v2411, 124
      %v2414 = vpop.permute.xlu0 %2413
      %2416 = vst.msk [vmem:[#allocation3 + $0x8] sm:$0x3] %vm2385, %v2414
      %v2417 = vld [vmem:[#allocation2] sm:$0x3]
      %v2419 = vrot.slane %v2417, 6
      %2420 = vrot.lane.b32.xlu0 %v2419, 123
      %v2421 = vpop.permute.xlu0 %2420
      %2423 = vst.msk [vmem:[#allocation3 + $0x8] sm:$0xc] %vm2393, %v2421
      %v2424 = vld [vmem:[#allocation2] sm:$0x3]
      %v2426 = vrot.slane %v2424, 4
      %2427 = vrot.lane.b32.xlu0 %v2426, 122
      %v2428 = vpop.permute.xlu0 %2427
      %2430 = vst.msk [vmem:[#allocation3 + $0x8] sm:$0x30] %vm2401, %v2428
      %v2431 = vld [vmem:[#allocation2] sm:$0x3]
      %v2433 = vrot.slane %v2431, 2
      %2434 = vrot.lane.b32.xlu0 %v2433, 121
      %v2435 = vpop.permute.xlu0 %2434
      %2437 = vst.msk [vmem:[#allocation3 + $0x8] sm:$0xc0] %vm2409, %v2435
      %v2438 = vld [vmem:[#allocation2] sm:$0x3]
      %2440 = vrot.lane.b32.xlu0 %v2438, 120
      %v2441 = vpop.permute.xlu0 %2440
      %2443 = vst.msk [vmem:[#allocation3 + $0x10] sm:$0x3] %vm2385, %v2441
      %v2444 = vld [vmem:[#allocation3] sm:$0xff]
      %v2445 = vld [vmem:[#allocation3 + $0x8] sm:$0xff]
      %v2446 = vld [vmem:[#allocation3 + $0x10] sm:$0x3]
      %v2447 = vld [vmem:[%s29] sm:$0xf]
      %v2449 = vsel %vm2083, %v2447, 0
      %v2452 = vsel %vm2087, %v2446, 0
      %2454 = vmatprep.subr.bf16.mxu0 0
      %2455 = vmatpush1.bf16.msra.mxu0 %v2444
      %2456 = vmatprep.subr.bf16.mxu0 0
      %2457 = vmatpush1.bf16.msra.mxu0 %v2445
      %2458 = vmatprep.subr.bf16.mxu0 0
      %2459 = vmatpush1.bf16.msra.mxu0 %v2452
      %2460 = vmatprep.subr.bf16.mxu0 0
      %2461 = vmatpush1.bf16.msra.mxu0 0
      %2462 = vmatprep.subr.bf16.mxu0 0
      %2463 = vmatpush1.bf16.msra.mxu0 0
      %2464 = vmatprep.subr.bf16.mxu0 0
      %2465 = vmatpush1.bf16.msra.mxu0 0
      %2466 = vmatprep.subr.bf16.mxu0 0
      %2467 = vmatpush1.bf16.msra.mxu0 0
      %2468 = vmatprep.subr.bf16.mxu0 0
      %2469 = vmatpush1.bf16.msra.mxu0 0
      %2470 = vmatprep.subr.bf16.mxu0 0
      %2471 = vmatpush1.bf16.msra.mxu0 0
      %2472 = vmatprep.subr.bf16.mxu0 0
      %2473 = vmatpush1.bf16.msra.mxu0 0
      %2474 = vmatprep.subr.bf16.mxu0 0
      %2475 = vmatpush1.bf16.msra.mxu0 0
      %2476 = vmatprep.subr.bf16.mxu0 0
      %2477 = vmatpush1.bf16.msra.mxu0 0
      %2478 = vmatprep.subr.bf16.mxu0 0
      %2479 = vmatpush1.bf16.msra.mxu0 0
      %2480 = vmatprep.subr.bf16.mxu0 0
      %2481 = vmatpush1.bf16.msra.mxu0 0
      %2482 = vmatprep.subr.bf16.mxu0 0
      %2483 = vmatpush1.bf16.msra.mxu0 0
      %2484 = vmatprep.subr.bf16.mxu0 0
      %2485 = vmatpush1.bf16.msra.mxu0 0
      %2486 = vmatprep.mubr.bf16.mxu0 0
      %2487 = vmatmul.mubr.bf16.gmra.mrb[0].mxu0 %v2449
      %v2488 = vpop.f32.mrb[0].mxu0
      %v2489 = vadd.f32 0.0, %v2488
      %v2490 = vpop.f32.mrb[0].mxu0
      %v2491 = vpop.f32.mrb[0].mxu0
      %v2492 = vpop.f32.mrb[0].mxu0
      %2493 = vdwg.mxu0
      %v2494 = vld [vmem:[%s31] sm:$0xff]
      %2496 = vset.pattern.permute.xlu0 0
      %2497 = vperm.xlu0 %2496, %v2494
      %v2498 = vpop.permute.xlu0 %2497
      %v2500 = vmul.f32 %v2489, %v2498
      %v2501 = vld [vmem:[%s33] sm:$0xff]
      %2503 = vset.pattern.permute.xlu0 0
      %2504 = vperm.xlu0 %2503, %v2501
      %v2505 = vpop.permute.xlu0 %2504
      %v2507 = vadd.f32 %v2500, %v2505
      %v2508 = vmax.f32 %v2507, 0.0
      %vm2509 = vcmask 125952
      %2510 = vst.msk [vmem:[#allocation2] sm:$0xf] %vm2509, 0
      %v2511 = vpack.c.bf16 %v2508, %v2508
      %2513 = vrot.lane.b32.xlu0 %v2511, 4
      %v2514 = vpop.permute.xlu0 %2513
      %vm2516 = vcmask 93216
      %2517 = vst.msk [vmem:[#allocation2] sm:$0xf] %vm2516, %v2514
      %v2518 = vld [vmem:[#allocation2] sm:$0xf]
      %vm2519 = vcmask 60416
      %2520 = vst.msk [vmem:[#allocation3] sm:$0xf] %vm2519, %v2518
      %v2521 = vld [vmem:[#allocation2] sm:$0xf]
      %v2523 = vrot.slane %v2521, 4
      %2524 = vrot.lane.b32.xlu0 %v2523, 127
      %v2525 = vpop.permute.xlu0 %2524
      %vm2527 = vcmask 64516
      %2528 = vst.msk [vmem:[#allocation3] sm:$0xf0] %vm2527, %v2525
      %v2529 = vld [vmem:[#allocation2] sm:$0xf]
      %2531 = vrot.lane.b32.xlu0 %v2529, 126
      %v2532 = vpop.permute.xlu0 %2531
      %2534 = vst.msk [vmem:[#allocation3 + $0x8] sm:$0xf] %vm2519, %v2532
      %v2535 = vld [vmem:[#allocation2] sm:$0xf]
      %v2537 = vrot.slane %v2535, 4
      %2538 = vrot.lane.b32.xlu0 %v2537, 125
      %v2539 = vpop.permute.xlu0 %2538
      %2541 = vst.msk [vmem:[#allocation3 + $0x8] sm:$0xf0] %vm2527, %v2539
      %v2542 = vld [vmem:[#allocation2] sm:$0xf]
      %2544 = vrot.lane.b32.xlu0 %v2542, 124
      %v2545 = vpop.permute.xlu0 %2544
      %2547 = vst.msk [vmem:[#allocation3 + $0x10] sm:$0xf] %vm2519, %v2545
      %v2548 = vld [vmem:[#allocation2] sm:$0xf]
      %v2550 = vrot.slane %v2548, 4
      %2551 = vrot.lane.b32.xlu0 %v2550, 123
      %v2552 = vpop.permute.xlu0 %2551
      %2554 = vst.msk [vmem:[#allocation3 + $0x10] sm:$0xf0] %vm2527, %v2552
      %v2555 = vld [vmem:[#allocation2] sm:$0xf]
      %2557 = vrot.lane.b32.xlu0 %v2555, 122
      %v2558 = vpop.permute.xlu0 %2557
      %2560 = vst.msk [vmem:[#allocation3 + $0x18] sm:$0xf] %vm2519, %v2558
      %v2561 = vld [vmem:[#allocation2] sm:$0xf]
      %v2563 = vrot.slane %v2561, 4
      %2564 = vrot.lane.b32.xlu0 %v2563, 121
      %v2565 = vpop.permute.xlu0 %2564
      %2567 = vst.msk [vmem:[#allocation3 + $0x18] sm:$0xf0] %vm2527, %v2565
      %v2568 = vld [vmem:[#allocation2] sm:$0xf]
      %2570 = vrot.lane.b32.xlu0 %v2568, 120
      %v2571 = vpop.permute.xlu0 %2570
      %2573 = vst.msk [vmem:[#allocation3 + $0x20] sm:$0xf] %vm2519, %v2571
      %v2574 = vld [vmem:[#allocation3] sm:$0xff]
      %v2575 = vld [vmem:[#allocation3 + $0x8] sm:$0xff]
      %v2576 = vld [vmem:[#allocation3 + $0x10] sm:$0xff]
      %v2577 = vld [vmem:[#allocation3 + $0x18] sm:$0xff]
      %v2578 = vld [vmem:[#allocation3 + $0x20] sm:$0xf]
      %v2579 = vld [vmem:[%s35] sm:$0xf]
      %vm2580 = vcmask 588800
      %v2582 = vsel %vm2580, %v2579, 0
      %v2585 = vsel %vm1948, %v2578, 0
      %2587 = vmatprep.subr.bf16.mxu0 0
      %2588 = vmatpush1.bf16.msra.mxu0 %v2574
      %2589 = vmatprep.subr.bf16.mxu0 0
      %2590 = vmatpush1.bf16.msra.mxu0 %v2575
      %2591 = vmatprep.subr.bf16.mxu0 0
      %2592 = vmatpush1.bf16.msra.mxu0 %v2576
      %2593 = vmatprep.subr.bf16.mxu0 0
      %2594 = vmatpush1.bf16.msra.mxu0 %v2577
      %2595 = vmatprep.subr.bf16.mxu0 0
      %2596 = vmatpush1.bf16.msra.mxu0 %v2585
      %2597 = vmatprep.subr.bf16.mxu0 0
      %2598 = vmatpush1.bf16.msra.mxu0 0
      %2599 = vmatprep.subr.bf16.mxu0 0
      %2600 = vmatpush1.bf16.msra.mxu0 0
      %2601 = vmatprep.subr.bf16.mxu0 0
      %2602 = vmatpush1.bf16.msra.mxu0 0
      %2603 = vmatprep.subr.bf16.mxu0 0
      %2604 = vmatpush1.bf16.msra.mxu0 0
      %2605 = vmatprep.subr.bf16.mxu0 0
      %2606 = vmatpush1.bf16.msra.mxu0 0
      %2607 = vmatprep.subr.bf16.mxu0 0
      %2608 = vmatpush1.bf16.msra.mxu0 0
      %2609 = vmatprep.subr.bf16.mxu0 0
      %2610 = vmatpush1.bf16.msra.mxu0 0
      %2611 = vmatprep.subr.bf16.mxu0 0
      %2612 = vmatpush1.bf16.msra.mxu0 0
      %2613 = vmatprep.subr.bf16.mxu0 0
      %2614 = vmatpush1.bf16.msra.mxu0 0
      %2615 = vmatprep.subr.bf16.mxu0 0
      %2616 = vmatpush1.bf16.msra.mxu0 0
      %2617 = vmatprep.subr.bf16.mxu0 0
      %2618 = vmatpush1.bf16.msra.mxu0 0
      %2619 = vmatprep.mubr.bf16.mxu0 0
      %2620 = vmatmul.mubr.bf16.gmra.mrb[0].mxu0 %v2582
      %v2621 = vpop.f32.mrb[0].mxu0
      %v2622 = vadd.f32 0.0, %v2621
      %v2623 = vpop.f32.mrb[0].mxu0
      %v2624 = vpop.f32.mrb[0].mxu0
      %v2625 = vpop.f32.mrb[0].mxu0
      %2626 = vdwg.mxu0
      %v2627 = vld [vmem:[%s37] sm:$0xff]
      %2629 = vset.pattern.permute.xlu0 0
      %2630 = vperm.xlu0 %2629, %v2627
      %v2631 = vpop.permute.xlu0 %2630
      %v2633 = vmul.f32 %v2622, %v2631
      %v2634 = vld [vmem:[%s39] sm:$0xff]
      %2636 = vset.pattern.permute.xlu0 0
      %2637 = vperm.xlu0 %2636, %v2634
      %v2638 = vpop.permute.xlu0 %2637
      %v2640 = vadd.f32 %v2633, %v2638
      %v2641 = vmax.f32 %v2640, 0.0
      %v2642 = vpack.c.bf16 %v2641, %v2641
      %v2643 = vld [vmem:[%s3] sm:$0xf]
      %v2644 = vld [vmem:[%s5] sm:$0xf]
      %vm2645 = vcmask 64512
      %v2647 = vsel %vm2645, %v2642, 0
      %v2650 = vsel %vm1948, %v2643, 0
      %2652 = vmatprep.subr.bf16.mxu0 0
      %2653 = vmatpush1.bf16.msra.mxu0 %v2650
      %2654 = vmatprep.subr.bf16.mxu0 0
      %2655 = vmatpush1.bf16.msra.mxu0 0
      %2656 = vmatprep.subr.bf16.mxu0 0
      %2657 = vmatpush1.bf16.msra.mxu0 0
      %2658 = vmatprep.subr.bf16.mxu0 0
      %2659 = vmatpush1.bf16.msra.mxu0 0
      %2660 = vmatprep.subr.bf16.mxu0 0
      %2661 = vmatpush1.bf16.msra.mxu0 0
      %2662 = vmatprep.subr.bf16.mxu0 0
      %2663 = vmatpush1.bf16.msra.mxu0 0
      %2664 = vmatprep.subr.bf16.mxu0 0
      %2665 = vmatpush1.bf16.msra.mxu0 0
      %2666 = vmatprep.subr.bf16.mxu0 0
      %2667 = vmatpush1.bf16.msra.mxu0 0
      %2668 = vmatprep.subr.bf16.mxu0 0
      %2669 = vmatpush1.bf16.msra.mxu0 0
      %2670 = vmatprep.subr.bf16.mxu0 0
      %2671 = vmatpush1.bf16.msra.mxu0 0
      %2672 = vmatprep.subr.bf16.mxu0 0
      %2673 = vmatpush1.bf16.msra.mxu0 0
      %2674 = vmatprep.subr.bf16.mxu0 0
      %2675 = vmatpush1.bf16.msra.mxu0 0
      %2676 = vmatprep.subr.bf16.mxu0 0
      %2677 = vmatpush1.bf16.msra.mxu0 0
      %2678 = vmatprep.subr.bf16.mxu0 0
      %2679 = vmatpush1.bf16.msra.mxu0 0
      %2680 = vmatprep.subr.bf16.mxu0 0
      %2681 = vmatpush1.bf16.msra.mxu0 0
      %2682 = vmatprep.subr.bf16.mxu0 0
      %2683 = vmatpush1.bf16.msra.mxu0 0
      %2684 = vmatprep.mubr.bf16.mxu0 0
      %2685 = vmatmul.mubr.bf16.gmra.mrb[0].mxu0 %v2647
      %v2686 = vpop.f32.mrb[0].mxu0
      %v2687 = vadd.f32 0.0, %v2686
      %v2688 = vpop.f32.mrb[0].mxu0
      %v2689 = vpop.f32.mrb[0].mxu0
      %v2690 = vpop.f32.mrb[0].mxu0
      %2691 = vdwg.mxu0
      %v2693 = vsel %vm1948, %v2644, 0
      %2695 = vmatprep.subr.bf16.mxu0 0
      %2696 = vmatpush1.bf16.msra.mxu0 %v2693
      %2697 = vmatprep.subr.bf16.mxu0 0
      %2698 = vmatpush1.bf16.msra.mxu0 0
      %2699 = vmatprep.subr.bf16.mxu0 0
      %2700 = vmatpush1.bf16.msra.mxu0 0
      %2701 = vmatprep.subr.bf16.mxu0 0
      %2702 = vmatpush1.bf16.msra.mxu0 0
      %2703 = vmatprep.subr.bf16.mxu0 0
      %2704 = vmatpush1.bf16.msra.mxu0 0
      %2705 = vmatprep.subr.bf16.mxu0 0
      %2706 = vmatpush1.bf16.msra.mxu0 0
      %2707 = vmatprep.subr.bf16.mxu0 0
      %2708 = vmatpush1.bf16.msra.mxu0 0
      %2709 = vmatprep.subr.bf16.mxu0 0
      %2710 = vmatpush1.bf16.msra.mxu0 0
      %2711 = vmatprep.subr.bf16.mxu0 0
      %2712 = vmatpush1.bf16.msra.mxu0 0
      %2713 = vmatprep.subr.bf16.mxu0 0
      %2714 = vmatpush1.bf16.msra.mxu0 0
      %2715 = vmatprep.subr.bf16.mxu0 0
      %2716 = vmatpush1.bf16.msra.mxu0 0
      %2717 = vmatprep.subr.bf16.mxu0 0
      %2718 = vmatpush1.bf16.msra.mxu0 0
      %2719 = vmatprep.subr.bf16.mxu0 0
      %2720 = vmatpush1.bf16.msra.mxu0 0
      %2721 = vmatprep.subr.bf16.mxu0 0
      %2722 = vmatpush1.bf16.msra.mxu0 0
      %2723 = vmatprep.subr.bf16.mxu0 0
      %2724 = vmatpush1.bf16.msra.mxu0 0
      %2725 = vmatprep.subr.bf16.mxu0 0
      %2726 = vmatpush1.bf16.msra.mxu0 0
      %2727 = vmatprep.mubr.bf16.mxu0 0
      %2728 = vmatmul.mubr.bf16.gmra.mrb[0].mxu0 %v2647
      %v2729 = vpop.f32.mrb[0].mxu0
      %v2730 = vadd.f32 0.0, %v2729
      %v2731 = vpop.f32.mrb[0].mxu0
      %v2732 = vpop.f32.mrb[0].mxu0
      %v2733 = vpop.f32.mrb[0].mxu0
      %2734 = vdwg.mxu0
      %v2735 = vmax.f32 %v2687, %v2730
      %vm2736 = vcmask 93184
      %2737 = vst.msk [vmem:[#allocation2] sm:$0xf] %vm2736, 0
      %v2738 = vpack.c.bf16 %v2735, %v2735
      %2740 = vrot.lane.b32.xlu0 %v2738, 4
      %v2741 = vpop.permute.xlu0 %2740
      %vm2743 = vcmask 60448
      %2744 = vst.msk [vmem:[#allocation2] sm:$0xf] %vm2743, %v2741
      %v2745 = vld [vmem:[#allocation2] sm:$0xf]
      %vm2746 = vcmask 27648
      %2747 = vst.msk [vmem:[#allocation3] sm:$0xf] %vm2746, %v2745
      %v2748 = vld [vmem:[#allocation2] sm:$0xf]
      %v2750 = vrot.slane %v2748, 4
      %2751 = vrot.lane.b32.xlu0 %v2750, 127
      %v2752 = vpop.permute.xlu0 %2751
      %vm2754 = vcmask 31748
      %2755 = vst.msk [vmem:[#allocation3] sm:$0xf0] %vm2754, %v2752
      %v2756 = vld [vmem:[#allocation2] sm:$0xf]
      %2758 = vrot.lane.b32.xlu0 %v2756, 126
      %v2759 = vpop.permute.xlu0 %2758
      %2761 = vst.msk [vmem:[#allocation3 + $0x8] sm:$0xf] %vm2746, %v2759
      %v2762 = vld [vmem:[#allocation2] sm:$0xf]
      %v2764 = vrot.slane %v2762, 4
      %2765 = vrot.lane.b32.xlu0 %v2764, 125
      %v2766 = vpop.permute.xlu0 %2765
      %2768 = vst.msk [vmem:[#allocation3 + $0x8] sm:$0xf0] %vm2754, %v2766
      %v2769 = vld [vmem:[#allocation2] sm:$0xf]
      %2771 = vrot.lane.b32.xlu0 %v2769, 124
      %v2772 = vpop.permute.xlu0 %2771
      %2774 = vst.msk [vmem:[#allocation3 + $0x10] sm:$0xf] %vm2746, %v2772
      %v2775 = vld [vmem:[#allocation2] sm:$0xf]
      %v2777 = vrot.slane %v2775, 4
      %2778 = vrot.lane.b32.xlu0 %v2777, 123
      %v2779 = vpop.permute.xlu0 %2778
      %2781 = vst.msk [vmem:[#allocation3 + $0x10] sm:$0xf0] %vm2754, %v2779
      %v2782 = vld [vmem:[#allocation2] sm:$0xf]
      %2784 = vrot.lane.b32.xlu0 %v2782, 122
      %v2785 = vpop.permute.xlu0 %2784
      %2787 = vst.msk [vmem:[#allocation3 + $0x18] sm:$0xf] %vm2746, %v2785
      %v2788 = vld [vmem:[#allocation2] sm:$0xf]
      %v2790 = vrot.slane %v2788, 4
      %2791 = vrot.lane.b32.xlu0 %v2790, 121
      %v2792 = vpop.permute.xlu0 %2791
      %2794 = vst.msk [vmem:[#allocation3 + $0x18] sm:$0xf0] %vm2754, %v2792
      %v2795 = vld [vmem:[#allocation2] sm:$0xf]
      %2797 = vrot.lane.b32.xlu0 %v2795, 120
      %v2798 = vpop.permute.xlu0 %2797
      %2800 = vst.msk [vmem:[#allocation3 + $0x20] sm:$0xf] %vm2746, %v2798
      %v2801 = vld [vmem:[#allocation3] sm:$0xff]
      %v2802 = vld [vmem:[#allocation3 + $0x8] sm:$0xff]
      %v2803 = vld [vmem:[#allocation3 + $0x10] sm:$0xff]
      %v2804 = vld [vmem:[#allocation3 + $0x18] sm:$0xff]
      %v2805 = vld [vmem:[#allocation3 + $0x20] sm:$0xf]
      %v2806 = vld [vmem:[%s41] sm:$0xf]
      %v2807 = vld [vmem:[%s41 + $0x4] sm:$0xf]
      %v2810 = vunpack.c.l.b16 %v2806
      %v2811 = vunpack.c.l.b16 %v2807
      %v2812 = vpack.c.b16 %v2811, %v2810
      %v2814 = vsel %vm2580, %v2812, 0
      %v2817 = vsel %vm1948, %v2805, 0
      %2819 = vmatprep.subr.bf16.mxu0 0
      %2820 = vmatpush1.bf16.msra.mxu0 %v2801
      %2821 = vmatprep.subr.bf16.mxu0 0
      %2822 = vmatpush1.bf16.msra.mxu0 %v2802
      %2823 = vmatprep.subr.bf16.mxu0 0
      %2824 = vmatpush1.bf16.msra.mxu0 %v2803
      %2825 = vmatprep.subr.bf16.mxu0 0
      %2826 = vmatpush1.bf16.msra.mxu0 %v2804
      %2827 = vmatprep.subr.bf16.mxu0 0
      %2828 = vmatpush1.bf16.msra.mxu0 %v2817
      %2829 = vmatprep.subr.bf16.mxu0 0
      %2830 = vmatpush1.bf16.msra.mxu0 0
      %2831 = vmatprep.subr.bf16.mxu0 0
      %2832 = vmatpush1.bf16.msra.mxu0 0
      %2833 = vmatprep.subr.bf16.mxu0 0
      %2834 = vmatpush1.bf16.msra.mxu0 0
      %2835 = vmatprep.subr.bf16.mxu0 0
      %2836 = vmatpush1.bf16.msra.mxu0 0
      %2837 = vmatprep.subr.bf16.mxu0 0
      %2838 = vmatpush1.bf16.msra.mxu0 0
      %2839 = vmatprep.subr.bf16.mxu0 0
      %2840 = vmatpush1.bf16.msra.mxu0 0
      %2841 = vmatprep.subr.bf16.mxu0 0
      %2842 = vmatpush1.bf16.msra.mxu0 0
      %2843 = vmatprep.subr.bf16.mxu0 0
      %2844 = vmatpush1.bf16.msra.mxu0 0
      %2845 = vmatprep.subr.bf16.mxu0 0
      %2846 = vmatpush1.bf16.msra.mxu0 0
      %2847 = vmatprep.subr.bf16.mxu0 0
      %2848 = vmatpush1.bf16.msra.mxu0 0
      %2849 = vmatprep.subr.bf16.mxu0 0
      %2850 = vmatpush1.bf16.msra.mxu0 0
      %2851 = vmatprep.mubr.bf16.mxu0 0
      %2852 = vmatmul.mubr.bf16.gmra.mrb[0].mxu0 %v2814
      %v2853 = vpop.f32.mrb[0].mxu0
      %v2854 = vadd.f32 0.0, %v2853
      %v2855 = vpop.f32.mrb[0].mxu0
      %v2856 = vpop.f32.mrb[0].mxu0
      %v2857 = vadd.f32 0.0, %v2856
      %v2858 = vpop.f32.mrb[0].mxu0
      %2859 = vdwg.mxu0
      %v2860 = vld [vmem:[%s43] sm:$0xff]
      %v2861 = vld [vmem:[%s43 + $0x8] sm:$0xff]
      %2863 = vset.pattern.permute.xlu0 0
      %2864 = vperm.xlu0 %2863, %v2860
      %v2865 = vpop.permute.xlu0 %2864
      %2868 = vset.pattern.permute.xlu0 0
      %2869 = vperm.xlu0 %2868, %v2861
      %v2870 = vpop.permute.xlu0 %2869
      %v2872 = vmul.f32 %v2854, %v2865
      %v2873 = vmul.f32 %v2857, %v2870
      %v2874 = vld [vmem:[%s45] sm:$0xff]
      %v2875 = vld [vmem:[%s45 + $0x8] sm:$0xff]
      %2877 = vset.pattern.permute.xlu0 0
      %2878 = vperm.xlu0 %2877, %v2874
      %v2879 = vpop.permute.xlu0 %2878
      %2882 = vset.pattern.permute.xlu0 0
      %2883 = vperm.xlu0 %2882, %v2875
      %v2884 = vpop.permute.xlu0 %2883
      %v2886 = vadd.f32 %v2872, %v2879
      %v2887 = vadd.f32 %v2873, %v2884
      %v2888 = vmax.f32 %v2886, 0.0
      %v2889 = vmax.f32 %v2887, 0.0
      %vm2890 = vcmask 97280
      %2891 = vst.msk [vmem:[#allocation2] sm:$0xff] %vm2890, 0
      %v2892 = vpack.c.bf16 %v2889, %v2888
      %2894 = vrot.lane.b32.xlu0 %v2892, 4
      %v2895 = vpop.permute.xlu0 %2894
      %vm2897 = vcmask 64544
      %2898 = vst.msk [vmem:[#allocation2] sm:$0xff] %vm2897, %v2895
      %v2899 = vld [vmem:[#allocation2] sm:$0xff]
      %vm2900 = vcmask 31744
      %2901 = vst.msk [vmem:[#allocation3] sm:$0xff] %vm2900, %v2899
      %v2902 = vld [vmem:[#allocation2] sm:$0xff]
      %2904 = vrot.lane.b32.xlu0 %v2902, 127
      %v2905 = vpop.permute.xlu0 %2904
      %2907 = vst.msk [vmem:[#allocation3 + $0x8] sm:$0xff] %vm2900, %v2905
      %v2908 = vld [vmem:[#allocation2] sm:$0xff]
      %2910 = vrot.lane.b32.xlu0 %v2908, 126
      %v2911 = vpop.permute.xlu0 %2910
      %2913 = vst.msk [vmem:[#allocation3 + $0x10] sm:$0xff] %vm2900, %v2911
      %v2914 = vld [vmem:[#allocation2] sm:$0xff]
      %2916 = vrot.lane.b32.xlu0 %v2914, 125
      %v2917 = vpop.permute.xlu0 %2916
      %2919 = vst.msk [vmem:[#allocation3 + $0x18] sm:$0xff] %vm2900, %v2917
      %v2920 = vld [vmem:[#allocation2] sm:$0xff]
      %2922 = vrot.lane.b32.xlu0 %v2920, 124
      %v2923 = vpop.permute.xlu0 %2922
      %2925 = vst.msk [vmem:[#allocation3 + $0x20] sm:$0xff] %vm2900, %v2923
      %v2926 = vld [vmem:[#allocation2] sm:$0xff]
      %2928 = vrot.lane.b32.xlu0 %v2926, 123
      %v2929 = vpop.permute.xlu0 %2928
      %2931 = vst.msk [vmem:[#allocation3 + $0x28] sm:$0xff] %vm2900, %v2929
      %v2932 = vld [vmem:[#allocation2] sm:$0xff]
      %2934 = vrot.lane.b32.xlu0 %v2932, 122
      %v2935 = vpop.permute.xlu0 %2934
      %2937 = vst.msk [vmem:[#allocation3 + $0x30] sm:$0xff] %vm2900, %v2935
      %v2938 = vld [vmem:[#allocation2] sm:$0xff]
      %2940 = vrot.lane.b32.xlu0 %v2938, 121
      %v2941 = vpop.permute.xlu0 %2940
      %2943 = vst.msk [vmem:[#allocation3 + $0x38] sm:$0xff] %vm2900, %v2941
      %v2944 = vld [vmem:[#allocation2] sm:$0xff]
      %2946 = vrot.lane.b32.xlu0 %v2944, 120
      %v2947 = vpop.permute.xlu0 %2946
      %2949 = vst.msk [vmem:[#allocation3 + $0x40] sm:$0xff] %vm2900, %v2947
      %v2950 = vld [vmem:[#allocation3] sm:$0xff]
      %v2951 = vld [vmem:[#allocation3 + $0x8] sm:$0xff]
      %v2952 = vld [vmem:[#allocation3 + $0x10] sm:$0xff]
      %v2953 = vld [vmem:[#allocation3 + $0x18] sm:$0xff]
      %v2954 = vld [vmem:[#allocation3 + $0x20] sm:$0xff]
      %v2955 = vld [vmem:[#allocation3 + $0x28] sm:$0xff]
      %v2956 = vld [vmem:[#allocation3 + $0x30] sm:$0xff]
      %v2957 = vld [vmem:[#allocation3 + $0x38] sm:$0xff]
      %v2958 = vld [vmem:[#allocation3 + $0x40] sm:$0xff]
      %v2959 = vld [vmem:[%s47] sm:$0xff]
      %v2960 = vld [vmem:[%s47 + $0x8] sm:$0xff]
      %v2963 = vunpack.c.l.b16 %v2959
      %v2964 = vunpack.c.h.b16 %v2959
      %v2965 = vunpack.c.l.b16 %v2960
      %v2966 = vunpack.c.h.b16 %v2960
      %v2967 = vpack.c.b16 %v2965, %v2963
      %v2968 = vpack.c.b16 %v2966, %v2964
      %v2971 = vsel %vm2285, %v2968, 0
      %2973 = vmatprep.subr.bf16.mxu0 0
      %2974 = vmatpush1.bf16.msra.mxu0 %v2950
      %2975 = vmatprep.subr.bf16.mxu0 0
      %2976 = vmatpush1.bf16.msra.mxu0 %v2951
      %2977 = vmatprep.subr.bf16.mxu0 0
      %2978 = vmatpush1.bf16.msra.mxu0 %v2952
      %2979 = vmatprep.subr.bf16.mxu0 0
      %2980 = vmatpush1.bf16.msra.mxu0 %v2953
      %2981 = vmatprep.subr.bf16.mxu0 0
      %2982 = vmatpush1.bf16.msra.mxu0 %v2954
      %2983 = vmatprep.subr.bf16.mxu0 0
      %2984 = vmatpush1.bf16.msra.mxu0 %v2955
      %2985 = vmatprep.subr.bf16.mxu0 0
      %2986 = vmatpush1.bf16.msra.mxu0 %v2956
      %2987 = vmatprep.subr.bf16.mxu0 0
      %2988 = vmatpush1.bf16.msra.mxu0 %v2957
      %2989 = vmatprep.subr.bf16.mxu0 0
      %2990 = vmatpush1.bf16.msra.mxu0 %v2958
      %2991 = vmatprep.subr.bf16.mxu0 0
      %2992 = vmatpush1.bf16.msra.mxu0 0
      %2993 = vmatprep.subr.bf16.mxu0 0
      %2994 = vmatpush1.bf16.msra.mxu0 0
      %2995 = vmatprep.subr.bf16.mxu0 0
      %2996 = vmatpush1.bf16.msra.mxu0 0
      %2997 = vmatprep.subr.bf16.mxu0 0
      %2998 = vmatpush1.bf16.msra.mxu0 0
      %2999 = vmatprep.subr.bf16.mxu0 0
      %3000 = vmatpush1.bf16.msra.mxu0 0
      %3001 = vmatprep.subr.bf16.mxu0 0
      %3002 = vmatpush1.bf16.msra.mxu0 0
      %3003 = vmatprep.subr.bf16.mxu0 0
      %3004 = vmatpush1.bf16.msra.mxu0 0
      %3005 = vmatprep.mubr.bf16.mxu0 %v2971
      %3006 = vmatmul.mubr.bf16.gmra.mrb[0].mxu0 %v2967
      %v3007 = vpop.f32.mrb[0].mxu0
      %v3008 = vadd.f32 0.0, %v3007
      %v3009 = vpop.f32.mrb[0].mxu0
      %v3010 = vpop.f32.mrb[0].mxu0
      %v3011 = vadd.f32 0.0, %v3010
      %v3012 = vpop.f32.mrb[0].mxu0
      %3013 = vdwg.mxu0
      %v3014 = vld [vmem:[%s49] sm:$0xff]
      %v3015 = vld [vmem:[%s49 + $0x8] sm:$0xff]
      %3017 = vset.pattern.permute.xlu0 0
      %3018 = vperm.xlu0 %3017, %v3014
      %v3019 = vpop.permute.xlu0 %3018
      %3022 = vset.pattern.permute.xlu0 0
      %3023 = vperm.xlu0 %3022, %v3015
      %v3024 = vpop.permute.xlu0 %3023
      %v3026 = vmul.f32 %v3008, %v3019
      %v3027 = vmul.f32 %v3011, %v3024
      %v3028 = vld [vmem:[%s51] sm:$0xff]
      %v3029 = vld [vmem:[%s51 + $0x8] sm:$0xff]
      %3031 = vset.pattern.permute.xlu0 0
      %3032 = vperm.xlu0 %3031, %v3028
      %v3033 = vpop.permute.xlu0 %3032
      %3036 = vset.pattern.permute.xlu0 0
      %3037 = vperm.xlu0 %3036, %v3029
      %v3038 = vpop.permute.xlu0 %3037
      %v3040 = vadd.f32 %v3026, %v3033
      %v3041 = vadd.f32 %v3027, %v3038
      %v3042 = vmax.f32 %v3040, 0.0
      %v3043 = vmax.f32 %v3041, 0.0
      %v3044 = vpack.c.bf16 %v3043, %v3042
      %v3045 = vld [vmem:[%s3] sm:$0x3]
      %v3046 = vld [vmem:[%s5] sm:$0x3]
      %v3048 = vsel %vm2900, %v3044, 0
      %v3051 = vsel %vm2087, %v3045, 0
      %3053 = vmatprep.subr.bf16.mxu0 0
      %3054 = vmatpush1.bf16.msra.mxu0 %v3051
      %3055 = vmatprep.subr.bf16.mxu0 0
      %3056 = vmatpush1.bf16.msra.mxu0 0
      %3057 = vmatprep.subr.bf16.mxu0 0
      %3058 = vmatpush1.bf16.msra.mxu0 0
      %3059 = vmatprep.subr.bf16.mxu0 0
      %3060 = vmatpush1.bf16.msra.mxu0 0
      %3061 = vmatprep.subr.bf16.mxu0 0
      %3062 = vmatpush1.bf16.msra.mxu0 0
      %3063 = vmatprep.subr.bf16.mxu0 0
      %3064 = vmatpush1.bf16.msra.mxu0 0
      %3065 = vmatprep.subr.bf16.mxu0 0
      %3066 = vmatpush1.bf16.msra.mxu0 0
      %3067 = vmatprep.subr.bf16.mxu0 0
      %3068 = vmatpush1.bf16.msra.mxu0 0
      %3069 = vmatprep.subr.bf16.mxu0 0
      %3070 = vmatpush1.bf16.msra.mxu0 0
      %3071 = vmatprep.subr.bf16.mxu0 0
      %3072 = vmatpush1.bf16.msra.mxu0 0
      %3073 = vmatprep.subr.bf16.mxu0 0
      %3074 = vmatpush1.bf16.msra.mxu0 0
      %3075 = vmatprep.subr.bf16.mxu0 0
      %3076 = vmatpush1.bf16.msra.mxu0 0
      %3077 = vmatprep.subr.bf16.mxu0 0
      %3078 = vmatpush1.bf16.msra.mxu0 0
      %3079 = vmatprep.subr.bf16.mxu0 0
      %3080 = vmatpush1.bf16.msra.mxu0 0
      %3081 = vmatprep.subr.bf16.mxu0 0
      %3082 = vmatpush1.bf16.msra.mxu0 0
      %3083 = vmatprep.subr.bf16.mxu0 0
      %3084 = vmatpush1.bf16.msra.mxu0 0
      %3085 = vmatprep.mubr.bf16.mxu0 0
      %3086 = vmatmul.mubr.bf16.gmra.mrb[0].mxu0 %v3048
      %v3087 = vpop.f32.mrb[0].mxu0
      %v3088 = vadd.f32 0.0, %v3087
      %v3089 = vpop.f32.mrb[0].mxu0
      %v3090 = vpop.f32.mrb[0].mxu0
      %v3091 = vadd.f32 0.0, %v3090
      %v3092 = vpop.f32.mrb[0].mxu0
      %3093 = vdwg.mxu0
      %v3095 = vsel %vm2087, %v3046, 0
      %3097 = vmatprep.subr.bf16.mxu0 0
      %3098 = vmatpush1.bf16.msra.mxu0 %v3095
      %3099 = vmatprep.subr.bf16.mxu0 0
      %3100 = vmatpush1.bf16.msra.mxu0 0
      %3101 = vmatprep.subr.bf16.mxu0 0
      %3102 = vmatpush1.bf16.msra.mxu0 0
      %3103 = vmatprep.subr.bf16.mxu0 0
      %3104 = vmatpush1.bf16.msra.mxu0 0
      %3105 = vmatprep.subr.bf16.mxu0 0
      %3106 = vmatpush1.bf16.msra.mxu0 0
      %3107 = vmatprep.subr.bf16.mxu0 0
      %3108 = vmatpush1.bf16.msra.mxu0 0
      %3109 = vmatprep.subr.bf16.mxu0 0
      %3110 = vmatpush1.bf16.msra.mxu0 0
      %3111 = vmatprep.subr.bf16.mxu0 0
      %3112 = vmatpush1.bf16.msra.mxu0 0
      %3113 = vmatprep.subr.bf16.mxu0 0
      %3114 = vmatpush1.bf16.msra.mxu0 0
      %3115 = vmatprep.subr.bf16.mxu0 0
      %3116 = vmatpush1.bf16.msra.mxu0 0
      %3117 = vmatprep.subr.bf16.mxu0 0
      %3118 = vmatpush1.bf16.msra.mxu0 0
      %3119 = vmatprep.subr.bf16.mxu0 0
      %3120 = vmatpush1.bf16.msra.mxu0 0
      %3121 = vmatprep.subr.bf16.mxu0 0
      %3122 = vmatpush1.bf16.msra.mxu0 0
      %3123 = vmatprep.subr.bf16.mxu0 0
      %3124 = vmatpush1.bf16.msra.mxu0 0
      %3125 = vmatprep.subr.bf16.mxu0 0
      %3126 = vmatpush1.bf16.msra.mxu0 0
      %3127 = vmatprep.subr.bf16.mxu0 0
      %3128 = vmatpush1.bf16.msra.mxu0 0
      %3129 = vmatprep.mubr.bf16.mxu0 0
      %3130 = vmatmul.mubr.bf16.gmra.mrb[0].mxu0 %v3048
      %v3131 = vpop.f32.mrb[0].mxu0
      %v3132 = vadd.f32 0.0, %v3131
      %v3133 = vpop.f32.mrb[0].mxu0
      %v3134 = vpop.f32.mrb[0].mxu0
      %v3135 = vadd.f32 0.0, %v3134
      %v3136 = vpop.f32.mrb[0].mxu0
      %3137 = vdwg.mxu0
      %v3138 = vmax.f32 %v3088, %v3132
      %v3139 = vmax.f32 %v3091, %v3135
      %vm3140 = vcmask 80896
      %3141 = vst.msk [vmem:[#allocation2] sm:$0xff] %vm3140, 0
      %v3142 = vpack.c.bf16 %v3139, %v3138
      %3144 = vrot.lane.b32.xlu0 %v3142, 4
      %v3145 = vpop.permute.xlu0 %3144
      %vm3147 = vcmask 48160
      %3148 = vst.msk [vmem:[#allocation2] sm:$0xff] %vm3147, %v3145
      %v3149 = vld [vmem:[#allocation2] sm:$0xff]
      %vm3150 = vcmask 15360
      %3151 = vst.msk [vmem:[#allocation3] sm:$0xff] %vm3150, %v3149
      %v3152 = vld [vmem:[#allocation2] sm:$0xff]
      %3154 = vrot.lane.b32.xlu0 %v3152, 127
      %v3155 = vpop.permute.xlu0 %3154
      %3157 = vst.msk [vmem:[#allocation3 + $0x8] sm:$0xff] %vm3150, %v3155
      %v3158 = vld [vmem:[#allocation2] sm:$0xff]
      %3160 = vrot.lane.b32.xlu0 %v3158, 126
      %v3161 = vpop.permute.xlu0 %3160
      %3163 = vst.msk [vmem:[#allocation3 + $0x10] sm:$0xff] %vm3150, %v3161
      %v3164 = vld [vmem:[#allocation2] sm:$0xff]
      %3166 = vrot.lane.b32.xlu0 %v3164, 125
      %v3167 = vpop.permute.xlu0 %3166
      %3169 = vst.msk [vmem:[#allocation3 + $0x18] sm:$0xff] %vm3150, %v3167
      %v3170 = vld [vmem:[#allocation2] sm:$0xff]
      %3172 = vrot.lane.b32.xlu0 %v3170, 124
      %v3173 = vpop.permute.xlu0 %3172
      %3175 = vst.msk [vmem:[#allocation3 + $0x20] sm:$0xff] %vm3150, %v3173
      %v3176 = vld [vmem:[#allocation2] sm:$0xff]
      %3178 = vrot.lane.b32.xlu0 %v3176, 123
      %v3179 = vpop.permute.xlu0 %3178
      %3181 = vst.msk [vmem:[#allocation3 + $0x28] sm:$0xff] %vm3150, %v3179
      %v3182 = vld [vmem:[#allocation2] sm:$0xff]
      %3184 = vrot.lane.b32.xlu0 %v3182, 122
      %v3185 = vpop.permute.xlu0 %3184
      %3187 = vst.msk [vmem:[#allocation3 + $0x30] sm:$0xff] %vm3150, %v3185
      %v3188 = vld [vmem:[#allocation2] sm:$0xff]
      %3190 = vrot.lane.b32.xlu0 %v3188, 121
      %v3191 = vpop.permute.xlu0 %3190
      %3193 = vst.msk [vmem:[#allocation3 + $0x38] sm:$0xff] %vm3150, %v3191
      %v3194 = vld [vmem:[#allocation2] sm:$0xff]
      %3196 = vrot.lane.b32.xlu0 %v3194, 120
      %v3197 = vpop.permute.xlu0 %3196
      %3199 = vst.msk [vmem:[#allocation3 + $0x40] sm:$0xff] %vm3150, %v3197
      %v3200 = vld [vmem:[#allocation3] sm:$0xff]
      %v3201 = vld [vmem:[#allocation3 + $0x8] sm:$0xff]
      %v3202 = vld [vmem:[#allocation3 + $0x10] sm:$0xff]
      %v3203 = vld [vmem:[#allocation3 + $0x18] sm:$0xff]
      %v3204 = vld [vmem:[#allocation3 + $0x20] sm:$0xff]
      %v3205 = vld [vmem:[#allocation3 + $0x28] sm:$0xff]
      %v3206 = vld [vmem:[#allocation3 + $0x30] sm:$0xff]
      %v3207 = vld [vmem:[#allocation3 + $0x38] sm:$0xff]
      %v3208 = vld [vmem:[#allocation3 + $0x40] sm:$0xff]
      %v3209 = vld [vmem:[%s53] sm:$0xff]
      %v3210 = vld [vmem:[%s53 + $0x8] sm:$0xff]
      %v3211 = vld [vmem:[%s53 + $0x10] sm:$0xff]
      %v3212 = vld [vmem:[%s53 + $0x18] sm:$0xff]
      %v3217 = vunpack.c.l.b16 %v3209
      %v3218 = vunpack.c.h.b16 %v3209
      %v3219 = vunpack.c.l.b16 %v3210
      %v3220 = vunpack.c.h.b16 %v3210
      %v3221 = vunpack.c.l.b16 %v3211
      %v3222 = vunpack.c.h.b16 %v3211
      %v3223 = vunpack.c.l.b16 %v3212
      %v3224 = vunpack.c.h.b16 %v3212
      %v3225 = vpack.c.b16 %v3219, %v3217
      %v3226 = vpack.c.b16 %v3220, %v3218
      %v3227 = vpack.c.b16 %v3223, %v3221
      %v3228 = vpack.c.b16 %v3224, %v3222
      %v3232 = vsel %vm2285, %v3226, 0
      %v3235 = vsel %vm2285, %v3228, 0
      %3237 = vmatprep.subr.bf16.mxu0 0
      %3238 = vmatpush1.bf16.msra.mxu0 %v3200
      %3239 = vmatprep.subr.bf16.mxu0 0
      %3240 = vmatpush1.bf16.msra.mxu0 %v3201
      %3241 = vmatprep.subr.bf16.mxu0 0
      %3242 = vmatpush1.bf16.msra.mxu0 %v3202
      %3243 = vmatprep.subr.bf16.mxu0 0
      %3244 = vmatpush1.bf16.msra.mxu0 %v3203
      %3245 = vmatprep.subr.bf16.mxu0 0
      %3246 = vmatpush1.bf16.msra.mxu0 %v3204
      %3247 = vmatprep.subr.bf16.mxu0 0
      %3248 = vmatpush1.bf16.msra.mxu0 %v3205
      %3249 = vmatprep.subr.bf16.mxu0 0
      %3250 = vmatpush1.bf16.msra.mxu0 %v3206
      %3251 = vmatprep.subr.bf16.mxu0 0
      %3252 = vmatpush1.bf16.msra.mxu0 %v3207
      %3253 = vmatprep.subr.bf16.mxu0 0
      %3254 = vmatpush1.bf16.msra.mxu0 %v3208
      %3255 = vmatprep.subr.bf16.mxu0 0
      %3256 = vmatpush1.bf16.msra.mxu0 0
      %3257 = vmatprep.subr.bf16.mxu0 0
      %3258 = vmatpush1.bf16.msra.mxu0 0
      %3259 = vmatprep.subr.bf16.mxu0 0
      %3260 = vmatpush1.bf16.msra.mxu0 0
      %3261 = vmatprep.subr.bf16.mxu0 0
      %3262 = vmatpush1.bf16.msra.mxu0 0
      %3263 = vmatprep.subr.bf16.mxu0 0
      %3264 = vmatpush1.bf16.msra.mxu0 0
      %3265 = vmatprep.subr.bf16.mxu0 0
      %3266 = vmatpush1.bf16.msra.mxu0 0
      %3267 = vmatprep.subr.bf16.mxu0 0
      %3268 = vmatpush1.bf16.msra.mxu0 0
      %3269 = vmatprep.mubr.bf16.mxu0 %v3232
      %3270 = vmatmul.mubr.bf16.gmra.mrb[0].mxu0 %v3225
      %v3271 = vpop.f32.mrb[0].mxu0
      %v3272 = vadd.f32 0.0, %v3271
      %v3273 = vpop.f32.mrb[0].mxu0
      %v3274 = vpop.f32.mrb[0].mxu0
      %v3275 = vadd.f32 0.0, %v3274
      %v3276 = vpop.f32.mrb[0].mxu0
      %3277 = vmatprep.mubr.bf16.mxu0 %v3235
      %3278 = vmatmul.mubr.bf16.gmra.mrb[0].mxu0 %v3227
      %v3279 = vpop.f32.mrb[0].mxu0
      %v3280 = vadd.f32 0.0, %v3279
      %v3281 = vpop.f32.mrb[0].mxu0
      %v3282 = vpop.f32.mrb[0].mxu0
      %v3283 = vadd.f32 0.0, %v3282
      %v3284 = vpop.f32.mrb[0].mxu0
      %3285 = vdwg.mxu0
      %v3286 = vld [vmem:[%s55] sm:$0xff]
      %v3287 = vld [vmem:[%s55 + $0x8] sm:$0xff]
      %v3288 = vld [vmem:[%s55 + $0x10] sm:$0xff]
      %v3289 = vld [vmem:[%s55 + $0x18] sm:$0xff]
      %3291 = vset.pattern.permute.xlu0 0
      %3292 = vperm.xlu0 %3291, %v3286
      %v3293 = vpop.permute.xlu0 %3292
      %3296 = vset.pattern.permute.xlu0 0
      %3297 = vperm.xlu0 %3296, %v3287
      %v3298 = vpop.permute.xlu0 %3297
      %3301 = vset.pattern.permute.xlu0 0
      %3302 = vperm.xlu0 %3301, %v3288
      %v3303 = vpop.permute.xlu0 %3302
      %3306 = vset.pattern.permute.xlu0 0
      %3307 = vperm.xlu0 %3306, %v3289
      %v3308 = vpop.permute.xlu0 %3307
      %v3310 = vmul.f32 %v3272, %v3293
      %v3311 = vmul.f32 %v3275, %v3298
      %v3312 = vmul.f32 %v3280, %v3303
      %v3313 = vmul.f32 %v3283, %v3308
      %v3314 = vld [vmem:[%s57] sm:$0xff]
      %v3315 = vld [vmem:[%s57 + $0x8] sm:$0xff]
      %v3316 = vld [vmem:[%s57 + $0x10] sm:$0xff]
      %v3317 = vld [vmem:[%s57 + $0x18] sm:$0xff]
      %3319 = vset.pattern.permute.xlu0 0
      %3320 = vperm.xlu0 %3319, %v3314
      %v3321 = vpop.permute.xlu0 %3320
      %3324 = vset.pattern.permute.xlu0 0
      %3325 = vperm.xlu0 %3324, %v3315
      %v3326 = vpop.permute.xlu0 %3325
      %3329 = vset.pattern.permute.xlu0 0
      %3330 = vperm.xlu0 %3329, %v3316
      %v3331 = vpop.permute.xlu0 %3330
      %3334 = vset.pattern.permute.xlu0 0
      %3335 = vperm.xlu0 %3334, %v3317
      %v3336 = vpop.permute.xlu0 %3335
      %v3338 = vadd.f32 %v3310, %v3321
      %v3339 = vadd.f32 %v3311, %v3326
      %v3340 = vadd.f32 %v3312, %v3331
      %v3341 = vadd.f32 %v3313, %v3336
      %v3342 = vmax.f32 %v3338, 0.0
      %v3343 = vmax.f32 %v3339, 0.0
      %v3344 = vmax.f32 %v3340, 0.0
      %v3345 = vmax.f32 %v3341, 0.0
      %3346 = vst.msk [vmem:[#allocation2] sm:$0xff] %vm3140, 0
      %3347 = vst.msk [vmem:[#allocation2 + $0x8] sm:$0xff] %vm3140, 0
      %v3348 = vpack.c.bf16 %v3343, %v3342
      %v3349 = vpack.c.bf16 %v3345, %v3344
      %3352 = vrot.lane.b32.xlu0 %v3348, 4
      %v3353 = vpop.permute.xlu0 %3352
      %3354 = vrot.lane.b32.xlu0 %v3349, 4
      %v3355 = vpop.permute.xlu0 %3354
      %3358 = vst.msk [vmem:[#allocation2] sm:$0xff] %vm3147, %v3353
      %3359 = vst.msk [vmem:[#allocation2 + $0x8] sm:$0xff] %vm3147, %v3355
      %v3360 = vld [vmem:[#allocation2] sm:$0xff]
      %v3361 = vld [vmem:[#allocation2 + $0x8] sm:$0xff]
      %3362 = vst.msk [vmem:[#allocation3] sm:$0xff] %vm3150, %v3360
      %3363 = vst.msk [vmem:[#allocation3 + $0x8] sm:$0xff] %vm3150, %v3361
      %v3364 = vld [vmem:[#allocation2] sm:$0xff]
      %v3365 = vld [vmem:[#allocation2 + $0x8] sm:$0xff]
      %3368 = vrot.lane.b32.xlu0 %v3364, 127
      %v3369 = vpop.permute.xlu0 %3368
      %3370 = vrot.lane.b32.xlu0 %v3365, 127
      %v3371 = vpop.permute.xlu0 %3370
      %3374 = vst.msk [vmem:[#allocation3 + $0x10] sm:$0xff] %vm3150, %v3369
      %3375 = vst.msk [vmem:[#allocation3 + $0x18] sm:$0xff] %vm3150, %v3371
      %v3376 = vld [vmem:[#allocation2] sm:$0xff]
      %v3377 = vld [vmem:[#allocation2 + $0x8] sm:$0xff]
      %3380 = vrot.lane.b32.xlu0 %v3376, 126
      %v3381 = vpop.permute.xlu0 %3380
      %3382 = vrot.lane.b32.xlu0 %v3377, 126
      %v3383 = vpop.permute.xlu0 %3382
      %3386 = vst.msk [vmem:[#allocation3 + $0x20] sm:$0xff] %vm3150, %v3381
      %3387 = vst.msk [vmem:[#allocation3 + $0x28] sm:$0xff] %vm3150, %v3383
      %v3388 = vld [vmem:[#allocation2] sm:$0xff]
      %v3389 = vld [vmem:[#allocation2 + $0x8] sm:$0xff]
      %3392 = vrot.lane.b32.xlu0 %v3388, 125
      %v3393 = vpop.permute.xlu0 %3392
      %3394 = vrot.lane.b32.xlu0 %v3389, 125
      %v3395 = vpop.permute.xlu0 %3394
      %3398 = vst.msk [vmem:[#allocation3 + $0x30] sm:$0xff] %vm3150, %v3393
      %3399 = vst.msk [vmem:[#allocation3 + $0x38] sm:$0xff] %vm3150, %v3395
      %v3400 = vld [vmem:[#allocation2] sm:$0xff]
      %v3401 = vld [vmem:[#allocation2 + $0x8] sm:$0xff]
      %3404 = vrot.lane.b32.xlu0 %v3400, 124
      %v3405 = vpop.permute.xlu0 %3404
      %3406 = vrot.lane.b32.xlu0 %v3401, 124
      %v3407 = vpop.permute.xlu0 %3406
      %3410 = vst.msk [vmem:[#allocation3 + $0x40] sm:$0xff] %vm3150, %v3405
      %3411 = vst.msk [vmem:[#allocation3 + $0x48] sm:$0xff] %vm3150, %v3407
      %v3412 = vld [vmem:[#allocation2] sm:$0xff]
      %v3413 = vld [vmem:[#allocation2 + $0x8] sm:$0xff]
      %3416 = vrot.lane.b32.xlu0 %v3412, 123
      %v3417 = vpop.permute.xlu0 %3416
      %3418 = vrot.lane.b32.xlu0 %v3413, 123
      %v3419 = vpop.permute.xlu0 %3418
      %3422 = vst.msk [vmem:[#allocation3 + $0x50] sm:$0xff] %vm3150, %v3417
      %3423 = vst.msk [vmem:[#allocation3 + $0x58] sm:$0xff] %vm3150, %v3419
      %v3424 = vld [vmem:[#allocation2] sm:$0xff]
      %v3425 = vld [vmem:[#allocation2 + $0x8] sm:$0xff]
      %3428 = vrot.lane.b32.xlu0 %v3424, 122
      %v3429 = vpop.permute.xlu0 %3428
      %3430 = vrot.lane.b32.xlu0 %v3425, 122
      %v3431 = vpop.permute.xlu0 %3430
      %3434 = vst.msk [vmem:[#allocation3 + $0x60] sm:$0xff] %vm3150, %v3429
      %3435 = vst.msk [vmem:[#allocation3 + $0x68] sm:$0xff] %vm3150, %v3431
      %v3436 = vld [vmem:[#allocation2] sm:$0xff]
      %v3437 = vld [vmem:[#allocation2 + $0x8] sm:$0xff]
      %3440 = vrot.lane.b32.xlu0 %v3436, 121
      %v3441 = vpop.permute.xlu0 %3440
      %3442 = vrot.lane.b32.xlu0 %v3437, 121
      %v3443 = vpop.permute.xlu0 %3442
      %3446 = vst.msk [vmem:[#allocation3 + $0x70] sm:$0xff] %vm3150, %v3441
      %3447 = vst.msk [vmem:[#allocation3 + $0x78] sm:$0xff] %vm3150, %v3443
      %v3448 = vld [vmem:[#allocation2] sm:$0xff]
      %v3449 = vld [vmem:[#allocation2 + $0x8] sm:$0xff]
      %3452 = vrot.lane.b32.xlu0 %v3448, 120
      %v3453 = vpop.permute.xlu0 %3452
      %3454 = vrot.lane.b32.xlu0 %v3449, 120
      %v3455 = vpop.permute.xlu0 %3454
      %3458 = vst.msk [vmem:[#allocation3 + $0x80] sm:$0xff] %vm3150, %v3453
      %3459 = vst.msk [vmem:[#allocation3 + $0x88] sm:$0xff] %vm3150, %v3455
      %v3460 = vld [vmem:[#allocation3] sm:$0xff]
      %v3461 = vld [vmem:[#allocation3 + $0x8] sm:$0xff]
      %v3462 = vld [vmem:[#allocation3 + $0x10] sm:$0xff]
      %v3463 = vld [vmem:[#allocation3 + $0x18] sm:$0xff]
      %v3464 = vld [vmem:[#allocation3 + $0x20] sm:$0xff]
      %v3465 = vld [vmem:[#allocation3 + $0x28] sm:$0xff]
      %v3466 = vld [vmem:[#allocation3 + $0x30] sm:$0xff]
      %v3467 = vld [vmem:[#allocation3 + $0x38] sm:$0xff]
      %v3468 = vld [vmem:[#allocation3 + $0x40] sm:$0xff]
      %v3469 = vld [vmem:[#allocation3 + $0x48] sm:$0xff]
      %v3470 = vld [vmem:[#allocation3 + $0x50] sm:$0xff]
      %v3471 = vld [vmem:[#allocation3 + $0x58] sm:$0xff]
      %v3472 = vld [vmem:[#allocation3 + $0x60] sm:$0xff]
      %v3473 = vld [vmem:[#allocation3 + $0x68] sm:$0xff]
      %v3474 = vld [vmem:[#allocation3 + $0x70] sm:$0xff]
      %v3475 = vld [vmem:[#allocation3 + $0x78] sm:$0xff]
      %v3476 = vld [vmem:[#allocation3 + $0x80] sm:$0xff]
      %v3477 = vld [vmem:[#allocation3 + $0x88] sm:$0xff]
      %v3478 = vld [vmem:[%s59] sm:$0xff]
      %v3479 = vld [vmem:[%s59 + $0x8] sm:$0xf]
      %v3480 = vld [vmem:[%s59 + $0xc] sm:$0xff]
      %v3481 = vld [vmem:[%s59 + $0x14] sm:$0xf]
      %v3482 = vld [vmem:[%s59 + $0x18] sm:$0xff]
      %v3483 = vld [vmem:[%s59 + $0x20] sm:$0xf]
      %v3484 = vld [vmem:[%s59 + $0x24] sm:$0xff]
      %v3485 = vld [vmem:[%s59 + $0x2c] sm:$0xf]
      %v3494 = vunpack.c.l.b16 %v3478
      %v3495 = vunpack.c.h.b16 %v3478
      %v3496 = vunpack.c.l.b16 %v3479
      %v3497 = vunpack.c.l.b16 %v3480
      %v3498 = vunpack.c.h.b16 %v3480
      %v3499 = vunpack.c.l.b16 %v3481
      %v3500 = vunpack.c.l.b16 %v3482
      %v3501 = vunpack.c.h.b16 %v3482
      %v3502 = vunpack.c.l.b16 %v3483
      %v3503 = vunpack.c.l.b16 %v3484
      %v3504 = vunpack.c.h.b16 %v3484
      %v3505 = vunpack.c.l.b16 %v3485
      %v3506 = vpack.c.b16 %v3497, %v3494
      %v3507 = vpack.c.b16 %v3498, %v3495
      %v3508 = vpack.c.b16 %v3499, %v3496
      %v3509 = vpack.c.b16 %v3503, %v3500
      %v3510 = vpack.c.b16 %v3504, %v3501
      %v3511 = vpack.c.b16 %v3505, %v3502
      %vm3516 = vcmask 261120
      %v3518 = vsel %vm3516, %v3508, 0
      %v3521 = vsel %vm3516, %v3511, 0
      %3523 = vmatprep.subr.bf16.mxu0 0
      %3524 = vmatpush1.bf16.msra.mxu0 %v3460
      %3525 = vmatprep.subr.bf16.mxu0 0
      %3526 = vmatpush1.bf16.msra.mxu0 %v3461
      %3527 = vmatprep.subr.bf16.mxu0 0
      %3528 = vmatpush1.bf16.msra.mxu0 %v3462
      %3529 = vmatprep.subr.bf16.mxu0 0
      %3530 = vmatpush1.bf16.msra.mxu0 %v3463
      %3531 = vmatprep.subr.bf16.mxu0 0
      %3532 = vmatpush1.bf16.msra.mxu0 %v3464
      %3533 = vmatprep.subr.bf16.mxu0 0
      %3534 = vmatpush1.bf16.msra.mxu0 %v3465
      %3535 = vmatprep.subr.bf16.mxu0 0
      %3536 = vmatpush1.bf16.msra.mxu0 %v3466
      %3537 = vmatprep.subr.bf16.mxu0 0
      %3538 = vmatpush1.bf16.msra.mxu0 %v3467
      %3539 = vmatprep.subr.bf16.mxu0 0
      %3540 = vmatpush1.bf16.msra.mxu0 %v3468
      %3541 = vmatprep.subr.bf16.mxu0 0
      %3542 = vmatpush1.bf16.msra.mxu0 %v3469
      %3543 = vmatprep.subr.bf16.mxu0 0
      %3544 = vmatpush1.bf16.msra.mxu0 %v3470
      %3545 = vmatprep.subr.bf16.mxu0 0
      %3546 = vmatpush1.bf16.msra.mxu0 %v3471
      %3547 = vmatprep.subr.bf16.mxu0 0
      %3548 = vmatpush1.bf16.msra.mxu0 %v3472
      %3549 = vmatprep.subr.bf16.mxu0 0
      %3550 = vmatpush1.bf16.msra.mxu0 %v3473
      %3551 = vmatprep.subr.bf16.mxu0 0
      %3552 = vmatpush1.bf16.msra.mxu0 %v3474
      %3553 = vmatprep.subr.bf16.mxu0 0
      %3554 = vmatpush1.bf16.msra.mxu0 %v3475
      %3555 = vmatprep.mubr.bf16.mxu0 %v3507
      %3556 = vmatmul.mubr.bf16.gmra.mrb[0].mxu0 %v3506
      %v3557 = vpop.f32.mrb[0].mxu0
      %v3558 = vadd.f32 0.0, %v3557
      %v3559 = vpop.f32.mrb[0].mxu0
      %v3560 = vpop.f32.mrb[0].mxu0
      %v3561 = vadd.f32 0.0, %v3560
      %v3562 = vpop.f32.mrb[0].mxu0
      %3563 = vmatprep.mubr.bf16.mxu0 %v3510
      %3564 = vmatmul.mubr.bf16.gmra.mrb[0].mxu0 %v3509
      %v3565 = vpop.f32.mrb[0].mxu0
      %v3566 = vadd.f32 0.0, %v3565
      %v3567 = vpop.f32.mrb[0].mxu0
      %v3568 = vpop.f32.mrb[0].mxu0
      %v3569 = vadd.f32 0.0, %v3568
      %v3570 = vpop.f32.mrb[0].mxu0
      %3571 = vdwg.mxu0
      %3572 = vmatprep.subr.bf16.mxu0 0
      %3573 = vmatpush1.bf16.msra.mxu0 %v3476
      %3574 = vmatprep.subr.bf16.mxu0 0
      %3575 = vmatpush1.bf16.msra.mxu0 %v3477
      %3576 = vmatprep.subr.bf16.mxu0 0
      %3577 = vmatpush1.bf16.msra.mxu0 0
      %3578 = vmatprep.subr.bf16.mxu0 0
      %3579 = vmatpush1.bf16.msra.mxu0 0
      %3580 = vmatprep.subr.bf16.mxu0 0
      %3581 = vmatpush1.bf16.msra.mxu0 0
      %3582 = vmatprep.subr.bf16.mxu0 0
      %3583 = vmatpush1.bf16.msra.mxu0 0
      %3584 = vmatprep.subr.bf16.mxu0 0
      %3585 = vmatpush1.bf16.msra.mxu0 0
      %3586 = vmatprep.subr.bf16.mxu0 0
      %3587 = vmatpush1.bf16.msra.mxu0 0
      %3588 = vmatprep.subr.bf16.mxu0 0
      %3589 = vmatpush1.bf16.msra.mxu0 0
      %3590 = vmatprep.subr.bf16.mxu0 0
      %3591 = vmatpush1.bf16.msra.mxu0 0
      %3592 = vmatprep.subr.bf16.mxu0 0
      %3593 = vmatpush1.bf16.msra.mxu0 0
      %3594 = vmatprep.subr.bf16.mxu0 0
      %3595 = vmatpush1.bf16.msra.mxu0 0
      %3596 = vmatprep.subr.bf16.mxu0 0
      %3597 = vmatpush1.bf16.msra.mxu0 0
      %3598 = vmatprep.subr.bf16.mxu0 0
      %3599 = vmatpush1.bf16.msra.mxu0 0
      %3600 = vmatprep.subr.bf16.mxu0 0
      %3601 = vmatpush1.bf16.msra.mxu0 0
      %3602 = vmatprep.subr.bf16.mxu0 0
      %3603 = vmatpush1.bf16.msra.mxu0 0
      %3604 = vmatprep.mubr.bf16.mxu0 0
      %3605 = vmatmul.mubr.bf16.gmra.mrb[0].mxu0 %v3518
      %v3606 = vpop.f32.mrb[0].mxu0
      %v3607 = vadd.f32 %v3558, %v3606
      %v3608 = vpop.f32.mrb[0].mxu0
      %v3609 = vpop.f32.mrb[0].mxu0
      %v3610 = vadd.f32 %v3561, %v3609
      %v3611 = vpop.f32.mrb[0].mxu0
      %3612 = vmatprep.mubr.bf16.mxu0 0
      %3613 = vmatmul.mubr.bf16.gmra.mrb[0].mxu0 %v3521
      %v3614 = vpop.f32.mrb[0].mxu0
      %v3615 = vadd.f32 %v3566, %v3614
      %v3616 = vpop.f32.mrb[0].mxu0
      %v3617 = vpop.f32.mrb[0].mxu0
      %v3618 = vadd.f32 %v3569, %v3617
      %v3619 = vpop.f32.mrb[0].mxu0
      %3620 = vdwg.mxu0
      %v3621 = vld [vmem:[%s61] sm:$0xff]
      %v3622 = vld [vmem:[%s61 + $0x8] sm:$0xff]
      %v3623 = vld [vmem:[%s61 + $0x10] sm:$0xff]
      %v3624 = vld [vmem:[%s61 + $0x18] sm:$0xff]
      %3626 = vset.pattern.permute.xlu0 0
      %3627 = vperm.xlu0 %3626, %v3621
      %v3628 = vpop.permute.xlu0 %3627
      %3631 = vset.pattern.permute.xlu0 0
      %3632 = vperm.xlu0 %3631, %v3622
      %v3633 = vpop.permute.xlu0 %3632
      %3636 = vset.pattern.permute.xlu0 0
      %3637 = vperm.xlu0 %3636, %v3623
      %v3638 = vpop.permute.xlu0 %3637
      %3641 = vset.pattern.permute.xlu0 0
      %3642 = vperm.xlu0 %3641, %v3624
      %v3643 = vpop.permute.xlu0 %3642
      %v3645 = vmul.f32 %v3607, %v3628
      %v3646 = vmul.f32 %v3610, %v3633
      %v3647 = vmul.f32 %v3615, %v3638
      %v3648 = vmul.f32 %v3618, %v3643
      %v3649 = vld [vmem:[%s63] sm:$0xff]
      %v3650 = vld [vmem:[%s63 + $0x8] sm:$0xff]
      %v3651 = vld [vmem:[%s63 + $0x10] sm:$0xff]
      %v3652 = vld [vmem:[%s63 + $0x18] sm:$0xff]
      %3654 = vset.pattern.permute.xlu0 0
      %3655 = vperm.xlu0 %3654, %v3649
      %v3656 = vpop.permute.xlu0 %3655
      %3659 = vset.pattern.permute.xlu0 0
      %3660 = vperm.xlu0 %3659, %v3650
      %v3661 = vpop.permute.xlu0 %3660
      %3664 = vset.pattern.permute.xlu0 0
      %3665 = vperm.xlu0 %3664, %v3651
      %v3666 = vpop.permute.xlu0 %3665
      %3669 = vset.pattern.permute.xlu0 0
      %3670 = vperm.xlu0 %3669, %v3652
      %v3671 = vpop.permute.xlu0 %3670
      %v3673 = vadd.f32 %v3645, %v3656
      %v3674 = vadd.f32 %v3646, %v3661
      %v3675 = vadd.f32 %v3647, %v3666
      %v3676 = vadd.f32 %v3648, %v3671
      %v3677 = vmax.f32 %v3673, 0.0
      %v3678 = vmax.f32 %v3674, 0.0
      %v3679 = vmax.f32 %v3675, 0.0
      %v3680 = vmax.f32 %v3676, 0.0
      %vm3681 = vcmask 48128
      %3682 = vst.msk [vmem:[#allocation2] sm:$0xff] %vm3681, 0
      %3683 = vst.msk [vmem:[#allocation2 + $0x8] sm:$0xff] %vm3681, 0
      %v3684 = vpack.c.bf16 %v3678, %v3677
      %v3685 = vpack.c.bf16 %v3680, %v3679
      %3688 = vrot.lane.b32.xlu0 %v3684, 2
      %v3689 = vpop.permute.xlu0 %3688
      %3690 = vrot.lane.b32.xlu0 %v3685, 2
      %v3691 = vpop.permute.xlu0 %3690
      %vm3694 = vcmask 31760
      %3695 = vst.msk [vmem:[#allocation2] sm:$0xff] %vm3694, %v3689
      %3696 = vst.msk [vmem:[#allocation2 + $0x8] sm:$0xff] %vm3694, %v3691
      %v3697 = vld [vmem:[#allocation2] sm:$0xff]
      %v3698 = vld [vmem:[#allocation2 + $0x8] sm:$0xff]
      %3699 = vst.msk [vmem:[#allocation3] sm:$0xff] %vm3150, %v3697
      %3700 = vst.msk [vmem:[#allocation3 + $0x8] sm:$0xff] %vm3150, %v3698
      %v3701 = vld [vmem:[#allocation2] sm:$0xff]
      %v3702 = vld [vmem:[#allocation2 + $0x8] sm:$0xff]
      %3705 = vrot.lane.b32.xlu0 %v3701, 127
      %v3706 = vpop.permute.xlu0 %3705
      %3707 = vrot.lane.b32.xlu0 %v3702, 127
      %v3708 = vpop.permute.xlu0 %3707
      %3711 = vst.msk [vmem:[#allocation3 + $0x10] sm:$0xff] %vm3150, %v3706
      %3712 = vst.msk [vmem:[#allocation3 + $0x18] sm:$0xff] %vm3150, %v3708
      %v3713 = vld [vmem:[#allocation2] sm:$0xff]
      %v3714 = vld [vmem:[#allocation2 + $0x8] sm:$0xff]
      %3717 = vrot.lane.b32.xlu0 %v3713, 126
      %v3718 = vpop.permute.xlu0 %3717
      %3719 = vrot.lane.b32.xlu0 %v3714, 126
      %v3720 = vpop.permute.xlu0 %3719
      %3723 = vst.msk [vmem:[#allocation3 + $0x20] sm:$0xff] %vm3150, %v3718
      %3724 = vst.msk [vmem:[#allocation3 + $0x28] sm:$0xff] %vm3150, %v3720
      %v3725 = vld [vmem:[#allocation2] sm:$0xff]
      %v3726 = vld [vmem:[#allocation2 + $0x8] sm:$0xff]
      %3729 = vrot.lane.b32.xlu0 %v3725, 125
      %v3730 = vpop.permute.xlu0 %3729
      %3731 = vrot.lane.b32.xlu0 %v3726, 125
      %v3732 = vpop.permute.xlu0 %3731
      %3735 = vst.msk [vmem:[#allocation3 + $0x30] sm:$0xff] %vm3150, %v3730
      %3736 = vst.msk [vmem:[#allocation3 + $0x38] sm:$0xff] %vm3150, %v3732
      %v3737 = vld [vmem:[#allocation2] sm:$0xff]
      %v3738 = vld [vmem:[#allocation2 + $0x8] sm:$0xff]
      %3741 = vrot.lane.b32.xlu0 %v3737, 124
      %v3742 = vpop.permute.xlu0 %3741
      %3743 = vrot.lane.b32.xlu0 %v3738, 124
      %v3744 = vpop.permute.xlu0 %3743
      %3747 = vst.msk [vmem:[#allocation3 + $0x40] sm:$0xff] %vm3150, %v3742
      %3748 = vst.msk [vmem:[#allocation3 + $0x48] sm:$0xff] %vm3150, %v3744
      %v3749 = vld [vmem:[#allocation3] sm:$0xff]
      %v3750 = vld [vmem:[#allocation3 + $0x8] sm:$0xff]
      %v3751 = vld [vmem:[#allocation3 + $0x10] sm:$0xff]
      %v3752 = vld [vmem:[#allocation3 + $0x18] sm:$0xff]
      %v3753 = vld [vmem:[#allocation3 + $0x20] sm:$0xff]
      %v3754 = vld [vmem:[#allocation3 + $0x28] sm:$0xff]
      %v3755 = vld [vmem:[#allocation3 + $0x30] sm:$0xff]
      %v3756 = vld [vmem:[#allocation3 + $0x38] sm:$0xff]
      %v3757 = vld [vmem:[#allocation3 + $0x40] sm:$0xff]
      %v3758 = vld [vmem:[#allocation3 + $0x48] sm:$0xff]
      %v3759 = vld [vmem:[%s113] sm:$0xff]
      %v3760 = vld [vmem:[%s113 + $0x8] sm:$0xff]
      %v3761 = vld [vmem:[%s113 + $0x10] sm:$0xff]
      %v3762 = vld [vmem:[%s113 + $0x18] sm:$0xff]
      %v3763 = vld [vmem:[%s113 + $0x20] sm:$0xff]
      %v3764 = vld [vmem:[%s113 + $0x28] sm:$0xff]
      %v3765 = vld [vmem:[%s113 + $0x30] sm:$0xff]
      %v3766 = vld [vmem:[%s113 + $0x38] sm:$0xff]
      %v3767 = vld [vmem:[%s115] sm:$0xff]
      %v3768 = vld [vmem:[%s115 + $0x8] sm:$0xff]
      %v3769 = vld [vmem:[%s115 + $0x10] sm:$0xff]
      %v3770 = vld [vmem:[%s115 + $0x18] sm:$0xff]
      %v3771 = vld [vmem:[%s115 + $0x20] sm:$0xff]
      %v3772 = vld [vmem:[%s115 + $0x28] sm:$0xff]
      %v3773 = vld [vmem:[%s115 + $0x30] sm:$0xff]
      %v3774 = vld [vmem:[%s115 + $0x38] sm:$0xff]
      %3776 = vset.pattern.permute.xlu0 0
      %3777 = vperm.xlu0 %3776, %v3767
      %v3778 = vpop.permute.xlu0 %3777
      %3781 = vset.pattern.permute.xlu0 0
      %3782 = vperm.xlu0 %3781, %v3768
      %v3783 = vpop.permute.xlu0 %3782
      %3786 = vset.pattern.permute.xlu0 0
      %3787 = vperm.xlu0 %3786, %v3769
      %v3788 = vpop.permute.xlu0 %3787
      %3791 = vset.pattern.permute.xlu0 0
      %3792 = vperm.xlu0 %3791, %v3770
      %v3793 = vpop.permute.xlu0 %3792
      %3796 = vset.pattern.permute.xlu0 0
      %3797 = vperm.xlu0 %3796, %v3771
      %v3798 = vpop.permute.xlu0 %3797
      %3801 = vset.pattern.permute.xlu0 0
      %3802 = vperm.xlu0 %3801, %v3772
      %v3803 = vpop.permute.xlu0 %3802
      %3806 = vset.pattern.permute.xlu0 0
      %3807 = vperm.xlu0 %3806, %v3773
      %v3808 = vpop.permute.xlu0 %3807
      %3811 = vset.pattern.permute.xlu0 0
      %3812 = vperm.xlu0 %3811, %v3774
      %v3813 = vpop.permute.xlu0 %3812
      %v3823 = vunpack.c.l.b16 %v3759
      %v3824 = vunpack.c.h.b16 %v3759
      %v3825 = vunpack.c.l.b16 %v3760
      %v3826 = vunpack.c.h.b16 %v3760
      %v3827 = vunpack.c.l.b16 %v3761
      %v3828 = vunpack.c.h.b16 %v3761
      %v3829 = vunpack.c.l.b16 %v3762
      %v3830 = vunpack.c.h.b16 %v3762
      %v3831 = vunpack.c.l.b16 %v3763
      %v3832 = vunpack.c.h.b16 %v3763
      %v3833 = vunpack.c.l.b16 %v3764
      %v3834 = vunpack.c.h.b16 %v3764
      %v3835 = vunpack.c.l.b16 %v3765
      %v3836 = vunpack.c.h.b16 %v3765
      %v3837 = vunpack.c.l.b16 %v3766
      %v3838 = vunpack.c.h.b16 %v3766
      %v3839 = vpack.c.b16 %v3825, %v3823
      %v3840 = vpack.c.b16 %v3826, %v3824
      %v3841 = vpack.c.b16 %v3829, %v3827
      %v3842 = vpack.c.b16 %v3830, %v3828
      %v3843 = vpack.c.b16 %v3833, %v3831
      %v3844 = vpack.c.b16 %v3834, %v3832
      %v3845 = vpack.c.b16 %v3837, %v3835
      %v3846 = vpack.c.b16 %v3838, %v3836
      %v3852 = vsel %vm3516, %v3840, 0
      %v3855 = vsel %vm3516, %v3842, 0
      %v3858 = vsel %vm3516, %v3844, 0
      %v3861 = vsel %vm3516, %v3846, 0
      %3863 = vmatprep.subr.bf16.mxu0 0
      %3864 = vmatpush1.bf16.msra.mxu0 %v3749
      %3865 = vmatprep.subr.bf16.mxu0 0
      %3866 = vmatpush1.bf16.msra.mxu0 %v3750
      %3867 = vmatprep.subr.bf16.mxu0 0
      %3868 = vmatpush1.bf16.msra.mxu0 %v3751
      %3869 = vmatprep.subr.bf16.mxu0 0
      %3870 = vmatpush1.bf16.msra.mxu0 %v3752
      %3871 = vmatprep.subr.bf16.mxu0 0
      %3872 = vmatpush1.bf16.msra.mxu0 %v3753
      %3873 = vmatprep.subr.bf16.mxu0 0
      %3874 = vmatpush1.bf16.msra.mxu0 %v3754
      %3875 = vmatprep.subr.bf16.mxu0 0
      %3876 = vmatpush1.bf16.msra.mxu0 %v3755
      %3877 = vmatprep.subr.bf16.mxu0 0
      %3878 = vmatpush1.bf16.msra.mxu0 %v3756
      %3879 = vmatprep.subr.bf16.mxu0 0
      %3880 = vmatpush1.bf16.msra.mxu0 %v3757
      %3881 = vmatprep.subr.bf16.mxu0 0
      %3882 = vmatpush1.bf16.msra.mxu0 %v3758
      %3883 = vmatprep.subr.bf16.mxu0 0
      %3884 = vmatpush1.bf16.msra.mxu0 0
      %3885 = vmatprep.subr.bf16.mxu0 0
      %3886 = vmatpush1.bf16.msra.mxu0 0
      %3887 = vmatprep.subr.bf16.mxu0 0
      %3888 = vmatpush1.bf16.msra.mxu0 0
      %3889 = vmatprep.subr.bf16.mxu0 0
      %3890 = vmatpush1.bf16.msra.mxu0 0
      %3891 = vmatprep.subr.bf16.mxu0 0
      %3892 = vmatpush1.bf16.msra.mxu0 0
      %3893 = vmatprep.subr.bf16.mxu0 0
      %3894 = vmatpush1.bf16.msra.mxu0 0
      %3895 = vmatprep.mubr.bf16.mxu0 %v3852
      %3896 = vmatmul.mubr.bf16.gmra.mrb[0].mxu0 %v3839
      %v3897 = vpop.f32.mrb[0].mxu0
      %v3898 = vadd.f32 %v3778, %v3897
      %v3899 = vpop.f32.mrb[0].mxu0
      %v3900 = vpop.f32.mrb[0].mxu0
      %v3901 = vadd.f32 %v3783, %v3900
      %v3902 = vpop.f32.mrb[0].mxu0
      %3903 = vmatprep.mubr.bf16.mxu0 %v3855
      %3904 = vmatmul.mubr.bf16.gmra.mrb[0].mxu0 %v3841
      %v3905 = vpop.f32.mrb[0].mxu0
      %v3906 = vadd.f32 %v3788, %v3905
      %v3907 = vpop.f32.mrb[0].mxu0
      %v3908 = vpop.f32.mrb[0].mxu0
      %v3909 = vadd.f32 %v3793, %v3908
      %v3910 = vpop.f32.mrb[0].mxu0
      %3911 = vmatprep.mubr.bf16.mxu0 %v3858
      %3912 = vmatmul.mubr.bf16.gmra.mrb[0].mxu0 %v3843
      %v3913 = vpop.f32.mrb[0].mxu0
      %v3914 = vadd.f32 %v3798, %v3913
      %v3915 = vpop.f32.mrb[0].mxu0
      %v3916 = vpop.f32.mrb[0].mxu0
      %v3917 = vadd.f32 %v3803, %v3916
      %v3918 = vpop.f32.mrb[0].mxu0
      %3919 = vmatprep.mubr.bf16.mxu0 %v3861
      %3920 = vmatmul.mubr.bf16.gmra.mrb[0].mxu0 %v3845
      %v3921 = vpop.f32.mrb[0].mxu0
      %v3922 = vadd.f32 %v3808, %v3921
      %v3923 = vpop.f32.mrb[0].mxu0
      %v3924 = vpop.f32.mrb[0].mxu0
      %v3925 = vadd.f32 %v3813, %v3924
      %v3926 = vpop.f32.mrb[0].mxu0
      %3927 = vdwg.mxu0
      %v3928 = vpack.c.bf16 %v3901, %v3898
      %v3929 = vpack.c.bf16 %v3909, %v3906
      %v3930 = vpack.c.bf16 %v3917, %v3914
      %v3931 = vpack.c.bf16 %v3925, %v3922
      %v3932 = vld [vmem:[%s7] sm:$0x1]
      %v3933 = vld [vmem:[%s9] sm:$0x1]
      %v3935 = vsel %vm3150, %v3930, 0
      %v3938 = vsel %vm3150, %v3931, 0
      %vm3940 = vcmask 1040384
      %v3942 = vsel %vm3940, %v3933, 0
      %3944 = vmatprep.subr.bf16.mxu0 0
      %3945 = vmatpush1.bf16.msra.mxu0 %v3942
      %3946 = vmatprep.subr.bf16.mxu0 0
      %3947 = vmatpush1.bf16.msra.mxu0 0
      %3948 = vmatprep.subr.bf16.mxu0 0
      %3949 = vmatpush1.bf16.msra.mxu0 0
      %3950 = vmatprep.subr.bf16.mxu0 0
      %3951 = vmatpush1.bf16.msra.mxu0 0
      %3952 = vmatprep.subr.bf16.mxu0 0
      %3953 = vmatpush1.bf16.msra.mxu0 0
      %3954 = vmatprep.subr.bf16.mxu0 0
      %3955 = vmatpush1.bf16.msra.mxu0 0
      %3956 = vmatprep.subr.bf16.mxu0 0
      %3957 = vmatpush1.bf16.msra.mxu0 0
      %3958 = vmatprep.subr.bf16.mxu0 0
      %3959 = vmatpush1.bf16.msra.mxu0 0
      %3960 = vmatprep.subr.bf16.mxu0 0
      %3961 = vmatpush1.bf16.msra.mxu0 0
      %3962 = vmatprep.subr.bf16.mxu0 0
      %3963 = vmatpush1.bf16.msra.mxu0 0
      %3964 = vmatprep.subr.bf16.mxu0 0
      %3965 = vmatpush1.bf16.msra.mxu0 0
      %3966 = vmatprep.subr.bf16.mxu0 0
      %3967 = vmatpush1.bf16.msra.mxu0 0
      %3968 = vmatprep.subr.bf16.mxu0 0
      %3969 = vmatpush1.bf16.msra.mxu0 0
      %3970 = vmatprep.subr.bf16.mxu0 0
      %3971 = vmatpush1.bf16.msra.mxu0 0
      %3972 = vmatprep.subr.bf16.mxu0 0
      %3973 = vmatpush1.bf16.msra.mxu0 0
      %3974 = vmatprep.subr.bf16.mxu0 0
      %3975 = vmatpush1.bf16.msra.mxu0 0
      %3976 = vmatprep.mubr.bf16.mxu0 0
      %3977 = vmatmul.mubr.bf16.gmra.mrb[0].mxu0 %v3935
      %v3978 = vpop.f32.mrb[0].mxu0
      %v3979 = vadd.f32 0.0, %v3978
      %v3980 = vpop.f32.mrb[0].mxu0
      %v3981 = vpop.f32.mrb[0].mxu0
      %v3982 = vadd.f32 0.0, %v3981
      %v3983 = vpop.f32.mrb[0].mxu0
      %3984 = vmatprep.mubr.bf16.mxu0 0
      %3985 = vmatmul.mubr.bf16.gmra.mrb[0].mxu0 %v3938
      %v3986 = vpop.f32.mrb[0].mxu0
      %v3987 = vadd.f32 0.0, %v3986
      %v3988 = vpop.f32.mrb[0].mxu0
      %v3989 = vpop.f32.mrb[0].mxu0
      %v3990 = vadd.f32 0.0, %v3989
      %v3991 = vpop.f32.mrb[0].mxu0
      %3992 = vdwg.mxu0
      %v3994 = vsel %vm3150, %v3928, 0
      %v3997 = vsel %vm3150, %v3929, 0
      %v4000 = vsel %vm3940, %v3932, 0
      %4002 = vmatprep.subr.bf16.mxu0 0
      %4003 = vmatpush1.bf16.msra.mxu0 %v4000
      %4004 = vmatprep.subr.bf16.mxu0 0
      %4005 = vmatpush1.bf16.msra.mxu0 0
      %4006 = vmatprep.subr.bf16.mxu0 0
      %4007 = vmatpush1.bf16.msra.mxu0 0
      %4008 = vmatprep.subr.bf16.mxu0 0
      %4009 = vmatpush1.bf16.msra.mxu0 0
      %4010 = vmatprep.subr.bf16.mxu0 0
      %4011 = vmatpush1.bf16.msra.mxu0 0
      %4012 = vmatprep.subr.bf16.mxu0 0
      %4013 = vmatpush1.bf16.msra.mxu0 0
      %4014 = vmatprep.subr.bf16.mxu0 0
      %4015 = vmatpush1.bf16.msra.mxu0 0
      %4016 = vmatprep.subr.bf16.mxu0 0
      %4017 = vmatpush1.bf16.msra.mxu0 0
      %4018 = vmatprep.subr.bf16.mxu0 0
      %4019 = vmatpush1.bf16.msra.mxu0 0
      %4020 = vmatprep.subr.bf16.mxu0 0
      %4021 = vmatpush1.bf16.msra.mxu0 0
      %4022 = vmatprep.subr.bf16.mxu0 0
      %4023 = vmatpush1.bf16.msra.mxu0 0
      %4024 = vmatprep.subr.bf16.mxu0 0
      %4025 = vmatpush1.bf16.msra.mxu0 0
      %4026 = vmatprep.subr.bf16.mxu0 0
      %4027 = vmatpush1.bf16.msra.mxu0 0
      %4028 = vmatprep.subr.bf16.mxu0 0
      %4029 = vmatpush1.bf16.msra.mxu0 0
      %4030 = vmatprep.subr.bf16.mxu0 0
      %4031 = vmatpush1.bf16.msra.mxu0 0
      %4032 = vmatprep.subr.bf16.mxu0 0
      %4033 = vmatpush1.bf16.msra.mxu0 0
      %4034 = vmatprep.mubr.bf16.mxu0 0
      %4035 = vmatmul.mubr.bf16.gmra.mrb[0].mxu0 %v3994
      %v4036 = vpop.f32.mrb[0].mxu0
      %v4037 = vadd.f32 %v3979, %v4036
      %v4038 = vpop.f32.mrb[0].mxu0
      %v4039 = vpop.f32.mrb[0].mxu0
      %v4040 = vadd.f32 %v3982, %v4039
      %v4041 = vpop.f32.mrb[0].mxu0
      %4042 = vmatprep.mubr.bf16.mxu0 0
      %4043 = vmatmul.mubr.bf16.gmra.mrb[0].mxu0 %v3997
      %v4044 = vpop.f32.mrb[0].mxu0
      %v4045 = vadd.f32 %v3987, %v4044
      %v4046 = vpop.f32.mrb[0].mxu0
      %v4047 = vpop.f32.mrb[0].mxu0
      %v4048 = vadd.f32 %v3990, %v4047
      %v4049 = vpop.f32.mrb[0].mxu0
      %4050 = vdwg.mxu0
      %4051 = vst.msk [vmem:[#allocation2] sm:$0xff] %vm2890, 0
      %4053 = vrot.lane.b32.xlu0 %v3044, 4
      %v4054 = vpop.permute.xlu0 %4053
      %4056 = vst.msk [vmem:[#allocation2] sm:$0xff] %vm2897, %v4054
      %4057 = vst.msk [vmem:[#allocation2 + $0x8] sm:$0xff] %vm2890, 0
      %4058 = vst.msk [vmem:[#allocation2 + $0x10] sm:$0xff] %vm2890, 0
      %v4059 = vpack.c.bf16 %v4040, %v4037
      %v4060 = vpack.c.bf16 %v4048, %v4045
      %4063 = vrot.lane.b32.xlu0 %v4059, 4
      %v4064 = vpop.permute.xlu0 %4063
      %4065 = vrot.lane.b32.xlu0 %v4060, 4
      %v4066 = vpop.permute.xlu0 %4065
      %4069 = vst.msk [vmem:[#allocation2 + $0x8] sm:$0xff] %vm2897, %v4064
      %4070 = vst.msk [vmem:[#allocation2 + $0x10] sm:$0xff] %vm2897, %v4066
      %v4071 = vld [vmem:[#allocation2] sm:$0xff]
      %v4072 = vld [vmem:[#allocation2 + $0x8] sm:$0xff]
      %v4073 = vld [vmem:[#allocation2 + $0x10] sm:$0xff]
      %4074 = vst.msk [vmem:[#allocation3] sm:$0xff] %vm2900, %v4071
      %4075 = vst.msk [vmem:[#allocation3 + $0x8] sm:$0xff] %vm2900, %v4072
      %4076 = vst.msk [vmem:[#allocation3 + $0x10] sm:$0xff] %vm2900, %v4073
      %v4077 = vld [vmem:[#allocation2] sm:$0xff]
      %v4078 = vld [vmem:[#allocation2 + $0x8] sm:$0xff]
      %v4079 = vld [vmem:[#allocation2 + $0x10] sm:$0xff]
      %4083 = vrot.lane.b32.xlu0 %v4077, 127
      %v4084 = vpop.permute.xlu0 %4083
      %4085 = vrot.lane.b32.xlu0 %v4078, 127
      %v4086 = vpop.permute.xlu0 %4085
      %4087 = vrot.lane.b32.xlu0 %v4079, 127
      %v4088 = vpop.permute.xlu0 %4087
      %4092 = vst.msk [vmem:[#allocation3 + $0x18] sm:$0xff] %vm2900, %v4084
      %4093 = vst.msk [vmem:[#allocation3 + $0x20] sm:$0xff] %vm2900, %v4086
      %4094 = vst.msk [vmem:[#allocation3 + $0x28] sm:$0xff] %vm2900, %v4088
      %v4095 = vld [vmem:[#allocation2] sm:$0xff]
      %v4096 = vld [vmem:[#allocation2 + $0x8] sm:$0xff]
      %v4097 = vld [vmem:[#allocation2 + $0x10] sm:$0xff]
      %4101 = vrot.lane.b32.xlu0 %v4095, 126
      %v4102 = vpop.permute.xlu0 %4101
      %4103 = vrot.lane.b32.xlu0 %v4096, 126
      %v4104 = vpop.permute.xlu0 %4103
      %4105 = vrot.lane.b32.xlu0 %v4097, 126
      %v4106 = vpop.permute.xlu0 %4105
      %4110 = vst.msk [vmem:[#allocation3 + $0x30] sm:$0xff] %vm2900, %v4102
      %4111 = vst.msk [vmem:[#allocation3 + $0x38] sm:$0xff] %vm2900, %v4104
      %4112 = vst.msk [vmem:[#allocation3 + $0x40] sm:$0xff] %vm2900, %v4106
      %v4113 = vld [vmem:[#allocation2] sm:$0xff]
      %v4114 = vld [vmem:[#allocation2 + $0x8] sm:$0xff]
      %v4115 = vld [vmem:[#allocation2 + $0x10] sm:$0xff]
      %4119 = vrot.lane.b32.xlu0 %v4113, 125
      %v4120 = vpop.permute.xlu0 %4119
      %4121 = vrot.lane.b32.xlu0 %v4114, 125
      %v4122 = vpop.permute.xlu0 %4121
      %4123 = vrot.lane.b32.xlu0 %v4115, 125
      %v4124 = vpop.permute.xlu0 %4123
      %4128 = vst.msk [vmem:[#allocation3 + $0x48] sm:$0xff] %vm2900, %v4120
      %4129 = vst.msk [vmem:[#allocation3 + $0x50] sm:$0xff] %vm2900, %v4122
      %4130 = vst.msk [vmem:[#allocation3 + $0x58] sm:$0xff] %vm2900, %v4124
      %v4131 = vld [vmem:[#allocation2] sm:$0xff]
      %v4132 = vld [vmem:[#allocation2 + $0x8] sm:$0xff]
      %v4133 = vld [vmem:[#allocation2 + $0x10] sm:$0xff]
      %4137 = vrot.lane.b32.xlu0 %v4131, 124
      %v4138 = vpop.permute.xlu0 %4137
      %4139 = vrot.lane.b32.xlu0 %v4132, 124
      %v4140 = vpop.permute.xlu0 %4139
      %4141 = vrot.lane.b32.xlu0 %v4133, 124
      %v4142 = vpop.permute.xlu0 %4141
      %4146 = vst.msk [vmem:[#allocation3 + $0x60] sm:$0xff] %vm2900, %v4138
      %4147 = vst.msk [vmem:[#allocation3 + $0x68] sm:$0xff] %vm2900, %v4140
      %4148 = vst.msk [vmem:[#allocation3 + $0x70] sm:$0xff] %vm2900, %v4142
      %v4149 = vld [vmem:[#allocation2] sm:$0xff]
      %v4150 = vld [vmem:[#allocation2 + $0x8] sm:$0xff]
      %v4151 = vld [vmem:[#allocation2 + $0x10] sm:$0xff]
      %4155 = vrot.lane.b32.xlu0 %v4149, 123
      %v4156 = vpop.permute.xlu0 %4155
      %4157 = vrot.lane.b32.xlu0 %v4150, 123
      %v4158 = vpop.permute.xlu0 %4157
      %4159 = vrot.lane.b32.xlu0 %v4151, 123
      %v4160 = vpop.permute.xlu0 %4159
      %4164 = vst.msk [vmem:[#allocation3 + $0x78] sm:$0xff] %vm2900, %v4156
      %4165 = vst.msk [vmem:[#allocation3 + $0x80] sm:$0xff] %vm2900, %v4158
      %4166 = vst.msk [vmem:[#allocation3 + $0x88] sm:$0xff] %vm2900, %v4160
      %v4167 = vld [vmem:[#allocation2] sm:$0xff]
      %v4168 = vld [vmem:[#allocation2 + $0x8] sm:$0xff]
      %v4169 = vld [vmem:[#allocation2 + $0x10] sm:$0xff]
      %4173 = vrot.lane.b32.xlu0 %v4167, 122
      %v4174 = vpop.permute.xlu0 %4173
      %4175 = vrot.lane.b32.xlu0 %v4168, 122
      %v4176 = vpop.permute.xlu0 %4175
      %4177 = vrot.lane.b32.xlu0 %v4169, 122
      %v4178 = vpop.permute.xlu0 %4177
      %4182 = vst.msk [vmem:[#allocation3 + $0x90] sm:$0xff] %vm2900, %v4174
      %4183 = vst.msk [vmem:[#allocation3 + $0x98] sm:$0xff] %vm2900, %v4176
      %4184 = vst.msk [vmem:[#allocation3 + $0xa0] sm:$0xff] %vm2900, %v4178
      %v4185 = vld [vmem:[#allocation2] sm:$0xff]
      %v4186 = vld [vmem:[#allocation2 + $0x8] sm:$0xff]
      %v4187 = vld [vmem:[#allocation2 + $0x10] sm:$0xff]
      %4191 = vrot.lane.b32.xlu0 %v4185, 121
      %v4192 = vpop.permute.xlu0 %4191
      %4193 = vrot.lane.b32.xlu0 %v4186, 121
      %v4194 = vpop.permute.xlu0 %4193
      %4195 = vrot.lane.b32.xlu0 %v4187, 121
      %v4196 = vpop.permute.xlu0 %4195
      %4200 = vst.msk [vmem:[#allocation3 + $0xa8] sm:$0xff] %vm2900, %v4192
      %4201 = vst.msk [vmem:[#allocation3 + $0xb0] sm:$0xff] %vm2900, %v4194
      %4202 = vst.msk [vmem:[#allocation3 + $0xb8] sm:$0xff] %vm2900, %v4196
      %v4203 = vld [vmem:[#allocation2] sm:$0xff]
      %v4204 = vld [vmem:[#allocation2 + $0x8] sm:$0xff]
      %v4205 = vld [vmem:[#allocation2 + $0x10] sm:$0xff]
      %4209 = vrot.lane.b32.xlu0 %v4203, 120
      %v4210 = vpop.permute.xlu0 %4209
      %4211 = vrot.lane.b32.xlu0 %v4204, 120
      %v4212 = vpop.permute.xlu0 %4211
      %4213 = vrot.lane.b32.xlu0 %v4205, 120
      %v4214 = vpop.permute.xlu0 %4213
      %4218 = vst.msk [vmem:[#allocation3 + $0xc0] sm:$0xff] %vm2900, %v4210
      %4219 = vst.msk [vmem:[#allocation3 + $0xc8] sm:$0xff] %vm2900, %v4212
      %4220 = vst.msk [vmem:[#allocation3 + $0xd0] sm:$0xff] %vm2900, %v4214
      %v4221 = vld [vmem:[#allocation3] sm:$0xff]
      %v4222 = vld [vmem:[#allocation3 + $0x8] sm:$0xff]
      %v4223 = vld [vmem:[#allocation3 + $0x10] sm:$0xff]
      %v4224 = vld [vmem:[#allocation3 + $0x18] sm:$0xff]
      %v4225 = vld [vmem:[#allocation3 + $0x20] sm:$0xff]
      %v4226 = vld [vmem:[#allocation3 + $0x28] sm:$0xff]
      %v4227 = vld [vmem:[#allocation3 + $0x30] sm:$0xff]
      %v4228 = vld [vmem:[#allocation3 + $0x38] sm:$0xff]
      %v4229 = vld [vmem:[#allocation3 + $0x40] sm:$0xff]
      %v4230 = vld [vmem:[#allocation3 + $0x48] sm:$0xff]
      %v4231 = vld [vmem:[#allocation3 + $0x50] sm:$0xff]
      %v4232 = vld [vmem:[#allocation3 + $0x58] sm:$0xff]
      %v4233 = vld [vmem:[#allocation3 + $0x60] sm:$0xff]
      %v4234 = vld [vmem:[#allocation3 + $0x68] sm:$0xff]
      %v4235 = vld [vmem:[#allocation3 + $0x70] sm:$0xff]
      %v4236 = vld [vmem:[#allocation3 + $0x78] sm:$0xff]
      %v4237 = vld [vmem:[#allocation3 + $0x80] sm:$0xff]
      %v4238 = vld [vmem:[#allocation3 + $0x88] sm:$0xff]
      %v4239 = vld [vmem:[#allocation3 + $0x90] sm:$0xff]
      %v4240 = vld [vmem:[#allocation3 + $0x98] sm:$0xff]
      %v4241 = vld [vmem:[#allocation3 + $0xa0] sm:$0xff]
      %v4242 = vld [vmem:[#allocation3 + $0xa8] sm:$0xff]
      %v4243 = vld [vmem:[#allocation3 + $0xb0] sm:$0xff]
      %v4244 = vld [vmem:[#allocation3 + $0xb8] sm:$0xff]
      %v4245 = vld [vmem:[#allocation3 + $0xc0] sm:$0xff]
      %v4246 = vld [vmem:[#allocation3 + $0xc8] sm:$0xff]
      %v4247 = vld [vmem:[#allocation3 + $0xd0] sm:$0xff]
      %v4248 = vld [vmem:[%s65] sm:$0xff]
      %v4249 = vld [vmem:[%s65 + $0x8] sm:$0xff]
      %v4250 = vld [vmem:[%s65 + $0x10] sm:$0xff]
      %v4251 = vld [vmem:[%s65 + $0x18] sm:$0xff]
      %v4256 = vunpack.c.l.b16 %v4248
      %v4257 = vunpack.c.h.b16 %v4248
      %v4258 = vunpack.c.l.b16 %v4249
      %v4259 = vunpack.c.h.b16 %v4249
      %v4260 = vunpack.c.l.b16 %v4250
      %v4261 = vunpack.c.h.b16 %v4250
      %v4262 = vunpack.c.l.b16 %v4251
      %v4263 = vunpack.c.h.b16 %v4251
      %v4264 = vpack.c.b16 %v4260, %v4256
      %v4265 = vpack.c.b16 %v4261, %v4257
      %v4266 = vpack.c.b16 %v4262, %v4258
      %v4267 = vpack.c.b16 %v4263, %v4259
      %vm4271 = vcmask 392192
      %v4273 = vsel %vm4271, %v4267, 0
      %4275 = vmatprep.subr.bf16.mxu0 0
      %4276 = vmatpush1.bf16.msra.mxu0 %v4221
      %4277 = vmatprep.subr.bf16.mxu0 0
      %4278 = vmatpush1.bf16.msra.mxu0 %v4222
      %4279 = vmatprep.subr.bf16.mxu0 0
      %4280 = vmatpush1.bf16.msra.mxu0 %v4223
      %4281 = vmatprep.subr.bf16.mxu0 0
      %4282 = vmatpush1.bf16.msra.mxu0 %v4224
      %4283 = vmatprep.subr.bf16.mxu0 0
      %4284 = vmatpush1.bf16.msra.mxu0 %v4225
      %4285 = vmatprep.subr.bf16.mxu0 0
      %4286 = vmatpush1.bf16.msra.mxu0 %v4226
      %4287 = vmatprep.subr.bf16.mxu0 0
      %4288 = vmatpush1.bf16.msra.mxu0 %v4227
      %4289 = vmatprep.subr.bf16.mxu0 0
      %4290 = vmatpush1.bf16.msra.mxu0 %v4228
      %4291 = vmatprep.subr.bf16.mxu0 0
      %4292 = vmatpush1.bf16.msra.mxu0 %v4229
      %4293 = vmatprep.subr.bf16.mxu0 0
      %4294 = vmatpush1.bf16.msra.mxu0 %v4230
      %4295 = vmatprep.subr.bf16.mxu0 0
      %4296 = vmatpush1.bf16.msra.mxu0 %v4231
      %4297 = vmatprep.subr.bf16.mxu0 0
      %4298 = vmatpush1.bf16.msra.mxu0 %v4232
      %4299 = vmatprep.subr.bf16.mxu0 0
      %4300 = vmatpush1.bf16.msra.mxu0 %v4233
      %4301 = vmatprep.subr.bf16.mxu0 0
      %4302 = vmatpush1.bf16.msra.mxu0 %v4234
      %4303 = vmatprep.subr.bf16.mxu0 0
      %4304 = vmatpush1.bf16.msra.mxu0 %v4235
      %4305 = vmatprep.subr.bf16.mxu0 0
      %4306 = vmatpush1.bf16.msra.mxu0 %v4236
      %4307 = vmatprep.mubr.bf16.mxu0 %v4265
      %4308 = vmatmul.mubr.bf16.gmra.mrb[0].mxu0 %v4264
      %v4309 = vpop.f32.mrb[0].mxu0
      %v4310 = vadd.f32 0.0, %v4309
      %v4311 = vpop.f32.mrb[0].mxu0
      %v4312 = vpop.f32.mrb[0].mxu0
      %v4313 = vadd.f32 0.0, %v4312
      %v4314 = vpop.f32.mrb[0].mxu0
      %4315 = vdwg.mxu0
      %4316 = vmatprep.subr.bf16.mxu0 0
      %4317 = vmatpush1.bf16.msra.mxu0 %v4237
      %4318 = vmatprep.subr.bf16.mxu0 0
      %4319 = vmatpush1.bf16.msra.mxu0 %v4238
      %4320 = vmatprep.subr.bf16.mxu0 0
      %4321 = vmatpush1.bf16.msra.mxu0 %v4239
      %4322 = vmatprep.subr.bf16.mxu0 0
      %4323 = vmatpush1.bf16.msra.mxu0 %v4240
      %4324 = vmatprep.subr.bf16.mxu0 0
      %4325 = vmatpush1.bf16.msra.mxu0 %v4241
      %4326 = vmatprep.subr.bf16.mxu0 0
      %4327 = vmatpush1.bf16.msra.mxu0 %v4242
      %4328 = vmatprep.subr.bf16.mxu0 0
      %4329 = vmatpush1.bf16.msra.mxu0 %v4243
      %4330 = vmatprep.subr.bf16.mxu0 0
      %4331 = vmatpush1.bf16.msra.mxu0 %v4244
      %4332 = vmatprep.subr.bf16.mxu0 0
      %4333 = vmatpush1.bf16.msra.mxu0 %v4245
      %4334 = vmatprep.subr.bf16.mxu0 0
      %4335 = vmatpush1.bf16.msra.mxu0 %v4246
      %4336 = vmatprep.subr.bf16.mxu0 0
      %4337 = vmatpush1.bf16.msra.mxu0 %v4247
      %4338 = vmatprep.subr.bf16.mxu0 0
      %4339 = vmatpush1.bf16.msra.mxu0 0
      %4340 = vmatprep.subr.bf16.mxu0 0
      %4341 = vmatpush1.bf16.msra.mxu0 0
      %4342 = vmatprep.subr.bf16.mxu0 0
      %4343 = vmatpush1.bf16.msra.mxu0 0
      %4344 = vmatprep.subr.bf16.mxu0 0
      %4345 = vmatpush1.bf16.msra.mxu0 0
      %4346 = vmatprep.subr.bf16.mxu0 0
      %4347 = vmatpush1.bf16.msra.mxu0 0
      %4348 = vmatprep.mubr.bf16.mxu0 %v4273
      %4349 = vmatmul.mubr.bf16.gmra.mrb[0].mxu0 %v4266
      %v4350 = vpop.f32.mrb[0].mxu0
      %v4351 = vadd.f32 %v4310, %v4350
      %v4352 = vpop.f32.mrb[0].mxu0
      %v4353 = vpop.f32.mrb[0].mxu0
      %v4354 = vadd.f32 %v4313, %v4353
      %v4355 = vpop.f32.mrb[0].mxu0
      %4356 = vdwg.mxu0
      %v4357 = vld [vmem:[%s67] sm:$0xff]
      %v4358 = vld [vmem:[%s67 + $0x8] sm:$0xff]
      %4360 = vset.pattern.permute.xlu0 0
      %4361 = vperm.xlu0 %4360, %v4357
      %v4362 = vpop.permute.xlu0 %4361
      %4365 = vset.pattern.permute.xlu0 0
      %4366 = vperm.xlu0 %4365, %v4358
      %v4367 = vpop.permute.xlu0 %4366
      %v4369 = vmul.f32 %v4351, %v4362
      %v4370 = vmul.f32 %v4354, %v4367
      %v4371 = vld [vmem:[%s69] sm:$0xff]
      %v4372 = vld [vmem:[%s69 + $0x8] sm:$0xff]
      %4374 = vset.pattern.permute.xlu0 0
      %4375 = vperm.xlu0 %4374, %v4371
      %v4376 = vpop.permute.xlu0 %4375
      %4379 = vset.pattern.permute.xlu0 0
      %4380 = vperm.xlu0 %4379, %v4372
      %v4381 = vpop.permute.xlu0 %4380
      %v4383 = vadd.f32 %v4369, %v4376
      %v4384 = vadd.f32 %v4370, %v4381
      %v4385 = vmax.f32 %v4383, 0.0
      %v4386 = vmax.f32 %v4384, 0.0
      %4387 = vst.msk [vmem:[#allocation2] sm:$0xff] %vm2890, 0
      %v4388 = vpack.c.bf16 %v4386, %v4385
      %4390 = vrot.lane.b32.xlu0 %v4388, 4
      %v4391 = vpop.permute.xlu0 %4390
      %4393 = vst.msk [vmem:[#allocation2] sm:$0xff] %vm2897, %v4391
      %v4394 = vld [vmem:[#allocation2] sm:$0xff]
      %4395 = vst.msk [vmem:[#allocation3] sm:$0xff] %vm2900, %v4394
      %v4396 = vld [vmem:[#allocation2] sm:$0xff]
      %4398 = vrot.lane.b32.xlu0 %v4396, 127
      %v4399 = vpop.permute.xlu0 %4398
      %4401 = vst.msk [vmem:[#allocation3 + $0x8] sm:$0xff] %vm2900, %v4399
      %v4402 = vld [vmem:[#allocation2] sm:$0xff]
      %4404 = vrot.lane.b32.xlu0 %v4402, 126
      %v4405 = vpop.permute.xlu0 %4404
      %4407 = vst.msk [vmem:[#allocation3 + $0x10] sm:$0xff] %vm2900, %v4405
      %v4408 = vld [vmem:[#allocation2] sm:$0xff]
      %4410 = vrot.lane.b32.xlu0 %v4408, 125
      %v4411 = vpop.permute.xlu0 %4410
      %4413 = vst.msk [vmem:[#allocation3 + $0x18] sm:$0xff] %vm2900, %v4411
      %v4414 = vld [vmem:[#allocation2] sm:$0xff]
      %4416 = vrot.lane.b32.xlu0 %v4414, 124
      %v4417 = vpop.permute.xlu0 %4416
      %4419 = vst.msk [vmem:[#allocation3 + $0x20] sm:$0xff] %vm2900, %v4417
      %v4420 = vld [vmem:[#allocation2] sm:$0xff]
      %4422 = vrot.lane.b32.xlu0 %v4420, 123
      %v4423 = vpop.permute.xlu0 %4422
      %4425 = vst.msk [vmem:[#allocation3 + $0x28] sm:$0xff] %vm2900, %v4423
      %v4426 = vld [vmem:[#allocation2] sm:$0xff]
      %4428 = vrot.lane.b32.xlu0 %v4426, 122
      %v4429 = vpop.permute.xlu0 %4428
      %4431 = vst.msk [vmem:[#allocation3 + $0x30] sm:$0xff] %vm2900, %v4429
      %v4432 = vld [vmem:[#allocation2] sm:$0xff]
      %4434 = vrot.lane.b32.xlu0 %v4432, 121
      %v4435 = vpop.permute.xlu0 %4434
      %4437 = vst.msk [vmem:[#allocation3 + $0x38] sm:$0xff] %vm2900, %v4435
      %v4438 = vld [vmem:[#allocation2] sm:$0xff]
      %4440 = vrot.lane.b32.xlu0 %v4438, 120
      %v4441 = vpop.permute.xlu0 %4440
      %4443 = vst.msk [vmem:[#allocation3 + $0x40] sm:$0xff] %vm2900, %v4441
      %v4444 = vld [vmem:[#allocation3] sm:$0xff]
      %v4445 = vld [vmem:[#allocation3 + $0x8] sm:$0xff]
      %v4446 = vld [vmem:[#allocation3 + $0x10] sm:$0xff]
      %v4447 = vld [vmem:[#allocation3 + $0x18] sm:$0xff]
      %v4448 = vld [vmem:[#allocation3 + $0x20] sm:$0xff]
      %v4449 = vld [vmem:[#allocation3 + $0x28] sm:$0xff]
      %v4450 = vld [vmem:[#allocation3 + $0x30] sm:$0xff]
      %v4451 = vld [vmem:[#allocation3 + $0x38] sm:$0xff]
      %v4452 = vld [vmem:[#allocation3 + $0x40] sm:$0xff]
      %v4453 = vld [vmem:[%s71] sm:$0xff]
      %v4454 = vld [vmem:[%s71 + $0x8] sm:$0xff]
      %v4457 = vunpack.c.l.b16 %v4453
      %v4458 = vunpack.c.h.b16 %v4453
      %v4459 = vunpack.c.l.b16 %v4454
      %v4460 = vunpack.c.h.b16 %v4454
      %v4461 = vpack.c.b16 %v4459, %v4457
      %v4462 = vpack.c.b16 %v4460, %v4458
      %v4465 = vsel %vm2285, %v4462, 0
      %4467 = vmatprep.subr.bf16.mxu0 0
      %4468 = vmatpush1.bf16.msra.mxu0 %v4444
      %4469 = vmatprep.subr.bf16.mxu0 0
      %4470 = vmatpush1.bf16.msra.mxu0 %v4445
      %4471 = vmatprep.subr.bf16.mxu0 0
      %4472 = vmatpush1.bf16.msra.mxu0 %v4446
      %4473 = vmatprep.subr.bf16.mxu0 0
      %4474 = vmatpush1.bf16.msra.mxu0 %v4447
      %4475 = vmatprep.subr.bf16.mxu0 0
      %4476 = vmatpush1.bf16.msra.mxu0 %v4448
      %4477 = vmatprep.subr.bf16.mxu0 0
      %4478 = vmatpush1.bf16.msra.mxu0 %v4449
      %4479 = vmatprep.subr.bf16.mxu0 0
      %4480 = vmatpush1.bf16.msra.mxu0 %v4450
      %4481 = vmatprep.subr.bf16.mxu0 0
      %4482 = vmatpush1.bf16.msra.mxu0 %v4451
      %4483 = vmatprep.subr.bf16.mxu0 0
      %4484 = vmatpush1.bf16.msra.mxu0 %v4452
      %4485 = vmatprep.subr.bf16.mxu0 0
      %4486 = vmatpush1.bf16.msra.mxu0 0
      %4487 = vmatprep.subr.bf16.mxu0 0
      %4488 = vmatpush1.bf16.msra.mxu0 0
      %4489 = vmatprep.subr.bf16.mxu0 0
      %4490 = vmatpush1.bf16.msra.mxu0 0
      %4491 = vmatprep.subr.bf16.mxu0 0
      %4492 = vmatpush1.bf16.msra.mxu0 0
      %4493 = vmatprep.subr.bf16.mxu0 0
      %4494 = vmatpush1.bf16.msra.mxu0 0
      %4495 = vmatprep.subr.bf16.mxu0 0
      %4496 = vmatpush1.bf16.msra.mxu0 0
      %4497 = vmatprep.subr.bf16.mxu0 0
      %4498 = vmatpush1.bf16.msra.mxu0 0
      %4499 = vmatprep.mubr.bf16.mxu0 %v4465
      %4500 = vmatmul.mubr.bf16.gmra.mrb[0].mxu0 %v4461
      %v4501 = vpop.f32.mrb[0].mxu0
      %v4502 = vadd.f32 0.0, %v4501
      %v4503 = vpop.f32.mrb[0].mxu0
      %v4504 = vpop.f32.mrb[0].mxu0
      %v4505 = vadd.f32 0.0, %v4504
      %v4506 = vpop.f32.mrb[0].mxu0
      %4507 = vdwg.mxu0
      %v4508 = vld [vmem:[%s73] sm:$0xff]
      %v4509 = vld [vmem:[%s73 + $0x8] sm:$0xff]
      %4511 = vset.pattern.permute.xlu0 0
      %4512 = vperm.xlu0 %4511, %v4508
      %v4513 = vpop.permute.xlu0 %4512
      %4516 = vset.pattern.permute.xlu0 0
      %4517 = vperm.xlu0 %4516, %v4509
      %v4518 = vpop.permute.xlu0 %4517
      %v4520 = vmul.f32 %v4502, %v4513
      %v4521 = vmul.f32 %v4505, %v4518
      %v4522 = vld [vmem:[%s75] sm:$0xff]
      %v4523 = vld [vmem:[%s75 + $0x8] sm:$0xff]
      %4525 = vset.pattern.permute.xlu0 0
      %4526 = vperm.xlu0 %4525, %v4522
      %v4527 = vpop.permute.xlu0 %4526
      %4530 = vset.pattern.permute.xlu0 0
      %4531 = vperm.xlu0 %4530, %v4523
      %v4532 = vpop.permute.xlu0 %4531
      %v4534 = vadd.f32 %v4520, %v4527
      %v4535 = vadd.f32 %v4521, %v4532
      %v4536 = vmax.f32 %v4534, 0.0
      %v4537 = vmax.f32 %v4535, 0.0
      %4538 = vst.msk [vmem:[#allocation2] sm:$0xff] %vm2645, 0
      %v4539 = vpack.c.bf16 %v4537, %v4536
      %4541 = vrot.lane.b32.xlu0 %v4539, 2
      %v4542 = vpop.permute.xlu0 %4541
      %vm4544 = vcmask 48144
      %4545 = vst.msk [vmem:[#allocation2] sm:$0xff] %vm4544, %v4542
      %v4546 = vld [vmem:[#allocation2] sm:$0xff]
      %4547 = vst.msk [vmem:[#allocation3] sm:$0xff] %vm2900, %v4546
      %v4548 = vld [vmem:[#allocation2] sm:$0xff]
      %4550 = vrot.lane.b32.xlu0 %v4548, 127
      %v4551 = vpop.permute.xlu0 %4550
      %4553 = vst.msk [vmem:[#allocation3 + $0x8] sm:$0xff] %vm2900, %v4551
      %v4554 = vld [vmem:[#allocation2] sm:$0xff]
      %4556 = vrot.lane.b32.xlu0 %v4554, 126
      %v4557 = vpop.permute.xlu0 %4556
      %4559 = vst.msk [vmem:[#allocation3 + $0x10] sm:$0xff] %vm2900, %v4557
      %v4560 = vld [vmem:[#allocation2] sm:$0xff]
      %4562 = vrot.lane.b32.xlu0 %v4560, 125
      %v4563 = vpop.permute.xlu0 %4562
      %4565 = vst.msk [vmem:[#allocation3 + $0x18] sm:$0xff] %vm2900, %v4563
      %v4566 = vld [vmem:[#allocation2] sm:$0xff]
      %4568 = vrot.lane.b32.xlu0 %v4566, 124
      %v4569 = vpop.permute.xlu0 %4568
      %4571 = vst.msk [vmem:[#allocation3 + $0x20] sm:$0xff] %vm2900, %v4569
      %v4572 = vld [vmem:[#allocation3] sm:$0xff]
      %v4573 = vld [vmem:[#allocation3 + $0x8] sm:$0xff]
      %v4574 = vld [vmem:[#allocation3 + $0x10] sm:$0xff]
      %v4575 = vld [vmem:[#allocation3 + $0x18] sm:$0xff]
      %v4576 = vld [vmem:[#allocation3 + $0x20] sm:$0xff]
      %v4577 = vld [vmem:[%s117] sm:$0xf]
      %v4578 = vld [vmem:[%s117 + $0x4] sm:$0xf]
      %v4579 = vld [vmem:[%s117 + $0x8] sm:$0xf]
      %v4580 = vld [vmem:[%s117 + $0xc] sm:$0xf]
      %v4581 = vld [vmem:[%s119] sm:$0xff]
      %v4582 = vld [vmem:[%s119 + $0x8] sm:$0xff]
      %v4583 = vld [vmem:[%s119 + $0x10] sm:$0xff]
      %v4584 = vld [vmem:[%s119 + $0x18] sm:$0xff]
      %4586 = vset.pattern.permute.xlu0 0
      %4587 = vperm.xlu0 %4586, %v4581
      %v4588 = vpop.permute.xlu0 %4587
      %4591 = vset.pattern.permute.xlu0 0
      %4592 = vperm.xlu0 %4591, %v4582
      %v4593 = vpop.permute.xlu0 %4592
      %4596 = vset.pattern.permute.xlu0 0
      %4597 = vperm.xlu0 %4596, %v4583
      %v4598 = vpop.permute.xlu0 %4597
      %4601 = vset.pattern.permute.xlu0 0
      %4602 = vperm.xlu0 %4601, %v4584
      %v4603 = vpop.permute.xlu0 %4602
      %v4609 = vunpack.c.l.b16 %v4577
      %v4610 = vunpack.c.l.b16 %v4578
      %v4611 = vunpack.c.l.b16 %v4579
      %v4612 = vunpack.c.l.b16 %v4580
      %v4613 = vpack.c.b16 %v4610, %v4609
      %v4614 = vpack.c.b16 %v4612, %v4611
      %vm4615 = vcmask 654336
      %v4617 = vsel %vm4615, %v4613, 0
      %v4620 = vsel %vm4615, %v4614, 0
      %4622 = vmatprep.subr.bf16.mxu0 0
      %4623 = vmatpush1.bf16.msra.mxu0 %v4572
      %4624 = vmatprep.subr.bf16.mxu0 0
      %4625 = vmatpush1.bf16.msra.mxu0 %v4573
      %4626 = vmatprep.subr.bf16.mxu0 0
      %4627 = vmatpush1.bf16.msra.mxu0 %v4574
      %4628 = vmatprep.subr.bf16.mxu0 0
      %4629 = vmatpush1.bf16.msra.mxu0 %v4575
      %4630 = vmatprep.subr.bf16.mxu0 0
      %4631 = vmatpush1.bf16.msra.mxu0 %v4576
      %4632 = vmatprep.subr.bf16.mxu0 0
      %4633 = vmatpush1.bf16.msra.mxu0 0
      %4634 = vmatprep.subr.bf16.mxu0 0
      %4635 = vmatpush1.bf16.msra.mxu0 0
      %4636 = vmatprep.subr.bf16.mxu0 0
      %4637 = vmatpush1.bf16.msra.mxu0 0
      %4638 = vmatprep.subr.bf16.mxu0 0
      %4639 = vmatpush1.bf16.msra.mxu0 0
      %4640 = vmatprep.subr.bf16.mxu0 0
      %4641 = vmatpush1.bf16.msra.mxu0 0
      %4642 = vmatprep.subr.bf16.mxu0 0
      %4643 = vmatpush1.bf16.msra.mxu0 0
      %4644 = vmatprep.subr.bf16.mxu0 0
      %4645 = vmatpush1.bf16.msra.mxu0 0
      %4646 = vmatprep.subr.bf16.mxu0 0
      %4647 = vmatpush1.bf16.msra.mxu0 0
      %4648 = vmatprep.subr.bf16.mxu0 0
      %4649 = vmatpush1.bf16.msra.mxu0 0
      %4650 = vmatprep.subr.bf16.mxu0 0
      %4651 = vmatpush1.bf16.msra.mxu0 0
      %4652 = vmatprep.subr.bf16.mxu0 0
      %4653 = vmatpush1.bf16.msra.mxu0 0
      %4654 = vmatprep.mubr.bf16.mxu0 0
      %4655 = vmatmul.mubr.bf16.gmra.mrb[0].mxu0 %v4617
      %v4656 = vpop.f32.mrb[0].mxu0
      %v4657 = vadd.f32 %v4588, %v4656
      %v4658 = vpop.f32.mrb[0].mxu0
      %v4659 = vpop.f32.mrb[0].mxu0
      %v4660 = vadd.f32 %v4593, %v4659
      %v4661 = vpop.f32.mrb[0].mxu0
      %4662 = vmatprep.mubr.bf16.mxu0 0
      %4663 = vmatmul.mubr.bf16.gmra.mrb[0].mxu0 %v4620
      %v4664 = vpop.f32.mrb[0].mxu0
      %v4665 = vadd.f32 %v4598, %v4664
      %v4666 = vpop.f32.mrb[0].mxu0
      %v4667 = vpop.f32.mrb[0].mxu0
      %v4668 = vadd.f32 %v4603, %v4667
      %v4669 = vpop.f32.mrb[0].mxu0
      %4670 = vdwg.mxu0
      %v4671 = vpack.c.bf16 %v4660, %v4657
      %v4672 = vpack.c.bf16 %v4668, %v4665
      %v4673 = vld [vmem:[%s7] sm:$0x3]
      %v4674 = vld [vmem:[%s9] sm:$0x3]
      %v4676 = vsel %vm2900, %v4672, 0
      %v4679 = vsel %vm2087, %v4674, 0
      %4681 = vmatprep.subr.bf16.mxu0 0
      %4682 = vmatpush1.bf16.msra.mxu0 %v4679
      %4683 = vmatprep.subr.bf16.mxu0 0
      %4684 = vmatpush1.bf16.msra.mxu0 0
      %4685 = vmatprep.subr.bf16.mxu0 0
      %4686 = vmatpush1.bf16.msra.mxu0 0
      %4687 = vmatprep.subr.bf16.mxu0 0
      %4688 = vmatpush1.bf16.msra.mxu0 0
      %4689 = vmatprep.subr.bf16.mxu0 0
      %4690 = vmatpush1.bf16.msra.mxu0 0
      %4691 = vmatprep.subr.bf16.mxu0 0
      %4692 = vmatpush1.bf16.msra.mxu0 0
      %4693 = vmatprep.subr.bf16.mxu0 0
      %4694 = vmatpush1.bf16.msra.mxu0 0
      %4695 = vmatprep.subr.bf16.mxu0 0
      %4696 = vmatpush1.bf16.msra.mxu0 0
      %4697 = vmatprep.subr.bf16.mxu0 0
      %4698 = vmatpush1.bf16.msra.mxu0 0
      %4699 = vmatprep.subr.bf16.mxu0 0
      %4700 = vmatpush1.bf16.msra.mxu0 0
      %4701 = vmatprep.subr.bf16.mxu0 0
      %4702 = vmatpush1.bf16.msra.mxu0 0
      %4703 = vmatprep.subr.bf16.mxu0 0
      %4704 = vmatpush1.bf16.msra.mxu0 0
      %4705 = vmatprep.subr.bf16.mxu0 0
      %4706 = vmatpush1.bf16.msra.mxu0 0
      %4707 = vmatprep.subr.bf16.mxu0 0
      %4708 = vmatpush1.bf16.msra.mxu0 0
      %4709 = vmatprep.subr.bf16.mxu0 0
      %4710 = vmatpush1.bf16.msra.mxu0 0
      %4711 = vmatprep.subr.bf16.mxu0 0
      %4712 = vmatpush1.bf16.msra.mxu0 0
      %4713 = vmatprep.mubr.bf16.mxu0 0
      %4714 = vmatmul.mubr.bf16.gmra.mrb[0].mxu0 %v4676
      %v4715 = vpop.f32.mrb[0].mxu0
      %v4716 = vadd.f32 0.0, %v4715
      %v4717 = vpop.f32.mrb[0].mxu0
      %v4718 = vpop.f32.mrb[0].mxu0
      %v4719 = vadd.f32 0.0, %v4718
      %v4720 = vpop.f32.mrb[0].mxu0
      %4721 = vdwg.mxu0
      %v4723 = vsel %vm2900, %v4671, 0
      %v4726 = vsel %vm2087, %v4673, 0
      %4728 = vmatprep.subr.bf16.mxu0 0
      %4729 = vmatpush1.bf16.msra.mxu0 %v4726
      %4730 = vmatprep.subr.bf16.mxu0 0
      %4731 = vmatpush1.bf16.msra.mxu0 0
      %4732 = vmatprep.subr.bf16.mxu0 0
      %4733 = vmatpush1.bf16.msra.mxu0 0
      %4734 = vmatprep.subr.bf16.mxu0 0
      %4735 = vmatpush1.bf16.msra.mxu0 0
      %4736 = vmatprep.subr.bf16.mxu0 0
      %4737 = vmatpush1.bf16.msra.mxu0 0
      %4738 = vmatprep.subr.bf16.mxu0 0
      %4739 = vmatpush1.bf16.msra.mxu0 0
      %4740 = vmatprep.subr.bf16.mxu0 0
      %4741 = vmatpush1.bf16.msra.mxu0 0
      %4742 = vmatprep.subr.bf16.mxu0 0
      %4743 = vmatpush1.bf16.msra.mxu0 0
      %4744 = vmatprep.subr.bf16.mxu0 0
      %4745 = vmatpush1.bf16.msra.mxu0 0
      %4746 = vmatprep.subr.bf16.mxu0 0
      %4747 = vmatpush1.bf16.msra.mxu0 0
      %4748 = vmatprep.subr.bf16.mxu0 0
      %4749 = vmatpush1.bf16.msra.mxu0 0
      %4750 = vmatprep.subr.bf16.mxu0 0
      %4751 = vmatpush1.bf16.msra.mxu0 0
      %4752 = vmatprep.subr.bf16.mxu0 0
      %4753 = vmatpush1.bf16.msra.mxu0 0
      %4754 = vmatprep.subr.bf16.mxu0 0
      %4755 = vmatpush1.bf16.msra.mxu0 0
      %4756 = vmatprep.subr.bf16.mxu0 0
      %4757 = vmatpush1.bf16.msra.mxu0 0
      %4758 = vmatprep.subr.bf16.mxu0 0
      %4759 = vmatpush1.bf16.msra.mxu0 0
      %4760 = vmatprep.mubr.bf16.mxu0 0
      %4761 = vmatmul.mubr.bf16.gmra.mrb[0].mxu0 %v4723
      %v4762 = vpop.f32.mrb[0].mxu0
      %v4763 = vadd.f32 %v4716, %v4762
      %v4764 = vpop.f32.mrb[0].mxu0
      %v4765 = vpop.f32.mrb[0].mxu0
      %v4766 = vadd.f32 %v4719, %v4765
      %v4767 = vpop.f32.mrb[0].mxu0
      %4768 = vdwg.mxu0
      %4769 = vst.msk [vmem:[#allocation2] sm:$0xf] %vm2509, 0
      %4771 = vrot.lane.b32.xlu0 %v2642, 4
      %v4772 = vpop.permute.xlu0 %4771
      %4774 = vst.msk [vmem:[#allocation2] sm:$0xf] %vm2516, %v4772
      %vm4775 = vcmask 130052
      %4776 = vst.msk [vmem:[#allocation2] sm:$0xf0] %vm4775, 0
      %4777 = vst.msk [vmem:[#allocation2 + $0x8] sm:$0xf] %vm2509, 0
      %v4778 = vpack.c.bf16 %v4766, %v4763
      %v4780 = vrot.slane %v4778, 4
      %4781 = vrot.lane.b32.xlu0 %v4780, 4
      %v4782 = vpop.permute.xlu0 %4781
      %vm4784 = vcmask 97316
      %4785 = vst.msk [vmem:[#allocation2] sm:$0xf0] %vm4784, %v4782
      %4786 = vst.msk [vmem:[#allocation2 + $0x8] sm:$0xf] %vm2516, %v4782
      %v4787 = vld [vmem:[#allocation2] sm:$0xff]
      %v4788 = vld [vmem:[#allocation2 + $0x8] sm:$0xf]
      %4789 = vst.msk [vmem:[#allocation3] sm:$0xff] %vm2645, %v4787
      %4790 = vst.msk [vmem:[#allocation3 + $0x8] sm:$0xf] %vm2519, %v4788
      %v4791 = vld [vmem:[#allocation2] sm:$0xff]
      %v4792 = vld [vmem:[#allocation2 + $0x8] sm:$0xf]
      %vm4795 = vcmask 1043456
      %v4796 = vrot.slane %v4791, 4
      %v4797 = vrot.slane %v4792, 4
      %v4798 = vsel %vm4795, %v4796, %v4797
      %4799 = vrot.lane.b32.xlu0 %v4796, 127
      %v4800 = vpop.permute.xlu0 %4799
      %4801 = vrot.lane.b32.xlu0 %v4798, 127
      %v4802 = vpop.permute.xlu0 %4801
      %4805 = vst.msk [vmem:[#allocation3 + $0x8] sm:$0xf0] %vm2527, %v4800
      %4806 = vst.msk [vmem:[#allocation3 + $0x10] sm:$0xff] %vm2645, %v4802
      %v4807 = vld [vmem:[#allocation2] sm:$0xff]
      %v4808 = vld [vmem:[#allocation2 + $0x8] sm:$0xf]
      %4811 = vrot.lane.b32.xlu0 %v4807, 126
      %v4812 = vpop.permute.xlu0 %4811
      %4813 = vrot.lane.b32.xlu0 %v4808, 126
      %v4814 = vpop.permute.xlu0 %4813
      %4817 = vst.msk [vmem:[#allocation3 + $0x18] sm:$0xff] %vm2645, %v4812
      %4818 = vst.msk [vmem:[#allocation3 + $0x20] sm:$0xf] %vm2519, %v4814
      %v4819 = vld [vmem:[#allocation2] sm:$0xff]
      %v4820 = vld [vmem:[#allocation2 + $0x8] sm:$0xf]
      %v4823 = vrot.slane %v4819, 4
      %v4824 = vrot.slane %v4820, 4
      %v4825 = vsel %vm4795, %v4823, %v4824
      %4826 = vrot.lane.b32.xlu0 %v4823, 125
      %v4827 = vpop.permute.xlu0 %4826
      %4828 = vrot.lane.b32.xlu0 %v4825, 125
      %v4829 = vpop.permute.xlu0 %4828
      %4832 = vst.msk [vmem:[#allocation3 + $0x20] sm:$0xf0] %vm2527, %v4827
      %4833 = vst.msk [vmem:[#allocation3 + $0x28] sm:$0xff] %vm2645, %v4829
      %v4834 = vld [vmem:[#allocation2] sm:$0xff]
      %v4835 = vld [vmem:[#allocation2 + $0x8] sm:$0xf]
      %4838 = vrot.lane.b32.xlu0 %v4834, 124
      %v4839 = vpop.permute.xlu0 %4838
      %4840 = vrot.lane.b32.xlu0 %v4835, 124
      %v4841 = vpop.permute.xlu0 %4840
      %4844 = vst.msk [vmem:[#allocation3 + $0x30] sm:$0xff] %vm2645, %v4839
      %4845 = vst.msk [vmem:[#allocation3 + $0x38] sm:$0xf] %vm2519, %v4841
      %v4846 = vld [vmem:[#allocation2] sm:$0xff]
      %v4847 = vld [vmem:[#allocation2 + $0x8] sm:$0xf]
      %v4850 = vrot.slane %v4846, 4
      %v4851 = vrot.slane %v4847, 4
      %v4852 = vsel %vm4795, %v4850, %v4851
      %4853 = vrot.lane.b32.xlu0 %v4850, 123
      %v4854 = vpop.permute.xlu0 %4853
      %4855 = vrot.lane.b32.xlu0 %v4852, 123
      %v4856 = vpop.permute.xlu0 %4855
      %4859 = vst.msk [vmem:[#allocation3 + $0x38] sm:$0xf0] %vm2527, %v4854
      %4860 = vst.msk [vmem:[#allocation3 + $0x40] sm:$0xff] %vm2645, %v4856
      %v4861 = vld [vmem:[#allocation2] sm:$0xff]
      %v4862 = vld [vmem:[#allocation2 + $0x8] sm:$0xf]
      %4865 = vrot.lane.b32.xlu0 %v4861, 122
      %v4866 = vpop.permute.xlu0 %4865
      %4867 = vrot.lane.b32.xlu0 %v4862, 122
      %v4868 = vpop.permute.xlu0 %4867
      %4871 = vst.msk [vmem:[#allocation3 + $0x48] sm:$0xff] %vm2645, %v4866
      %4872 = vst.msk [vmem:[#allocation3 + $0x50] sm:$0xf] %vm2519, %v4868
      %v4873 = vld [vmem:[#allocation2] sm:$0xff]
      %v4874 = vld [vmem:[#allocation2 + $0x8] sm:$0xf]
      %v4877 = vrot.slane %v4873, 4
      %v4878 = vrot.slane %v4874, 4
      %v4879 = vsel %vm4795, %v4877, %v4878
      %4880 = vrot.lane.b32.xlu0 %v4877, 121
      %v4881 = vpop.permute.xlu0 %4880
      %4882 = vrot.lane.b32.xlu0 %v4879, 121
      %v4883 = vpop.permute.xlu0 %4882
      %4886 = vst.msk [vmem:[#allocation3 + $0x50] sm:$0xf0] %vm2527, %v4881
      %4887 = vst.msk [vmem:[#allocation3 + $0x58] sm:$0xff] %vm2645, %v4883
      %v4888 = vld [vmem:[#allocation2] sm:$0xff]
      %v4889 = vld [vmem:[#allocation2 + $0x8] sm:$0xf]
      %4892 = vrot.lane.b32.xlu0 %v4888, 120
      %v4893 = vpop.permute.xlu0 %4892
      %4894 = vrot.lane.b32.xlu0 %v4889, 120
      %v4895 = vpop.permute.xlu0 %4894
      %4898 = vst.msk [vmem:[#allocation3 + $0x60] sm:$0xff] %vm2645, %v4893
      %4899 = vst.msk [vmem:[#allocation3 + $0x68] sm:$0xf] %vm2519, %v4895
      %v4900 = vld [vmem:[#allocation3] sm:$0xff]
      %v4901 = vld [vmem:[#allocation3 + $0x8] sm:$0xff]
      %v4902 = vld [vmem:[#allocation3 + $0x10] sm:$0xff]
      %v4903 = vld [vmem:[#allocation3 + $0x18] sm:$0xff]
      %v4904 = vld [vmem:[#allocation3 + $0x20] sm:$0xff]
      %v4905 = vld [vmem:[#allocation3 + $0x28] sm:$0xff]
      %v4906 = vld [vmem:[#allocation3 + $0x30] sm:$0xff]
      %v4907 = vld [vmem:[#allocation3 + $0x38] sm:$0xff]
      %v4908 = vld [vmem:[#allocation3 + $0x40] sm:$0xff]
      %v4909 = vld [vmem:[#allocation3 + $0x48] sm:$0xff]
      %v4910 = vld [vmem:[#allocation3 + $0x50] sm:$0xff]
      %v4911 = vld [vmem:[#allocation3 + $0x58] sm:$0xff]
      %v4912 = vld [vmem:[#allocation3 + $0x60] sm:$0xff]
      %v4913 = vld [vmem:[#allocation3 + $0x68] sm:$0xf]
      %v4914 = vld [vmem:[%s77] sm:$0xff]
      %v4916 = vunpack.c.l.b16 %v4914
      %v4917 = vunpack.c.h.b16 %v4914
      %v4918 = vpack.c.b16 %v4916, %v4916
      %v4919 = vpack.c.b16 %v4917, %v4917
      %vm4921 = vcmask 719872
      %v4923 = vsel %vm4921, %v4919, 0
      %v4926 = vsel %vm1948, %v4913, 0
      %4928 = vmatprep.subr.bf16.mxu0 0
      %4929 = vmatpush1.bf16.msra.mxu0 %v4900
      %4930 = vmatprep.subr.bf16.mxu0 0
      %4931 = vmatpush1.bf16.msra.mxu0 %v4901
      %4932 = vmatprep.subr.bf16.mxu0 0
      %4933 = vmatpush1.bf16.msra.mxu0 %v4902
      %4934 = vmatprep.subr.bf16.mxu0 0
      %4935 = vmatpush1.bf16.msra.mxu0 %v4903
      %4936 = vmatprep.subr.bf16.mxu0 0
      %4937 = vmatpush1.bf16.msra.mxu0 %v4904
      %4938 = vmatprep.subr.bf16.mxu0 0
      %4939 = vmatpush1.bf16.msra.mxu0 %v4905
      %4940 = vmatprep.subr.bf16.mxu0 0
      %4941 = vmatpush1.bf16.msra.mxu0 %v4906
      %4942 = vmatprep.subr.bf16.mxu0 0
      %4943 = vmatpush1.bf16.msra.mxu0 %v4907
      %4944 = vmatprep.subr.bf16.mxu0 0
      %4945 = vmatpush1.bf16.msra.mxu0 %v4908
      %4946 = vmatprep.subr.bf16.mxu0 0
      %4947 = vmatpush1.bf16.msra.mxu0 %v4909
      %4948 = vmatprep.subr.bf16.mxu0 0
      %4949 = vmatpush1.bf16.msra.mxu0 %v4910
      %4950 = vmatprep.subr.bf16.mxu0 0
      %4951 = vmatpush1.bf16.msra.mxu0 %v4911
      %4952 = vmatprep.subr.bf16.mxu0 0
      %4953 = vmatpush1.bf16.msra.mxu0 %v4912
      %4954 = vmatprep.subr.bf16.mxu0 0
      %4955 = vmatpush1.bf16.msra.mxu0 %v4926
      %4956 = vmatprep.subr.bf16.mxu0 0
      %4957 = vmatpush1.bf16.msra.mxu0 0
      %4958 = vmatprep.subr.bf16.mxu0 0
      %4959 = vmatpush1.bf16.msra.mxu0 0
      %4960 = vmatprep.mubr.bf16.mxu0 %v4923
      %4961 = vmatmul.mubr.bf16.gmra.mrb[0].mxu0 %v4918
      %v4962 = vpop.f32.mrb[0].mxu0
      %v4963 = vadd.f32 0.0, %v4962
      %v4964 = vpop.f32.mrb[0].mxu0
      %v4965 = vpop.f32.mrb[0].mxu0
      %v4966 = vpop.f32.mrb[0].mxu0
      %4967 = vdwg.mxu0
      %v4968 = vld [vmem:[%s79] sm:$0xff]
      %4970 = vset.pattern.permute.xlu0 0
      %4971 = vperm.xlu0 %4970, %v4968
      %v4972 = vpop.permute.xlu0 %4971
      %v4974 = vmul.f32 %v4963, %v4972
      %v4975 = vld [vmem:[%s81] sm:$0xff]
      %4977 = vset.pattern.permute.xlu0 0
      %4978 = vperm.xlu0 %4977, %v4975
      %v4979 = vpop.permute.xlu0 %4978
      %v4981 = vadd.f32 %v4974, %v4979
      %v4982 = vmax.f32 %v4981, 0.0
      %4983 = vst.msk [vmem:[#allocation2] sm:$0xf] %vm2509, 0
      %v4984 = vpack.c.bf16 %v4982, %v4982
      %4986 = vrot.lane.b32.xlu0 %v4984, 4
      %v4987 = vpop.permute.xlu0 %4986
      %4989 = vst.msk [vmem:[#allocation2] sm:$0xf] %vm2516, %v4987
      %v4990 = vld [vmem:[#allocation2] sm:$0xf]
      %4991 = vst.msk [vmem:[#allocation3] sm:$0xf] %vm2519, %v4990
      %v4992 = vld [vmem:[#allocation2] sm:$0xf]
      %v4994 = vrot.slane %v4992, 4
      %4995 = vrot.lane.b32.xlu0 %v4994, 127
      %v4996 = vpop.permute.xlu0 %4995
      %4998 = vst.msk [vmem:[#allocation3] sm:$0xf0] %vm2527, %v4996
      %v4999 = vld [vmem:[#allocation2] sm:$0xf]
      %5001 = vrot.lane.b32.xlu0 %v4999, 126
      %v5002 = vpop.permute.xlu0 %5001
      %5004 = vst.msk [vmem:[#allocation3 + $0x8] sm:$0xf] %vm2519, %v5002
      %v5005 = vld [vmem:[#allocation2] sm:$0xf]
      %v5007 = vrot.slane %v5005, 4
      %5008 = vrot.lane.b32.xlu0 %v5007, 125
      %v5009 = vpop.permute.xlu0 %5008
      %5011 = vst.msk [vmem:[#allocation3 + $0x8] sm:$0xf0] %vm2527, %v5009
      %v5012 = vld [vmem:[#allocation2] sm:$0xf]
      %5014 = vrot.lane.b32.xlu0 %v5012, 124
      %v5015 = vpop.permute.xlu0 %5014
      %5017 = vst.msk [vmem:[#allocation3 + $0x10] sm:$0xf] %vm2519, %v5015
      %v5018 = vld [vmem:[#allocation2] sm:$0xf]
      %v5020 = vrot.slane %v5018, 4
      %5021 = vrot.lane.b32.xlu0 %v5020, 123
      %v5022 = vpop.permute.xlu0 %5021
      %5024 = vst.msk [vmem:[#allocation3 + $0x10] sm:$0xf0] %vm2527, %v5022
      %v5025 = vld [vmem:[#allocation2] sm:$0xf]
      %5027 = vrot.lane.b32.xlu0 %v5025, 122
      %v5028 = vpop.permute.xlu0 %5027
      %5030 = vst.msk [vmem:[#allocation3 + $0x18] sm:$0xf] %vm2519, %v5028
      %v5031 = vld [vmem:[#allocation2] sm:$0xf]
      %v5033 = vrot.slane %v5031, 4
      %5034 = vrot.lane.b32.xlu0 %v5033, 121
      %v5035 = vpop.permute.xlu0 %5034
      %5037 = vst.msk [vmem:[#allocation3 + $0x18] sm:$0xf0] %vm2527, %v5035
      %v5038 = vld [vmem:[#allocation2] sm:$0xf]
      %5040 = vrot.lane.b32.xlu0 %v5038, 120
      %v5041 = vpop.permute.xlu0 %5040
      %5043 = vst.msk [vmem:[#allocation3 + $0x20] sm:$0xf] %vm2519, %v5041
      %v5044 = vld [vmem:[#allocation3] sm:$0xff]
      %v5045 = vld [vmem:[#allocation3 + $0x8] sm:$0xff]
      %v5046 = vld [vmem:[#allocation3 + $0x10] sm:$0xff]
      %v5047 = vld [vmem:[#allocation3 + $0x18] sm:$0xff]
      %v5048 = vld [vmem:[#allocation3 + $0x20] sm:$0xf]
      %v5049 = vld [vmem:[%s83] sm:$0xf]
      %v5051 = vsel %vm2580, %v5049, 0
      %v5054 = vsel %vm1948, %v5048, 0
      %5056 = vmatprep.subr.bf16.mxu0 0
      %5057 = vmatpush1.bf16.msra.mxu0 %v5044
      %5058 = vmatprep.subr.bf16.mxu0 0
      %5059 = vmatpush1.bf16.msra.mxu0 %v5045
      %5060 = vmatprep.subr.bf16.mxu0 0
      %5061 = vmatpush1.bf16.msra.mxu0 %v5046
      %5062 = vmatprep.subr.bf16.mxu0 0
      %5063 = vmatpush1.bf16.msra.mxu0 %v5047
      %5064 = vmatprep.subr.bf16.mxu0 0
      %5065 = vmatpush1.bf16.msra.mxu0 %v5054
      %5066 = vmatprep.subr.bf16.mxu0 0
      %5067 = vmatpush1.bf16.msra.mxu0 0
      %5068 = vmatprep.subr.bf16.mxu0 0
      %5069 = vmatpush1.bf16.msra.mxu0 0
      %5070 = vmatprep.subr.bf16.mxu0 0
      %5071 = vmatpush1.bf16.msra.mxu0 0
      %5072 = vmatprep.subr.bf16.mxu0 0
      %5073 = vmatpush1.bf16.msra.mxu0 0
      %5074 = vmatprep.subr.bf16.mxu0 0
      %5075 = vmatpush1.bf16.msra.mxu0 0
      %5076 = vmatprep.subr.bf16.mxu0 0
      %5077 = vmatpush1.bf16.msra.mxu0 0
      %5078 = vmatprep.subr.bf16.mxu0 0
      %5079 = vmatpush1.bf16.msra.mxu0 0
      %5080 = vmatprep.subr.bf16.mxu0 0
      %5081 = vmatpush1.bf16.msra.mxu0 0
      %5082 = vmatprep.subr.bf16.mxu0 0
      %5083 = vmatpush1.bf16.msra.mxu0 0
      %5084 = vmatprep.subr.bf16.mxu0 0
      %5085 = vmatpush1.bf16.msra.mxu0 0
      %5086 = vmatprep.subr.bf16.mxu0 0
      %5087 = vmatpush1.bf16.msra.mxu0 0
      %5088 = vmatprep.mubr.bf16.mxu0 0
      %5089 = vmatmul.mubr.bf16.gmra.mrb[0].mxu0 %v5051
      %v5090 = vpop.f32.mrb[0].mxu0
      %v5091 = vadd.f32 0.0, %v5090
      %v5092 = vpop.f32.mrb[0].mxu0
      %v5093 = vpop.f32.mrb[0].mxu0
      %v5094 = vpop.f32.mrb[0].mxu0
      %5095 = vdwg.mxu0
      %v5096 = vld [vmem:[%s85] sm:$0xff]
      %5098 = vset.pattern.permute.xlu0 0
      %5099 = vperm.xlu0 %5098, %v5096
      %v5100 = vpop.permute.xlu0 %5099
      %v5102 = vmul.f32 %v5091, %v5100
      %v5103 = vld [vmem:[%s87] sm:$0xff]
      %5105 = vset.pattern.permute.xlu0 0
      %5106 = vperm.xlu0 %5105, %v5103
      %v5107 = vpop.permute.xlu0 %5106
      %v5109 = vadd.f32 %v5102, %v5107
      %v5110 = vmax.f32 %v5109, 0.0
      %5111 = vst.msk [vmem:[#allocation2] sm:$0xf] %vm2736, 0
      %v5112 = vpack.c.bf16 %v5110, %v5110
      %5114 = vrot.lane.b32.xlu0 %v5112, 2
      %v5115 = vpop.permute.xlu0 %5114
      %vm5117 = vcmask 76816
      %5118 = vst.msk [vmem:[#allocation2] sm:$0xf] %vm5117, %v5115
      %v5119 = vld [vmem:[#allocation2] sm:$0xf]
      %5120 = vst.msk [vmem:[#allocation3] sm:$0xf] %vm2519, %v5119
      %v5121 = vld [vmem:[#allocation2] sm:$0xf]
      %v5123 = vrot.slane %v5121, 4
      %5124 = vrot.lane.b32.xlu0 %v5123, 127
      %v5125 = vpop.permute.xlu0 %5124
      %5127 = vst.msk [vmem:[#allocation3] sm:$0xf0] %vm2527, %v5125
      %v5128 = vld [vmem:[#allocation2] sm:$0xf]
      %5130 = vrot.lane.b32.xlu0 %v5128, 126
      %v5131 = vpop.permute.xlu0 %5130
      %5133 = vst.msk [vmem:[#allocation3 + $0x8] sm:$0xf] %vm2519, %v5131
      %v5134 = vld [vmem:[#allocation2] sm:$0xf]
      %v5136 = vrot.slane %v5134, 4
      %5137 = vrot.lane.b32.xlu0 %v5136, 125
      %v5138 = vpop.permute.xlu0 %5137
      %5140 = vst.msk [vmem:[#allocation3 + $0x8] sm:$0xf0] %vm2527, %v5138
      %v5141 = vld [vmem:[#allocation2] sm:$0xf]
      %5143 = vrot.lane.b32.xlu0 %v5141, 124
      %v5144 = vpop.permute.xlu0 %5143
      %5146 = vst.msk [vmem:[#allocation3 + $0x10] sm:$0xf] %vm2519, %v5144
      %v5147 = vld [vmem:[#allocation3] sm:$0xff]
      %v5148 = vld [vmem:[#allocation3 + $0x8] sm:$0xff]
      %v5149 = vld [vmem:[#allocation3 + $0x10] sm:$0xf]
      %v5150 = vld [vmem:[%s121] sm:$0xf]
      %v5151 = vld [vmem:[%s121 + $0x4] sm:$0xf]
      %v5152 = vld [vmem:[%s123] sm:$0xff]
      %v5153 = vld [vmem:[%s123 + $0x8] sm:$0xff]
      %5155 = vset.pattern.permute.xlu0 0
      %5156 = vperm.xlu0 %5155, %v5152
      %v5157 = vpop.permute.xlu0 %5156
      %5160 = vset.pattern.permute.xlu0 0
      %5161 = vperm.xlu0 %5160, %v5153
      %v5162 = vpop.permute.xlu0 %5161
      %v5166 = vunpack.c.l.b16 %v5150
      %v5167 = vunpack.c.l.b16 %v5151
      %v5168 = vpack.c.b16 %v5167, %v5166
      %vm5169 = vcmask 326656
      %v5171 = vsel %vm5169, %v5168, 0
      %v5174 = vsel %vm1948, %v5149, 0
      %5176 = vmatprep.subr.bf16.mxu0 0
      %5177 = vmatpush1.bf16.msra.mxu0 %v5147
      %5178 = vmatprep.subr.bf16.mxu0 0
      %5179 = vmatpush1.bf16.msra.mxu0 %v5148
      %5180 = vmatprep.subr.bf16.mxu0 0
      %5181 = vmatpush1.bf16.msra.mxu0 %v5174
      %5182 = vmatprep.subr.bf16.mxu0 0
      %5183 = vmatpush1.bf16.msra.mxu0 0
      %5184 = vmatprep.subr.bf16.mxu0 0
      %5185 = vmatpush1.bf16.msra.mxu0 0
      %5186 = vmatprep.subr.bf16.mxu0 0
      %5187 = vmatpush1.bf16.msra.mxu0 0
      %5188 = vmatprep.subr.bf16.mxu0 0
      %5189 = vmatpush1.bf16.msra.mxu0 0
      %5190 = vmatprep.subr.bf16.mxu0 0
      %5191 = vmatpush1.bf16.msra.mxu0 0
      %5192 = vmatprep.subr.bf16.mxu0 0
      %5193 = vmatpush1.bf16.msra.mxu0 0
      %5194 = vmatprep.subr.bf16.mxu0 0
      %5195 = vmatpush1.bf16.msra.mxu0 0
      %5196 = vmatprep.subr.bf16.mxu0 0
      %5197 = vmatpush1.bf16.msra.mxu0 0
      %5198 = vmatprep.subr.bf16.mxu0 0
      %5199 = vmatpush1.bf16.msra.mxu0 0
      %5200 = vmatprep.subr.bf16.mxu0 0
      %5201 = vmatpush1.bf16.msra.mxu0 0
      %5202 = vmatprep.subr.bf16.mxu0 0
      %5203 = vmatpush1.bf16.msra.mxu0 0
      %5204 = vmatprep.subr.bf16.mxu0 0
      %5205 = vmatpush1.bf16.msra.mxu0 0
      %5206 = vmatprep.subr.bf16.mxu0 0
      %5207 = vmatpush1.bf16.msra.mxu0 0
      %5208 = vmatprep.mubr.bf16.mxu0 0
      %5209 = vmatmul.mubr.bf16.gmra.mrb[0].mxu0 %v5171
      %v5210 = vpop.f32.mrb[0].mxu0
      %v5211 = vadd.f32 %v5157, %v5210
      %v5212 = vpop.f32.mrb[0].mxu0
      %v5213 = vpop.f32.mrb[0].mxu0
      %v5214 = vadd.f32 %v5162, %v5213
      %v5215 = vpop.f32.mrb[0].mxu0
      %5216 = vdwg.mxu0
      %v5217 = vpack.c.bf16 %v5211, %v5211
      %v5218 = vpack.c.bf16 %v5214, %v5214
      %v5219 = vld [vmem:[%s7] sm:$0xf]
      %v5220 = vld [vmem:[%s9] sm:$0xf]
      %v5222 = vsel %vm2645, %v5218, 0
      %v5225 = vsel %vm1948, %v5220, 0
      %5227 = vmatprep.subr.bf16.mxu0 0
      %5228 = vmatpush1.bf16.msra.mxu0 %v5225
      %5229 = vmatprep.subr.bf16.mxu0 0
      %5230 = vmatpush1.bf16.msra.mxu0 0
      %5231 = vmatprep.subr.bf16.mxu0 0
      %5232 = vmatpush1.bf16.msra.mxu0 0
      %5233 = vmatprep.subr.bf16.mxu0 0
      %5234 = vmatpush1.bf16.msra.mxu0 0
      %5235 = vmatprep.subr.bf16.mxu0 0
      %5236 = vmatpush1.bf16.msra.mxu0 0
      %5237 = vmatprep.subr.bf16.mxu0 0
      %5238 = vmatpush1.bf16.msra.mxu0 0
      %5239 = vmatprep.subr.bf16.mxu0 0
      %5240 = vmatpush1.bf16.msra.mxu0 0
      %5241 = vmatprep.subr.bf16.mxu0 0
      %5242 = vmatpush1.bf16.msra.mxu0 0
      %5243 = vmatprep.subr.bf16.mxu0 0
      %5244 = vmatpush1.bf16.msra.mxu0 0
      %5245 = vmatprep.subr.bf16.mxu0 0
      %5246 = vmatpush1.bf16.msra.mxu0 0
      %5247 = vmatprep.subr.bf16.mxu0 0
      %5248 = vmatpush1.bf16.msra.mxu0 0
      %5249 = vmatprep.subr.bf16.mxu0 0
      %5250 = vmatpush1.bf16.msra.mxu0 0
      %5251 = vmatprep.subr.bf16.mxu0 0
      %5252 = vmatpush1.bf16.msra.mxu0 0
      %5253 = vmatprep.subr.bf16.mxu0 0
      %5254 = vmatpush1.bf16.msra.mxu0 0
      %5255 = vmatprep.subr.bf16.mxu0 0
      %5256 = vmatpush1.bf16.msra.mxu0 0
      %5257 = vmatprep.subr.bf16.mxu0 0
      %5258 = vmatpush1.bf16.msra.mxu0 0
      %5259 = vmatprep.mubr.bf16.mxu0 0
      %5260 = vmatmul.mubr.bf16.gmra.mrb[0].mxu0 %v5222
      %v5261 = vpop.f32.mrb[0].mxu0
      %v5262 = vadd.f32 0.0, %v5261
      %v5263 = vpop.f32.mrb[0].mxu0
      %v5264 = vpop.f32.mrb[0].mxu0
      %v5265 = vpop.f32.mrb[0].mxu0
      %5266 = vdwg.mxu0
      %v5268 = vsel %vm2645, %v5217, 0
      %v5271 = vsel %vm1948, %v5219, 0
      %5273 = vmatprep.subr.bf16.mxu0 0
      %5274 = vmatpush1.bf16.msra.mxu0 %v5271
      %5275 = vmatprep.subr.bf16.mxu0 0
      %5276 = vmatpush1.bf16.msra.mxu0 0
      %5277 = vmatprep.subr.bf16.mxu0 0
      %5278 = vmatpush1.bf16.msra.mxu0 0
      %5279 = vmatprep.subr.bf16.mxu0 0
      %5280 = vmatpush1.bf16.msra.mxu0 0
      %5281 = vmatprep.subr.bf16.mxu0 0
      %5282 = vmatpush1.bf16.msra.mxu0 0
      %5283 = vmatprep.subr.bf16.mxu0 0
      %5284 = vmatpush1.bf16.msra.mxu0 0
      %5285 = vmatprep.subr.bf16.mxu0 0
      %5286 = vmatpush1.bf16.msra.mxu0 0
      %5287 = vmatprep.subr.bf16.mxu0 0
      %5288 = vmatpush1.bf16.msra.mxu0 0
      %5289 = vmatprep.subr.bf16.mxu0 0
      %5290 = vmatpush1.bf16.msra.mxu0 0
      %5291 = vmatprep.subr.bf16.mxu0 0
      %5292 = vmatpush1.bf16.msra.mxu0 0
      %5293 = vmatprep.subr.bf16.mxu0 0
      %5294 = vmatpush1.bf16.msra.mxu0 0
      %5295 = vmatprep.subr.bf16.mxu0 0
      %5296 = vmatpush1.bf16.msra.mxu0 0
      %5297 = vmatprep.subr.bf16.mxu0 0
      %5298 = vmatpush1.bf16.msra.mxu0 0
      %5299 = vmatprep.subr.bf16.mxu0 0
      %5300 = vmatpush1.bf16.msra.mxu0 0
      %5301 = vmatprep.subr.bf16.mxu0 0
      %5302 = vmatpush1.bf16.msra.mxu0 0
      %5303 = vmatprep.subr.bf16.mxu0 0
      %5304 = vmatpush1.bf16.msra.mxu0 0
      %5305 = vmatprep.mubr.bf16.mxu0 0
      %5306 = vmatmul.mubr.bf16.gmra.mrb[0].mxu0 %v5268
      %v5307 = vpop.f32.mrb[0].mxu0
      %v5308 = vadd.f32 %v5262, %v5307
      %v5309 = vpop.f32.mrb[0].mxu0
      %v5310 = vpop.f32.mrb[0].mxu0
      %v5311 = vpop.f32.mrb[0].mxu0
      %5312 = vdwg.mxu0
      %5313 = vst.msk [vmem:[#allocation2] sm:$0x3] %vm2010, 0
      %5315 = vrot.lane.b32.xlu0 %v2274, 4
      %v5316 = vpop.permute.xlu0 %5315
      %5318 = vst.msk [vmem:[#allocation2] sm:$0x3] %vm2017, %v5316
      %vm5319 = vcmask 193538
      %5320 = vst.msk [vmem:[#allocation2] sm:$0x3c] %vm5319, 0
      %v5321 = vpack.c.bf16 %v5308, %v5308
      %v5323 = vrot.slane %v5321, 6
      %5324 = vrot.lane.b32.xlu0 %v5323, 4
      %v5325 = vpop.permute.xlu0 %5324
      %vm5327 = vcmask 160802
      %5328 = vst.msk [vmem:[#allocation2] sm:$0x3c] %vm5327, %v5325
      %v5329 = vld [vmem:[#allocation2] sm:$0x3f]
      %vm5330 = vcmask 128000
      %5331 = vst.msk [vmem:[#allocation3] sm:$0x3f] %vm5330, %v5329
      %v5332 = vld [vmem:[#allocation2] sm:$0x3f]
      %v5334 = vrot.slane %v5332, 2
      %5335 = vrot.lane.b32.xlu0 %v5334, 127
      %v5336 = vpop.permute.xlu0 %5335
      %5338 = vst.msk [vmem:[#allocation3] sm:$0xc0] %vm2044, %v5336
      %5339 = vst.msk [vmem:[#allocation3 + $0x8] sm:$0xf] %vm2509, %v5336
      %v5340 = vld [vmem:[#allocation2] sm:$0x3f]
      %v5342 = vrot.slane %v5340, 4
      %5343 = vrot.lane.b32.xlu0 %v5342, 126
      %v5344 = vpop.permute.xlu0 %5343
      %5346 = vst.msk [vmem:[#allocation3 + $0x8] sm:$0xf0] %vm4775, %v5344
      %5347 = vst.msk [vmem:[#allocation3 + $0x10] sm:$0x3] %vm2020, %v5344
      %v5348 = vld [vmem:[#allocation2] sm:$0x3f]
      %v5350 = vrot.slane %v5348, 6
      %5351 = vrot.lane.b32.xlu0 %v5350, 125
      %v5352 = vpop.permute.xlu0 %5351
      %vm5354 = vcmask 130050
      %5355 = vst.msk [vmem:[#allocation3 + $0x10] sm:$0xfc] %vm5354, %v5352
      %v5356 = vld [vmem:[#allocation2] sm:$0x3f]
      %5358 = vrot.lane.b32.xlu0 %v5356, 124
      %v5359 = vpop.permute.xlu0 %5358
      %5361 = vst.msk [vmem:[#allocation3 + $0x18] sm:$0x3f] %vm5330, %v5359
      %v5362 = vld [vmem:[#allocation2] sm:$0x3f]
      %v5364 = vrot.slane %v5362, 2
      %5365 = vrot.lane.b32.xlu0 %v5364, 123
      %v5366 = vpop.permute.xlu0 %5365
      %5368 = vst.msk [vmem:[#allocation3 + $0x18] sm:$0xc0] %vm2044, %v5366
      %5369 = vst.msk [vmem:[#allocation3 + $0x20] sm:$0xf] %vm2509, %v5366
      %v5370 = vld [vmem:[#allocation2] sm:$0x3f]
      %v5372 = vrot.slane %v5370, 4
      %5373 = vrot.lane.b32.xlu0 %v5372, 122
      %v5374 = vpop.permute.xlu0 %5373
      %5376 = vst.msk [vmem:[#allocation3 + $0x20] sm:$0xf0] %vm4775, %v5374
      %5377 = vst.msk [vmem:[#allocation3 + $0x28] sm:$0x3] %vm2020, %v5374
      %v5378 = vld [vmem:[#allocation2] sm:$0x3f]
      %v5380 = vrot.slane %v5378, 6
      %5381 = vrot.lane.b32.xlu0 %v5380, 121
      %v5382 = vpop.permute.xlu0 %5381
      %5384 = vst.msk [vmem:[#allocation3 + $0x28] sm:$0xfc] %vm5354, %v5382
      %v5385 = vld [vmem:[#allocation2] sm:$0x3f]
      %5387 = vrot.lane.b32.xlu0 %v5385, 120
      %v5388 = vpop.permute.xlu0 %5387
      %5390 = vst.msk [vmem:[#allocation3 + $0x30] sm:$0x3f] %vm5330, %v5388
      %v5391 = vld [vmem:[#allocation3] sm:$0xff]
      %v5392 = vld [vmem:[#allocation3 + $0x8] sm:$0xff]
      %v5393 = vld [vmem:[#allocation3 + $0x10] sm:$0xff]
      %v5394 = vld [vmem:[#allocation3 + $0x18] sm:$0xff]
      %v5395 = vld [vmem:[#allocation3 + $0x20] sm:$0xff]
      %v5396 = vld [vmem:[#allocation3 + $0x28] sm:$0xff]
      %v5397 = vld [vmem:[#allocation3 + $0x30] sm:$0x3f]
      %v5398 = vld [vmem:[%s89] sm:$0x3]
      %vm5399 = vcmask 883712
      %v5401 = vsel %vm5399, %v5398, 0
      %vm5403 = vcmask 1045504
      %v5405 = vsel %vm5403, %v5397, 0
      %5407 = vmatprep.subr.bf16.mxu0 0
      %5408 = vmatpush1.bf16.msra.mxu0 %v5391
      %5409 = vmatprep.subr.bf16.mxu0 0
      %5410 = vmatpush1.bf16.msra.mxu0 %v5392
      %5411 = vmatprep.subr.bf16.mxu0 0
      %5412 = vmatpush1.bf16.msra.mxu0 %v5393
      %5413 = vmatprep.subr.bf16.mxu0 0
      %5414 = vmatpush1.bf16.msra.mxu0 %v5394
      %5415 = vmatprep.subr.bf16.mxu0 0
      %5416 = vmatpush1.bf16.msra.mxu0 %v5395
      %5417 = vmatprep.subr.bf16.mxu0 0
      %5418 = vmatpush1.bf16.msra.mxu0 %v5396
      %5419 = vmatprep.subr.bf16.mxu0 0
      %5420 = vmatpush1.bf16.msra.mxu0 %v5405
      %5421 = vmatprep.subr.bf16.mxu0 0
      %5422 = vmatpush1.bf16.msra.mxu0 0
      %5423 = vmatprep.subr.bf16.mxu0 0
      %5424 = vmatpush1.bf16.msra.mxu0 0
      %5425 = vmatprep.subr.bf16.mxu0 0
      %5426 = vmatpush1.bf16.msra.mxu0 0
      %5427 = vmatprep.subr.bf16.mxu0 0
      %5428 = vmatpush1.bf16.msra.mxu0 0
      %5429 = vmatprep.subr.bf16.mxu0 0
      %5430 = vmatpush1.bf16.msra.mxu0 0
      %5431 = vmatprep.subr.bf16.mxu0 0
      %5432 = vmatpush1.bf16.msra.mxu0 0
      %5433 = vmatprep.subr.bf16.mxu0 0
      %5434 = vmatpush1.bf16.msra.mxu0 0
      %5435 = vmatprep.subr.bf16.mxu0 0
      %5436 = vmatpush1.bf16.msra.mxu0 0
      %5437 = vmatprep.subr.bf16.mxu0 0
      %5438 = vmatpush1.bf16.msra.mxu0 0
      %5439 = vmatprep.mubr.bf16.mxu0 0
      %5440 = vmatmul.mubr.bf16.gmra.mrb[0].mxu0 %v5401
      %v5441 = vpop.f32.mrb[0].mxu0
      %v5442 = vadd.f32 0.0, %v5441
      %v5443 = vpop.f32.mrb[0].mxu0
      %v5444 = vpop.f32.mrb[0].mxu0
      %v5445 = vpop.f32.mrb[0].mxu0
      %5446 = vdwg.mxu0
      %v5447 = vld [vmem:[%s91] sm:$0xf]
      %5449 = vset.pattern.permute.xlu0 0
      %5450 = vperm.xlu0 %5449, %v5447
      %v5451 = vpop.permute.xlu0 %5450
      %v5453 = vmul.f32 %v5442, %v5451
      %v5454 = vld [vmem:[%s93] sm:$0xf]
      %5456 = vset.pattern.permute.xlu0 0
      %5457 = vperm.xlu0 %5456, %v5454
      %v5458 = vpop.permute.xlu0 %5457
      %v5460 = vadd.f32 %v5453, %v5458
      %v5461 = vmax.f32 %v5460, 0.0
      %5462 = vst.msk [vmem:[#allocation2] sm:$0x3] %vm2010, 0
      %v5463 = vpack.c.bf16 %v5461, %v5461
      %5465 = vrot.lane.b32.xlu0 %v5463, 4
      %v5466 = vpop.permute.xlu0 %5465
      %5468 = vst.msk [vmem:[#allocation2] sm:$0x3] %vm2017, %v5466
      %v5469 = vld [vmem:[#allocation2] sm:$0x3]
      %5470 = vst.msk [vmem:[#allocation3] sm:$0x3] %vm2020, %v5469
      %v5471 = vld [vmem:[#allocation2] sm:$0x3]
      %v5473 = vrot.slane %v5471, 6
      %5474 = vrot.lane.b32.xlu0 %v5473, 127
      %v5475 = vpop.permute.xlu0 %5474
      %5477 = vst.msk [vmem:[#allocation3] sm:$0xc] %vm2028, %v5475
      %v5478 = vld [vmem:[#allocation2] sm:$0x3]
      %v5480 = vrot.slane %v5478, 4
      %5481 = vrot.lane.b32.xlu0 %v5480, 126
      %v5482 = vpop.permute.xlu0 %5481
      %5484 = vst.msk [vmem:[#allocation3] sm:$0x30] %vm2036, %v5482
      %v5485 = vld [vmem:[#allocation2] sm:$0x3]
      %v5487 = vrot.slane %v5485, 2
      %5488 = vrot.lane.b32.xlu0 %v5487, 125
      %v5489 = vpop.permute.xlu0 %5488
      %5491 = vst.msk [vmem:[#allocation3] sm:$0xc0] %vm2044, %v5489
      %v5492 = vld [vmem:[#allocation2] sm:$0x3]
      %5494 = vrot.lane.b32.xlu0 %v5492, 124
      %v5495 = vpop.permute.xlu0 %5494
      %5497 = vst.msk [vmem:[#allocation3 + $0x8] sm:$0x3] %vm2020, %v5495
      %v5498 = vld [vmem:[#allocation2] sm:$0x3]
      %v5500 = vrot.slane %v5498, 6
      %5501 = vrot.lane.b32.xlu0 %v5500, 123
      %v5502 = vpop.permute.xlu0 %5501
      %5504 = vst.msk [vmem:[#allocation3 + $0x8] sm:$0xc] %vm2028, %v5502
      %v5505 = vld [vmem:[#allocation2] sm:$0x3]
      %v5507 = vrot.slane %v5505, 4
      %5508 = vrot.lane.b32.xlu0 %v5507, 122
      %v5509 = vpop.permute.xlu0 %5508
      %5511 = vst.msk [vmem:[#allocation3 + $0x8] sm:$0x30] %vm2036, %v5509
      %v5512 = vld [vmem:[#allocation2] sm:$0x3]
      %v5514 = vrot.slane %v5512, 2
      %5515 = vrot.lane.b32.xlu0 %v5514, 121
      %v5516 = vpop.permute.xlu0 %5515
      %5518 = vst.msk [vmem:[#allocation3 + $0x8] sm:$0xc0] %vm2044, %v5516
      %v5519 = vld [vmem:[#allocation2] sm:$0x3]
      %5521 = vrot.lane.b32.xlu0 %v5519, 120
      %v5522 = vpop.permute.xlu0 %5521
      %5524 = vst.msk [vmem:[#allocation3 + $0x10] sm:$0x3] %vm2020, %v5522
      %v5525 = vld [vmem:[#allocation3] sm:$0xff]
      %v5526 = vld [vmem:[#allocation3 + $0x8] sm:$0xff]
      %v5527 = vld [vmem:[#allocation3 + $0x10] sm:$0x3]
      %v5528 = vld [vmem:[%s95] sm:$0x3]
      %v5530 = vsel %vm2083, %v5528, 0
      %v5533 = vsel %vm2087, %v5527, 0
      %5535 = vmatprep.subr.bf16.mxu0 0
      %5536 = vmatpush1.bf16.msra.mxu0 %v5525
      %5537 = vmatprep.subr.bf16.mxu0 0
      %5538 = vmatpush1.bf16.msra.mxu0 %v5526
      %5539 = vmatprep.subr.bf16.mxu0 0
      %5540 = vmatpush1.bf16.msra.mxu0 %v5533
      %5541 = vmatprep.subr.bf16.mxu0 0
      %5542 = vmatpush1.bf16.msra.mxu0 0
      %5543 = vmatprep.subr.bf16.mxu0 0
      %5544 = vmatpush1.bf16.msra.mxu0 0
      %5545 = vmatprep.subr.bf16.mxu0 0
      %5546 = vmatpush1.bf16.msra.mxu0 0
      %5547 = vmatprep.subr.bf16.mxu0 0
      %5548 = vmatpush1.bf16.msra.mxu0 0
      %5549 = vmatprep.subr.bf16.mxu0 0
      %5550 = vmatpush1.bf16.msra.mxu0 0
      %5551 = vmatprep.subr.bf16.mxu0 0
      %5552 = vmatpush1.bf16.msra.mxu0 0
      %5553 = vmatprep.subr.bf16.mxu0 0
      %5554 = vmatpush1.bf16.msra.mxu0 0
      %5555 = vmatprep.subr.bf16.mxu0 0
      %5556 = vmatpush1.bf16.msra.mxu0 0
      %5557 = vmatprep.subr.bf16.mxu0 0
      %5558 = vmatpush1.bf16.msra.mxu0 0
      %5559 = vmatprep.subr.bf16.mxu0 0
      %5560 = vmatpush1.bf16.msra.mxu0 0
      %5561 = vmatprep.subr.bf16.mxu0 0
      %5562 = vmatpush1.bf16.msra.mxu0 0
      %5563 = vmatprep.subr.bf16.mxu0 0
      %5564 = vmatpush1.bf16.msra.mxu0 0
      %5565 = vmatprep.subr.bf16.mxu0 0
      %5566 = vmatpush1.bf16.msra.mxu0 0
      %5567 = vmatprep.mubr.bf16.mxu0 0
      %5568 = vmatmul.mubr.bf16.gmra.mrb[0].mxu0 %v5530
      %v5569 = vpop.f32.mrb[0].mxu0
      %v5570 = vadd.f32 0.0, %v5569
      %v5571 = vpop.f32.mrb[0].mxu0
      %v5572 = vpop.f32.mrb[0].mxu0
      %v5573 = vpop.f32.mrb[0].mxu0
      %5574 = vdwg.mxu0
      %v5575 = vld [vmem:[%s97] sm:$0xf]
      %5577 = vset.pattern.permute.xlu0 0
      %5578 = vperm.xlu0 %5577, %v5575
      %v5579 = vpop.permute.xlu0 %5578
      %v5581 = vmul.f32 %v5570, %v5579
      %v5582 = vld [vmem:[%s99] sm:$0xf]
      %5584 = vset.pattern.permute.xlu0 0
      %5585 = vperm.xlu0 %5584, %v5582
      %v5586 = vpop.permute.xlu0 %5585
      %v5588 = vadd.f32 %v5581, %v5586
      %v5589 = vmax.f32 %v5588, 0.0
      %5590 = vst.msk [vmem:[#allocation2] sm:$0x3] %vm2010, 0
      %v5591 = vpack.c.bf16 %v5589, %v5589
      %5593 = vrot.lane.b32.xlu0 %v5591, 4
      %v5594 = vpop.permute.xlu0 %5593
      %5596 = vst.msk [vmem:[#allocation2] sm:$0x3] %vm2017, %v5594
      %v5597 = vld [vmem:[#allocation2] sm:$0x3]
      %5598 = vst.msk [vmem:[#allocation3] sm:$0x3] %vm2020, %v5597
      %v5599 = vld [vmem:[#allocation2] sm:$0x3]
      %v5601 = vrot.slane %v5599, 6
      %5602 = vrot.lane.b32.xlu0 %v5601, 127
      %v5603 = vpop.permute.xlu0 %5602
      %5605 = vst.msk [vmem:[#allocation3] sm:$0xc] %vm2028, %v5603
      %v5606 = vld [vmem:[#allocation2] sm:$0x3]
      %v5608 = vrot.slane %v5606, 4
      %5609 = vrot.lane.b32.xlu0 %v5608, 126
      %v5610 = vpop.permute.xlu0 %5609
      %5612 = vst.msk [vmem:[#allocation3] sm:$0x30] %vm2036, %v5610
      %v5613 = vld [vmem:[#allocation2] sm:$0x3]
      %v5615 = vrot.slane %v5613, 2
      %5616 = vrot.lane.b32.xlu0 %v5615, 125
      %v5617 = vpop.permute.xlu0 %5616
      %5619 = vst.msk [vmem:[#allocation3] sm:$0xc0] %vm2044, %v5617
      %v5620 = vld [vmem:[#allocation2] sm:$0x3]
      %5622 = vrot.lane.b32.xlu0 %v5620, 124
      %v5623 = vpop.permute.xlu0 %5622
      %5625 = vst.msk [vmem:[#allocation3 + $0x8] sm:$0x3] %vm2020, %v5623
      %v5626 = vld [vmem:[#allocation2] sm:$0x3]
      %v5628 = vrot.slane %v5626, 6
      %5629 = vrot.lane.b32.xlu0 %v5628, 123
      %v5630 = vpop.permute.xlu0 %5629
      %5632 = vst.msk [vmem:[#allocation3 + $0x8] sm:$0xc] %vm2028, %v5630
      %v5633 = vld [vmem:[#allocation2] sm:$0x3]
      %v5635 = vrot.slane %v5633, 4
      %5636 = vrot.lane.b32.xlu0 %v5635, 122
      %v5637 = vpop.permute.xlu0 %5636
      %5639 = vst.msk [vmem:[#allocation3 + $0x8] sm:$0x30] %vm2036, %v5637
      %v5640 = vld [vmem:[#allocation2] sm:$0x3]
      %v5642 = vrot.slane %v5640, 2
      %5643 = vrot.lane.b32.xlu0 %v5642, 121
      %v5644 = vpop.permute.xlu0 %5643
      %5646 = vst.msk [vmem:[#allocation3 + $0x8] sm:$0xc0] %vm2044, %v5644
      %v5647 = vld [vmem:[#allocation2] sm:$0x3]
      %5649 = vrot.lane.b32.xlu0 %v5647, 120
      %v5650 = vpop.permute.xlu0 %5649
      %5652 = vst.msk [vmem:[#allocation3 + $0x10] sm:$0x3] %vm2020, %v5650
      %v5653 = vld [vmem:[#allocation3] sm:$0xff]
      %v5654 = vld [vmem:[#allocation3 + $0x8] sm:$0xff]
      %v5655 = vld [vmem:[#allocation3 + $0x10] sm:$0x3]
      %v5656 = vld [vmem:[%s101] sm:$0x3]
      %v5658 = vsel %vm2083, %v5656, 0
      %v5661 = vsel %vm2087, %v5655, 0
      %5663 = vmatprep.subr.bf16.mxu0 0
      %5664 = vmatpush1.bf16.msra.mxu0 %v5653
      %5665 = vmatprep.subr.bf16.mxu0 0
      %5666 = vmatpush1.bf16.msra.mxu0 %v5654
      %5667 = vmatprep.subr.bf16.mxu0 0
      %5668 = vmatpush1.bf16.msra.mxu0 %v5661
      %5669 = vmatprep.subr.bf16.mxu0 0
      %5670 = vmatpush1.bf16.msra.mxu0 0
      %5671 = vmatprep.subr.bf16.mxu0 0
      %5672 = vmatpush1.bf16.msra.mxu0 0
      %5673 = vmatprep.subr.bf16.mxu0 0
      %5674 = vmatpush1.bf16.msra.mxu0 0
      %5675 = vmatprep.subr.bf16.mxu0 0
      %5676 = vmatpush1.bf16.msra.mxu0 0
      %5677 = vmatprep.subr.bf16.mxu0 0
      %5678 = vmatpush1.bf16.msra.mxu0 0
      %5679 = vmatprep.subr.bf16.mxu0 0
      %5680 = vmatpush1.bf16.msra.mxu0 0
      %5681 = vmatprep.subr.bf16.mxu0 0
      %5682 = vmatpush1.bf16.msra.mxu0 0
      %5683 = vmatprep.subr.bf16.mxu0 0
      %5684 = vmatpush1.bf16.msra.mxu0 0
      %5685 = vmatprep.subr.bf16.mxu0 0
      %5686 = vmatpush1.bf16.msra.mxu0 0
      %5687 = vmatprep.subr.bf16.mxu0 0
      %5688 = vmatpush1.bf16.msra.mxu0 0
      %5689 = vmatprep.subr.bf16.mxu0 0
      %5690 = vmatpush1.bf16.msra.mxu0 0
      %5691 = vmatprep.subr.bf16.mxu0 0
      %5692 = vmatpush1.bf16.msra.mxu0 0
      %5693 = vmatprep.subr.bf16.mxu0 0
      %5694 = vmatpush1.bf16.msra.mxu0 0
      %5695 = vmatprep.mubr.bf16.mxu0 0
      %5696 = vmatmul.mubr.bf16.gmra.mrb[0].mxu0 %v5658
      %v5697 = vpop.f32.mrb[0].mxu0
      %v5698 = vadd.f32 0.0, %v5697
      %v5699 = vpop.f32.mrb[0].mxu0
      %v5700 = vpop.f32.mrb[0].mxu0
      %v5701 = vpop.f32.mrb[0].mxu0
      %5702 = vdwg.mxu0
      %v5703 = vld [vmem:[%s103] sm:$0x7]
      %5705 = vset.pattern.permute.xlu0 0
      %5706 = vperm.xlu0 %5705, %v5703
      %v5707 = vpop.permute.xlu0 %5706
      %v5709 = vmul.f32 %v5698, %v5707
      %v5710 = vld [vmem:[%s105] sm:$0x7]
      %5712 = vset.pattern.permute.xlu0 0
      %5713 = vperm.xlu0 %5712, %v5710
      %v5714 = vpop.permute.xlu0 %5713
      %v5716 = vadd.f32 %v5709, %v5714
      %v5717 = vmax.f32 %v5716, 0.0
      %vm5718 = vcmask 189440
      %vm5719 = vmand %vm5718, %vm1862
      %v5720 = vld [vmem:[#allocation2] sm:$0x3]
      %v5721 = vsel %vm5719, 0, %v5720
      %5722 = vst [vmem:[#allocation2] sm:$0x3] %v5721
      %v5723 = vpack.c.bf16 %v5717, %v5717
      %5725 = vrot.lane.b32.xlu0 %v5723, 4
      %v5726 = vpop.permute.xlu0 %5725
      %vm5728 = vcmask 156704
      %vm5729 = vmand %vm5728, %vm1862
      %v5730 = vld [vmem:[#allocation2] sm:$0x3]
      %v5731 = vsel %vm5729, %v5726, %v5730
      %5732 = vst [vmem:[#allocation2] sm:$0x3] %v5731
      %v5733 = vld [vmem:[#allocation2] sm:$0x3]
      %vm5734 = vcmask 123904
      %vm5735 = vmand %vm5734, %vm1862
      %v5736 = vld [vmem:[#allocation3] sm:$0x3]
      %v5737 = vsel %vm5735, %v5733, %v5736
      %5738 = vst [vmem:[#allocation3] sm:$0x3] %v5737
      %v5739 = vld [vmem:[#allocation2] sm:$0x3]
      %v5741 = vshrl.u32 %v5739, 16
      %v5743 = vrot.slane %v5741, 6
      %v5744 = vshll.u32 %v5739, 16
      %v5746 = vrot.slane %v5744, 7
      %v5747 = vor.u32 %v5743, %v5746
      %5748 = vrot.lane.b32.xlu0 %v5747, 127
      %v5749 = vpop.permute.xlu0 %5748
      %vm5751 = vcmask 124929
      %vm5752 = vmand %vm5751, %vm1875
      %v5753 = vld [vmem:[#allocation3] sm:$0x6]
      %v5754 = vsel %vm5752, %v5749, %v5753
      %5755 = vst [vmem:[#allocation3] sm:$0x6] %v5754
      %v5756 = vld [vmem:[#allocation2] sm:$0x3]
      %v5758 = vrot.slane %v5756, 5
      %5759 = vrot.lane.b32.xlu0 %v5758, 126
      %v5760 = vpop.permute.xlu0 %5759
      %vm5762 = vcmask 126979
      %vm5763 = vmand %vm5762, %vm1937
      %v5764 = vld [vmem:[#allocation3] sm:$0x18]
      %v5765 = vsel %vm5763, %v5760, %v5764
      %5766 = vst [vmem:[#allocation3] sm:$0x18] %v5765
      %v5767 = vld [vmem:[#allocation2] sm:$0x3]
      %v5769 = vshrl.u32 %v5767, 16
      %v5771 = vrot.slane %v5769, 3
      %v5772 = vshll.u32 %v5767, 16
      %v5774 = vrot.slane %v5772, 4
      %v5775 = vor.u32 %v5771, %v5774
      %5776 = vrot.lane.b32.xlu0 %v5775, 125
      %v5777 = vpop.permute.xlu0 %5776
      %vm5779 = vcmask 128004
      %vm5780 = vsmask.f32 7954
      %vm5781 = vmand %vm5779, %vm5780
      %v5782 = vld [vmem:[#allocation3] sm:$0x30]
      %v5783 = vsel %vm5781, %v5777, %v5782
      %5784 = vst [vmem:[#allocation3] sm:$0x30] %v5783
      %v5785 = vld [vmem:[#allocation2] sm:$0x3]
      %v5787 = vrot.slane %v5785, 2
      %5788 = vrot.lane.b32.xlu0 %v5787, 124
      %v5789 = vpop.permute.xlu0 %5788
      %vm5791 = vcmask 130054
      %vm5792 = vsmask.f32 7424
      %vm5793 = vmand %vm5791, %vm5792
      %v5794 = vld [vmem:[#allocation3] sm:$0xc0]
      %v5795 = vsel %vm5793, %v5789, %v5794
      %5796 = vst [vmem:[#allocation3] sm:$0xc0] %v5795
      %v5797 = vld [vmem:[#allocation2] sm:$0x3]
      %v5799 = vshll.u32 %v5797, 16
      %v5801 = vrot.slane %v5799, 1
      %v5802 = vshrl.u32 %v5797, 16
      %v5804 = vor.u32 %v5802, %v5801
      %5805 = vrot.lane.b32.xlu0 %v5801, 123
      %v5806 = vpop.permute.xlu0 %5805
      %5807 = vrot.lane.b32.xlu0 %v5804, 123
      %v5808 = vpop.permute.xlu0 %5807
      %vm5811 = vcmask 130055
      %vm5812 = vsmask.f32 7966
      %vm5813 = vmand %vm5811, %vm5812
      %v5814 = vld [vmem:[#allocation3] sm:$0x80]
      %v5815 = vsel %vm5813, %v5806, %v5814
      %5816 = vst [vmem:[#allocation3] sm:$0x80] %v5815
      %vm5817 = vcmask 122880
      %5818 = vst.msk [vmem:[#allocation3 + $0x8] sm:$0x1] %vm5817, %v5808
      %v5819 = vld [vmem:[#allocation2] sm:$0x3]
      %v5821 = vrot.slane %v5819, 7
      %5822 = vrot.lane.b32.xlu0 %v5821, 122
      %v5823 = vpop.permute.xlu0 %5822
      %vm5825 = vmand %vm5751, %vm1887
      %v5826 = vld [vmem:[#allocation3 + $0x8] sm:$0x6]
      %v5827 = vsel %vm5825, %v5823, %v5826
      %5828 = vst [vmem:[#allocation3 + $0x8] sm:$0x6] %v5827
      %v5829 = vld [vmem:[#allocation2] sm:$0x3]
      %v5831 = vshrl.u32 %v5829, 16
      %v5833 = vrot.slane %v5831, 5
      %v5834 = vshll.u32 %v5829, 16
      %v5836 = vrot.slane %v5834, 6
      %v5837 = vor.u32 %v5833, %v5836
      %5838 = vrot.lane.b32.xlu0 %v5837, 121
      %v5839 = vpop.permute.xlu0 %5838
      %vm5841 = vcmask 125954
      %vm5842 = vmand %vm5841, %vm1900
      %v5843 = vld [vmem:[#allocation3 + $0x8] sm:$0xc]
      %v5844 = vsel %vm5842, %v5839, %v5843
      %5845 = vst [vmem:[#allocation3 + $0x8] sm:$0xc] %v5844
      %v5846 = vld [vmem:[#allocation2] sm:$0x3]
      %v5848 = vrot.slane %v5846, 4
      %5849 = vrot.lane.b32.xlu0 %v5848, 120
      %v5850 = vpop.permute.xlu0 %5849
      %vm5852 = vsmask.f32 5376
      %vm5853 = vmand %vm5779, %vm5852
      %v5854 = vld [vmem:[#allocation3 + $0x8] sm:$0x30]
      %v5855 = vsel %vm5853, %v5850, %v5854
      %5856 = vst [vmem:[#allocation3 + $0x8] sm:$0x30] %v5855
      %v5857 = vld [vmem:[#allocation3] sm:$0xff]
      %v5858 = vld [vmem:[#allocation3 + $0x8] sm:$0x3f]
      %v5859 = vld [vmem:[%s107] sm:$0x3]
      %vm5860 = vcmask 220160
      %v5862 = vsel %vm5860, %v5859, 0
      %v5864 = vsel %vm1949, 4294967295, 65535
      %v5865 = vsel %vm5403, %v5864, 0
      %v5867 = vand.u32 %v5858, %v5865
      %5869 = vmatprep.subr.bf16.mxu0 0
      %5870 = vmatpush1.bf16.msra.mxu0 %v5857
      %5871 = vmatprep.subr.bf16.mxu0 0
      %5872 = vmatpush1.bf16.msra.mxu0 %v5867
      %5873 = vmatprep.subr.bf16.mxu0 0
      %5874 = vmatpush1.bf16.msra.mxu0 0
      %5875 = vmatprep.subr.bf16.mxu0 0
      %5876 = vmatpush1.bf16.msra.mxu0 0
      %5877 = vmatprep.subr.bf16.mxu0 0
      %5878 = vmatpush1.bf16.msra.mxu0 0
      %5879 = vmatprep.subr.bf16.mxu0 0
      %5880 = vmatpush1.bf16.msra.mxu0 0
      %5881 = vmatprep.subr.bf16.mxu0 0
      %5882 = vmatpush1.bf16.msra.mxu0 0
      %5883 = vmatprep.subr.bf16.mxu0 0
      %5884 = vmatpush1.bf16.msra.mxu0 0
      %5885 = vmatprep.subr.bf16.mxu0 0
      %5886 = vmatpush1.bf16.msra.mxu0 0
      %5887 = vmatprep.subr.bf16.mxu0 0
      %5888 = vmatpush1.bf16.msra.mxu0 0
      %5889 = vmatprep.subr.bf16.mxu0 0
      %5890 = vmatpush1.bf16.msra.mxu0 0
      %5891 = vmatprep.subr.bf16.mxu0 0
      %5892 = vmatpush1.bf16.msra.mxu0 0
      %5893 = vmatprep.subr.bf16.mxu0 0
      %5894 = vmatpush1.bf16.msra.mxu0 0
      %5895 = vmatprep.subr.bf16.mxu0 0
      %5896 = vmatpush1.bf16.msra.mxu0 0
      %5897 = vmatprep.subr.bf16.mxu0 0
      %5898 = vmatpush1.bf16.msra.mxu0 0
      %5899 = vmatprep.subr.bf16.mxu0 0
      %5900 = vmatpush1.bf16.msra.mxu0 0
      %5901 = vmatprep.mubr.bf16.mxu0 0
      %5902 = vmatmul.mubr.bf16.gmra.mrb[0].mxu0 %v5862
      %v5903 = vpop.f32.mrb[0].mxu0
      %v5904 = vadd.f32 0.0, %v5903
      %v5905 = vpop.f32.mrb[0].mxu0
      %v5906 = vpop.f32.mrb[0].mxu0
      %v5907 = vpop.f32.mrb[0].mxu0
      %5908 = vdwg.mxu0
      %v5909 = vld [vmem:[%s109] sm:$0x7]
      %5911 = vset.pattern.permute.xlu0 0
      %5912 = vperm.xlu0 %5911, %v5909
      %v5913 = vpop.permute.xlu0 %5912
      %v5915 = vmul.f32 %v5904, %v5913
      %v5916 = vld [vmem:[%s111] sm:$0x7]
      %5918 = vset.pattern.permute.xlu0 0
      %5919 = vperm.xlu0 %5918, %v5916
      %v5920 = vpop.permute.xlu0 %5919
      %v5922 = vadd.f32 %v5915, %v5920
      %v5923 = vmax.f32 %v5922, 0.0
      %vm5924 = vcmask 124928
      %5925 = vst.msk [vmem:[%s1818] sm:$0x7] %vm5924, %v5923
      %p5926 = scmp.lt.s32.totalorder %s136, 1
      %s5927 = scalar_select %p5926, %s136, 1
      %s5928 = smul.addr %s5927, 4
      %s5929 = scalar_lea.vmem %s125, %s5928
      // Predicated region
      $region269: #{unet_forward_packed.1} parent=267 // pred_check
        %p5930 = pneg %p1461
      $region270: #{unet_forward_packed.1} parent=267 // pred_check_branch
        %5932 = sbr.rel (%p5930) target = $region272
      $region271: #{unet_forward_packed.1} parent=267 // pred_region
        _
      $region272: #{unet_forward_packed.1} parent=267 // pred_fallthru
        _
    $region268: #{unet_forward_packed.1} parent=5 // pred_fallthru
      _
    %p5933 = scmp.le.s32.totalorder 2, %s131
    // Predicated region
    $region273: #{unet_forward_packed.1} parent=5 // pred_check
      %p5934 = pneg %p5933
    $region274: #{unet_forward_packed.1} parent=5 // pred_check_branch
      %5936 = sbr.rel (%p5934) target = $region276
    $region275: #{unet_forward_packed.1} parent=5 // pred_region
      %s5937 = ssub.s32 %s131, 2
      // Predicated region
      $region277: #{unet_forward_packed.1} parent=275 // pred_check
        %p5938 = pneg %p1467
      $region278: #{unet_forward_packed.1} parent=275 // pred_check_branch
        %5940 = sbr.rel (%p5938) target = $region280
      $region279: #{unet_forward_packed.1} parent=275 // pred_region
        %p5941 = scmp.lt.s32.totalorder %s137, 1
        %s5942 = scalar_select %p5941, %s137, 1
        %s5943 = smul.addr %s5942, 4
        %s5944 = scalar_lea.vmem %s125, %s5943
      $region280: #{unet_forward_packed.1} parent=275 // pred_fallthru
        _
    $region276: #{unet_forward_packed.1} parent=5 // pred_fallthru
      _
  $region6: #{unet_forward_packed.1} parent=0 // loop_footer
    %s135 = sadd.s32 1, %s131
  $region7: #{unet_forward_packed.1} parent=0 // loop_footer_branch
    %130 = sbr.rel target = $region3
  $region8: #{unet_forward_packed.1} parent=0 // loop_exit
    _

</llo_original>
